<compile_context>
chip_gen: v6e
topology: v6e:2x2x1
jax: 0.10.0
libtpu: 0.0.40
codegen_flags: <defaults>
</compile_context>

<pallas_src>
import functools
import math

import jax
import jax.numpy as jnp
from jax.experimental import pallas as pl
from jax.experimental.pallas import tpu as pltpu  # noqa: F401  (TPU backend)

# ------------------------- tiny T5 config -------------------------
VOCAB = 64
D_MODEL = 32
N_HEADS = 4
D_KV = 8                      # per-head dim; N_HEADS * D_KV == D_MODEL
INNER = N_HEADS * D_KV
D_FF = 64
N_LAYERS = 1
NUM_BUCKETS = 32
MAX_DISTANCE = 128
LN_EPS = 1e-6
NEG_INF = -1e9

D_PAD = 128                   # lane-dense padded hidden width
FF_PAD = 128                  # lane-dense padded FFN width
VOCAB_PAD = 128               # lane-dense padded logits width

BATCH = 2
SEQ = 8


# ------------------------- one-time padding helpers -------------------------
def _pad2(a, rows, cols):
    r, c = a.shape
    return jnp.pad(a.astype(jnp.float32), ((0, rows - r), (0, cols - c)))


def _pad_row(v):
    return jnp.pad(v.astype(jnp.float32), (0, D_PAD - v.shape[0]))


# ------------------------- in-kernel helpers -------------------------
def _rms(x, w):
    # T5LayerNorm: no mean subtraction, no bias.  Padding lanes are exactly
    # zero (all padded weight rows/cols are zero and residuals preserve it),
    # so summing over 128 lanes and dividing by D_MODEL is exact.
    var = jnp.sum(x * x, axis=-1, keepdims=True) * (1.0 / D_MODEL)
    return x * jax.lax.rsqrt(var + LN_EPS) * w


def _mha(q, k, v, bias, wo_ref, B, Sq, Sk):
    """Multi-head attention on lane-dense slabs.

    q: (B*Sq, D_PAD), k/v: (B*Sk, D_PAD); head h lives in lanes
    [h*D_KV, (h+1)*D_KV), lanes [INNER, D_PAD) are zero.
    bias: (H, Sq, Sk) or None.  wo_ref: (INNER, D_PAD) padded output proj.
    T5 attention has NO 1/sqrt(d) scale.  Returns (B*Sq, D_PAD).
    """
    ctx_rows = []
    for b in range(B):
        heads = []
        for h in range(N_HEADS):
            c = h * D_KV
            qh = q[b * Sq:(b + 1) * Sq, c:c + D_KV]
            kh = k[b * Sk:(b + 1) * Sk, c:c + D_KV]
            vh = v[b * Sk:(b + 1) * Sk, c:c + D_KV]
            # contract last dims directly -> no in-kernel transpose.
            s = jax.lax.dot_general(qh, kh, (((1,), (1,)), ((), ())),
                                    preferred_element_type=jnp.float32)
            if bias is not None:
                s = s + bias[h]
            m = jnp.max(s, axis=-1, keepdims=True)
            p = jnp.exp(s - m)
            p = p / jnp.sum(p, axis=-1, keepdims=True)   # exact softmax denom
            heads.append(jnp.dot(p, vh, preferred_element_type=jnp.float32))
        ctx_rows.append(jnp.concatenate(heads, axis=-1))          # (Sq, INNER)
    ctx = jnp.concatenate(ctx_rows, axis=0) if B > 1 else ctx_rows[0]
    # single output projection for all heads / batches.
    return jnp.dot(ctx, wo_ref[...], preferred_element_type=jnp.float32)


# ------------------------- Pallas kernels (one per layer) -------------------------
def _enc_layer_kernel(B, S, apply_final_ln,
                      x_ref, ln_ref, wqkv_ref, wo_ref, wi_ref, wo2_ref,
                      bias_ref, o_ref):
    x = x_ref[...]                                       # (B*S, D_PAD)
    ln = ln_ref[...]                                     # (3, D_PAD)
    # --- self-attention block ---
    n = _rms(x, ln[0:1, :])
    qkv = jnp.dot(n, wqkv_ref[...], preferred_element_type=jnp.float32)  # (B*S, 3*D_PAD)
    attn = _mha(qkv[:, 0:D_PAD], qkv[:, D_PAD:2 * D_PAD], qkv[:, 2 * D_PAD:3 * D_PAD],
                bias_ref[...], wo_ref, B, S, S)
    h1 = x + attn
    # --- ReLU feed-forward block ---
    n2 = _rms(h1, ln[1:2, :])
    ff = jnp.maximum(jnp.dot(n2, wi_ref[...], preferred_element_type=jnp.float32), 0.0)
    out = h1 + jnp.dot(ff, wo2_ref[...], preferred_element_type=jnp.float32)
    if apply_final_ln:                                   # fused encoder-final RMSNorm
        out = _rms(out, ln[2:3, :])
    o_ref[...] = out


def _dec_layer_kernel(B, S, Se, is_last,
                      x_ref, enc_ref, ln_ref, wqkv_s_ref, wo_s_ref,
                      wq_c_ref, wkv_c_ref, wo_c_ref, wi_ref, wo2_ref,
                      sbias_ref, emb_t_ref, o_ref):
    x = x_ref[...]
    enc = enc_ref[...]
    ln = ln_ref[...]                                     # (4, D_PAD)
    # --- causal self-attention (relative bias + causal mask baked into sbias) ---
    n = _rms(x, ln[0:1, :])
    qkv = jnp.dot(n, wqkv_s_ref[...], preferred_element_type=jnp.float32)
    h1 = x + _mha(qkv[:, 0:D_PAD], qkv[:, D_PAD:2 * D_PAD], qkv[:, 2 * D_PAD:3 * D_PAD],
                  sbias_ref[...], wo_s_ref, B, S, S)
    # --- cross-attention over encoder output (no position bias in T5) ---
    n2 = _rms(h1, ln[1:2, :])
    q = jnp.dot(n2, wq_c_ref[...], preferred_element_type=jnp.float32)     # (B*S, D_PAD)
    kv = jnp.dot(enc, wkv_c_ref[...], preferred_element_type=jnp.float32)  # (B*Se, 2*D_PAD)
    h2 = h1 + _mha(q, kv[:, 0:D_PAD], kv[:, D_PAD:2 * D_PAD], None, wo_c_ref, B, S, Se)
    # --- ReLU feed-forward block ---
    n3 = _rms(h2, ln[2:3, :])
    ff = jnp.maximum(jnp.dot(n3, wi_ref[...], preferred_element_type=jnp.float32), 0.0)
    out = h2 + jnp.dot(ff, wo2_ref[...], preferred_element_type=jnp.float32)
    if is_last:
        # fused decoder-final RMSNorm + tied lm_head (scale by d_model**-0.5).
        nf = _rms(out, ln[3:4, :])
        out = (D_MODEL ** -0.5) * jnp.dot(nf, emb_t_ref[...],
                                          preferred_element_type=jnp.float32)
    o_ref[...] = out


# ------------------------- position bias (one-time, plain JAX) -------------------------
def _relative_position_bucket(rel_pos, bidirectional,
                              num_buckets=NUM_BUCKETS, max_distance=MAX_DISTANCE):
    rel_buckets = jnp.zeros_like(rel_pos)
    if bidirectional:
        num_buckets //= 2
        rel_buckets = rel_buckets + (rel_pos > 0).astype(jnp.int32) * num_buckets
        rel_pos = jnp.abs(rel_pos)
    else:
        rel_pos = -jnp.minimum(rel_pos, 0)
    max_exact = num_buckets // 2
    is_small = rel_pos < max_exact
    rp_f = jnp.maximum(rel_pos, 1).astype(jnp.float32)
    rel_if_large = max_exact + (
        jnp.log(rp_f / max_exact) / math.log(max_distance / max_exact)
        * (num_buckets - max_exact)
    ).astype(jnp.int32)
    rel_if_large = jnp.minimum(rel_if_large, num_buckets - 1)
    return rel_buckets + jnp.where(is_small, rel_pos, rel_if_large)


def _position_bias(rel_emb, q_len, k_len, bidirectional):
    ctx = jnp.arange(q_len)[:, None]
    mem = jnp.arange(k_len)[None, :]
    buckets = _relative_position_bucket(mem - ctx, bidirectional)
    values = rel_emb[buckets]                       # (q, k, H)
    return jnp.transpose(values, (2, 0, 1))         # (H, q, k)


# ------------------------- one-time weight preparation -------------------------
def prepare_params(params, seq_len):
    """Pad / fuse / transpose all weights into the lane-dense layout the kernels
    consume and precompute the position-bias tensors.  Run once per param set."""
    enc_bias = _position_bias(params['enc_rel_bias'], seq_len, seq_len, True
                              ).astype(jnp.float32)
    dec_pos = _position_bias(params['dec_rel_bias'], seq_len, seq_len, False)
    causal = jnp.tril(jnp.ones((seq_len, seq_len), jnp.float32))
    dec_self_bias = (dec_pos + (1.0 - causal)[None] * NEG_INF).astype(jnp.float32)

    def pack_slabs(ws):
        # each w: (D_MODEL, INNER) -> its own zero-padded 128-lane slab.
        return jnp.concatenate([_pad2(w, D_PAD, D_PAD) for w in ws], axis=1)

    prep = {
        'embed_pad': _pad2(params['embed'], VOCAB, D_PAD),          # (VOCAB, 128)
        'emb_t_pad': _pad2(params['embed'].T, D_PAD, VOCAB_PAD),    # (128, 128)
        'enc_bias': enc_bias,                                       # (H, S, S)
        'dec_self_bias': dec_self_bias,                             # (H, S, S)
        'enc_layers': [],
        'dec_layers': [],
    }
    for lyr in params['enc_layers']:
        prep['enc_layers'].append({
            'ln': jnp.stack([_pad_row(lyr['ln_attn']), _pad_row(lyr['ln_ff']),
                             _pad_row(params['enc_final_ln'])]),    # (3, 128)
            'wqkv': pack_slabs([lyr['wq'], lyr['wk'], lyr['wv']]),  # (128, 384)
            'wo': _pad2(lyr['wo'], INNER, D_PAD),                   # (32, 128)
            'wi': _pad2(lyr['wi'], D_PAD, FF_PAD),                  # (128, 128)
            'wo_ff': _pad2(lyr['wo_ff'], FF_PAD, D_PAD),            # (128, 128)
        })
    for lyr in params['dec_layers']:
        prep['dec_layers'].append({
            'ln': jnp.stack([_pad_row(lyr['ln_self']), _pad_row(lyr['ln_cross']),
                             _pad_row(lyr['ln_ff']),
                             _pad_row(params['dec_final_ln'])]),    # (4, 128)
            'wqkv_s': pack_slabs([lyr['sq'], lyr['sk'], lyr['sv']]),  # (128, 384)
            'wo_s': _pad2(lyr['so'], INNER, D_PAD),
            'wq_c': _pad2(lyr['cq'], D_PAD, D_PAD),                 # (128, 128)
            'wkv_c': pack_slabs([lyr['ck'], lyr['cv']]),            # (128, 256)
            'wo_c': _pad2(lyr['co'], INNER, D_PAD),
            'wi': _pad2(lyr['wi'], D_PAD, FF_PAD),
            'wo_ff': _pad2(lyr['wo_ff'], FF_PAD, D_PAD),
        })
    return prep


# ------------------------- forward (jitted; 2 pallas_calls total) -------------------------
def _encoder(prep, ids, B, S):
    x = prep['embed_pad'][ids].reshape(B * S, D_PAD)
    n_layers = len(prep['enc_layers'])
    for i, lyr in enumerate(prep['enc_layers']):
        x = pl.pallas_call(
            functools.partial(_enc_layer_kernel, B, S, i == n_layers - 1),
            out_shape=jax.ShapeDtypeStruct((B * S, D_PAD), jnp.float32),
        )(x, lyr['ln'], lyr['wqkv'], lyr['wo'], lyr['wi'], lyr['wo_ff'],
          prep['enc_bias'])
    return x


def _decoder(prep, dec_ids, enc_out, B, S):
    Se = enc_out.shape[0] // B
    x = prep['embed_pad'][dec_ids].reshape(B * S, D_PAD)
    n_layers = len(prep['dec_layers'])
    for i, lyr in enumerate(prep['dec_layers']):
        is_last = i == n_layers - 1
        out_w = VOCAB_PAD if is_last else D_PAD
        x = pl.pallas_call(
            functools.partial(_dec_layer_kernel, B, S, Se, is_last),
            out_shape=jax.ShapeDtypeStruct((B * S, out_w), jnp.float32),
        )(x, enc_out, lyr['ln'], lyr['wqkv_s'], lyr['wo_s'],
          lyr['wq_c'], lyr['wkv_c'], lyr['wo_c'], lyr['wi'], lyr['wo_ff'],
          prep['dec_self_bias'], prep['emb_t_pad'])
    return x          # last layer already produced (padded) logits


@jax.jit
def t5_forward(prep, input_ids):
    """Mirrors T5.forward with y=None: decoder_input_ids = input_ids -> logits."""
    B, S = input_ids.shape
    enc_out = _encoder(prep, input_ids, B, S)
    logits_pad = _decoder(prep, input_ids, enc_out, B, S)
    return logits_pad[:, :VOCAB].reshape(B, S, VOCAB)


@jax.jit
def t5_forward_with_labels(prep, input_ids, labels):
    """Mirrors T5.forward with y given: decoder input = shift-right(labels)."""
    B, S = input_ids.shape
    enc_out = _encoder(prep, input_ids, B, S)
    dec_ids = jnp.concatenate(
        [jnp.zeros((B, 1), labels.dtype), labels[:, :-1]], axis=1)
    logits = _decoder(prep, dec_ids, enc_out, B, S)[:, :VOCAB].reshape(B, S, VOCAB)
    logp = jax.nn.log_softmax(logits, axis=-1)
    loss = -jnp.mean(jnp.take_along_axis(logp, labels[..., None], axis=-1))
    return loss, logits


# ------------------------- deterministic params -------------------------
def init_params(key):
    keys = iter(jax.random.split(key, 128))

    def nrm(shape, scale=0.05):
        return (scale * jax.random.normal(next(keys), shape)).astype(jnp.float32)

    params = {
        'embed': nrm((VOCAB, D_MODEL), 1.0),
        'enc_rel_bias': nrm((NUM_BUCKETS, N_HEADS)),
        'dec_rel_bias': nrm((NUM_BUCKETS, N_HEADS)),
        'enc_final_ln': jnp.ones((D_MODEL,), jnp.float32),
        'dec_final_ln': jnp.ones((D_MODEL,), jnp.float32),
        'enc_layers': [],
        'dec_layers': [],
    }
    for _ in range(N_LAYERS):
        params['enc_layers'].append({
            'ln_attn': jnp.ones((D_MODEL,), jnp.float32),
            'wq': nrm((D_MODEL, INNER)), 'wk': nrm((D_MODEL, INNER)),
            'wv': nrm((D_MODEL, INNER)), 'wo': nrm((INNER, D_MODEL)),
            'ln_ff': jnp.ones((D_MODEL,), jnp.float32),
            'wi': nrm((D_MODEL, D_FF)), 'wo_ff': nrm((D_FF, D_MODEL)),
        })
        params['dec_layers'].append({
            'ln_self': jnp.ones((D_MODEL,), jnp.float32),
            'sq': nrm((D_MODEL, INNER)), 'sk': nrm((D_MODEL, INNER)),
            'sv': nrm((D_MODEL, INNER)), 'so': nrm((INNER, D_MODEL)),
            'ln_cross': jnp.ones((D_MODEL,), jnp.float32),
            'cq': nrm((D_MODEL, INNER)), 'ck': nrm((D_MODEL, INNER)),
            'cv': nrm((D_MODEL, INNER)), 'co': nrm((INNER, D_MODEL)),
            'ln_ff': jnp.ones((D_MODEL,), jnp.float32),
            'wi': nrm((D_MODEL, D_FF)), 'wo_ff': nrm((D_FF, D_MODEL)),
        })
    return params


# ------------------------- main -------------------------
if __name__ == "__main__":
    key = jax.random.PRNGKey(0)
    pkey, dkey = jax.random.split(key)
    params = init_params(pkey)
    # one-time: pad / fuse weights and precompute position biases.
    prep = jax.block_until_ready(prepare_params(params, SEQ))

    input_ids = jax.random.randint(dkey, (BATCH, SEQ), 0, VOCAB, dtype=jnp.int32)

    logits = t5_forward(prep, input_ids)            # y=None branch of T5.forward
    logits = jax.block_until_ready(logits)
    assert logits.shape == (BATCH, SEQ, VOCAB)
    assert bool(jnp.all(jnp.isfinite(logits)))
    print("KERNEL_OK")
</pallas_src>

<mosaic_0001>
module attributes {stable_mosaic.version = 11 : i64} {
  func.func @_enc_layer_kernel(%arg0: memref<16x128xf32, #tpu.memory_space<vmem>>, %arg1: memref<3x128xf32, #tpu.memory_space<vmem>>, %arg2: memref<128x384xf32, #tpu.memory_space<vmem>>, %arg3: memref<32x128xf32, #tpu.memory_space<vmem>>, %arg4: memref<128x128xf32, #tpu.memory_space<vmem>>, %arg5: memref<128x128xf32, #tpu.memory_space<vmem>>, %arg6: memref<4x8x8xf32, #tpu.memory_space<vmem>>, %arg7: memref<16x128xf32, #tpu.memory_space<vmem>>) attributes {dimension_semantics = [], scalar_prefetch = 0 : i64, scratch_operands = 0 : i64, tpu.core_type = #tpu.core_type<tc>} {
    %c0 = arith.constant 0 : index
    %c0_0 = arith.constant 0 : index
    %0 = vector.load %arg0[%c0, %c0_0] : memref<16x128xf32, #tpu.memory_space<vmem>>, vector<16x128xf32>
    %c0_1 = arith.constant 0 : index
    %c0_2 = arith.constant 0 : index
    %1 = vector.load %arg1[%c0_1, %c0_2] : memref<3x128xf32, #tpu.memory_space<vmem>>, vector<3x128xf32>
    %2 = vector.extract_strided_slice %1 {offsets = [0, 0], sizes = [1, 128], strides = [1, 1]} : vector<3x128xf32> to vector<1x128xf32>
    %3 = arith.mulf %0, %0 : vector<16x128xf32>
    %cst = arith.constant dense<0.000000e+00> : vector<16xf32>
    %4 = vector.multi_reduction <add>, %3, %cst [1] : vector<16x128xf32> to vector<16xf32>
    %5 = vector.shape_cast %4 : vector<16xf32> to vector<16x1xf32>
    %cst_3 = arith.constant 3.125000e-02 : f32
    %6 = vector.broadcast %cst_3 : f32 to vector<16x1xf32>
    %7 = arith.mulf %5, %6 : vector<16x1xf32>
    %cst_4 = arith.constant 9.99999997E-7 : f32
    %8 = vector.broadcast %cst_4 : f32 to vector<16x1xf32>
    %9 = arith.addf %7, %8 : vector<16x1xf32>
    %10 = math.rsqrt %9 : vector<16x1xf32>
    %11 = vector.broadcast %10 : vector<16x1xf32> to vector<16x128xf32>
    %12 = arith.mulf %0, %11 : vector<16x128xf32>
    %13 = vector.broadcast %2 : vector<1x128xf32> to vector<16x128xf32>
    %14 = arith.mulf %12, %13 : vector<16x128xf32>
    %c0_5 = arith.constant 0 : index
    %c0_6 = arith.constant 0 : index
    %15 = vector.load %arg2[%c0_5, %c0_6] : memref<128x384xf32, #tpu.memory_space<vmem>>, vector<128x384xf32>
    %cst_7 = arith.constant dense<0.000000e+00> : vector<16x384xf32>
    %16 = tpu.matmul %14, %15, %cst_7 {dimension_numbers = #tpu.dot_dimension_numbers<[1], [0], [0], [1], [0, 0, 1, 1], [], []>} : vector<16x128xf32>, vector<128x384xf32>, vector<16x384xf32> -> vector<16x384xf32>
    %17 = vector.extract_strided_slice %16 {offsets = [0, 0], sizes = [16, 128], strides = [1, 1]} : vector<16x384xf32> to vector<16x128xf32>
    %18 = vector.extract_strided_slice %16 {offsets = [0, 128], sizes = [16, 128], strides = [1, 1]} : vector<16x384xf32> to vector<16x128xf32>
    %19 = vector.extract_strided_slice %16 {offsets = [0, 256], sizes = [16, 128], strides = [1, 1]} : vector<16x384xf32> to vector<16x128xf32>
    %c0_8 = arith.constant 0 : index
    %c0_9 = arith.constant 0 : index
    %c0_10 = arith.constant 0 : index
    %20 = vector.load %arg6[%c0_8, %c0_9, %c0_10] : memref<4x8x8xf32, #tpu.memory_space<vmem>>, vector<4x8x8xf32>
    %21 = vector.extract_strided_slice %17 {offsets = [0, 0], sizes = [8, 8], strides = [1, 1]} : vector<16x128xf32> to vector<8x8xf32>
    %22 = vector.extract_strided_slice %18 {offsets = [0, 0], sizes = [8, 8], strides = [1, 1]} : vector<16x128xf32> to vector<8x8xf32>
    %23 = vector.extract_strided_slice %19 {offsets = [0, 0], sizes = [8, 8], strides = [1, 1]} : vector<16x128xf32> to vector<8x8xf32>
    %cst_11 = arith.constant dense<0.000000e+00> : vector<8x8xf32>
    %24 = tpu.matmul %21, %22, %cst_11 {dimension_numbers = #tpu.dot_dimension_numbers<[1], [1], [0], [0], [0, 0, 1, 0], [], []>} : vector<8x8xf32>, vector<8x8xf32>, vector<8x8xf32> -> vector<8x8xf32>
    %25 = vector.extract_strided_slice %20 {offsets = [0, 0, 0], sizes = [1, 8, 8], strides = [1, 1, 1]} : vector<4x8x8xf32> to vector<1x8x8xf32>
    %26 = vector.shape_cast %25 : vector<1x8x8xf32> to vector<8x8xf32>
    %27 = arith.addf %24, %26 : vector<8x8xf32>
    %cst_12 = arith.constant dense<0xFF800000> : vector<8xf32>
    %28 = vector.multi_reduction <maximumf>, %27, %cst_12 [1] : vector<8x8xf32> to vector<8xf32>
    %29 = vector.shape_cast %28 : vector<8xf32> to vector<8x1xf32>
    %30 = vector.broadcast %29 : vector<8x1xf32> to vector<8x8xf32>
    %31 = arith.subf %27, %30 : vector<8x8xf32>
    %32 = math.exp %31 : vector<8x8xf32>
    %cst_13 = arith.constant dense<0.000000e+00> : vector<8xf32>
    %33 = vector.multi_reduction <add>, %32, %cst_13 [1] : vector<8x8xf32> to vector<8xf32>
    %34 = vector.shape_cast %33 : vector<8xf32> to vector<8x1xf32>
    %35 = vector.broadcast %34 : vector<8x1xf32> to vector<8x8xf32>
    %36 = arith.divf %32, %35 : vector<8x8xf32>
    %cst_14 = arith.constant dense<0.000000e+00> : vector<8x8xf32>
    %37 = tpu.matmul %36, %23, %cst_14 {dimension_numbers = #tpu.dot_dimension_numbers<[1], [0], [0], [1], [0, 0, 1, 1], [], []>} : vector<8x8xf32>, vector<8x8xf32>, vector<8x8xf32> -> vector<8x8xf32>
    %38 = vector.extract_strided_slice %17 {offsets = [0, 8], sizes = [8, 8], strides = [1, 1]} : vector<16x128xf32> to vector<8x8xf32>
    %39 = vector.extract_strided_slice %18 {offsets = [0, 8], sizes = [8, 8], strides = [1, 1]} : vector<16x128xf32> to vector<8x8xf32>
    %40 = vector.extract_strided_slice %19 {offsets = [0, 8], sizes = [8, 8], strides = [1, 1]} : vector<16x128xf32> to vector<8x8xf32>
    %cst_15 = arith.constant dense<0.000000e+00> : vector<8x8xf32>
    %41 = tpu.matmul %38, %39, %cst_15 {dimension_numbers = #tpu.dot_dimension_numbers<[1], [1], [0], [0], [0, 0, 1, 0], [], []>} : vector<8x8xf32>, vector<8x8xf32>, vector<8x8xf32> -> vector<8x8xf32>
    %42 = vector.extract_strided_slice %20 {offsets = [1, 0, 0], sizes = [1, 8, 8], strides = [1, 1, 1]} : vector<4x8x8xf32> to vector<1x8x8xf32>
    %43 = vector.shape_cast %42 : vector<1x8x8xf32> to vector<8x8xf32>
    %44 = arith.addf %41, %43 : vector<8x8xf32>
    %cst_16 = arith.constant dense<0xFF800000> : vector<8xf32>
    %45 = vector.multi_reduction <maximumf>, %44, %cst_16 [1] : vector<8x8xf32> to vector<8xf32>
    %46 = vector.shape_cast %45 : vector<8xf32> to vector<8x1xf32>
    %47 = vector.broadcast %46 : vector<8x1xf32> to vector<8x8xf32>
    %48 = arith.subf %44, %47 : vector<8x8xf32>
    %49 = math.exp %48 : vector<8x8xf32>
    %cst_17 = arith.constant dense<0.000000e+00> : vector<8xf32>
    %50 = vector.multi_reduction <add>, %49, %cst_17 [1] : vector<8x8xf32> to vector<8xf32>
    %51 = vector.shape_cast %50 : vector<8xf32> to vector<8x1xf32>
    %52 = vector.broadcast %51 : vector<8x1xf32> to vector<8x8xf32>
    %53 = arith.divf %49, %52 : vector<8x8xf32>
    %cst_18 = arith.constant dense<0.000000e+00> : vector<8x8xf32>
    %54 = tpu.matmul %53, %40, %cst_18 {dimension_numbers = #tpu.dot_dimension_numbers<[1], [0], [0], [1], [0, 0, 1, 1], [], []>} : vector<8x8xf32>, vector<8x8xf32>, vector<8x8xf32> -> vector<8x8xf32>
    %55 = vector.extract_strided_slice %17 {offsets = [0, 16], sizes = [8, 8], strides = [1, 1]} : vector<16x128xf32> to vector<8x8xf32>
    %56 = vector.extract_strided_slice %18 {offsets = [0, 16], sizes = [8, 8], strides = [1, 1]} : vector<16x128xf32> to vector<8x8xf32>
    %57 = vector.extract_strided_slice %19 {offsets = [0, 16], sizes = [8, 8], strides = [1, 1]} : vector<16x128xf32> to vector<8x8xf32>
    %cst_19 = arith.constant dense<0.000000e+00> : vector<8x8xf32>
    %58 = tpu.matmul %55, %56, %cst_19 {dimension_numbers = #tpu.dot_dimension_numbers<[1], [1], [0], [0], [0, 0, 1, 0], [], []>} : vector<8x8xf32>, vector<8x8xf32>, vector<8x8xf32> -> vector<8x8xf32>
    %59 = vector.extract_strided_slice %20 {offsets = [2, 0, 0], sizes = [1, 8, 8], strides = [1, 1, 1]} : vector<4x8x8xf32> to vector<1x8x8xf32>
    %60 = vector.shape_cast %59 : vector<1x8x8xf32> to vector<8x8xf32>
    %61 = arith.addf %58, %60 : vector<8x8xf32>
    %cst_20 = arith.constant dense<0xFF800000> : vector<8xf32>
    %62 = vector.multi_reduction <maximumf>, %61, %cst_20 [1] : vector<8x8xf32> to vector<8xf32>
    %63 = vector.shape_cast %62 : vector<8xf32> to vector<8x1xf32>
    %64 = vector.broadcast %63 : vector<8x1xf32> to vector<8x8xf32>
    %65 = arith.subf %61, %64 : vector<8x8xf32>
    %66 = math.exp %65 : vector<8x8xf32>
    %cst_21 = arith.constant dense<0.000000e+00> : vector<8xf32>
    %67 = vector.multi_reduction <add>, %66, %cst_21 [1] : vector<8x8xf32> to vector<8xf32>
    %68 = vector.shape_cast %67 : vector<8xf32> to vector<8x1xf32>
    %69 = vector.broadcast %68 : vector<8x1xf32> to vector<8x8xf32>
    %70 = arith.divf %66, %69 : vector<8x8xf32>
    %cst_22 = arith.constant dense<0.000000e+00> : vector<8x8xf32>
    %71 = tpu.matmul %70, %57, %cst_22 {dimension_numbers = #tpu.dot_dimension_numbers<[1], [0], [0], [1], [0, 0, 1, 1], [], []>} : vector<8x8xf32>, vector<8x8xf32>, vector<8x8xf32> -> vector<8x8xf32>
    %72 = vector.extract_strided_slice %17 {offsets = [0, 24], sizes = [8, 8], strides = [1, 1]} : vector<16x128xf32> to vector<8x8xf32>
    %73 = vector.extract_strided_slice %18 {offsets = [0, 24], sizes = [8, 8], strides = [1, 1]} : vector<16x128xf32> to vector<8x8xf32>
    %74 = vector.extract_strided_slice %19 {offsets = [0, 24], sizes = [8, 8], strides = [1, 1]} : vector<16x128xf32> to vector<8x8xf32>
    %cst_23 = arith.constant dense<0.000000e+00> : vector<8x8xf32>
    %75 = tpu.matmul %72, %73, %cst_23 {dimension_numbers = #tpu.dot_dimension_numbers<[1], [1], [0], [0], [0, 0, 1, 0], [], []>} : vector<8x8xf32>, vector<8x8xf32>, vector<8x8xf32> -> vector<8x8xf32>
    %76 = vector.extract_strided_slice %20 {offsets = [3, 0, 0], sizes = [1, 8, 8], strides = [1, 1, 1]} : vector<4x8x8xf32> to vector<1x8x8xf32>
    %77 = vector.shape_cast %76 : vector<1x8x8xf32> to vector<8x8xf32>
    %78 = arith.addf %75, %77 : vector<8x8xf32>
    %cst_24 = arith.constant dense<0xFF800000> : vector<8xf32>
    %79 = vector.multi_reduction <maximumf>, %78, %cst_24 [1] : vector<8x8xf32> to vector<8xf32>
    %80 = vector.shape_cast %79 : vector<8xf32> to vector<8x1xf32>
    %81 = vector.broadcast %80 : vector<8x1xf32> to vector<8x8xf32>
    %82 = arith.subf %78, %81 : vector<8x8xf32>
    %83 = math.exp %82 : vector<8x8xf32>
    %cst_25 = arith.constant dense<0.000000e+00> : vector<8xf32>
    %84 = vector.multi_reduction <add>, %83, %cst_25 [1] : vector<8x8xf32> to vector<8xf32>
    %85 = vector.shape_cast %84 : vector<8xf32> to vector<8x1xf32>
    %86 = vector.broadcast %85 : vector<8x1xf32> to vector<8x8xf32>
    %87 = arith.divf %83, %86 : vector<8x8xf32>
    %cst_26 = arith.constant dense<0.000000e+00> : vector<8x8xf32>
    %88 = tpu.matmul %87, %74, %cst_26 {dimension_numbers = #tpu.dot_dimension_numbers<[1], [0], [0], [1], [0, 0, 1, 1], [], []>} : vector<8x8xf32>, vector<8x8xf32>, vector<8x8xf32> -> vector<8x8xf32>
    %89 = tpu.concatenate %37, %54, %71, %88 in 1 : vector<8x8xf32>, vector<8x8xf32>, vector<8x8xf32>, vector<8x8xf32> -> vector<8x32xf32>
    %90 = vector.extract_strided_slice %17 {offsets = [8, 0], sizes = [8, 8], strides = [1, 1]} : vector<16x128xf32> to vector<8x8xf32>
    %91 = vector.extract_strided_slice %18 {offsets = [8, 0], sizes = [8, 8], strides = [1, 1]} : vector<16x128xf32> to vector<8x8xf32>
    %92 = vector.extract_strided_slice %19 {offsets = [8, 0], sizes = [8, 8], strides = [1, 1]} : vector<16x128xf32> to vector<8x8xf32>
    %cst_27 = arith.constant dense<0.000000e+00> : vector<8x8xf32>
    %93 = tpu.matmul %90, %91, %cst_27 {dimension_numbers = #tpu.dot_dimension_numbers<[1], [1], [0], [0], [0, 0, 1, 0], [], []>} : vector<8x8xf32>, vector<8x8xf32>, vector<8x8xf32> -> vector<8x8xf32>
    %94 = vector.extract_strided_slice %20 {offsets = [0, 0, 0], sizes = [1, 8, 8], strides = [1, 1, 1]} : vector<4x8x8xf32> to vector<1x8x8xf32>
    %95 = vector.shape_cast %94 : vector<1x8x8xf32> to vector<8x8xf32>
    %96 = arith.addf %93, %95 : vector<8x8xf32>
    %cst_28 = arith.constant dense<0xFF800000> : vector<8xf32>
    %97 = vector.multi_reduction <maximumf>, %96, %cst_28 [1] : vector<8x8xf32> to vector<8xf32>
    %98 = vector.shape_cast %97 : vector<8xf32> to vector<8x1xf32>
    %99 = vector.broadcast %98 : vector<8x1xf32> to vector<8x8xf32>
    %100 = arith.subf %96, %99 : vector<8x8xf32>
    %101 = math.exp %100 : vector<8x8xf32>
    %cst_29 = arith.constant dense<0.000000e+00> : vector<8xf32>
    %102 = vector.multi_reduction <add>, %101, %cst_29 [1] : vector<8x8xf32> to vector<8xf32>
    %103 = vector.shape_cast %102 : vector<8xf32> to vector<8x1xf32>
    %104 = vector.broadcast %103 : vector<8x1xf32> to vector<8x8xf32>
    %105 = arith.divf %101, %104 : vector<8x8xf32>
    %cst_30 = arith.constant dense<0.000000e+00> : vector<8x8xf32>
    %106 = tpu.matmul %105, %92, %cst_30 {dimension_numbers = #tpu.dot_dimension_numbers<[1], [0], [0], [1], [0, 0, 1, 1], [], []>} : vector<8x8xf32>, vector<8x8xf32>, vector<8x8xf32> -> vector<8x8xf32>
    %107 = vector.extract_strided_slice %17 {offsets = [8, 8], sizes = [8, 8], strides = [1, 1]} : vector<16x128xf32> to vector<8x8xf32>
    %108 = vector.extract_strided_slice %18 {offsets = [8, 8], sizes = [8, 8], strides = [1, 1]} : vector<16x128xf32> to vector<8x8xf32>
    %109 = vector.extract_strided_slice %19 {offsets = [8, 8], sizes = [8, 8], strides = [1, 1]} : vector<16x128xf32> to vector<8x8xf32>
    %cst_31 = arith.constant dense<0.000000e+00> : vector<8x8xf32>
    %110 = tpu.matmul %107, %108, %cst_31 {dimension_numbers = #tpu.dot_dimension_numbers<[1], [1], [0], [0], [0, 0, 1, 0], [], []>} : vector<8x8xf32>, vector<8x8xf32>, vector<8x8xf32> -> vector<8x8xf32>
    %111 = vector.extract_strided_slice %20 {offsets = [1, 0, 0], sizes = [1, 8, 8], strides = [1, 1, 1]} : vector<4x8x8xf32> to vector<1x8x8xf32>
    %112 = vector.shape_cast %111 : vector<1x8x8xf32> to vector<8x8xf32>
    %113 = arith.addf %110, %112 : vector<8x8xf32>
    %cst_32 = arith.constant dense<0xFF800000> : vector<8xf32>
    %114 = vector.multi_reduction <maximumf>, %113, %cst_32 [1] : vector<8x8xf32> to vector<8xf32>
    %115 = vector.shape_cast %114 : vector<8xf32> to vector<8x1xf32>
    %116 = vector.broadcast %115 : vector<8x1xf32> to vector<8x8xf32>
    %117 = arith.subf %113, %116 : vector<8x8xf32>
    %118 = math.exp %117 : vector<8x8xf32>
    %cst_33 = arith.constant dense<0.000000e+00> : vector<8xf32>
    %119 = vector.multi_reduction <add>, %118, %cst_33 [1] : vector<8x8xf32> to vector<8xf32>
    %120 = vector.shape_cast %119 : vector<8xf32> to vector<8x1xf32>
    %121 = vector.broadcast %120 : vector<8x1xf32> to vector<8x8xf32>
    %122 = arith.divf %118, %121 : vector<8x8xf32>
    %cst_34 = arith.constant dense<0.000000e+00> : vector<8x8xf32>
    %123 = tpu.matmul %122, %109, %cst_34 {dimension_numbers = #tpu.dot_dimension_numbers<[1], [0], [0], [1], [0, 0, 1, 1], [], []>} : vector<8x8xf32>, vector<8x8xf32>, vector<8x8xf32> -> vector<8x8xf32>
    %124 = vector.extract_strided_slice %17 {offsets = [8, 16], sizes = [8, 8], strides = [1, 1]} : vector<16x128xf32> to vector<8x8xf32>
    %125 = vector.extract_strided_slice %18 {offsets = [8, 16], sizes = [8, 8], strides = [1, 1]} : vector<16x128xf32> to vector<8x8xf32>
    %126 = vector.extract_strided_slice %19 {offsets = [8, 16], sizes = [8, 8], strides = [1, 1]} : vector<16x128xf32> to vector<8x8xf32>
    %cst_35 = arith.constant dense<0.000000e+00> : vector<8x8xf32>
    %127 = tpu.matmul %124, %125, %cst_35 {dimension_numbers = #tpu.dot_dimension_numbers<[1], [1], [0], [0], [0, 0, 1, 0], [], []>} : vector<8x8xf32>, vector<8x8xf32>, vector<8x8xf32> -> vector<8x8xf32>
    %128 = vector.extract_strided_slice %20 {offsets = [2, 0, 0], sizes = [1, 8, 8], strides = [1, 1, 1]} : vector<4x8x8xf32> to vector<1x8x8xf32>
    %129 = vector.shape_cast %128 : vector<1x8x8xf32> to vector<8x8xf32>
    %130 = arith.addf %127, %129 : vector<8x8xf32>
    %cst_36 = arith.constant dense<0xFF800000> : vector<8xf32>
    %131 = vector.multi_reduction <maximumf>, %130, %cst_36 [1] : vector<8x8xf32> to vector<8xf32>
    %132 = vector.shape_cast %131 : vector<8xf32> to vector<8x1xf32>
    %133 = vector.broadcast %132 : vector<8x1xf32> to vector<8x8xf32>
    %134 = arith.subf %130, %133 : vector<8x8xf32>
    %135 = math.exp %134 : vector<8x8xf32>
    %cst_37 = arith.constant dense<0.000000e+00> : vector<8xf32>
    %136 = vector.multi_reduction <add>, %135, %cst_37 [1] : vector<8x8xf32> to vector<8xf32>
    %137 = vector.shape_cast %136 : vector<8xf32> to vector<8x1xf32>
    %138 = vector.broadcast %137 : vector<8x1xf32> to vector<8x8xf32>
    %139 = arith.divf %135, %138 : vector<8x8xf32>
    %cst_38 = arith.constant dense<0.000000e+00> : vector<8x8xf32>
    %140 = tpu.matmul %139, %126, %cst_38 {dimension_numbers = #tpu.dot_dimension_numbers<[1], [0], [0], [1], [0, 0, 1, 1], [], []>} : vector<8x8xf32>, vector<8x8xf32>, vector<8x8xf32> -> vector<8x8xf32>
    %141 = vector.extract_strided_slice %17 {offsets = [8, 24], sizes = [8, 8], strides = [1, 1]} : vector<16x128xf32> to vector<8x8xf32>
    %142 = vector.extract_strided_slice %18 {offsets = [8, 24], sizes = [8, 8], strides = [1, 1]} : vector<16x128xf32> to vector<8x8xf32>
    %143 = vector.extract_strided_slice %19 {offsets = [8, 24], sizes = [8, 8], strides = [1, 1]} : vector<16x128xf32> to vector<8x8xf32>
    %cst_39 = arith.constant dense<0.000000e+00> : vector<8x8xf32>
    %144 = tpu.matmul %141, %142, %cst_39 {dimension_numbers = #tpu.dot_dimension_numbers<[1], [1], [0], [0], [0, 0, 1, 0], [], []>} : vector<8x8xf32>, vector<8x8xf32>, vector<8x8xf32> -> vector<8x8xf32>
    %145 = vector.extract_strided_slice %20 {offsets = [3, 0, 0], sizes = [1, 8, 8], strides = [1, 1, 1]} : vector<4x8x8xf32> to vector<1x8x8xf32>
    %146 = vector.shape_cast %145 : vector<1x8x8xf32> to vector<8x8xf32>
    %147 = arith.addf %144, %146 : vector<8x8xf32>
    %cst_40 = arith.constant dense<0xFF800000> : vector<8xf32>
    %148 = vector.multi_reduction <maximumf>, %147, %cst_40 [1] : vector<8x8xf32> to vector<8xf32>
    %149 = vector.shape_cast %148 : vector<8xf32> to vector<8x1xf32>
    %150 = vector.broadcast %149 : vector<8x1xf32> to vector<8x8xf32>
    %151 = arith.subf %147, %150 : vector<8x8xf32>
    %152 = math.exp %151 : vector<8x8xf32>
    %cst_41 = arith.constant dense<0.000000e+00> : vector<8xf32>
    %153 = vector.multi_reduction <add>, %152, %cst_41 [1] : vector<8x8xf32> to vector<8xf32>
    %154 = vector.shape_cast %153 : vector<8xf32> to vector<8x1xf32>
    %155 = vector.broadcast %154 : vector<8x1xf32> to vector<8x8xf32>
    %156 = arith.divf %152, %155 : vector<8x8xf32>
    %cst_42 = arith.constant dense<0.000000e+00> : vector<8x8xf32>
    %157 = tpu.matmul %156, %143, %cst_42 {dimension_numbers = #tpu.dot_dimension_numbers<[1], [0], [0], [1], [0, 0, 1, 1], [], []>} : vector<8x8xf32>, vector<8x8xf32>, vector<8x8xf32> -> vector<8x8xf32>
    %158 = tpu.concatenate %106, %123, %140, %157 in 1 : vector<8x8xf32>, vector<8x8xf32>, vector<8x8xf32>, vector<8x8xf32> -> vector<8x32xf32>
    %159 = tpu.concatenate %89, %158 in 0 : vector<8x32xf32>, vector<8x32xf32> -> vector<16x32xf32>
    %c0_43 = arith.constant 0 : index
    %c0_44 = arith.constant 0 : index
    %160 = vector.load %arg3[%c0_43, %c0_44] : memref<32x128xf32, #tpu.memory_space<vmem>>, vector<32x128xf32>
    %cst_45 = arith.constant dense<0.000000e+00> : vector<16x128xf32>
    %161 = tpu.matmul %159, %160, %cst_45 {dimension_numbers = #tpu.dot_dimension_numbers<[1], [0], [0], [1], [0, 0, 1, 1], [], []>} : vector<16x32xf32>, vector<32x128xf32>, vector<16x128xf32> -> vector<16x128xf32>
    %162 = arith.addf %0, %161 : vector<16x128xf32>
    %163 = vector.extract_strided_slice %1 {offsets = [1, 0], sizes = [1, 128], strides = [1, 1]} : vector<3x128xf32> to vector<1x128xf32>
    %164 = arith.mulf %162, %162 : vector<16x128xf32>
    %cst_46 = arith.constant dense<0.000000e+00> : vector<16xf32>
    %165 = vector.multi_reduction <add>, %164, %cst_46 [1] : vector<16x128xf32> to vector<16xf32>
    %166 = vector.shape_cast %165 : vector<16xf32> to vector<16x1xf32>
    %cst_47 = arith.constant 3.125000e-02 : f32
    %167 = vector.broadcast %cst_47 : f32 to vector<16x1xf32>
    %168 = arith.mulf %166, %167 : vector<16x1xf32>
    %cst_48 = arith.constant 9.99999997E-7 : f32
    %169 = vector.broadcast %cst_48 : f32 to vector<16x1xf32>
    %170 = arith.addf %168, %169 : vector<16x1xf32>
    %171 = math.rsqrt %170 : vector<16x1xf32>
    %172 = vector.broadcast %171 : vector<16x1xf32> to vector<16x128xf32>
    %173 = arith.mulf %162, %172 : vector<16x128xf32>
    %174 = vector.broadcast %163 : vector<1x128xf32> to vector<16x128xf32>
    %175 = arith.mulf %173, %174 : vector<16x128xf32>
    %c0_49 = arith.constant 0 : index
    %c0_50 = arith.constant 0 : index
    %176 = vector.load %arg4[%c0_49, %c0_50] : memref<128x128xf32, #tpu.memory_space<vmem>>, vector<128x128xf32>
    %cst_51 = arith.constant dense<0.000000e+00> : vector<16x128xf32>
    %177 = tpu.matmul %175, %176, %cst_51 {dimension_numbers = #tpu.dot_dimension_numbers<[1], [0], [0], [1], [0, 0, 1, 1], [], []>} : vector<16x128xf32>, vector<128x128xf32>, vector<16x128xf32> -> vector<16x128xf32>
    %cst_52 = arith.constant 0.000000e+00 : f32
    %178 = vector.broadcast %cst_52 : f32 to vector<16x128xf32>
    %179 = arith.maximumf %177, %178 : vector<16x128xf32>
    %c0_53 = arith.constant 0 : index
    %c0_54 = arith.constant 0 : index
    %180 = vector.load %arg5[%c0_53, %c0_54] : memref<128x128xf32, #tpu.memory_space<vmem>>, vector<128x128xf32>
    %cst_55 = arith.constant dense<0.000000e+00> : vector<16x128xf32>
    %181 = tpu.matmul %179, %180, %cst_55 {dimension_numbers = #tpu.dot_dimension_numbers<[1], [0], [0], [1], [0, 0, 1, 1], [], []>} : vector<16x128xf32>, vector<128x128xf32>, vector<16x128xf32> -> vector<16x128xf32>
    %182 = arith.addf %162, %181 : vector<16x128xf32>
    %183 = vector.extract_strided_slice %1 {offsets = [2, 0], sizes = [1, 128], strides = [1, 1]} : vector<3x128xf32> to vector<1x128xf32>
    %184 = arith.mulf %182, %182 : vector<16x128xf32>
    %cst_56 = arith.constant dense<0.000000e+00> : vector<16xf32>
    %185 = vector.multi_reduction <add>, %184, %cst_56 [1] : vector<16x128xf32> to vector<16xf32>
    %186 = vector.shape_cast %185 : vector<16xf32> to vector<16x1xf32>
    %cst_57 = arith.constant 3.125000e-02 : f32
    %187 = vector.broadcast %cst_57 : f32 to vector<16x1xf32>
    %188 = arith.mulf %186, %187 : vector<16x1xf32>
    %cst_58 = arith.constant 9.99999997E-7 : f32
    %189 = vector.broadcast %cst_58 : f32 to vector<16x1xf32>
    %190 = arith.addf %188, %189 : vector<16x1xf32>
    %191 = math.rsqrt %190 : vector<16x1xf32>
    %192 = vector.broadcast %191 : vector<16x1xf32> to vector<16x128xf32>
    %193 = arith.mulf %182, %192 : vector<16x128xf32>
    %194 = vector.broadcast %183 : vector<1x128xf32> to vector<16x128xf32>
    %195 = arith.mulf %193, %194 : vector<16x128xf32>
    %c0_59 = arith.constant 0 : index
    %c0_60 = arith.constant 0 : index
    %196 = vector.load %arg7[%c0_59, %c0_60] : memref<16x128xf32, #tpu.memory_space<vmem>>, vector<16x128xf32>
    tpu.vector_store %arg7[%c0_59, %c0_60], %195 {strides = array<i32>} : memref<16x128xf32, #tpu.memory_space<vmem>>, vector<16x128xf32>,
    return
  }
}

module attributes {stable_mosaic.version = 11 : i64} {
  func.func @_dec_layer_kernel(%arg0: memref<16x128xf32, #tpu.memory_space<vmem>>, %arg1: memref<16x128xf32, #tpu.memory_space<vmem>>, %arg2: memref<4x128xf32, #tpu.memory_space<vmem>>, %arg3: memref<128x384xf32, #tpu.memory_space<vmem>>, %arg4: memref<32x128xf32, #tpu.memory_space<vmem>>, %arg5: memref<128x128xf32, #tpu.memory_space<vmem>>, %arg6: memref<128x256xf32, #tpu.memory_space<vmem>>, %arg7: memref<32x128xf32, #tpu.memory_space<vmem>>, %arg8: memref<128x128xf32, #tpu.memory_space<vmem>>, %arg9: memref<128x128xf32, #tpu.memory_space<vmem>>, %arg10: memref<4x8x8xf32, #tpu.memory_space<vmem>>, %arg11: memref<128x128xf32, #tpu.memory_space<vmem>>, %arg12: memref<16x128xf32, #tpu.memory_space<vmem>>) attributes {dimension_semantics = [], scalar_prefetch = 0 : i64, scratch_operands = 0 : i64, tpu.core_type = #tpu.core_type<tc>} {
    %c0 = arith.constant 0 : index
    %c0_0 = arith.constant 0 : index
    %0 = vector.load %arg0[%c0, %c0_0] : memref<16x128xf32, #tpu.memory_space<vmem>>, vector<16x128xf32>
    %c0_1 = arith.constant 0 : index
    %c0_2 = arith.constant 0 : index
    %1 = vector.load %arg1[%c0_1, %c0_2] : memref<16x128xf32, #tpu.memory_space<vmem>>, vector<16x128xf32>
    %c0_3 = arith.constant 0 : index
    %c0_4 = arith.constant 0 : index
    %2 = vector.load %arg2[%c0_3, %c0_4] : memref<4x128xf32, #tpu.memory_space<vmem>>, vector<4x128xf32>
    %3 = vector.extract_strided_slice %2 {offsets = [0, 0], sizes = [1, 128], strides = [1, 1]} : vector<4x128xf32> to vector<1x128xf32>
    %4 = arith.mulf %0, %0 : vector<16x128xf32>
    %cst = arith.constant dense<0.000000e+00> : vector<16xf32>
    %5 = vector.multi_reduction <add>, %4, %cst [1] : vector<16x128xf32> to vector<16xf32>
    %6 = vector.shape_cast %5 : vector<16xf32> to vector<16x1xf32>
    %cst_5 = arith.constant 3.125000e-02 : f32
    %7 = vector.broadcast %cst_5 : f32 to vector<16x1xf32>
    %8 = arith.mulf %6, %7 : vector<16x1xf32>
    %cst_6 = arith.constant 9.99999997E-7 : f32
    %9 = vector.broadcast %cst_6 : f32 to vector<16x1xf32>
    %10 = arith.addf %8, %9 : vector<16x1xf32>
    %11 = math.rsqrt %10 : vector<16x1xf32>
    %12 = vector.broadcast %11 : vector<16x1xf32> to vector<16x128xf32>
    %13 = arith.mulf %0, %12 : vector<16x128xf32>
    %14 = vector.broadcast %3 : vector<1x128xf32> to vector<16x128xf32>
    %15 = arith.mulf %13, %14 : vector<16x128xf32>
    %c0_7 = arith.constant 0 : index
    %c0_8 = arith.constant 0 : index
    %16 = vector.load %arg3[%c0_7, %c0_8] : memref<128x384xf32, #tpu.memory_space<vmem>>, vector<128x384xf32>
    %cst_9 = arith.constant dense<0.000000e+00> : vector<16x384xf32>
    %17 = tpu.matmul %15, %16, %cst_9 {dimension_numbers = #tpu.dot_dimension_numbers<[1], [0], [0], [1], [0, 0, 1, 1], [], []>} : vector<16x128xf32>, vector<128x384xf32>, vector<16x384xf32> -> vector<16x384xf32>
    %18 = vector.extract_strided_slice %17 {offsets = [0, 0], sizes = [16, 128], strides = [1, 1]} : vector<16x384xf32> to vector<16x128xf32>
    %19 = vector.extract_strided_slice %17 {offsets = [0, 128], sizes = [16, 128], strides = [1, 1]} : vector<16x384xf32> to vector<16x128xf32>
    %20 = vector.extract_strided_slice %17 {offsets = [0, 256], sizes = [16, 128], strides = [1, 1]} : vector<16x384xf32> to vector<16x128xf32>
    %c0_10 = arith.constant 0 : index
    %c0_11 = arith.constant 0 : index
    %c0_12 = arith.constant 0 : index
    %21 = vector.load %arg10[%c0_10, %c0_11, %c0_12] : memref<4x8x8xf32, #tpu.memory_space<vmem>>, vector<4x8x8xf32>
    %22 = vector.extract_strided_slice %18 {offsets = [0, 0], sizes = [8, 8], strides = [1, 1]} : vector<16x128xf32> to vector<8x8xf32>
    %23 = vector.extract_strided_slice %19 {offsets = [0, 0], sizes = [8, 8], strides = [1, 1]} : vector<16x128xf32> to vector<8x8xf32>
    %24 = vector.extract_strided_slice %20 {offsets = [0, 0], sizes = [8, 8], strides = [1, 1]} : vector<16x128xf32> to vector<8x8xf32>
    %cst_13 = arith.constant dense<0.000000e+00> : vector<8x8xf32>
    %25 = tpu.matmul %22, %23, %cst_13 {dimension_numbers = #tpu.dot_dimension_numbers<[1], [1], [0], [0], [0, 0, 1, 0], [], []>} : vector<8x8xf32>, vector<8x8xf32>, vector<8x8xf32> -> vector<8x8xf32>
    %26 = vector.extract_strided_slice %21 {offsets = [0, 0, 0], sizes = [1, 8, 8], strides = [1, 1, 1]} : vector<4x8x8xf32> to vector<1x8x8xf32>
    %27 = vector.shape_cast %26 : vector<1x8x8xf32> to vector<8x8xf32>
    %28 = arith.addf %25, %27 : vector<8x8xf32>
    %cst_14 = arith.constant dense<0xFF800000> : vector<8xf32>
    %29 = vector.multi_reduction <maximumf>, %28, %cst_14 [1] : vector<8x8xf32> to vector<8xf32>
    %30 = vector.shape_cast %29 : vector<8xf32> to vector<8x1xf32>
    %31 = vector.broadcast %30 : vector<8x1xf32> to vector<8x8xf32>
    %32 = arith.subf %28, %31 : vector<8x8xf32>
    %33 = math.exp %32 : vector<8x8xf32>
    %cst_15 = arith.constant dense<0.000000e+00> : vector<8xf32>
    %34 = vector.multi_reduction <add>, %33, %cst_15 [1] : vector<8x8xf32> to vector<8xf32>
    %35 = vector.shape_cast %34 : vector<8xf32> to vector<8x1xf32>
    %36 = vector.broadcast %35 : vector<8x1xf32> to vector<8x8xf32>
    %37 = arith.divf %33, %36 : vector<8x8xf32>
    %cst_16 = arith.constant dense<0.000000e+00> : vector<8x8xf32>
    %38 = tpu.matmul %37, %24, %cst_16 {dimension_numbers = #tpu.dot_dimension_numbers<[1], [0], [0], [1], [0, 0, 1, 1], [], []>} : vector<8x8xf32>, vector<8x8xf32>, vector<8x8xf32> -> vector<8x8xf32>
    %39 = vector.extract_strided_slice %18 {offsets = [0, 8], sizes = [8, 8], strides = [1, 1]} : vector<16x128xf32> to vector<8x8xf32>
    %40 = vector.extract_strided_slice %19 {offsets = [0, 8], sizes = [8, 8], strides = [1, 1]} : vector<16x128xf32> to vector<8x8xf32>
    %41 = vector.extract_strided_slice %20 {offsets = [0, 8], sizes = [8, 8], strides = [1, 1]} : vector<16x128xf32> to vector<8x8xf32>
    %cst_17 = arith.constant dense<0.000000e+00> : vector<8x8xf32>
    %42 = tpu.matmul %39, %40, %cst_17 {dimension_numbers = #tpu.dot_dimension_numbers<[1], [1], [0], [0], [0, 0, 1, 0], [], []>} : vector<8x8xf32>, vector<8x8xf32>, vector<8x8xf32> -> vector<8x8xf32>
    %43 = vector.extract_strided_slice %21 {offsets = [1, 0, 0], sizes = [1, 8, 8], strides = [1, 1, 1]} : vector<4x8x8xf32> to vector<1x8x8xf32>
    %44 = vector.shape_cast %43 : vector<1x8x8xf32> to vector<8x8xf32>
    %45 = arith.addf %42, %44 : vector<8x8xf32>
    %cst_18 = arith.constant dense<0xFF800000> : vector<8xf32>
    %46 = vector.multi_reduction <maximumf>, %45, %cst_18 [1] : vector<8x8xf32> to vector<8xf32>
    %47 = vector.shape_cast %46 : vector<8xf32> to vector<8x1xf32>
    %48 = vector.broadcast %47 : vector<8x1xf32> to vector<8x8xf32>
    %49 = arith.subf %45, %48 : vector<8x8xf32>
    %50 = math.exp %49 : vector<8x8xf32>
    %cst_19 = arith.constant dense<0.000000e+00> : vector<8xf32>
    %51 = vector.multi_reduction <add>, %50, %cst_19 [1] : vector<8x8xf32> to vector<8xf32>
    %52 = vector.shape_cast %51 : vector<8xf32> to vector<8x1xf32>
    %53 = vector.broadcast %52 : vector<8x1xf32> to vector<8x8xf32>
    %54 = arith.divf %50, %53 : vector<8x8xf32>
    %cst_20 = arith.constant dense<0.000000e+00> : vector<8x8xf32>
    %55 = tpu.matmul %54, %41, %cst_20 {dimension_numbers = #tpu.dot_dimension_numbers<[1], [0], [0], [1], [0, 0, 1, 1], [], []>} : vector<8x8xf32>, vector<8x8xf32>, vector<8x8xf32> -> vector<8x8xf32>
    %56 = vector.extract_strided_slice %18 {offsets = [0, 16], sizes = [8, 8], strides = [1, 1]} : vector<16x128xf32> to vector<8x8xf32>
    %57 = vector.extract_strided_slice %19 {offsets = [0, 16], sizes = [8, 8], strides = [1, 1]} : vector<16x128xf32> to vector<8x8xf32>
    %58 = vector.extract_strided_slice %20 {offsets = [0, 16], sizes = [8, 8], strides = [1, 1]} : vector<16x128xf32> to vector<8x8xf32>
    %cst_21 = arith.constant dense<0.000000e+00> : vector<8x8xf32>
    %59 = tpu.matmul %56, %57, %cst_21 {dimension_numbers = #tpu.dot_dimension_numbers<[1], [1], [0], [0], [0, 0, 1, 0], [], []>} : vector<8x8xf32>, vector<8x8xf32>, vector<8x8xf32> -> vector<8x8xf32>
    %60 = vector.extract_strided_slice %21 {offsets = [2, 0, 0], sizes = [1, 8, 8], strides = [1, 1, 1]} : vector<4x8x8xf32> to vector<1x8x8xf32>
    %61 = vector.shape_cast %60 : vector<1x8x8xf32> to vector<8x8xf32>
    %62 = arith.addf %59, %61 : vector<8x8xf32>
    %cst_22 = arith.constant dense<0xFF800000> : vector<8xf32>
    %63 = vector.multi_reduction <maximumf>, %62, %cst_22 [1] : vector<8x8xf32> to vector<8xf32>
    %64 = vector.shape_cast %63 : vector<8xf32> to vector<8x1xf32>
    %65 = vector.broadcast %64 : vector<8x1xf32> to vector<8x8xf32>
    %66 = arith.subf %62, %65 : vector<8x8xf32>
    %67 = math.exp %66 : vector<8x8xf32>
    %cst_23 = arith.constant dense<0.000000e+00> : vector<8xf32>
    %68 = vector.multi_reduction <add>, %67, %cst_23 [1] : vector<8x8xf32> to vector<8xf32>
    %69 = vector.shape_cast %68 : vector<8xf32> to vector<8x1xf32>
    %70 = vector.broadcast %69 : vector<8x1xf32> to vector<8x8xf32>
    %71 = arith.divf %67, %70 : vector<8x8xf32>
    %cst_24 = arith.constant dense<0.000000e+00> : vector<8x8xf32>
    %72 = tpu.matmul %71, %58, %cst_24 {dimension_numbers = #tpu.dot_dimension_numbers<[1], [0], [0], [1], [0, 0, 1, 1], [], []>} : vector<8x8xf32>, vector<8x8xf32>, vector<8x8xf32> -> vector<8x8xf32>
    %73 = vector.extract_strided_slice %18 {offsets = [0, 24], sizes = [8, 8], strides = [1, 1]} : vector<16x128xf32> to vector<8x8xf32>
    %74 = vector.extract_strided_slice %19 {offsets = [0, 24], sizes = [8, 8], strides = [1, 1]} : vector<16x128xf32> to vector<8x8xf32>
    %75 = vector.extract_strided_slice %20 {offsets = [0, 24], sizes = [8, 8], strides = [1, 1]} : vector<16x128xf32> to vector<8x8xf32>
    %cst_25 = arith.constant dense<0.000000e+00> : vector<8x8xf32>
    %76 = tpu.matmul %73, %74, %cst_25 {dimension_numbers = #tpu.dot_dimension_numbers<[1], [1], [0], [0], [0, 0, 1, 0], [], []>} : vector<8x8xf32>, vector<8x8xf32>, vector<8x8xf32> -> vector<8x8xf32>
    %77 = vector.extract_strided_slice %21 {offsets = [3, 0, 0], sizes = [1, 8, 8], strides = [1, 1, 1]} : vector<4x8x8xf32> to vector<1x8x8xf32>
    %78 = vector.shape_cast %77 : vector<1x8x8xf32> to vector<8x8xf32>
    %79 = arith.addf %76, %78 : vector<8x8xf32>
    %cst_26 = arith.constant dense<0xFF800000> : vector<8xf32>
    %80 = vector.multi_reduction <maximumf>, %79, %cst_26 [1] : vector<8x8xf32> to vector<8xf32>
    %81 = vector.shape_cast %80 : vector<8xf32> to vector<8x1xf32>
    %82 = vector.broadcast %81 : vector<8x1xf32> to vector<8x8xf32>
    %83 = arith.subf %79, %82 : vector<8x8xf32>
    %84 = math.exp %83 : vector<8x8xf32>
    %cst_27 = arith.constant dense<0.000000e+00> : vector<8xf32>
    %85 = vector.multi_reduction <add>, %84, %cst_27 [1] : vector<8x8xf32> to vector<8xf32>
    %86 = vector.shape_cast %85 : vector<8xf32> to vector<8x1xf32>
    %87 = vector.broadcast %86 : vector<8x1xf32> to vector<8x8xf32>
    %88 = arith.divf %84, %87 : vector<8x8xf32>
    %cst_28 = arith.constant dense<0.000000e+00> : vector<8x8xf32>
    %89 = tpu.matmul %88, %75, %cst_28 {dimension_numbers = #tpu.dot_dimension_numbers<[1], [0], [0], [1], [0, 0, 1, 1], [], []>} : vector<8x8xf32>, vector<8x8xf32>, vector<8x8xf32> -> vector<8x8xf32>
    %90 = tpu.concatenate %38, %55, %72, %89 in 1 : vector<8x8xf32>, vector<8x8xf32>, vector<8x8xf32>, vector<8x8xf32> -> vector<8x32xf32>
    %91 = vector.extract_strided_slice %18 {offsets = [8, 0], sizes = [8, 8], strides = [1, 1]} : vector<16x128xf32> to vector<8x8xf32>
    %92 = vector.extract_strided_slice %19 {offsets = [8, 0], sizes = [8, 8], strides = [1, 1]} : vector<16x128xf32> to vector<8x8xf32>
    %93 = vector.extract_strided_slice %20 {offsets = [8, 0], sizes = [8, 8], strides = [1, 1]} : vector<16x128xf32> to vector<8x8xf32>
    %cst_29 = arith.constant dense<0.000000e+00> : vector<8x8xf32>
    %94 = tpu.matmul %91, %92, %cst_29 {dimension_numbers = #tpu.dot_dimension_numbers<[1], [1], [0], [0], [0, 0, 1, 0], [], []>} : vector<8x8xf32>, vector<8x8xf32>, vector<8x8xf32> -> vector<8x8xf32>
    %95 = vector.extract_strided_slice %21 {offsets = [0, 0, 0], sizes = [1, 8, 8], strides = [1, 1, 1]} : vector<4x8x8xf32> to vector<1x8x8xf32>
    %96 = vector.shape_cast %95 : vector<1x8x8xf32> to vector<8x8xf32>
    %97 = arith.addf %94, %96 : vector<8x8xf32>
    %cst_30 = arith.constant dense<0xFF800000> : vector<8xf32>
    %98 = vector.multi_reduction <maximumf>, %97, %cst_30 [1] : vector<8x8xf32> to vector<8xf32>
    %99 = vector.shape_cast %98 : vector<8xf32> to vector<8x1xf32>
    %100 = vector.broadcast %99 : vector<8x1xf32> to vector<8x8xf32>
    %101 = arith.subf %97, %100 : vector<8x8xf32>
    %102 = math.exp %101 : vector<8x8xf32>
    %cst_31 = arith.constant dense<0.000000e+00> : vector<8xf32>
    %103 = vector.multi_reduction <add>, %102, %cst_31 [1] : vector<8x8xf32> to vector<8xf32>
    %104 = vector.shape_cast %103 : vector<8xf32> to vector<8x1xf32>
    %105 = vector.broadcast %104 : vector<8x1xf32> to vector<8x8xf32>
    %106 = arith.divf %102, %105 : vector<8x8xf32>
    %cst_32 = arith.constant dense<0.000000e+00> : vector<8x8xf32>
    %107 = tpu.matmul %106, %93, %cst_32 {dimension_numbers = #tpu.dot_dimension_numbers<[1], [0], [0], [1], [0, 0, 1, 1], [], []>} : vector<8x8xf32>, vector<8x8xf32>, vector<8x8xf32> -> vector<8x8xf32>
    %108 = vector.extract_strided_slice %18 {offsets = [8, 8], sizes = [8, 8], strides = [1, 1]} : vector<16x128xf32> to vector<8x8xf32>
    %109 = vector.extract_strided_slice %19 {offsets = [8, 8], sizes = [8, 8], strides = [1, 1]} : vector<16x128xf32> to vector<8x8xf32>
    %110 = vector.extract_strided_slice %20 {offsets = [8, 8], sizes = [8, 8], strides = [1, 1]} : vector<16x128xf32> to vector<8x8xf32>
    %cst_33 = arith.constant dense<0.000000e+00> : vector<8x8xf32>
    %111 = tpu.matmul %108, %109, %cst_33 {dimension_numbers = #tpu.dot_dimension_numbers<[1], [1], [0], [0], [0, 0, 1, 0], [], []>} : vector<8x8xf32>, vector<8x8xf32>, vector<8x8xf32> -> vector<8x8xf32>
    %112 = vector.extract_strided_slice %21 {offsets = [1, 0, 0], sizes = [1, 8, 8], strides = [1, 1, 1]} : vector<4x8x8xf32> to vector<1x8x8xf32>
    %113 = vector.shape_cast %112 : vector<1x8x8xf32> to vector<8x8xf32>
    %114 = arith.addf %111, %113 : vector<8x8xf32>
    %cst_34 = arith.constant dense<0xFF800000> : vector<8xf32>
    %115 = vector.multi_reduction <maximumf>, %114, %cst_34 [1] : vector<8x8xf32> to vector<8xf32>
    %116 = vector.shape_cast %115 : vector<8xf32> to vector<8x1xf32>
    %117 = vector.broadcast %116 : vector<8x1xf32> to vector<8x8xf32>
    %118 = arith.subf %114, %117 : vector<8x8xf32>
    %119 = math.exp %118 : vector<8x8xf32>
    %cst_35 = arith.constant dense<0.000000e+00> : vector<8xf32>
    %120 = vector.multi_reduction <add>, %119, %cst_35 [1] : vector<8x8xf32> to vector<8xf32>
    %121 = vector.shape_cast %120 : vector<8xf32> to vector<8x1xf32>
    %122 = vector.broadcast %121 : vector<8x1xf32> to vector<8x8xf32>
    %123 = arith.divf %119, %122 : vector<8x8xf32>
    %cst_36 = arith.constant dense<0.000000e+00> : vector<8x8xf32>
    %124 = tpu.matmul %123, %110, %cst_36 {dimension_numbers = #tpu.dot_dimension_numbers<[1], [0], [0], [1], [0, 0, 1, 1], [], []>} : vector<8x8xf32>, vector<8x8xf32>, vector<8x8xf32> -> vector<8x8xf32>
    %125 = vector.extract_strided_slice %18 {offsets = [8, 16], sizes = [8, 8], strides = [1, 1]} : vector<16x128xf32> to vector<8x8xf32>
    %126 = vector.extract_strided_slice %19 {offsets = [8, 16], sizes = [8, 8], strides = [1, 1]} : vector<16x128xf32> to vector<8x8xf32>
    %127 = vector.extract_strided_slice %20 {offsets = [8, 16], sizes = [8, 8], strides = [1, 1]} : vector<16x128xf32> to vector<8x8xf32>
    %cst_37 = arith.constant dense<0.000000e+00> : vector<8x8xf32>
    %128 = tpu.matmul %125, %126, %cst_37 {dimension_numbers = #tpu.dot_dimension_numbers<[1], [1], [0], [0], [0, 0, 1, 0], [], []>} : vector<8x8xf32>, vector<8x8xf32>, vector<8x8xf32> -> vector<8x8xf32>
    %129 = vector.extract_strided_slice %21 {offsets = [2, 0, 0], sizes = [1, 8, 8], strides = [1, 1, 1]} : vector<4x8x8xf32> to vector<1x8x8xf32>
    %130 = vector.shape_cast %129 : vector<1x8x8xf32> to vector<8x8xf32>
    %131 = arith.addf %128, %130 : vector<8x8xf32>
    %cst_38 = arith.constant dense<0xFF800000> : vector<8xf32>
    %132 = vector.multi_reduction <maximumf>, %131, %cst_38 [1] : vector<8x8xf32> to vector<8xf32>
    %133 = vector.shape_cast %132 : vector<8xf32> to vector<8x1xf32>
    %134 = vector.broadcast %133 : vector<8x1xf32> to vector<8x8xf32>
    %135 = arith.subf %131, %134 : vector<8x8xf32>
    %136 = math.exp %135 : vector<8x8xf32>
    %cst_39 = arith.constant dense<0.000000e+00> : vector<8xf32>
    %137 = vector.multi_reduction <add>, %136, %cst_39 [1] : vector<8x8xf32> to vector<8xf32>
    %138 = vector.shape_cast %137 : vector<8xf32> to vector<8x1xf32>
    %139 = vector.broadcast %138 : vector<8x1xf32> to vector<8x8xf32>
    %140 = arith.divf %136, %139 : vector<8x8xf32>
    %cst_40 = arith.constant dense<0.000000e+00> : vector<8x8xf32>
    %141 = tpu.matmul %140, %127, %cst_40 {dimension_numbers = #tpu.dot_dimension_numbers<[1], [0], [0], [1], [0, 0, 1, 1], [], []>} : vector<8x8xf32>, vector<8x8xf32>, vector<8x8xf32> -> vector<8x8xf32>
    %142 = vector.extract_strided_slice %18 {offsets = [8, 24], sizes = [8, 8], strides = [1, 1]} : vector<16x128xf32> to vector<8x8xf32>
    %143 = vector.extract_strided_slice %19 {offsets = [8, 24], sizes = [8, 8], strides = [1, 1]} : vector<16x128xf32> to vector<8x8xf32>
    %144 = vector.extract_strided_slice %20 {offsets = [8, 24], sizes = [8, 8], strides = [1, 1]} : vector<16x128xf32> to vector<8x8xf32>
    %cst_41 = arith.constant dense<0.000000e+00> : vector<8x8xf32>
    %145 = tpu.matmul %142, %143, %cst_41 {dimension_numbers = #tpu.dot_dimension_numbers<[1], [1], [0], [0], [0, 0, 1, 0], [], []>} : vector<8x8xf32>, vector<8x8xf32>, vector<8x8xf32> -> vector<8x8xf32>
    %146 = vector.extract_strided_slice %21 {offsets = [3, 0, 0], sizes = [1, 8, 8], strides = [1, 1, 1]} : vector<4x8x8xf32> to vector<1x8x8xf32>
    %147 = vector.shape_cast %146 : vector<1x8x8xf32> to vector<8x8xf32>
    %148 = arith.addf %145, %147 : vector<8x8xf32>
    %cst_42 = arith.constant dense<0xFF800000> : vector<8xf32>
    %149 = vector.multi_reduction <maximumf>, %148, %cst_42 [1] : vector<8x8xf32> to vector<8xf32>
    %150 = vector.shape_cast %149 : vector<8xf32> to vector<8x1xf32>
    %151 = vector.broadcast %150 : vector<8x1xf32> to vector<8x8xf32>
    %152 = arith.subf %148, %151 : vector<8x8xf32>
    %153 = math.exp %152 : vector<8x8xf32>
    %cst_43 = arith.constant dense<0.000000e+00> : vector<8xf32>
    %154 = vector.multi_reduction <add>, %153, %cst_43 [1] : vector<8x8xf32> to vector<8xf32>
    %155 = vector.shape_cast %154 : vector<8xf32> to vector<8x1xf32>
    %156 = vector.broadcast %155 : vector<8x1xf32> to vector<8x8xf32>
    %157 = arith.divf %153, %156 : vector<8x8xf32>
    %cst_44 = arith.constant dense<0.000000e+00> : vector<8x8xf32>
    %158 = tpu.matmul %157, %144, %cst_44 {dimension_numbers = #tpu.dot_dimension_numbers<[1], [0], [0], [1], [0, 0, 1, 1], [], []>} : vector<8x8xf32>, vector<8x8xf32>, vector<8x8xf32> -> vector<8x8xf32>
    %159 = tpu.concatenate %107, %124, %141, %158 in 1 : vector<8x8xf32>, vector<8x8xf32>, vector<8x8xf32>, vector<8x8xf32> -> vector<8x32xf32>
    %160 = tpu.concatenate %90, %159 in 0 : vector<8x32xf32>, vector<8x32xf32> -> vector<16x32xf32>
    %c0_45 = arith.constant 0 : index
    %c0_46 = arith.constant 0 : index
    %161 = vector.load %arg4[%c0_45, %c0_46] : memref<32x128xf32, #tpu.memory_space<vmem>>, vector<32x128xf32>
    %cst_47 = arith.constant dense<0.000000e+00> : vector<16x128xf32>
    %162 = tpu.matmul %160, %161, %cst_47 {dimension_numbers = #tpu.dot_dimension_numbers<[1], [0], [0], [1], [0, 0, 1, 1], [], []>} : vector<16x32xf32>, vector<32x128xf32>, vector<16x128xf32> -> vector<16x128xf32>
    %163 = arith.addf %0, %162 : vector<16x128xf32>
    %164 = vector.extract_strided_slice %2 {offsets = [1, 0], sizes = [1, 128], strides = [1, 1]} : vector<4x128xf32> to vector<1x128xf32>
    %165 = arith.mulf %163, %163 : vector<16x128xf32>
    %cst_48 = arith.constant dense<0.000000e+00> : vector<16xf32>
    %166 = vector.multi_reduction <add>, %165, %cst_48 [1] : vector<16x128xf32> to vector<16xf32>
    %167 = vector.shape_cast %166 : vector<16xf32> to vector<16x1xf32>
    %cst_49 = arith.constant 3.125000e-02 : f32
    %168 = vector.broadcast %cst_49 : f32 to vector<16x1xf32>
    %169 = arith.mulf %167, %168 : vector<16x1xf32>
    %cst_50 = arith.constant 9.99999997E-7 : f32
    %170 = vector.broadcast %cst_50 : f32 to vector<16x1xf32>
    %171 = arith.addf %169, %170 : vector<16x1xf32>
    %172 = math.rsqrt %171 : vector<16x1xf32>
    %173 = vector.broadcast %172 : vector<16x1xf32> to vector<16x128xf32>
    %174 = arith.mulf %163, %173 : vector<16x128xf32>
    %175 = vector.broadcast %164 : vector<1x128xf32> to vector<16x128xf32>
    %176 = arith.mulf %174, %175 : vector<16x128xf32>
    %c0_51 = arith.constant 0 : index
    %c0_52 = arith.constant 0 : index
    %177 = vector.load %arg5[%c0_51, %c0_52] : memref<128x128xf32, #tpu.memory_space<vmem>>, vector<128x128xf32>
    %cst_53 = arith.constant dense<0.000000e+00> : vector<16x128xf32>
    %178 = tpu.matmul %176, %177, %cst_53 {dimension_numbers = #tpu.dot_dimension_numbers<[1], [0], [0], [1], [0, 0, 1, 1], [], []>} : vector<16x128xf32>, vector<128x128xf32>, vector<16x128xf32> -> vector<16x128xf32>
    %c0_54 = arith.constant 0 : index
    %c0_55 = arith.constant 0 : index
    %179 = vector.load %arg6[%c0_54, %c0_55] : memref<128x256xf32, #tpu.memory_space<vmem>>, vector<128x256xf32>
    %cst_56 = arith.constant dense<0.000000e+00> : vector<16x256xf32>
    %180 = tpu.matmul %1, %179, %cst_56 {dimension_numbers = #tpu.dot_dimension_numbers<[1], [0], [0], [1], [0, 0, 1, 1], [], []>} : vector<16x128xf32>, vector<128x256xf32>, vector<16x256xf32> -> vector<16x256xf32>
    %181 = vector.extract_strided_slice %180 {offsets = [0, 0], sizes = [16, 128], strides = [1, 1]} : vector<16x256xf32> to vector<16x128xf32>
    %182 = vector.extract_strided_slice %180 {offsets = [0, 128], sizes = [16, 128], strides = [1, 1]} : vector<16x256xf32> to vector<16x128xf32>
    %183 = vector.extract_strided_slice %178 {offsets = [0, 0], sizes = [8, 8], strides = [1, 1]} : vector<16x128xf32> to vector<8x8xf32>
    %184 = vector.extract_strided_slice %181 {offsets = [0, 0], sizes = [8, 8], strides = [1, 1]} : vector<16x128xf32> to vector<8x8xf32>
    %185 = vector.extract_strided_slice %182 {offsets = [0, 0], sizes = [8, 8], strides = [1, 1]} : vector<16x128xf32> to vector<8x8xf32>
    %cst_57 = arith.constant dense<0.000000e+00> : vector<8x8xf32>
    %186 = tpu.matmul %183, %184, %cst_57 {dimension_numbers = #tpu.dot_dimension_numbers<[1], [1], [0], [0], [0, 0, 1, 0], [], []>} : vector<8x8xf32>, vector<8x8xf32>, vector<8x8xf32> -> vector<8x8xf32>
    %cst_58 = arith.constant dense<0xFF800000> : vector<8xf32>
    %187 = vector.multi_reduction <maximumf>, %186, %cst_58 [1] : vector<8x8xf32> to vector<8xf32>
    %188 = vector.shape_cast %187 : vector<8xf32> to vector<8x1xf32>
    %189 = vector.broadcast %188 : vector<8x1xf32> to vector<8x8xf32>
    %190 = arith.subf %186, %189 : vector<8x8xf32>
    %191 = math.exp %190 : vector<8x8xf32>
    %cst_59 = arith.constant dense<0.000000e+00> : vector<8xf32>
    %192 = vector.multi_reduction <add>, %191, %cst_59 [1] : vector<8x8xf32> to vector<8xf32>
    %193 = vector.shape_cast %192 : vector<8xf32> to vector<8x1xf32>
    %194 = vector.broadcast %193 : vector<8x1xf32> to vector<8x8xf32>
    %195 = arith.divf %191, %194 : vector<8x8xf32>
    %cst_60 = arith.constant dense<0.000000e+00> : vector<8x8xf32>
    %196 = tpu.matmul %195, %185, %cst_60 {dimension_numbers = #tpu.dot_dimension_numbers<[1], [0], [0], [1], [0, 0, 1, 1], [], []>} : vector<8x8xf32>, vector<8x8xf32>, vector<8x8xf32> -> vector<8x8xf32>
    %197 = vector.extract_strided_slice %178 {offsets = [0, 8], sizes = [8, 8], strides = [1, 1]} : vector<16x128xf32> to vector<8x8xf32>
    %198 = vector.extract_strided_slice %181 {offsets = [0, 8], sizes = [8, 8], strides = [1, 1]} : vector<16x128xf32> to vector<8x8xf32>
    %199 = vector.extract_strided_slice %182 {offsets = [0, 8], sizes = [8, 8], strides = [1, 1]} : vector<16x128xf32> to vector<8x8xf32>
    %cst_61 = arith.constant dense<0.000000e+00> : vector<8x8xf32>
    %200 = tpu.matmul %197, %198, %cst_61 {dimension_numbers = #tpu.dot_dimension_numbers<[1], [1], [0], [0], [0, 0, 1, 0], [], []>} : vector<8x8xf32>, vector<8x8xf32>, vector<8x8xf32> -> vector<8x8xf32>
    %cst_62 = arith.constant dense<0xFF800000> : vector<8xf32>
    %201 = vector.multi_reduction <maximumf>, %200, %cst_62 [1] : vector<8x8xf32> to vector<8xf32>
    %202 = vector.shape_cast %201 : vector<8xf32> to vector<8x1xf32>
    %203 = vector.broadcast %202 : vector<8x1xf32> to vector<8x8xf32>
    %204 = arith.subf %200, %203 : vector<8x8xf32>
    %205 = math.exp %204 : vector<8x8xf32>
    %cst_63 = arith.constant dense<0.000000e+00> : vector<8xf32>
    %206 = vector.multi_reduction <add>, %205, %cst_63 [1] : vector<8x8xf32> to vector<8xf32>
    %207 = vector.shape_cast %206 : vector<8xf32> to vector<8x1xf32>
    %208 = vector.broadcast %207 : vector<8x1xf32> to vector<8x8xf32>
    %209 = arith.divf %205, %208 : vector<8x8xf32>
    %cst_64 = arith.constant dense<0.000000e+00> : vector<8x8xf32>
    %210 = tpu.matmul %209, %199, %cst_64 {dimension_numbers = #tpu.dot_dimension_numbers<[1], [0], [0], [1], [0, 0, 1, 1], [], []>} : vector<8x8xf32>, vector<8x8xf32>, vector<8x8xf32> -> vector<8x8xf32>
    %211 = vector.extract_strided_slice %178 {offsets = [0, 16], sizes = [8, 8], strides = [1, 1]} : vector<16x128xf32> to vector<8x8xf32>
    %212 = vector.extract_strided_slice %181 {offsets = [0, 16], sizes = [8, 8], strides = [1, 1]} : vector<16x128xf32> to vector<8x8xf32>
    %213 = vector.extract_strided_slice %182 {offsets = [0, 16], sizes = [8, 8], strides = [1, 1]} : vector<16x128xf32> to vector<8x8xf32>
    %cst_65 = arith.constant dense<0.000000e+00> : vector<8x8xf32>
    %214 = tpu.matmul %211, %212, %cst_65 {dimension_numbers = #tpu.dot_dimension_numbers<[1], [1], [0], [0], [0, 0, 1, 0], [], []>} : vector<8x8xf32>, vector<8x8xf32>, vector<8x8xf32> -> vector<8x8xf32>
    %cst_66 = arith.constant dense<0xFF800000> : vector<8xf32>
    %215 = vector.multi_reduction <maximumf>, %214, %cst_66 [1] : vector<8x8xf32> to vector<8xf32>
    %216 = vector.shape_cast %215 : vector<8xf32> to vector<8x1xf32>
    %217 = vector.broadcast %216 : vector<8x1xf32> to vector<8x8xf32>
    %218 = arith.subf %214, %217 : vector<8x8xf32>
    %219 = math.exp %218 : vector<8x8xf32>
    %cst_67 = arith.constant dense<0.000000e+00> : vector<8xf32>
    %220 = vector.multi_reduction <add>, %219, %cst_67 [1] : vector<8x8xf32> to vector<8xf32>
    %221 = vector.shape_cast %220 : vector<8xf32> to vector<8x1xf32>
    %222 = vector.broadcast %221 : vector<8x1xf32> to vector<8x8xf32>
    %223 = arith.divf %219, %222 : vector<8x8xf32>
    %cst_68 = arith.constant dense<0.000000e+00> : vector<8x8xf32>
    %224 = tpu.matmul %223, %213, %cst_68 {dimension_numbers = #tpu.dot_dimension_numbers<[1], [0], [0], [1], [0, 0, 1, 1], [], []>} : vector<8x8xf32>, vector<8x8xf32>, vector<8x8xf32> -> vector<8x8xf32>
    %225 = vector.extract_strided_slice %178 {offsets = [0, 24], sizes = [8, 8], strides = [1, 1]} : vector<16x128xf32> to vector<8x8xf32>
    %226 = vector.extract_strided_slice %181 {offsets = [0, 24], sizes = [8, 8], strides = [1, 1]} : vector<16x128xf32> to vector<8x8xf32>
    %227 = vector.extract_strided_slice %182 {offsets = [0, 24], sizes = [8, 8], strides = [1, 1]} : vector<16x128xf32> to vector<8x8xf32>
    %cst_69 = arith.constant dense<0.000000e+00> : vector<8x8xf32>
    %228 = tpu.matmul %225, %226, %cst_69 {dimension_numbers = #tpu.dot_dimension_numbers<[1], [1], [0], [0], [0, 0, 1, 0], [], []>} : vector<8x8xf32>, vector<8x8xf32>, vector<8x8xf32> -> vector<8x8xf32>
    %cst_70 = arith.constant dense<0xFF800000> : vector<8xf32>
    %229 = vector.multi_reduction <maximumf>, %228, %cst_70 [1] : vector<8x8xf32> to vector<8xf32>
    %230 = vector.shape_cast %229 : vector<8xf32> to vector<8x1xf32>
    %231 = vector.broadcast %230 : vector<8x1xf32> to vector<8x8xf32>
    %232 = arith.subf %228, %231 : vector<8x8xf32>
    %233 = math.exp %232 : vector<8x8xf32>
    %cst_71 = arith.constant dense<0.000000e+00> : vector<8xf32>
    %234 = vector.multi_reduction <add>, %233, %cst_71 [1] : vector<8x8xf32> to vector<8xf32>
    %235 = vector.shape_cast %234 : vector<8xf32> to vector<8x1xf32>
    %236 = vector.broadcast %235 : vector<8x1xf32> to vector<8x8xf32>
    %237 = arith.divf %233, %236 : vector<8x8xf32>
    %cst_72 = arith.constant dense<0.000000e+00> : vector<8x8xf32>
    %238 = tpu.matmul %237, %227, %cst_72 {dimension_numbers = #tpu.dot_dimension_numbers<[1], [0], [0], [1], [0, 0, 1, 1], [], []>} : vector<8x8xf32>, vector<8x8xf32>, vector<8x8xf32> -> vector<8x8xf32>
    %239 = tpu.concatenate %196, %210, %224, %238 in 1 : vector<8x8xf32>, vector<8x8xf32>, vector<8x8xf32>, vector<8x8xf32> -> vector<8x32xf32>
    %240 = vector.extract_strided_slice %178 {offsets = [8, 0], sizes = [8, 8], strides = [1, 1]} : vector<16x128xf32> to vector<8x8xf32>
    %241 = vector.extract_strided_slice %181 {offsets = [8, 0], sizes = [8, 8], strides = [1, 1]} : vector<16x128xf32> to vector<8x8xf32>
    %242 = vector.extract_strided_slice %182 {offsets = [8, 0], sizes = [8, 8], strides = [1, 1]} : vector<16x128xf32> to vector<8x8xf32>
    %cst_73 = arith.constant dense<0.000000e+00> : vector<8x8xf32>
    %243 = tpu.matmul %240, %241, %cst_73 {dimension_numbers = #tpu.dot_dimension_numbers<[1], [1], [0], [0], [0, 0, 1, 0], [], []>} : vector<8x8xf32>, vector<8x8xf32>, vector<8x8xf32> -> vector<8x8xf32>
    %cst_74 = arith.constant dense<0xFF800000> : vector<8xf32>
    %244 = vector.multi_reduction <maximumf>, %243, %cst_74 [1] : vector<8x8xf32> to vector<8xf32>
    %245 = vector.shape_cast %244 : vector<8xf32> to vector<8x1xf32>
    %246 = vector.broadcast %245 : vector<8x1xf32> to vector<8x8xf32>
    %247 = arith.subf %243, %246 : vector<8x8xf32>
    %248 = math.exp %247 : vector<8x8xf32>
    %cst_75 = arith.constant dense<0.000000e+00> : vector<8xf32>
    %249 = vector.multi_reduction <add>, %248, %cst_75 [1] : vector<8x8xf32> to vector<8xf32>
    %250 = vector.shape_cast %249 : vector<8xf32> to vector<8x1xf32>
    %251 = vector.broadcast %250 : vector<8x1xf32> to vector<8x8xf32>
    %252 = arith.divf %248, %251 : vector<8x8xf32>
    %cst_76 = arith.constant dense<0.000000e+00> : vector<8x8xf32>
    %253 = tpu.matmul %252, %242, %cst_76 {dimension_numbers = #tpu.dot_dimension_numbers<[1], [0], [0], [1], [0, 0, 1, 1], [], []>} : vector<8x8xf32>, vector<8x8xf32>, vector<8x8xf32> -> vector<8x8xf32>
    %254 = vector.extract_strided_slice %178 {offsets = [8, 8], sizes = [8, 8], strides = [1, 1]} : vector<16x128xf32> to vector<8x8xf32>
    %255 = vector.extract_strided_slice %181 {offsets = [8, 8], sizes = [8, 8], strides = [1, 1]} : vector<16x128xf32> to vector<8x8xf32>
    %256 = vector.extract_strided_slice %182 {offsets = [8, 8], sizes = [8, 8], strides = [1, 1]} : vector<16x128xf32> to vector<8x8xf32>
    %cst_77 = arith.constant dense<0.000000e+00> : vector<8x8xf32>
    %257 = tpu.matmul %254, %255, %cst_77 {dimension_numbers = #tpu.dot_dimension_numbers<[1], [1], [0], [0], [0, 0, 1, 0], [], []>} : vector<8x8xf32>, vector<8x8xf32>, vector<8x8xf32> -> vector<8x8xf32>
    %cst_78 = arith.constant dense<0xFF800000> : vector<8xf32>
    %258 = vector.multi_reduction <maximumf>, %257, %cst_78 [1] : vector<8x8xf32> to vector<8xf32>
    %259 = vector.shape_cast %258 : vector<8xf32> to vector<8x1xf32>
    %260 = vector.broadcast %259 : vector<8x1xf32> to vector<8x8xf32>
    %261 = arith.subf %257, %260 : vector<8x8xf32>
    %262 = math.exp %261 : vector<8x8xf32>
    %cst_79 = arith.constant dense<0.000000e+00> : vector<8xf32>
    %263 = vector.multi_reduction <add>, %262, %cst_79 [1] : vector<8x8xf32> to vector<8xf32>
    %264 = vector.shape_cast %263 : vector<8xf32> to vector<8x1xf32>
    %265 = vector.broadcast %264 : vector<8x1xf32> to vector<8x8xf32>
    %266 = arith.divf %262, %265 : vector<8x8xf32>
    %cst_80 = arith.constant dense<0.000000e+00> : vector<8x8xf32>
    %267 = tpu.matmul %266, %256, %cst_80 {dimension_numbers = #tpu.dot_dimension_numbers<[1], [0], [0], [1], [0, 0, 1, 1], [], []>} : vector<8x8xf32>, vector<8x8xf32>, vector<8x8xf32> -> vector<8x8xf32>
    %268 = vector.extract_strided_slice %178 {offsets = [8, 16], sizes = [8, 8], strides = [1, 1]} : vector<16x128xf32> to vector<8x8xf32>
    %269 = vector.extract_strided_slice %181 {offsets = [8, 16], sizes = [8, 8], strides = [1, 1]} : vector<16x128xf32> to vector<8x8xf32>
    %270 = vector.extract_strided_slice %182 {offsets = [8, 16], sizes = [8, 8], strides = [1, 1]} : vector<16x128xf32> to vector<8x8xf32>
    %cst_81 = arith.constant dense<0.000000e+00> : vector<8x8xf32>
    %271 = tpu.matmul %268, %269, %cst_81 {dimension_numbers = #tpu.dot_dimension_numbers<[1], [1], [0], [0], [0, 0, 1, 0], [], []>} : vector<8x8xf32>, vector<8x8xf32>, vector<8x8xf32> -> vector<8x8xf32>
    %cst_82 = arith.constant dense<0xFF800000> : vector<8xf32>
    %272 = vector.multi_reduction <maximumf>, %271, %cst_82 [1] : vector<8x8xf32> to vector<8xf32>
    %273 = vector.shape_cast %272 : vector<8xf32> to vector<8x1xf32>
    %274 = vector.broadcast %273 : vector<8x1xf32> to vector<8x8xf32>
    %275 = arith.subf %271, %274 : vector<8x8xf32>
    %276 = math.exp %275 : vector<8x8xf32>
    %cst_83 = arith.constant dense<0.000000e+00> : vector<8xf32>
    %277 = vector.multi_reduction <add>, %276, %cst_83 [1] : vector<8x8xf32> to vector<8xf32>
    %278 = vector.shape_cast %277 : vector<8xf32> to vector<8x1xf32>
    %279 = vector.broadcast %278 : vector<8x1xf32> to vector<8x8xf32>
    %280 = arith.divf %276, %279 : vector<8x8xf32>
    %cst_84 = arith.constant dense<0.000000e+00> : vector<8x8xf32>
    %281 = tpu.matmul %280, %270, %cst_84 {dimension_numbers = #tpu.dot_dimension_numbers<[1], [0], [0], [1], [0, 0, 1, 1], [], []>} : vector<8x8xf32>, vector<8x8xf32>, vector<8x8xf32> -> vector<8x8xf32>
    %282 = vector.extract_strided_slice %178 {offsets = [8, 24], sizes = [8, 8], strides = [1, 1]} : vector<16x128xf32> to vector<8x8xf32>
    %283 = vector.extract_strided_slice %181 {offsets = [8, 24], sizes = [8, 8], strides = [1, 1]} : vector<16x128xf32> to vector<8x8xf32>
    %284 = vector.extract_strided_slice %182 {offsets = [8, 24], sizes = [8, 8], strides = [1, 1]} : vector<16x128xf32> to vector<8x8xf32>
    %cst_85 = arith.constant dense<0.000000e+00> : vector<8x8xf32>
    %285 = tpu.matmul %282, %283, %cst_85 {dimension_numbers = #tpu.dot_dimension_numbers<[1], [1], [0], [0], [0, 0, 1, 0], [], []>} : vector<8x8xf32>, vector<8x8xf32>, vector<8x8xf32> -> vector<8x8xf32>
    %cst_86 = arith.constant dense<0xFF800000> : vector<8xf32>
    %286 = vector.multi_reduction <maximumf>, %285, %cst_86 [1] : vector<8x8xf32> to vector<8xf32>
    %287 = vector.shape_cast %286 : vector<8xf32> to vector<8x1xf32>
    %288 = vector.broadcast %287 : vector<8x1xf32> to vector<8x8xf32>
    %289 = arith.subf %285, %288 : vector<8x8xf32>
    %290 = math.exp %289 : vector<8x8xf32>
    %cst_87 = arith.constant dense<0.000000e+00> : vector<8xf32>
    %291 = vector.multi_reduction <add>, %290, %cst_87 [1] : vector<8x8xf32> to vector<8xf32>
    %292 = vector.shape_cast %291 : vector<8xf32> to vector<8x1xf32>
    %293 = vector.broadcast %292 : vector<8x1xf32> to vector<8x8xf32>
    %294 = arith.divf %290, %293 : vector<8x8xf32>
    %cst_88 = arith.constant dense<0.000000e+00> : vector<8x8xf32>
    %295 = tpu.matmul %294, %284, %cst_88 {dimension_numbers = #tpu.dot_dimension_numbers<[1], [0], [0], [1], [0, 0, 1, 1], [], []>} : vector<8x8xf32>, vector<8x8xf32>, vector<8x8xf32> -> vector<8x8xf32>
    %296 = tpu.concatenate %253, %267, %281, %295 in 1 : vector<8x8xf32>, vector<8x8xf32>, vector<8x8xf32>, vector<8x8xf32> -> vector<8x32xf32>
    %297 = tpu.concatenate %239, %296 in 0 : vector<8x32xf32>, vector<8x32xf32> -> vector<16x32xf32>
    %c0_89 = arith.constant 0 : index
    %c0_90 = arith.constant 0 : index
    %298 = vector.load %arg7[%c0_89, %c0_90] : memref<32x128xf32, #tpu.memory_space<vmem>>, vector<32x128xf32>
    %cst_91 = arith.constant dense<0.000000e+00> : vector<16x128xf32>
    %299 = tpu.matmul %297, %298, %cst_91 {dimension_numbers = #tpu.dot_dimension_numbers<[1], [0], [0], [1], [0, 0, 1, 1], [], []>} : vector<16x32xf32>, vector<32x128xf32>, vector<16x128xf32> -> vector<16x128xf32>
    %300 = arith.addf %163, %299 : vector<16x128xf32>
    %301 = vector.extract_strided_slice %2 {offsets = [2, 0], sizes = [1, 128], strides = [1, 1]} : vector<4x128xf32> to vector<1x128xf32>
    %302 = arith.mulf %300, %300 : vector<16x128xf32>
    %cst_92 = arith.constant dense<0.000000e+00> : vector<16xf32>
    %303 = vector.multi_reduction <add>, %302, %cst_92 [1] : vector<16x128xf32> to vector<16xf32>
    %304 = vector.shape_cast %303 : vector<16xf32> to vector<16x1xf32>
    %cst_93 = arith.constant 3.125000e-02 : f32
    %305 = vector.broadcast %cst_93 : f32 to vector<16x1xf32>
    %306 = arith.mulf %304, %305 : vector<16x1xf32>
    %cst_94 = arith.constant 9.99999997E-7 : f32
    %307 = vector.broadcast %cst_94 : f32 to vector<16x1xf32>
    %308 = arith.addf %306, %307 : vector<16x1xf32>
    %309 = math.rsqrt %308 : vector<16x1xf32>
    %310 = vector.broadcast %309 : vector<16x1xf32> to vector<16x128xf32>
    %311 = arith.mulf %300, %310 : vector<16x128xf32>
    %312 = vector.broadcast %301 : vector<1x128xf32> to vector<16x128xf32>
    %313 = arith.mulf %311, %312 : vector<16x128xf32>
    %c0_95 = arith.constant 0 : index
    %c0_96 = arith.constant 0 : index
    %314 = vector.load %arg8[%c0_95, %c0_96] : memref<128x128xf32, #tpu.memory_space<vmem>>, vector<128x128xf32>
    %cst_97 = arith.constant dense<0.000000e+00> : vector<16x128xf32>
    %315 = tpu.matmul %313, %314, %cst_97 {dimension_numbers = #tpu.dot_dimension_numbers<[1], [0], [0], [1], [0, 0, 1, 1], [], []>} : vector<16x128xf32>, vector<128x128xf32>, vector<16x128xf32> -> vector<16x128xf32>
    %cst_98 = arith.constant 0.000000e+00 : f32
    %316 = vector.broadcast %cst_98 : f32 to vector<16x128xf32>
    %317 = arith.maximumf %315, %316 : vector<16x128xf32>
    %c0_99 = arith.constant 0 : index
    %c0_100 = arith.constant 0 : index
    %318 = vector.load %arg9[%c0_99, %c0_100] : memref<128x128xf32, #tpu.memory_space<vmem>>, vector<128x128xf32>
    %cst_101 = arith.constant dense<0.000000e+00> : vector<16x128xf32>
    %319 = tpu.matmul %317, %318, %cst_101 {dimension_numbers = #tpu.dot_dimension_numbers<[1], [0], [0], [1], [0, 0, 1, 1], [], []>} : vector<16x128xf32>, vector<128x128xf32>, vector<16x128xf32> -> vector<16x128xf32>
    %320 = arith.addf %300, %319 : vector<16x128xf32>
    %321 = vector.extract_strided_slice %2 {offsets = [3, 0], sizes = [1, 128], strides = [1, 1]} : vector<4x128xf32> to vector<1x128xf32>
    %322 = arith.mulf %320, %320 : vector<16x128xf32>
    %cst_102 = arith.constant dense<0.000000e+00> : vector<16xf32>
    %323 = vector.multi_reduction <add>, %322, %cst_102 [1] : vector<16x128xf32> to vector<16xf32>
    %324 = vector.shape_cast %323 : vector<16xf32> to vector<16x1xf32>
    %cst_103 = arith.constant 3.125000e-02 : f32
    %325 = vector.broadcast %cst_103 : f32 to vector<16x1xf32>
    %326 = arith.mulf %324, %325 : vector<16x1xf32>
    %cst_104 = arith.constant 9.99999997E-7 : f32
    %327 = vector.broadcast %cst_104 : f32 to vector<16x1xf32>
    %328 = arith.addf %326, %327 : vector<16x1xf32>
    %329 = math.rsqrt %328 : vector<16x1xf32>
    %330 = vector.broadcast %329 : vector<16x1xf32> to vector<16x128xf32>
    %331 = arith.mulf %320, %330 : vector<16x128xf32>
    %332 = vector.broadcast %321 : vector<1x128xf32> to vector<16x128xf32>
    %333 = arith.mulf %331, %332 : vector<16x128xf32>
    %c0_105 = arith.constant 0 : index
    %c0_106 = arith.constant 0 : index
    %334 = vector.load %arg11[%c0_105, %c0_106] : memref<128x128xf32, #tpu.memory_space<vmem>>, vector<128x128xf32>
    %cst_107 = arith.constant dense<0.000000e+00> : vector<16x128xf32>
    %335 = tpu.matmul %333, %334, %cst_107 {dimension_numbers = #tpu.dot_dimension_numbers<[1], [0], [0], [1], [0, 0, 1, 1], [], []>} : vector<16x128xf32>, vector<128x128xf32>, vector<16x128xf32> -> vector<16x128xf32>
    %cst_108 = arith.constant 0.176776692 : f32
    %336 = vector.broadcast %cst_108 : f32 to vector<16x128xf32>
    %337 = arith.mulf %336, %335 : vector<16x128xf32>
    %c0_109 = arith.constant 0 : index
    %c0_110 = arith.constant 0 : index
    %338 = vector.load %arg12[%c0_109, %c0_110] : memref<16x128xf32, #tpu.memory_space<vmem>>, vector<16x128xf32>
    tpu.vector_store %arg12[%c0_109, %c0_110], %337 {strides = array<i32>} : memref<16x128xf32, #tpu.memory_space<vmem>>, vector<16x128xf32>,
    return
  }
}

</mosaic_0001>

<llo_original>
// kernel: t5_forward.2
$region0: #{t5_forward.2}
  #allocation0 [shape = 'u32[]', space=smem, size = 0x4, offset = 0x4, fixed_abs, tag = 'smem constant byte address 0x4 - core index']
  #allocation1 [shape = 'u32[144,128]{1,0:T(1,128)}', space=vmem, size = 0x12000, scoped, tag = 'internal scratch']
  %s0 = inlined_call_operand.vmem [shape: f32[16,128], index: 0, kind: input, shape index: {}]
  %s1 = inlined_call_operand.vmem [shape: f32[3,128], index: 1, kind: input, shape index: {}]
  %s2 = inlined_call_operand.hbm [shape: f32[128,384], index: 2, kind: input, shape index: {}]
  %s3 = inlined_call_operand.hbm [shape: f32[32,128], index: 3, kind: input, shape index: {}]
  %s4 = inlined_call_operand.hbm [shape: f32[128,128], index: 4, kind: input, shape index: {}]
  %s5 = inlined_call_operand.hbm [shape: f32[128,128], index: 5, kind: input, shape index: {}]
  %s6 = inlined_call_operand.hbm [shape: f32[4,8,8], index: 6, kind: input, shape index: {}]
  %s7 = inlined_call_operand.vmem [shape: f32[16,128], index: 7, kind: output, shape index: {}]
  %s8 = sld [smem:[#allocation0]]
  $region58: #{t5_forward.2} parent=0
    _
  %s10 = ssub.s32 1, %s8
  %s11 = scalar_select 0, %s10, %s8
  $region1: #{t5_forward.2} parent=0
    #allocation2 [shape = 'u8[196608]{0}', space=vmem, size = 0x30000, scoped, tag = 'input window, operand 2, single buffered']
    #allocation3 [shape = 's32[1]{0}', space=sflag, size = 0x4, scoped, tag = 'scoped memory for t5_forward.2']
    #allocation4 [shape = 'u8[16384]{0}', space=vmem, size = 0x4000, scoped, tag = 'input window, operand 3, single buffered']
    #allocation5 [shape = 's32[1]{0}', space=sflag, size = 0x4, scoped, tag = 'scoped memory for t5_forward.2']
    #allocation6 [shape = 'u8[65536]{0}', space=vmem, size = 0x10000, scoped, tag = 'input window, operand 4, single buffered']
    #allocation7 [shape = 'u8[65536]{0}', space=vmem, size = 0x10000, scoped, tag = 'input window, operand 5, single buffered']
    #allocation8 [shape = 's32[1]{0}', space=sflag, size = 0x4, scoped, tag = 'scoped memory for t5_forward.2']
    #allocation9 [shape = 'u8[16384]{0}', space=vmem, size = 0x4000, scoped, tag = 'input window, operand 6, single buffered']
    %12 = vsyncpa [#allocation3], 0
    %13 = vsyncpa [#allocation5], 0
    %14 = vsyncpa [#allocation8], 0
    // Predicated region
    $region2: #{t5_forward.2} parent=1 // pred_check
      _
    $region3: #{t5_forward.2} parent=1 // pred_check_branch
      %16 = sbr.rel (0) target = $region5
    $region4: #{t5_forward.2} parent=1 // pred_region
      _
    $region5: #{t5_forward.2} parent=1 // pred_fallthru
      _
    // Predicated region
    $region6: #{t5_forward.2} parent=1 // pred_check
      _
    $region7: #{t5_forward.2} parent=1 // pred_check_branch
      %18 = sbr.rel (0) target = $region9
    $region8: #{t5_forward.2} parent=1 // pred_region
      _
    $region9: #{t5_forward.2} parent=1 // pred_fallthru
      _
    // Predicated region
    $region10: #{t5_forward.2} parent=1 // pred_check
      _
    $region11: #{t5_forward.2} parent=1 // pred_check_branch
      %20 = sbr.rel (0) target = $region13
    $region12: #{t5_forward.2} parent=1 // pred_region
      %s22 = ssub.s32 6144, 6144
      %23 = vsyncadd [#allocation3], %s22
      %s24 = sshll.u32 [#allocation2], 4
      %s25 = int_to_ptr.vmem [resolvable:$true] %s24
      %30 = dma.hbm_to_vmem [thread:$0]  %s2, 6144, %s25, [#allocation3], 384, 384, 24
    $region13: #{t5_forward.2} parent=1 // pred_fallthru
      _
    // Predicated region
    $region14: #{t5_forward.2} parent=1 // pred_check
      _
    $region15: #{t5_forward.2} parent=1 // pred_check_branch
      %32 = sbr.rel (0) target = $region17
    $region16: #{t5_forward.2} parent=1 // pred_region
      %s34 = ssub.s32 512, 512
      %35 = vsyncadd [#allocation5], %s34
      %s36 = sshll.u32 [#allocation4], 4
      %s37 = int_to_ptr.vmem [resolvable:$true] %s36
      %42 = dma.hbm_to_vmem [thread:$0]  %s3, 512, %s37, [#allocation5], 128, 128, 8
    $region17: #{t5_forward.2} parent=1 // pred_fallthru
      _
    // Predicated region
    $region18: #{t5_forward.2} parent=1 // pred_check
      _
    $region19: #{t5_forward.2} parent=1 // pred_check_branch
      %44 = sbr.rel (0) target = $region21
    $region20: #{t5_forward.2} parent=1 // pred_region
      %s46 = ssub.s32 2048, 2048
      %47 = vsyncadd [#allocation5], %s46
      %s48 = sshll.u32 [#allocation6], 4
      %s49 = int_to_ptr.vmem [resolvable:$true] %s48
      %54 = dma.hbm_to_vmem [thread:$0]  %s4, 2048, %s49, [#allocation5], 128, 128, 8
    $region21: #{t5_forward.2} parent=1 // pred_fallthru
      _
    // Predicated region
    $region22: #{t5_forward.2} parent=1 // pred_check
      _
    $region23: #{t5_forward.2} parent=1 // pred_check_branch
      %56 = sbr.rel (0) target = $region25
    $region24: #{t5_forward.2} parent=1 // pred_region
      %s58 = ssub.s32 2048, 2048
      %59 = vsyncadd [#allocation8], %s58
      %s60 = sshll.u32 [#allocation7], 4
      %s61 = int_to_ptr.vmem [resolvable:$true] %s60
      %66 = dma.hbm_to_vmem [thread:$0]  %s5, 2048, %s61, [#allocation8], 128, 128, 8
    $region25: #{t5_forward.2} parent=1 // pred_fallthru
      _
    // Predicated region
    $region26: #{t5_forward.2} parent=1 // pred_check
      _
    $region27: #{t5_forward.2} parent=1 // pred_check_branch
      %68 = sbr.rel (0) target = $region29
    $region28: #{t5_forward.2} parent=1 // pred_region
      %s70 = ssub.s32 512, 512
      %71 = vsyncadd [#allocation8], %s70
      %s72 = sshll.u32 [#allocation9], 4
      %s73 = int_to_ptr.vmem [resolvable:$true] %s72
      %78 = dma.hbm_to_vmem [thread:$0]  %s6, 512, %s73, [#allocation8], 128, 128, 8
    $region29: #{t5_forward.2} parent=1 // pred_fallthru
      _
    // Predicated region
    $region30: #{t5_forward.2} parent=1 // pred_check
      _
    $region31: #{t5_forward.2} parent=1 // pred_check_branch
      %80 = sbr.rel (0) target = $region33
    $region32: #{t5_forward.2} parent=1 // pred_region
      %81 = dma.done [#allocation3], 6144
    $region33: #{t5_forward.2} parent=1 // pred_fallthru
      _
    // Predicated region
    $region34: #{t5_forward.2} parent=1 // pred_check
      _
    $region35: #{t5_forward.2} parent=1 // pred_check_branch
      %83 = sbr.rel (0) target = $region37
    $region36: #{t5_forward.2} parent=1 // pred_region
      %84 = dma.done [#allocation5], 512
    $region37: #{t5_forward.2} parent=1 // pred_fallthru
      _
    // Predicated region
    $region38: #{t5_forward.2} parent=1 // pred_check
      _
    $region39: #{t5_forward.2} parent=1 // pred_check_branch
      %86 = sbr.rel (0) target = $region41
    $region40: #{t5_forward.2} parent=1 // pred_region
      %87 = dma.done [#allocation5], 2048
    $region41: #{t5_forward.2} parent=1 // pred_fallthru
      _
    // Predicated region
    $region42: #{t5_forward.2} parent=1 // pred_check
      _
    $region43: #{t5_forward.2} parent=1 // pred_check_branch
      %89 = sbr.rel (0) target = $region45
    $region44: #{t5_forward.2} parent=1 // pred_region
      %90 = dma.done [#allocation8], 2048
    $region45: #{t5_forward.2} parent=1 // pred_fallthru
      _
    // Predicated region
    $region46: #{t5_forward.2} parent=1 // pred_check
      _
    $region47: #{t5_forward.2} parent=1 // pred_check_branch
      %92 = sbr.rel (0) target = $region49
    $region48: #{t5_forward.2} parent=1 // pred_region
      %93 = dma.done [#allocation8], 512
    $region49: #{t5_forward.2} parent=1 // pred_fallthru
      _
    %v94 = vld [vmem:[%s0] sm:$0xff]
    %v95 = vld [vmem:[%s0 + $0x8] sm:$0xff]
    %v96 = vld [vmem:[%s1] sm:$0x7]
    %v97 = vmul.f32 %v94, %v94
    %v98 = vmul.f32 %v95, %v95
    %99 = vadd.xlane.f32.xlu0 %v97
    %v100 = vpop.xlane.xlu0 %99
    %101 = vadd.xlane.f32.xlu0 %v98
    %v102 = vpop.xlane.xlu0 %101
    %v103 = vmul.f32 %v100, 0.03125
    %v104 = vmul.f32 %v102, 0.03125
    %v105 = vadd.f32 %v103, 1e-06
    %v106 = vadd.f32 %v104, 1e-06
    %v107 = vrsqrt.pop %v105
    %v108 = vrsqrt.pop %v106
    %v109 = vmul.f32 %v94, %v107
    %v110 = vmul.f32 %v95, %v108
    %v111 = vlaneseq
    %v112 = vshrl.u32 %v111, 7
    %v113 = vsub.s32 0, %v112
    %v114 = vrot.slane %v96, %v113
    %v115 = vmul.f32 %v109, %v114
    %v116 = vmul.f32 %v110, %v114
    %v117 = vld [vmem:[#allocation2] sm:$0xff]
    %v118 = vld [vmem:[#allocation2 + $0x8] sm:$0xff]
    %v119 = vld [vmem:[#allocation2 + $0x10] sm:$0xff]
    %v120 = vld [vmem:[#allocation2 + $0x18] sm:$0xff]
    %v121 = vld [vmem:[#allocation2 + $0x20] sm:$0xff]
    %v122 = vld [vmem:[#allocation2 + $0x28] sm:$0xff]
    %v123 = vld [vmem:[#allocation2 + $0x30] sm:$0xff]
    %v124 = vld [vmem:[#allocation2 + $0x38] sm:$0xff]
    %v125 = vld [vmem:[#allocation2 + $0x40] sm:$0xff]
    %v126 = vld [vmem:[#allocation2 + $0x48] sm:$0xff]
    %v127 = vld [vmem:[#allocation2 + $0x50] sm:$0xff]
    %v128 = vld [vmem:[#allocation2 + $0x58] sm:$0xff]
    %v129 = vld [vmem:[#allocation2 + $0x60] sm:$0xff]
    %v130 = vld [vmem:[#allocation2 + $0x68] sm:$0xff]
    %v131 = vld [vmem:[#allocation2 + $0x70] sm:$0xff]
    %v132 = vld [vmem:[#allocation2 + $0x78] sm:$0xff]
    %v133 = vld [vmem:[#allocation2 + $0x80] sm:$0xff]
    %v134 = vld [vmem:[#allocation2 + $0x88] sm:$0xff]
    %v135 = vld [vmem:[#allocation2 + $0x90] sm:$0xff]
    %v136 = vld [vmem:[#allocation2 + $0x98] sm:$0xff]
    %v137 = vld [vmem:[#allocation2 + $0xa0] sm:$0xff]
    %v138 = vld [vmem:[#allocation2 + $0xa8] sm:$0xff]
    %v139 = vld [vmem:[#allocation2 + $0xb0] sm:$0xff]
    %v140 = vld [vmem:[#allocation2 + $0xb8] sm:$0xff]
    %v141 = vld [vmem:[#allocation2 + $0xc0] sm:$0xff]
    %v142 = vld [vmem:[#allocation2 + $0xc8] sm:$0xff]
    %v143 = vld [vmem:[#allocation2 + $0xd0] sm:$0xff]
    %v144 = vld [vmem:[#allocation2 + $0xd8] sm:$0xff]
    %v145 = vld [vmem:[#allocation2 + $0xe0] sm:$0xff]
    %v146 = vld [vmem:[#allocation2 + $0xe8] sm:$0xff]
    %v147 = vld [vmem:[#allocation2 + $0xf0] sm:$0xff]
    %v148 = vld [vmem:[#allocation2 + $0xf8] sm:$0xff]
    %v149 = vld [vmem:[#allocation2 + $0x100] sm:$0xff]
    %v150 = vld [vmem:[#allocation2 + $0x108] sm:$0xff]
    %v151 = vld [vmem:[#allocation2 + $0x110] sm:$0xff]
    %v152 = vld [vmem:[#allocation2 + $0x118] sm:$0xff]
    %v153 = vld [vmem:[#allocation2 + $0x120] sm:$0xff]
    %v154 = vld [vmem:[#allocation2 + $0x128] sm:$0xff]
    %v155 = vld [vmem:[#allocation2 + $0x130] sm:$0xff]
    %v156 = vld [vmem:[#allocation2 + $0x138] sm:$0xff]
    %v157 = vld [vmem:[#allocation2 + $0x140] sm:$0xff]
    %v158 = vld [vmem:[#allocation2 + $0x148] sm:$0xff]
    %v159 = vld [vmem:[#allocation2 + $0x150] sm:$0xff]
    %v160 = vld [vmem:[#allocation2 + $0x158] sm:$0xff]
    %v161 = vld [vmem:[#allocation2 + $0x160] sm:$0xff]
    %v162 = vld [vmem:[#allocation2 + $0x168] sm:$0xff]
    %v163 = vld [vmem:[#allocation2 + $0x170] sm:$0xff]
    %v164 = vld [vmem:[#allocation2 + $0x178] sm:$0xff]
    %165 = vmatprep.subr.mxu0 %v163
    %166 = vmatpush1.msra.mxu0 %v162
    %167 = vmatprep.subr.mxu0 %v160
    %168 = vmatpush1.msra.mxu0 %v159
    %169 = vmatprep.subr.mxu0 %v157
    %170 = vmatpush1.msra.mxu0 %v156
    %171 = vmatprep.subr.mxu0 %v154
    %172 = vmatpush1.msra.mxu0 %v153
    %173 = vmatprep.subr.mxu0 %v151
    %174 = vmatpush1.msra.mxu0 %v150
    %175 = vmatprep.subr.mxu0 %v148
    %176 = vmatpush1.msra.mxu0 %v147
    %177 = vmatprep.subr.mxu0 %v145
    %178 = vmatpush1.msra.mxu0 %v144
    %179 = vmatprep.subr.mxu0 %v142
    %180 = vmatpush1.msra.mxu0 %v141
    %181 = vmatprep.subr.mxu0 %v139
    %182 = vmatpush1.msra.mxu0 %v138
    %183 = vmatprep.subr.mxu0 %v136
    %184 = vmatpush1.msra.mxu0 %v135
    %185 = vmatprep.subr.mxu0 %v133
    %186 = vmatpush1.msra.mxu0 %v132
    %187 = vmatprep.subr.mxu0 %v130
    %188 = vmatpush1.msra.mxu0 %v129
    %189 = vmatprep.subr.mxu0 %v127
    %190 = vmatpush1.msra.mxu0 %v126
    %191 = vmatprep.subr.mxu0 %v124
    %192 = vmatpush1.msra.mxu0 %v123
    %193 = vmatprep.subr.mxu0 %v121
    %194 = vmatpush1.msra.mxu0 %v120
    %195 = vmatprep.subr.mxu0 %v118
    %196 = vmatpush1.msra.mxu0 %v117
    %197 = vmatprep.subr.mxu0 0.0
    %198 = vmatpush2.msra.mxu0 0.0
    %199 = vmatprep.subr.mxu0 0.0
    %200 = vmatpush2.msra.mxu0 0.0
    %201 = vmatprep.subr.mxu0 0.0
    %202 = vmatpush2.msra.mxu0 0.0
    %203 = vmatprep.subr.mxu0 0.0
    %204 = vmatpush2.msra.mxu0 0.0
    %205 = vmatprep.subr.mxu0 0.0
    %206 = vmatpush2.msra.mxu0 0.0
    %207 = vmatprep.subr.mxu0 0.0
    %208 = vmatpush2.msra.mxu0 0.0
    %209 = vmatprep.subr.mxu0 0.0
    %210 = vmatpush2.msra.mxu0 0.0
    %211 = vmatprep.subr.mxu0 0.0
    %212 = vmatpush2.msra.mxu0 0.0
    %213 = vmatprep.subr.mxu0 0.0
    %214 = vmatpush2.msra.mxu0 0.0
    %215 = vmatprep.subr.mxu0 0.0
    %216 = vmatpush2.msra.mxu0 0.0
    %217 = vmatprep.subr.mxu0 0.0
    %218 = vmatpush2.msra.mxu0 0.0
    %219 = vmatprep.subr.mxu0 0.0
    %220 = vmatpush2.msra.mxu0 0.0
    %221 = vmatprep.subr.mxu0 0.0
    %222 = vmatpush2.msra.mxu0 0.0
    %223 = vmatprep.subr.mxu0 0.0
    %224 = vmatpush2.msra.mxu0 0.0
    %225 = vmatprep.subr.mxu0 0.0
    %226 = vmatpush2.msra.mxu0 0.0
    %227 = vmatprep.subr.mxu0 0.0
    %228 = vmatpush2.msra.mxu0 0.0
    %229 = vmatprep.mubr.f32.mxu0 0.0
    %230 = vmatmul.mubr.f32.gmra.mxu0 %v115
    %v231 = vpop.f32.mrf.mxu0
    %v232 = vadd.f32 0.0, %v231
    %v233 = vpop.f32.mrf.mxu0
    %v234 = vadd.f32 0.0, %v233
    %235 = vmatprep.mubr.f32.mxu0 0.0
    %236 = vmatmul.mubr.f32.gmra.mxu0 %v116
    %v237 = vpop.f32.mrf.mxu0
    %v238 = vadd.f32 0.0, %v237
    %v239 = vpop.f32.mrf.mxu0
    %v240 = vadd.f32 0.0, %v239
    %241 = vdwg.mxu0
    %242 = vmatprep.subr.mxu0 0.0
    %243 = vmatpush1.msra.mxu0 %v164
    %244 = vmatprep.subr.mxu0 0.0
    %245 = vmatpush1.msra.mxu0 %v161
    %246 = vmatprep.subr.mxu0 0.0
    %247 = vmatpush1.msra.mxu0 %v158
    %248 = vmatprep.subr.mxu0 0.0
    %249 = vmatpush1.msra.mxu0 %v155
    %250 = vmatprep.subr.mxu0 0.0
    %251 = vmatpush1.msra.mxu0 %v152
    %252 = vmatprep.subr.mxu0 0.0
    %253 = vmatpush1.msra.mxu0 %v149
    %254 = vmatprep.subr.mxu0 0.0
    %255 = vmatpush1.msra.mxu0 %v146
    %256 = vmatprep.subr.mxu0 0.0
    %257 = vmatpush1.msra.mxu0 %v143
    %258 = vmatprep.subr.mxu0 0.0
    %259 = vmatpush1.msra.mxu0 %v140
    %260 = vmatprep.subr.mxu0 0.0
    %261 = vmatpush1.msra.mxu0 %v137
    %262 = vmatprep.subr.mxu0 0.0
    %263 = vmatpush1.msra.mxu0 %v134
    %264 = vmatprep.subr.mxu0 0.0
    %265 = vmatpush1.msra.mxu0 %v131
    %266 = vmatprep.subr.mxu0 0.0
    %267 = vmatpush1.msra.mxu0 %v128
    %268 = vmatprep.subr.mxu0 0.0
    %269 = vmatpush1.msra.mxu0 %v125
    %270 = vmatprep.subr.mxu0 0.0
    %271 = vmatpush1.msra.mxu0 %v122
    %272 = vmatprep.subr.mxu0 0.0
    %273 = vmatpush1.msra.mxu0 %v119
    %274 = vmatprep.subr.mxu0 0.0
    %275 = vmatpush2.msra.mxu0 0.0
    %276 = vmatprep.subr.mxu0 0.0
    %277 = vmatpush2.msra.mxu0 0.0
    %278 = vmatprep.subr.mxu0 0.0
    %279 = vmatpush2.msra.mxu0 0.0
    %280 = vmatprep.subr.mxu0 0.0
    %281 = vmatpush2.msra.mxu0 0.0
    %282 = vmatprep.subr.mxu0 0.0
    %283 = vmatpush2.msra.mxu0 0.0
    %284 = vmatprep.subr.mxu0 0.0
    %285 = vmatpush2.msra.mxu0 0.0
    %286 = vmatprep.subr.mxu0 0.0
    %287 = vmatpush2.msra.mxu0 0.0
    %288 = vmatprep.subr.mxu0 0.0
    %289 = vmatpush2.msra.mxu0 0.0
    %290 = vmatprep.subr.mxu0 0.0
    %291 = vmatpush2.msra.mxu0 0.0
    %292 = vmatprep.subr.mxu0 0.0
    %293 = vmatpush2.msra.mxu0 0.0
    %294 = vmatprep.subr.mxu0 0.0
    %295 = vmatpush2.msra.mxu0 0.0
    %296 = vmatprep.subr.mxu0 0.0
    %297 = vmatpush2.msra.mxu0 0.0
    %298 = vmatprep.subr.mxu0 0.0
    %299 = vmatpush2.msra.mxu0 0.0
    %300 = vmatprep.subr.mxu0 0.0
    %301 = vmatpush2.msra.mxu0 0.0
    %302 = vmatprep.subr.mxu0 0.0
    %303 = vmatpush2.msra.mxu0 0.0
    %304 = vmatprep.subr.mxu0 0.0
    %305 = vmatpush2.msra.mxu0 0.0
    %306 = vmatprep.mubr.f32.mxu0 0.0
    %307 = vmatmul.mubr.f32.gmra.mxu0 %v115
    %v308 = vpop.f32.mrf.mxu0
    %v309 = vadd.f32 0.0, %v308
    %v310 = vpop.f32.mrf.mxu0
    %311 = vmatprep.mubr.f32.mxu0 0.0
    %312 = vmatmul.mubr.f32.gmra.mxu0 %v116
    %v313 = vpop.f32.mrf.mxu0
    %v314 = vadd.f32 0.0, %v313
    %v315 = vpop.f32.mrf.mxu0
    %316 = vdwg.mxu0
    %v317 = vld [vmem:[#allocation9] sm:$0xff]
    %v318 = vld [vmem:[#allocation9 + $0x8] sm:$0xff]
    %v319 = vld [vmem:[#allocation9 + $0x10] sm:$0xff]
    %v320 = vld [vmem:[#allocation9 + $0x18] sm:$0xff]
    %vm321 = vcmask 64512
    %v323 = vsel %vm321, %v232, 0
    %v326 = vsel %vm321, %v234, 0
    %328 = vmatprep.subr.mxu0 0.0
    %329 = vmatpush1.xpose.msra.mxu0 0.0
    %330 = vmatprep.subr.mxu0 0.0
    %331 = vmatpush1.xpose.msra.mxu0 0.0
    %332 = vmatprep.subr.mxu0 0.0
    %333 = vmatpush1.xpose.msra.mxu0 0.0
    %334 = vmatprep.subr.mxu0 0.0
    %335 = vmatpush1.xpose.msra.mxu0 0.0
    %336 = vmatprep.subr.mxu0 0.0
    %337 = vmatpush1.xpose.msra.mxu0 0.0
    %338 = vmatprep.subr.mxu0 0.0
    %339 = vmatpush1.xpose.msra.mxu0 0.0
    %340 = vmatprep.subr.mxu0 0.0
    %341 = vmatpush1.xpose.msra.mxu0 0.0
    %342 = vmatprep.subr.mxu0 0.0
    %343 = vmatpush1.xpose.msra.mxu0 0.0
    %344 = vmatprep.subr.mxu0 0.0
    %345 = vmatpush1.xpose.msra.mxu0 0.0
    %346 = vmatprep.subr.mxu0 0.0
    %347 = vmatpush1.xpose.msra.mxu0 0.0
    %348 = vmatprep.subr.mxu0 0.0
    %349 = vmatpush1.xpose.msra.mxu0 0.0
    %350 = vmatprep.subr.mxu0 0.0
    %351 = vmatpush1.xpose.msra.mxu0 0.0
    %352 = vmatprep.subr.mxu0 0.0
    %353 = vmatpush1.xpose.msra.mxu0 0.0
    %354 = vmatprep.subr.mxu0 0.0
    %355 = vmatpush1.xpose.msra.mxu0 0.0
    %356 = vmatprep.subr.mxu0 0.0
    %357 = vmatpush1.xpose.msra.mxu0 0.0
    %358 = vmatprep.subr.mxu0 0.0
    %359 = vmatpush1.xpose.msra.mxu0 %v326
    %360 = vmatprep.subr.mxu0 0.0
    %361 = vmatpush2.xpose.msra.mxu0 0.0
    %362 = vmatprep.subr.mxu0 0.0
    %363 = vmatpush2.xpose.msra.mxu0 0.0
    %364 = vmatprep.subr.mxu0 0.0
    %365 = vmatpush2.xpose.msra.mxu0 0.0
    %366 = vmatprep.subr.mxu0 0.0
    %367 = vmatpush2.xpose.msra.mxu0 0.0
    %368 = vmatprep.subr.mxu0 0.0
    %369 = vmatpush2.xpose.msra.mxu0 0.0
    %370 = vmatprep.subr.mxu0 0.0
    %371 = vmatpush2.xpose.msra.mxu0 0.0
    %372 = vmatprep.subr.mxu0 0.0
    %373 = vmatpush2.xpose.msra.mxu0 0.0
    %374 = vmatprep.subr.mxu0 0.0
    %375 = vmatpush2.xpose.msra.mxu0 0.0
    %376 = vmatprep.subr.mxu0 0.0
    %377 = vmatpush2.xpose.msra.mxu0 0.0
    %378 = vmatprep.subr.mxu0 0.0
    %379 = vmatpush2.xpose.msra.mxu0 0.0
    %380 = vmatprep.subr.mxu0 0.0
    %381 = vmatpush2.xpose.msra.mxu0 0.0
    %382 = vmatprep.subr.mxu0 0.0
    %383 = vmatpush2.xpose.msra.mxu0 0.0
    %384 = vmatprep.subr.mxu0 0.0
    %385 = vmatpush2.xpose.msra.mxu0 0.0
    %386 = vmatprep.subr.mxu0 0.0
    %387 = vmatpush2.xpose.msra.mxu0 0.0
    %388 = vmatprep.subr.mxu0 0.0
    %389 = vmatpush2.xpose.msra.mxu0 0.0
    %390 = vmatprep.subr.mxu0 0.0
    %391 = vmatpush2.xpose.msra.mxu0 0.0
    %392 = vmatprep.mubr.f32.mxu0 0.0
    %393 = vmatmul.mubr.f32.gmra.mxu0 %v323
    %v394 = vpop.f32.mrf.mxu0
    %v395 = vadd.f32 %v317, %v394
    %v396 = vpop.f32.mrf.mxu0
    %397 = vdwg.mxu0
    %v398 = vsel %vm321, %v395, -inf
    %399 = vmax.xlane.f32.xlu0 %v398
    %v400 = vpop.xlane.xlu0 %399
    %v401 = vsub.f32 %v395, %v400
    %v402 = vmul.f32 %v401, 1.442695
    %v403 = vpow.pop %v402
    %v404 = vsel %vm321, %v403, 0.0
    %405 = vadd.xlane.f32.xlu0 %v404
    %v406 = vpop.xlane.xlu0 %405
    %v407 = vrcp.pop %v406
    %v408 = vmul.f32 %v403, %v407
    %v410 = vsel %vm321, %v408, 0
    %412 = vmatprep.subr.mxu0 0.0
    %413 = vmatpush1.msra.mxu0 0.0
    %414 = vmatprep.subr.mxu0 0.0
    %415 = vmatpush1.msra.mxu0 0.0
    %416 = vmatprep.subr.mxu0 0.0
    %417 = vmatpush1.msra.mxu0 0.0
    %418 = vmatprep.subr.mxu0 0.0
    %419 = vmatpush1.msra.mxu0 0.0
    %420 = vmatprep.subr.mxu0 0.0
    %421 = vmatpush1.msra.mxu0 0.0
    %422 = vmatprep.subr.mxu0 0.0
    %423 = vmatpush1.msra.mxu0 0.0
    %424 = vmatprep.subr.mxu0 0.0
    %425 = vmatpush1.msra.mxu0 0.0
    %426 = vmatprep.subr.mxu0 0.0
    %427 = vmatpush1.msra.mxu0 0.0
    %428 = vmatprep.subr.mxu0 0.0
    %429 = vmatpush1.msra.mxu0 0.0
    %430 = vmatprep.subr.mxu0 0.0
    %431 = vmatpush1.msra.mxu0 0.0
    %432 = vmatprep.subr.mxu0 0.0
    %433 = vmatpush1.msra.mxu0 0.0
    %434 = vmatprep.subr.mxu0 0.0
    %435 = vmatpush1.msra.mxu0 0.0
    %436 = vmatprep.subr.mxu0 0.0
    %437 = vmatpush1.msra.mxu0 0.0
    %438 = vmatprep.subr.mxu0 0.0
    %439 = vmatpush1.msra.mxu0 0.0
    %440 = vmatprep.subr.mxu0 0.0
    %441 = vmatpush1.msra.mxu0 0.0
    %442 = vmatprep.subr.mxu0 0.0
    %443 = vmatpush1.msra.mxu0 %v309
    %444 = vmatprep.subr.mxu0 0.0
    %445 = vmatpush2.msra.mxu0 0.0
    %446 = vmatprep.subr.mxu0 0.0
    %447 = vmatpush2.msra.mxu0 0.0
    %448 = vmatprep.subr.mxu0 0.0
    %449 = vmatpush2.msra.mxu0 0.0
    %450 = vmatprep.subr.mxu0 0.0
    %451 = vmatpush2.msra.mxu0 0.0
    %452 = vmatprep.subr.mxu0 0.0
    %453 = vmatpush2.msra.mxu0 0.0
    %454 = vmatprep.subr.mxu0 0.0
    %455 = vmatpush2.msra.mxu0 0.0
    %456 = vmatprep.subr.mxu0 0.0
    %457 = vmatpush2.msra.mxu0 0.0
    %458 = vmatprep.subr.mxu0 0.0
    %459 = vmatpush2.msra.mxu0 0.0
    %460 = vmatprep.subr.mxu0 0.0
    %461 = vmatpush2.msra.mxu0 0.0
    %462 = vmatprep.subr.mxu0 0.0
    %463 = vmatpush2.msra.mxu0 0.0
    %464 = vmatprep.subr.mxu0 0.0
    %465 = vmatpush2.msra.mxu0 0.0
    %466 = vmatprep.subr.mxu0 0.0
    %467 = vmatpush2.msra.mxu0 0.0
    %468 = vmatprep.subr.mxu0 0.0
    %469 = vmatpush2.msra.mxu0 0.0
    %470 = vmatprep.subr.mxu0 0.0
    %471 = vmatpush2.msra.mxu0 0.0
    %472 = vmatprep.subr.mxu0 0.0
    %473 = vmatpush2.msra.mxu0 0.0
    %474 = vmatprep.subr.mxu0 0.0
    %475 = vmatpush2.msra.mxu0 0.0
    %476 = vmatprep.mubr.f32.mxu0 0.0
    %477 = vmatmul.mubr.f32.gmra.mxu0 %v410
    %v478 = vpop.f32.mrf.mxu0
    %v479 = vadd.f32 0.0, %v478
    %v480 = vpop.f32.mrf.mxu0
    %481 = vdwg.mxu0
    %482 = vrot.lane.b32.xlu0 %v232, 120
    %v483 = vpop.permute.xlu0 %482
    %484 = vrot.lane.b32.xlu0 %v234, 120
    %v485 = vpop.permute.xlu0 %484
    %v486 = vsel %vm321, %v483, 0
    %v488 = vsel %vm321, %v485, 0
    %490 = vmatprep.subr.mxu0 0.0
    %491 = vmatpush1.xpose.msra.mxu0 0.0
    %492 = vmatprep.subr.mxu0 0.0
    %493 = vmatpush1.xpose.msra.mxu0 0.0
    %494 = vmatprep.subr.mxu0 0.0
    %495 = vmatpush1.xpose.msra.mxu0 0.0
    %496 = vmatprep.subr.mxu0 0.0
    %497 = vmatpush1.xpose.msra.mxu0 0.0
    %498 = vmatprep.subr.mxu0 0.0
    %499 = vmatpush1.xpose.msra.mxu0 0.0
    %500 = vmatprep.subr.mxu0 0.0
    %501 = vmatpush1.xpose.msra.mxu0 0.0
    %502 = vmatprep.subr.mxu0 0.0
    %503 = vmatpush1.xpose.msra.mxu0 0.0
    %504 = vmatprep.subr.mxu0 0.0
    %505 = vmatpush1.xpose.msra.mxu0 0.0
    %506 = vmatprep.subr.mxu0 0.0
    %507 = vmatpush1.xpose.msra.mxu0 0.0
    %508 = vmatprep.subr.mxu0 0.0
    %509 = vmatpush1.xpose.msra.mxu0 0.0
    %510 = vmatprep.subr.mxu0 0.0
    %511 = vmatpush1.xpose.msra.mxu0 0.0
    %512 = vmatprep.subr.mxu0 0.0
    %513 = vmatpush1.xpose.msra.mxu0 0.0
    %514 = vmatprep.subr.mxu0 0.0
    %515 = vmatpush1.xpose.msra.mxu0 0.0
    %516 = vmatprep.subr.mxu0 0.0
    %517 = vmatpush1.xpose.msra.mxu0 0.0
    %518 = vmatprep.subr.mxu0 0.0
    %519 = vmatpush1.xpose.msra.mxu0 0.0
    %520 = vmatprep.subr.mxu0 0.0
    %521 = vmatpush1.xpose.msra.mxu0 %v488
    %522 = vmatprep.subr.mxu0 0.0
    %523 = vmatpush2.xpose.msra.mxu0 0.0
    %524 = vmatprep.subr.mxu0 0.0
    %525 = vmatpush2.xpose.msra.mxu0 0.0
    %526 = vmatprep.subr.mxu0 0.0
    %527 = vmatpush2.xpose.msra.mxu0 0.0
    %528 = vmatprep.subr.mxu0 0.0
    %529 = vmatpush2.xpose.msra.mxu0 0.0
    %530 = vmatprep.subr.mxu0 0.0
    %531 = vmatpush2.xpose.msra.mxu0 0.0
    %532 = vmatprep.subr.mxu0 0.0
    %533 = vmatpush2.xpose.msra.mxu0 0.0
    %534 = vmatprep.subr.mxu0 0.0
    %535 = vmatpush2.xpose.msra.mxu0 0.0
    %536 = vmatprep.subr.mxu0 0.0
    %537 = vmatpush2.xpose.msra.mxu0 0.0
    %538 = vmatprep.subr.mxu0 0.0
    %539 = vmatpush2.xpose.msra.mxu0 0.0
    %540 = vmatprep.subr.mxu0 0.0
    %541 = vmatpush2.xpose.msra.mxu0 0.0
    %542 = vmatprep.subr.mxu0 0.0
    %543 = vmatpush2.xpose.msra.mxu0 0.0
    %544 = vmatprep.subr.mxu0 0.0
    %545 = vmatpush2.xpose.msra.mxu0 0.0
    %546 = vmatprep.subr.mxu0 0.0
    %547 = vmatpush2.xpose.msra.mxu0 0.0
    %548 = vmatprep.subr.mxu0 0.0
    %549 = vmatpush2.xpose.msra.mxu0 0.0
    %550 = vmatprep.subr.mxu0 0.0
    %551 = vmatpush2.xpose.msra.mxu0 0.0
    %552 = vmatprep.subr.mxu0 0.0
    %553 = vmatpush2.xpose.msra.mxu0 0.0
    %554 = vmatprep.mubr.f32.mxu0 0.0
    %555 = vmatmul.mubr.f32.gmra.mxu0 %v486
    %v556 = vpop.f32.mrf.mxu0
    %v557 = vadd.f32 %v318, %v556
    %v558 = vpop.f32.mrf.mxu0
    %559 = vdwg.mxu0
    %v560 = vsel %vm321, %v557, -inf
    %561 = vmax.xlane.f32.xlu0 %v560
    %v562 = vpop.xlane.xlu0 %561
    %v563 = vsub.f32 %v557, %v562
    %v564 = vmul.f32 %v563, 1.442695
    %v565 = vpow.pop %v564
    %v566 = vsel %vm321, %v565, 0.0
    %567 = vadd.xlane.f32.xlu0 %v566
    %v568 = vpop.xlane.xlu0 %567
    %v569 = vrcp.pop %v568
    %v570 = vmul.f32 %v565, %v569
    %572 = vrot.lane.b32.xlu0 %v309, 120
    %v573 = vpop.permute.xlu0 %572
    %v576 = vsel %vm321, %v570, 0
    %578 = vmatprep.subr.mxu0 0.0
    %579 = vmatpush1.msra.mxu0 0.0
    %580 = vmatprep.subr.mxu0 0.0
    %581 = vmatpush1.msra.mxu0 0.0
    %582 = vmatprep.subr.mxu0 0.0
    %583 = vmatpush1.msra.mxu0 0.0
    %584 = vmatprep.subr.mxu0 0.0
    %585 = vmatpush1.msra.mxu0 0.0
    %586 = vmatprep.subr.mxu0 0.0
    %587 = vmatpush1.msra.mxu0 0.0
    %588 = vmatprep.subr.mxu0 0.0
    %589 = vmatpush1.msra.mxu0 0.0
    %590 = vmatprep.subr.mxu0 0.0
    %591 = vmatpush1.msra.mxu0 0.0
    %592 = vmatprep.subr.mxu0 0.0
    %593 = vmatpush1.msra.mxu0 0.0
    %594 = vmatprep.subr.mxu0 0.0
    %595 = vmatpush1.msra.mxu0 0.0
    %596 = vmatprep.subr.mxu0 0.0
    %597 = vmatpush1.msra.mxu0 0.0
    %598 = vmatprep.subr.mxu0 0.0
    %599 = vmatpush1.msra.mxu0 0.0
    %600 = vmatprep.subr.mxu0 0.0
    %601 = vmatpush1.msra.mxu0 0.0
    %602 = vmatprep.subr.mxu0 0.0
    %603 = vmatpush1.msra.mxu0 0.0
    %604 = vmatprep.subr.mxu0 0.0
    %605 = vmatpush1.msra.mxu0 0.0
    %606 = vmatprep.subr.mxu0 0.0
    %607 = vmatpush1.msra.mxu0 0.0
    %608 = vmatprep.subr.mxu0 0.0
    %609 = vmatpush1.msra.mxu0 %v573
    %610 = vmatprep.subr.mxu0 0.0
    %611 = vmatpush2.msra.mxu0 0.0
    %612 = vmatprep.subr.mxu0 0.0
    %613 = vmatpush2.msra.mxu0 0.0
    %614 = vmatprep.subr.mxu0 0.0
    %615 = vmatpush2.msra.mxu0 0.0
    %616 = vmatprep.subr.mxu0 0.0
    %617 = vmatpush2.msra.mxu0 0.0
    %618 = vmatprep.subr.mxu0 0.0
    %619 = vmatpush2.msra.mxu0 0.0
    %620 = vmatprep.subr.mxu0 0.0
    %621 = vmatpush2.msra.mxu0 0.0
    %622 = vmatprep.subr.mxu0 0.0
    %623 = vmatpush2.msra.mxu0 0.0
    %624 = vmatprep.subr.mxu0 0.0
    %625 = vmatpush2.msra.mxu0 0.0
    %626 = vmatprep.subr.mxu0 0.0
    %627 = vmatpush2.msra.mxu0 0.0
    %628 = vmatprep.subr.mxu0 0.0
    %629 = vmatpush2.msra.mxu0 0.0
    %630 = vmatprep.subr.mxu0 0.0
    %631 = vmatpush2.msra.mxu0 0.0
    %632 = vmatprep.subr.mxu0 0.0
    %633 = vmatpush2.msra.mxu0 0.0
    %634 = vmatprep.subr.mxu0 0.0
    %635 = vmatpush2.msra.mxu0 0.0
    %636 = vmatprep.subr.mxu0 0.0
    %637 = vmatpush2.msra.mxu0 0.0
    %638 = vmatprep.subr.mxu0 0.0
    %639 = vmatpush2.msra.mxu0 0.0
    %640 = vmatprep.subr.mxu0 0.0
    %641 = vmatpush2.msra.mxu0 0.0
    %642 = vmatprep.mubr.f32.mxu0 0.0
    %643 = vmatmul.mubr.f32.gmra.mxu0 %v576
    %v644 = vpop.f32.mrf.mxu0
    %v645 = vadd.f32 0.0, %v644
    %v646 = vpop.f32.mrf.mxu0
    %647 = vdwg.mxu0
    %648 = vrot.lane.b32.xlu0 %v232, 112
    %v649 = vpop.permute.xlu0 %648
    %650 = vrot.lane.b32.xlu0 %v234, 112
    %v651 = vpop.permute.xlu0 %650
    %v652 = vsel %vm321, %v649, 0
    %v654 = vsel %vm321, %v651, 0
    %656 = vmatprep.subr.mxu0 0.0
    %657 = vmatpush1.xpose.msra.mxu0 0.0
    %658 = vmatprep.subr.mxu0 0.0
    %659 = vmatpush1.xpose.msra.mxu0 0.0
    %660 = vmatprep.subr.mxu0 0.0
    %661 = vmatpush1.xpose.msra.mxu0 0.0
    %662 = vmatprep.subr.mxu0 0.0
    %663 = vmatpush1.xpose.msra.mxu0 0.0
    %664 = vmatprep.subr.mxu0 0.0
    %665 = vmatpush1.xpose.msra.mxu0 0.0
    %666 = vmatprep.subr.mxu0 0.0
    %667 = vmatpush1.xpose.msra.mxu0 0.0
    %668 = vmatprep.subr.mxu0 0.0
    %669 = vmatpush1.xpose.msra.mxu0 0.0
    %670 = vmatprep.subr.mxu0 0.0
    %671 = vmatpush1.xpose.msra.mxu0 0.0
    %672 = vmatprep.subr.mxu0 0.0
    %673 = vmatpush1.xpose.msra.mxu0 0.0
    %674 = vmatprep.subr.mxu0 0.0
    %675 = vmatpush1.xpose.msra.mxu0 0.0
    %676 = vmatprep.subr.mxu0 0.0
    %677 = vmatpush1.xpose.msra.mxu0 0.0
    %678 = vmatprep.subr.mxu0 0.0
    %679 = vmatpush1.xpose.msra.mxu0 0.0
    %680 = vmatprep.subr.mxu0 0.0
    %681 = vmatpush1.xpose.msra.mxu0 0.0
    %682 = vmatprep.subr.mxu0 0.0
    %683 = vmatpush1.xpose.msra.mxu0 0.0
    %684 = vmatprep.subr.mxu0 0.0
    %685 = vmatpush1.xpose.msra.mxu0 0.0
    %686 = vmatprep.subr.mxu0 0.0
    %687 = vmatpush1.xpose.msra.mxu0 %v654
    %688 = vmatprep.subr.mxu0 0.0
    %689 = vmatpush2.xpose.msra.mxu0 0.0
    %690 = vmatprep.subr.mxu0 0.0
    %691 = vmatpush2.xpose.msra.mxu0 0.0
    %692 = vmatprep.subr.mxu0 0.0
    %693 = vmatpush2.xpose.msra.mxu0 0.0
    %694 = vmatprep.subr.mxu0 0.0
    %695 = vmatpush2.xpose.msra.mxu0 0.0
    %696 = vmatprep.subr.mxu0 0.0
    %697 = vmatpush2.xpose.msra.mxu0 0.0
    %698 = vmatprep.subr.mxu0 0.0
    %699 = vmatpush2.xpose.msra.mxu0 0.0
    %700 = vmatprep.subr.mxu0 0.0
    %701 = vmatpush2.xpose.msra.mxu0 0.0
    %702 = vmatprep.subr.mxu0 0.0
    %703 = vmatpush2.xpose.msra.mxu0 0.0
    %704 = vmatprep.subr.mxu0 0.0
    %705 = vmatpush2.xpose.msra.mxu0 0.0
    %706 = vmatprep.subr.mxu0 0.0
    %707 = vmatpush2.xpose.msra.mxu0 0.0
    %708 = vmatprep.subr.mxu0 0.0
    %709 = vmatpush2.xpose.msra.mxu0 0.0
    %710 = vmatprep.subr.mxu0 0.0
    %711 = vmatpush2.xpose.msra.mxu0 0.0
    %712 = vmatprep.subr.mxu0 0.0
    %713 = vmatpush2.xpose.msra.mxu0 0.0
    %714 = vmatprep.subr.mxu0 0.0
    %715 = vmatpush2.xpose.msra.mxu0 0.0
    %716 = vmatprep.subr.mxu0 0.0
    %717 = vmatpush2.xpose.msra.mxu0 0.0
    %718 = vmatprep.subr.mxu0 0.0
    %719 = vmatpush2.xpose.msra.mxu0 0.0
    %720 = vmatprep.mubr.f32.mxu0 0.0
    %721 = vmatmul.mubr.f32.gmra.mxu0 %v652
    %v722 = vpop.f32.mrf.mxu0
    %v723 = vadd.f32 %v319, %v722
    %v724 = vpop.f32.mrf.mxu0
    %725 = vdwg.mxu0
    %v726 = vsel %vm321, %v723, -inf
    %727 = vmax.xlane.f32.xlu0 %v726
    %v728 = vpop.xlane.xlu0 %727
    %v729 = vsub.f32 %v723, %v728
    %v730 = vmul.f32 %v729, 1.442695
    %v731 = vpow.pop %v730
    %v732 = vsel %vm321, %v731, 0.0
    %733 = vadd.xlane.f32.xlu0 %v732
    %v734 = vpop.xlane.xlu0 %733
    %v735 = vrcp.pop %v734
    %v736 = vmul.f32 %v731, %v735
    %737 = vrot.lane.b32.xlu0 %v309, 112
    %v738 = vpop.permute.xlu0 %737
    %v741 = vsel %vm321, %v736, 0
    %743 = vmatprep.subr.mxu0 0.0
    %744 = vmatpush1.msra.mxu0 0.0
    %745 = vmatprep.subr.mxu0 0.0
    %746 = vmatpush1.msra.mxu0 0.0
    %747 = vmatprep.subr.mxu0 0.0
    %748 = vmatpush1.msra.mxu0 0.0
    %749 = vmatprep.subr.mxu0 0.0
    %750 = vmatpush1.msra.mxu0 0.0
    %751 = vmatprep.subr.mxu0 0.0
    %752 = vmatpush1.msra.mxu0 0.0
    %753 = vmatprep.subr.mxu0 0.0
    %754 = vmatpush1.msra.mxu0 0.0
    %755 = vmatprep.subr.mxu0 0.0
    %756 = vmatpush1.msra.mxu0 0.0
    %757 = vmatprep.subr.mxu0 0.0
    %758 = vmatpush1.msra.mxu0 0.0
    %759 = vmatprep.subr.mxu0 0.0
    %760 = vmatpush1.msra.mxu0 0.0
    %761 = vmatprep.subr.mxu0 0.0
    %762 = vmatpush1.msra.mxu0 0.0
    %763 = vmatprep.subr.mxu0 0.0
    %764 = vmatpush1.msra.mxu0 0.0
    %765 = vmatprep.subr.mxu0 0.0
    %766 = vmatpush1.msra.mxu0 0.0
    %767 = vmatprep.subr.mxu0 0.0
    %768 = vmatpush1.msra.mxu0 0.0
    %769 = vmatprep.subr.mxu0 0.0
    %770 = vmatpush1.msra.mxu0 0.0
    %771 = vmatprep.subr.mxu0 0.0
    %772 = vmatpush1.msra.mxu0 0.0
    %773 = vmatprep.subr.mxu0 0.0
    %774 = vmatpush1.msra.mxu0 %v738
    %775 = vmatprep.subr.mxu0 0.0
    %776 = vmatpush2.msra.mxu0 0.0
    %777 = vmatprep.subr.mxu0 0.0
    %778 = vmatpush2.msra.mxu0 0.0
    %779 = vmatprep.subr.mxu0 0.0
    %780 = vmatpush2.msra.mxu0 0.0
    %781 = vmatprep.subr.mxu0 0.0
    %782 = vmatpush2.msra.mxu0 0.0
    %783 = vmatprep.subr.mxu0 0.0
    %784 = vmatpush2.msra.mxu0 0.0
    %785 = vmatprep.subr.mxu0 0.0
    %786 = vmatpush2.msra.mxu0 0.0
    %787 = vmatprep.subr.mxu0 0.0
    %788 = vmatpush2.msra.mxu0 0.0
    %789 = vmatprep.subr.mxu0 0.0
    %790 = vmatpush2.msra.mxu0 0.0
    %791 = vmatprep.subr.mxu0 0.0
    %792 = vmatpush2.msra.mxu0 0.0
    %793 = vmatprep.subr.mxu0 0.0
    %794 = vmatpush2.msra.mxu0 0.0
    %795 = vmatprep.subr.mxu0 0.0
    %796 = vmatpush2.msra.mxu0 0.0
    %797 = vmatprep.subr.mxu0 0.0
    %798 = vmatpush2.msra.mxu0 0.0
    %799 = vmatprep.subr.mxu0 0.0
    %800 = vmatpush2.msra.mxu0 0.0
    %801 = vmatprep.subr.mxu0 0.0
    %802 = vmatpush2.msra.mxu0 0.0
    %803 = vmatprep.subr.mxu0 0.0
    %804 = vmatpush2.msra.mxu0 0.0
    %805 = vmatprep.subr.mxu0 0.0
    %806 = vmatpush2.msra.mxu0 0.0
    %807 = vmatprep.mubr.f32.mxu0 0.0
    %808 = vmatmul.mubr.f32.gmra.mxu0 %v741
    %v809 = vpop.f32.mrf.mxu0
    %v810 = vadd.f32 0.0, %v809
    %v811 = vpop.f32.mrf.mxu0
    %812 = vdwg.mxu0
    %813 = vrot.lane.b32.xlu0 %v232, 104
    %v814 = vpop.permute.xlu0 %813
    %815 = vrot.lane.b32.xlu0 %v234, 104
    %v816 = vpop.permute.xlu0 %815
    %v817 = vsel %vm321, %v814, 0
    %v819 = vsel %vm321, %v816, 0
    %821 = vmatprep.subr.mxu0 0.0
    %822 = vmatpush1.xpose.msra.mxu0 0.0
    %823 = vmatprep.subr.mxu0 0.0
    %824 = vmatpush1.xpose.msra.mxu0 0.0
    %825 = vmatprep.subr.mxu0 0.0
    %826 = vmatpush1.xpose.msra.mxu0 0.0
    %827 = vmatprep.subr.mxu0 0.0
    %828 = vmatpush1.xpose.msra.mxu0 0.0
    %829 = vmatprep.subr.mxu0 0.0
    %830 = vmatpush1.xpose.msra.mxu0 0.0
    %831 = vmatprep.subr.mxu0 0.0
    %832 = vmatpush1.xpose.msra.mxu0 0.0
    %833 = vmatprep.subr.mxu0 0.0
    %834 = vmatpush1.xpose.msra.mxu0 0.0
    %835 = vmatprep.subr.mxu0 0.0
    %836 = vmatpush1.xpose.msra.mxu0 0.0
    %837 = vmatprep.subr.mxu0 0.0
    %838 = vmatpush1.xpose.msra.mxu0 0.0
    %839 = vmatprep.subr.mxu0 0.0
    %840 = vmatpush1.xpose.msra.mxu0 0.0
    %841 = vmatprep.subr.mxu0 0.0
    %842 = vmatpush1.xpose.msra.mxu0 0.0
    %843 = vmatprep.subr.mxu0 0.0
    %844 = vmatpush1.xpose.msra.mxu0 0.0
    %845 = vmatprep.subr.mxu0 0.0
    %846 = vmatpush1.xpose.msra.mxu0 0.0
    %847 = vmatprep.subr.mxu0 0.0
    %848 = vmatpush1.xpose.msra.mxu0 0.0
    %849 = vmatprep.subr.mxu0 0.0
    %850 = vmatpush1.xpose.msra.mxu0 0.0
    %851 = vmatprep.subr.mxu0 0.0
    %852 = vmatpush1.xpose.msra.mxu0 %v819
    %853 = vmatprep.subr.mxu0 0.0
    %854 = vmatpush2.xpose.msra.mxu0 0.0
    %855 = vmatprep.subr.mxu0 0.0
    %856 = vmatpush2.xpose.msra.mxu0 0.0
    %857 = vmatprep.subr.mxu0 0.0
    %858 = vmatpush2.xpose.msra.mxu0 0.0
    %859 = vmatprep.subr.mxu0 0.0
    %860 = vmatpush2.xpose.msra.mxu0 0.0
    %861 = vmatprep.subr.mxu0 0.0
    %862 = vmatpush2.xpose.msra.mxu0 0.0
    %863 = vmatprep.subr.mxu0 0.0
    %864 = vmatpush2.xpose.msra.mxu0 0.0
    %865 = vmatprep.subr.mxu0 0.0
    %866 = vmatpush2.xpose.msra.mxu0 0.0
    %867 = vmatprep.subr.mxu0 0.0
    %868 = vmatpush2.xpose.msra.mxu0 0.0
    %869 = vmatprep.subr.mxu0 0.0
    %870 = vmatpush2.xpose.msra.mxu0 0.0
    %871 = vmatprep.subr.mxu0 0.0
    %872 = vmatpush2.xpose.msra.mxu0 0.0
    %873 = vmatprep.subr.mxu0 0.0
    %874 = vmatpush2.xpose.msra.mxu0 0.0
    %875 = vmatprep.subr.mxu0 0.0
    %876 = vmatpush2.xpose.msra.mxu0 0.0
    %877 = vmatprep.subr.mxu0 0.0
    %878 = vmatpush2.xpose.msra.mxu0 0.0
    %879 = vmatprep.subr.mxu0 0.0
    %880 = vmatpush2.xpose.msra.mxu0 0.0
    %881 = vmatprep.subr.mxu0 0.0
    %882 = vmatpush2.xpose.msra.mxu0 0.0
    %883 = vmatprep.subr.mxu0 0.0
    %884 = vmatpush2.xpose.msra.mxu0 0.0
    %885 = vmatprep.mubr.f32.mxu0 0.0
    %886 = vmatmul.mubr.f32.gmra.mxu0 %v817
    %v887 = vpop.f32.mrf.mxu0
    %v888 = vadd.f32 %v320, %v887
    %v889 = vpop.f32.mrf.mxu0
    %890 = vdwg.mxu0
    %v891 = vsel %vm321, %v888, -inf
    %892 = vmax.xlane.f32.xlu0 %v891
    %v893 = vpop.xlane.xlu0 %892
    %v894 = vsub.f32 %v888, %v893
    %v895 = vmul.f32 %v894, 1.442695
    %v896 = vpow.pop %v895
    %v897 = vsel %vm321, %v896, 0.0
    %898 = vadd.xlane.f32.xlu0 %v897
    %v899 = vpop.xlane.xlu0 %898
    %v900 = vrcp.pop %v899
    %v901 = vmul.f32 %v896, %v900
    %902 = vrot.lane.b32.xlu0 %v309, 104
    %v903 = vpop.permute.xlu0 %902
    %v906 = vsel %vm321, %v901, 0
    %908 = vmatprep.subr.mxu0 0.0
    %909 = vmatpush1.msra.mxu0 0.0
    %910 = vmatprep.subr.mxu0 0.0
    %911 = vmatpush1.msra.mxu0 0.0
    %912 = vmatprep.subr.mxu0 0.0
    %913 = vmatpush1.msra.mxu0 0.0
    %914 = vmatprep.subr.mxu0 0.0
    %915 = vmatpush1.msra.mxu0 0.0
    %916 = vmatprep.subr.mxu0 0.0
    %917 = vmatpush1.msra.mxu0 0.0
    %918 = vmatprep.subr.mxu0 0.0
    %919 = vmatpush1.msra.mxu0 0.0
    %920 = vmatprep.subr.mxu0 0.0
    %921 = vmatpush1.msra.mxu0 0.0
    %922 = vmatprep.subr.mxu0 0.0
    %923 = vmatpush1.msra.mxu0 0.0
    %924 = vmatprep.subr.mxu0 0.0
    %925 = vmatpush1.msra.mxu0 0.0
    %926 = vmatprep.subr.mxu0 0.0
    %927 = vmatpush1.msra.mxu0 0.0
    %928 = vmatprep.subr.mxu0 0.0
    %929 = vmatpush1.msra.mxu0 0.0
    %930 = vmatprep.subr.mxu0 0.0
    %931 = vmatpush1.msra.mxu0 0.0
    %932 = vmatprep.subr.mxu0 0.0
    %933 = vmatpush1.msra.mxu0 0.0
    %934 = vmatprep.subr.mxu0 0.0
    %935 = vmatpush1.msra.mxu0 0.0
    %936 = vmatprep.subr.mxu0 0.0
    %937 = vmatpush1.msra.mxu0 0.0
    %938 = vmatprep.subr.mxu0 0.0
    %939 = vmatpush1.msra.mxu0 %v903
    %940 = vmatprep.subr.mxu0 0.0
    %941 = vmatpush2.msra.mxu0 0.0
    %942 = vmatprep.subr.mxu0 0.0
    %943 = vmatpush2.msra.mxu0 0.0
    %944 = vmatprep.subr.mxu0 0.0
    %945 = vmatpush2.msra.mxu0 0.0
    %946 = vmatprep.subr.mxu0 0.0
    %947 = vmatpush2.msra.mxu0 0.0
    %948 = vmatprep.subr.mxu0 0.0
    %949 = vmatpush2.msra.mxu0 0.0
    %950 = vmatprep.subr.mxu0 0.0
    %951 = vmatpush2.msra.mxu0 0.0
    %952 = vmatprep.subr.mxu0 0.0
    %953 = vmatpush2.msra.mxu0 0.0
    %954 = vmatprep.subr.mxu0 0.0
    %955 = vmatpush2.msra.mxu0 0.0
    %956 = vmatprep.subr.mxu0 0.0
    %957 = vmatpush2.msra.mxu0 0.0
    %958 = vmatprep.subr.mxu0 0.0
    %959 = vmatpush2.msra.mxu0 0.0
    %960 = vmatprep.subr.mxu0 0.0
    %961 = vmatpush2.msra.mxu0 0.0
    %962 = vmatprep.subr.mxu0 0.0
    %963 = vmatpush2.msra.mxu0 0.0
    %964 = vmatprep.subr.mxu0 0.0
    %965 = vmatpush2.msra.mxu0 0.0
    %966 = vmatprep.subr.mxu0 0.0
    %967 = vmatpush2.msra.mxu0 0.0
    %968 = vmatprep.subr.mxu0 0.0
    %969 = vmatpush2.msra.mxu0 0.0
    %970 = vmatprep.subr.mxu0 0.0
    %971 = vmatpush2.msra.mxu0 0.0
    %972 = vmatprep.mubr.f32.mxu0 0.0
    %973 = vmatmul.mubr.f32.gmra.mxu0 %v906
    %v974 = vpop.f32.mrf.mxu0
    %v975 = vadd.f32 0.0, %v974
    %v976 = vpop.f32.mrf.mxu0
    %977 = vdwg.mxu0
    %979 = vrot.lane.b32.xlu0 %v645, 8
    %v980 = vpop.permute.xlu0 %979
    %983 = vrot.lane.b32.xlu0 %v810, 16
    %v984 = vpop.permute.xlu0 %983
    %987 = vrot.lane.b32.xlu0 %v975, 24
    %v988 = vpop.permute.xlu0 %987
    %v990 = vsel %vm321, %v479, %v980
    %vm991 = vcmask 130048
    %v992 = vsel %vm991, %v990, %v984
    %vm993 = vcmask 195584
    %v994 = vsel %vm993, %v992, %v988
    %v996 = vsel %vm321, %v238, 0
    %v999 = vsel %vm321, %v240, 0
    %1001 = vmatprep.subr.mxu0 0.0
    %1002 = vmatpush1.xpose.msra.mxu0 0.0
    %1003 = vmatprep.subr.mxu0 0.0
    %1004 = vmatpush1.xpose.msra.mxu0 0.0
    %1005 = vmatprep.subr.mxu0 0.0
    %1006 = vmatpush1.xpose.msra.mxu0 0.0
    %1007 = vmatprep.subr.mxu0 0.0
    %1008 = vmatpush1.xpose.msra.mxu0 0.0
    %1009 = vmatprep.subr.mxu0 0.0
    %1010 = vmatpush1.xpose.msra.mxu0 0.0
    %1011 = vmatprep.subr.mxu0 0.0
    %1012 = vmatpush1.xpose.msra.mxu0 0.0
    %1013 = vmatprep.subr.mxu0 0.0
    %1014 = vmatpush1.xpose.msra.mxu0 0.0
    %1015 = vmatprep.subr.mxu0 0.0
    %1016 = vmatpush1.xpose.msra.mxu0 0.0
    %1017 = vmatprep.subr.mxu0 0.0
    %1018 = vmatpush1.xpose.msra.mxu0 0.0
    %1019 = vmatprep.subr.mxu0 0.0
    %1020 = vmatpush1.xpose.msra.mxu0 0.0
    %1021 = vmatprep.subr.mxu0 0.0
    %1022 = vmatpush1.xpose.msra.mxu0 0.0
    %1023 = vmatprep.subr.mxu0 0.0
    %1024 = vmatpush1.xpose.msra.mxu0 0.0
    %1025 = vmatprep.subr.mxu0 0.0
    %1026 = vmatpush1.xpose.msra.mxu0 0.0
    %1027 = vmatprep.subr.mxu0 0.0
    %1028 = vmatpush1.xpose.msra.mxu0 0.0
    %1029 = vmatprep.subr.mxu0 0.0
    %1030 = vmatpush1.xpose.msra.mxu0 0.0
    %1031 = vmatprep.subr.mxu0 0.0
    %1032 = vmatpush1.xpose.msra.mxu0 %v999
    %1033 = vmatprep.subr.mxu0 0.0
    %1034 = vmatpush2.xpose.msra.mxu0 0.0
    %1035 = vmatprep.subr.mxu0 0.0
    %1036 = vmatpush2.xpose.msra.mxu0 0.0
    %1037 = vmatprep.subr.mxu0 0.0
    %1038 = vmatpush2.xpose.msra.mxu0 0.0
    %1039 = vmatprep.subr.mxu0 0.0
    %1040 = vmatpush2.xpose.msra.mxu0 0.0
    %1041 = vmatprep.subr.mxu0 0.0
    %1042 = vmatpush2.xpose.msra.mxu0 0.0
    %1043 = vmatprep.subr.mxu0 0.0
    %1044 = vmatpush2.xpose.msra.mxu0 0.0
    %1045 = vmatprep.subr.mxu0 0.0
    %1046 = vmatpush2.xpose.msra.mxu0 0.0
    %1047 = vmatprep.subr.mxu0 0.0
    %1048 = vmatpush2.xpose.msra.mxu0 0.0
    %1049 = vmatprep.subr.mxu0 0.0
    %1050 = vmatpush2.xpose.msra.mxu0 0.0
    %1051 = vmatprep.subr.mxu0 0.0
    %1052 = vmatpush2.xpose.msra.mxu0 0.0
    %1053 = vmatprep.subr.mxu0 0.0
    %1054 = vmatpush2.xpose.msra.mxu0 0.0
    %1055 = vmatprep.subr.mxu0 0.0
    %1056 = vmatpush2.xpose.msra.mxu0 0.0
    %1057 = vmatprep.subr.mxu0 0.0
    %1058 = vmatpush2.xpose.msra.mxu0 0.0
    %1059 = vmatprep.subr.mxu0 0.0
    %1060 = vmatpush2.xpose.msra.mxu0 0.0
    %1061 = vmatprep.subr.mxu0 0.0
    %1062 = vmatpush2.xpose.msra.mxu0 0.0
    %1063 = vmatprep.subr.mxu0 0.0
    %1064 = vmatpush2.xpose.msra.mxu0 0.0
    %1065 = vmatprep.mubr.f32.mxu0 0.0
    %1066 = vmatmul.mubr.f32.gmra.mxu0 %v996
    %v1067 = vpop.f32.mrf.mxu0
    %v1068 = vadd.f32 %v317, %v1067
    %v1069 = vpop.f32.mrf.mxu0
    %1070 = vdwg.mxu0
    %v1071 = vsel %vm321, %v1068, -inf
    %1072 = vmax.xlane.f32.xlu0 %v1071
    %v1073 = vpop.xlane.xlu0 %1072
    %v1074 = vsub.f32 %v1068, %v1073
    %v1075 = vmul.f32 %v1074, 1.442695
    %v1076 = vpow.pop %v1075
    %v1077 = vsel %vm321, %v1076, 0.0
    %1078 = vadd.xlane.f32.xlu0 %v1077
    %v1079 = vpop.xlane.xlu0 %1078
    %v1080 = vrcp.pop %v1079
    %v1081 = vmul.f32 %v1076, %v1080
    %v1083 = vsel %vm321, %v1081, 0
    %1085 = vmatprep.subr.mxu0 0.0
    %1086 = vmatpush1.msra.mxu0 0.0
    %1087 = vmatprep.subr.mxu0 0.0
    %1088 = vmatpush1.msra.mxu0 0.0
    %1089 = vmatprep.subr.mxu0 0.0
    %1090 = vmatpush1.msra.mxu0 0.0
    %1091 = vmatprep.subr.mxu0 0.0
    %1092 = vmatpush1.msra.mxu0 0.0
    %1093 = vmatprep.subr.mxu0 0.0
    %1094 = vmatpush1.msra.mxu0 0.0
    %1095 = vmatprep.subr.mxu0 0.0
    %1096 = vmatpush1.msra.mxu0 0.0
    %1097 = vmatprep.subr.mxu0 0.0
    %1098 = vmatpush1.msra.mxu0 0.0
    %1099 = vmatprep.subr.mxu0 0.0
    %1100 = vmatpush1.msra.mxu0 0.0
    %1101 = vmatprep.subr.mxu0 0.0
    %1102 = vmatpush1.msra.mxu0 0.0
    %1103 = vmatprep.subr.mxu0 0.0
    %1104 = vmatpush1.msra.mxu0 0.0
    %1105 = vmatprep.subr.mxu0 0.0
    %1106 = vmatpush1.msra.mxu0 0.0
    %1107 = vmatprep.subr.mxu0 0.0
    %1108 = vmatpush1.msra.mxu0 0.0
    %1109 = vmatprep.subr.mxu0 0.0
    %1110 = vmatpush1.msra.mxu0 0.0
    %1111 = vmatprep.subr.mxu0 0.0
    %1112 = vmatpush1.msra.mxu0 0.0
    %1113 = vmatprep.subr.mxu0 0.0
    %1114 = vmatpush1.msra.mxu0 0.0
    %1115 = vmatprep.subr.mxu0 0.0
    %1116 = vmatpush1.msra.mxu0 %v314
    %1117 = vmatprep.subr.mxu0 0.0
    %1118 = vmatpush2.msra.mxu0 0.0
    %1119 = vmatprep.subr.mxu0 0.0
    %1120 = vmatpush2.msra.mxu0 0.0
    %1121 = vmatprep.subr.mxu0 0.0
    %1122 = vmatpush2.msra.mxu0 0.0
    %1123 = vmatprep.subr.mxu0 0.0
    %1124 = vmatpush2.msra.mxu0 0.0
    %1125 = vmatprep.subr.mxu0 0.0
    %1126 = vmatpush2.msra.mxu0 0.0
    %1127 = vmatprep.subr.mxu0 0.0
    %1128 = vmatpush2.msra.mxu0 0.0
    %1129 = vmatprep.subr.mxu0 0.0
    %1130 = vmatpush2.msra.mxu0 0.0
    %1131 = vmatprep.subr.mxu0 0.0
    %1132 = vmatpush2.msra.mxu0 0.0
    %1133 = vmatprep.subr.mxu0 0.0
    %1134 = vmatpush2.msra.mxu0 0.0
    %1135 = vmatprep.subr.mxu0 0.0
    %1136 = vmatpush2.msra.mxu0 0.0
    %1137 = vmatprep.subr.mxu0 0.0
    %1138 = vmatpush2.msra.mxu0 0.0
    %1139 = vmatprep.subr.mxu0 0.0
    %1140 = vmatpush2.msra.mxu0 0.0
    %1141 = vmatprep.subr.mxu0 0.0
    %1142 = vmatpush2.msra.mxu0 0.0
    %1143 = vmatprep.subr.mxu0 0.0
    %1144 = vmatpush2.msra.mxu0 0.0
    %1145 = vmatprep.subr.mxu0 0.0
    %1146 = vmatpush2.msra.mxu0 0.0
    %1147 = vmatprep.subr.mxu0 0.0
    %1148 = vmatpush2.msra.mxu0 0.0
    %1149 = vmatprep.mubr.f32.mxu0 0.0
    %1150 = vmatmul.mubr.f32.gmra.mxu0 %v1083
    %v1151 = vpop.f32.mrf.mxu0
    %v1152 = vadd.f32 0.0, %v1151
    %v1153 = vpop.f32.mrf.mxu0
    %1154 = vdwg.mxu0
    %1155 = vrot.lane.b32.xlu0 %v238, 120
    %v1156 = vpop.permute.xlu0 %1155
    %1157 = vrot.lane.b32.xlu0 %v240, 120
    %v1158 = vpop.permute.xlu0 %1157
    %v1159 = vsel %vm321, %v1156, 0
    %v1161 = vsel %vm321, %v1158, 0
    %1163 = vmatprep.subr.mxu0 0.0
    %1164 = vmatpush1.xpose.msra.mxu0 0.0
    %1165 = vmatprep.subr.mxu0 0.0
    %1166 = vmatpush1.xpose.msra.mxu0 0.0
    %1167 = vmatprep.subr.mxu0 0.0
    %1168 = vmatpush1.xpose.msra.mxu0 0.0
    %1169 = vmatprep.subr.mxu0 0.0
    %1170 = vmatpush1.xpose.msra.mxu0 0.0
    %1171 = vmatprep.subr.mxu0 0.0
    %1172 = vmatpush1.xpose.msra.mxu0 0.0
    %1173 = vmatprep.subr.mxu0 0.0
    %1174 = vmatpush1.xpose.msra.mxu0 0.0
    %1175 = vmatprep.subr.mxu0 0.0
    %1176 = vmatpush1.xpose.msra.mxu0 0.0
    %1177 = vmatprep.subr.mxu0 0.0
    %1178 = vmatpush1.xpose.msra.mxu0 0.0
    %1179 = vmatprep.subr.mxu0 0.0
    %1180 = vmatpush1.xpose.msra.mxu0 0.0
    %1181 = vmatprep.subr.mxu0 0.0
    %1182 = vmatpush1.xpose.msra.mxu0 0.0
    %1183 = vmatprep.subr.mxu0 0.0
    %1184 = vmatpush1.xpose.msra.mxu0 0.0
    %1185 = vmatprep.subr.mxu0 0.0
    %1186 = vmatpush1.xpose.msra.mxu0 0.0
    %1187 = vmatprep.subr.mxu0 0.0
    %1188 = vmatpush1.xpose.msra.mxu0 0.0
    %1189 = vmatprep.subr.mxu0 0.0
    %1190 = vmatpush1.xpose.msra.mxu0 0.0
    %1191 = vmatprep.subr.mxu0 0.0
    %1192 = vmatpush1.xpose.msra.mxu0 0.0
    %1193 = vmatprep.subr.mxu0 0.0
    %1194 = vmatpush1.xpose.msra.mxu0 %v1161
    %1195 = vmatprep.subr.mxu0 0.0
    %1196 = vmatpush2.xpose.msra.mxu0 0.0
    %1197 = vmatprep.subr.mxu0 0.0
    %1198 = vmatpush2.xpose.msra.mxu0 0.0
    %1199 = vmatprep.subr.mxu0 0.0
    %1200 = vmatpush2.xpose.msra.mxu0 0.0
    %1201 = vmatprep.subr.mxu0 0.0
    %1202 = vmatpush2.xpose.msra.mxu0 0.0
    %1203 = vmatprep.subr.mxu0 0.0
    %1204 = vmatpush2.xpose.msra.mxu0 0.0
    %1205 = vmatprep.subr.mxu0 0.0
    %1206 = vmatpush2.xpose.msra.mxu0 0.0
    %1207 = vmatprep.subr.mxu0 0.0
    %1208 = vmatpush2.xpose.msra.mxu0 0.0
    %1209 = vmatprep.subr.mxu0 0.0
    %1210 = vmatpush2.xpose.msra.mxu0 0.0
    %1211 = vmatprep.subr.mxu0 0.0
    %1212 = vmatpush2.xpose.msra.mxu0 0.0
    %1213 = vmatprep.subr.mxu0 0.0
    %1214 = vmatpush2.xpose.msra.mxu0 0.0
    %1215 = vmatprep.subr.mxu0 0.0
    %1216 = vmatpush2.xpose.msra.mxu0 0.0
    %1217 = vmatprep.subr.mxu0 0.0
    %1218 = vmatpush2.xpose.msra.mxu0 0.0
    %1219 = vmatprep.subr.mxu0 0.0
    %1220 = vmatpush2.xpose.msra.mxu0 0.0
    %1221 = vmatprep.subr.mxu0 0.0
    %1222 = vmatpush2.xpose.msra.mxu0 0.0
    %1223 = vmatprep.subr.mxu0 0.0
    %1224 = vmatpush2.xpose.msra.mxu0 0.0
    %1225 = vmatprep.subr.mxu0 0.0
    %1226 = vmatpush2.xpose.msra.mxu0 0.0
    %1227 = vmatprep.mubr.f32.mxu0 0.0
    %1228 = vmatmul.mubr.f32.gmra.mxu0 %v1159
    %v1229 = vpop.f32.mrf.mxu0
    %v1230 = vadd.f32 %v318, %v1229
    %v1231 = vpop.f32.mrf.mxu0
    %1232 = vdwg.mxu0
    %v1233 = vsel %vm321, %v1230, -inf
    %1234 = vmax.xlane.f32.xlu0 %v1233
    %v1235 = vpop.xlane.xlu0 %1234
    %v1236 = vsub.f32 %v1230, %v1235
    %v1237 = vmul.f32 %v1236, 1.442695
    %v1238 = vpow.pop %v1237
    %v1239 = vsel %vm321, %v1238, 0.0
    %1240 = vadd.xlane.f32.xlu0 %v1239
    %v1241 = vpop.xlane.xlu0 %1240
    %v1242 = vrcp.pop %v1241
    %v1243 = vmul.f32 %v1238, %v1242
    %1245 = vrot.lane.b32.xlu0 %v314, 120
    %v1246 = vpop.permute.xlu0 %1245
    %v1249 = vsel %vm321, %v1243, 0
    %1251 = vmatprep.subr.mxu0 0.0
    %1252 = vmatpush1.msra.mxu0 0.0
    %1253 = vmatprep.subr.mxu0 0.0
    %1254 = vmatpush1.msra.mxu0 0.0
    %1255 = vmatprep.subr.mxu0 0.0
    %1256 = vmatpush1.msra.mxu0 0.0
    %1257 = vmatprep.subr.mxu0 0.0
    %1258 = vmatpush1.msra.mxu0 0.0
    %1259 = vmatprep.subr.mxu0 0.0
    %1260 = vmatpush1.msra.mxu0 0.0
    %1261 = vmatprep.subr.mxu0 0.0
    %1262 = vmatpush1.msra.mxu0 0.0
    %1263 = vmatprep.subr.mxu0 0.0
    %1264 = vmatpush1.msra.mxu0 0.0
    %1265 = vmatprep.subr.mxu0 0.0
    %1266 = vmatpush1.msra.mxu0 0.0
    %1267 = vmatprep.subr.mxu0 0.0
    %1268 = vmatpush1.msra.mxu0 0.0
    %1269 = vmatprep.subr.mxu0 0.0
    %1270 = vmatpush1.msra.mxu0 0.0
    %1271 = vmatprep.subr.mxu0 0.0
    %1272 = vmatpush1.msra.mxu0 0.0
    %1273 = vmatprep.subr.mxu0 0.0
    %1274 = vmatpush1.msra.mxu0 0.0
    %1275 = vmatprep.subr.mxu0 0.0
    %1276 = vmatpush1.msra.mxu0 0.0
    %1277 = vmatprep.subr.mxu0 0.0
    %1278 = vmatpush1.msra.mxu0 0.0
    %1279 = vmatprep.subr.mxu0 0.0
    %1280 = vmatpush1.msra.mxu0 0.0
    %1281 = vmatprep.subr.mxu0 0.0
    %1282 = vmatpush1.msra.mxu0 %v1246
    %1283 = vmatprep.subr.mxu0 0.0
    %1284 = vmatpush2.msra.mxu0 0.0
    %1285 = vmatprep.subr.mxu0 0.0
    %1286 = vmatpush2.msra.mxu0 0.0
    %1287 = vmatprep.subr.mxu0 0.0
    %1288 = vmatpush2.msra.mxu0 0.0
    %1289 = vmatprep.subr.mxu0 0.0
    %1290 = vmatpush2.msra.mxu0 0.0
    %1291 = vmatprep.subr.mxu0 0.0
    %1292 = vmatpush2.msra.mxu0 0.0
    %1293 = vmatprep.subr.mxu0 0.0
    %1294 = vmatpush2.msra.mxu0 0.0
    %1295 = vmatprep.subr.mxu0 0.0
    %1296 = vmatpush2.msra.mxu0 0.0
    %1297 = vmatprep.subr.mxu0 0.0
    %1298 = vmatpush2.msra.mxu0 0.0
    %1299 = vmatprep.subr.mxu0 0.0
    %1300 = vmatpush2.msra.mxu0 0.0
    %1301 = vmatprep.subr.mxu0 0.0
    %1302 = vmatpush2.msra.mxu0 0.0
    %1303 = vmatprep.subr.mxu0 0.0
    %1304 = vmatpush2.msra.mxu0 0.0
    %1305 = vmatprep.subr.mxu0 0.0
    %1306 = vmatpush2.msra.mxu0 0.0
    %1307 = vmatprep.subr.mxu0 0.0
    %1308 = vmatpush2.msra.mxu0 0.0
    %1309 = vmatprep.subr.mxu0 0.0
    %1310 = vmatpush2.msra.mxu0 0.0
    %1311 = vmatprep.subr.mxu0 0.0
    %1312 = vmatpush2.msra.mxu0 0.0
    %1313 = vmatprep.subr.mxu0 0.0
    %1314 = vmatpush2.msra.mxu0 0.0
    %1315 = vmatprep.mubr.f32.mxu0 0.0
    %1316 = vmatmul.mubr.f32.gmra.mxu0 %v1249
    %v1317 = vpop.f32.mrf.mxu0
    %v1318 = vadd.f32 0.0, %v1317
    %v1319 = vpop.f32.mrf.mxu0
    %1320 = vdwg.mxu0
    %1321 = vrot.lane.b32.xlu0 %v238, 112
    %v1322 = vpop.permute.xlu0 %1321
    %1323 = vrot.lane.b32.xlu0 %v240, 112
    %v1324 = vpop.permute.xlu0 %1323
    %v1325 = vsel %vm321, %v1322, 0
    %v1327 = vsel %vm321, %v1324, 0
    %1329 = vmatprep.subr.mxu0 0.0
    %1330 = vmatpush1.xpose.msra.mxu0 0.0
    %1331 = vmatprep.subr.mxu0 0.0
    %1332 = vmatpush1.xpose.msra.mxu0 0.0
    %1333 = vmatprep.subr.mxu0 0.0
    %1334 = vmatpush1.xpose.msra.mxu0 0.0
    %1335 = vmatprep.subr.mxu0 0.0
    %1336 = vmatpush1.xpose.msra.mxu0 0.0
    %1337 = vmatprep.subr.mxu0 0.0
    %1338 = vmatpush1.xpose.msra.mxu0 0.0
    %1339 = vmatprep.subr.mxu0 0.0
    %1340 = vmatpush1.xpose.msra.mxu0 0.0
    %1341 = vmatprep.subr.mxu0 0.0
    %1342 = vmatpush1.xpose.msra.mxu0 0.0
    %1343 = vmatprep.subr.mxu0 0.0
    %1344 = vmatpush1.xpose.msra.mxu0 0.0
    %1345 = vmatprep.subr.mxu0 0.0
    %1346 = vmatpush1.xpose.msra.mxu0 0.0
    %1347 = vmatprep.subr.mxu0 0.0
    %1348 = vmatpush1.xpose.msra.mxu0 0.0
    %1349 = vmatprep.subr.mxu0 0.0
    %1350 = vmatpush1.xpose.msra.mxu0 0.0
    %1351 = vmatprep.subr.mxu0 0.0
    %1352 = vmatpush1.xpose.msra.mxu0 0.0
    %1353 = vmatprep.subr.mxu0 0.0
    %1354 = vmatpush1.xpose.msra.mxu0 0.0
    %1355 = vmatprep.subr.mxu0 0.0
    %1356 = vmatpush1.xpose.msra.mxu0 0.0
    %1357 = vmatprep.subr.mxu0 0.0
    %1358 = vmatpush1.xpose.msra.mxu0 0.0
    %1359 = vmatprep.subr.mxu0 0.0
    %1360 = vmatpush1.xpose.msra.mxu0 %v1327
    %1361 = vmatprep.subr.mxu0 0.0
    %1362 = vmatpush2.xpose.msra.mxu0 0.0
    %1363 = vmatprep.subr.mxu0 0.0
    %1364 = vmatpush2.xpose.msra.mxu0 0.0
    %1365 = vmatprep.subr.mxu0 0.0
    %1366 = vmatpush2.xpose.msra.mxu0 0.0
    %1367 = vmatprep.subr.mxu0 0.0
    %1368 = vmatpush2.xpose.msra.mxu0 0.0
    %1369 = vmatprep.subr.mxu0 0.0
    %1370 = vmatpush2.xpose.msra.mxu0 0.0
    %1371 = vmatprep.subr.mxu0 0.0
    %1372 = vmatpush2.xpose.msra.mxu0 0.0
    %1373 = vmatprep.subr.mxu0 0.0
    %1374 = vmatpush2.xpose.msra.mxu0 0.0
    %1375 = vmatprep.subr.mxu0 0.0
    %1376 = vmatpush2.xpose.msra.mxu0 0.0
    %1377 = vmatprep.subr.mxu0 0.0
    %1378 = vmatpush2.xpose.msra.mxu0 0.0
    %1379 = vmatprep.subr.mxu0 0.0
    %1380 = vmatpush2.xpose.msra.mxu0 0.0
    %1381 = vmatprep.subr.mxu0 0.0
    %1382 = vmatpush2.xpose.msra.mxu0 0.0
    %1383 = vmatprep.subr.mxu0 0.0
    %1384 = vmatpush2.xpose.msra.mxu0 0.0
    %1385 = vmatprep.subr.mxu0 0.0
    %1386 = vmatpush2.xpose.msra.mxu0 0.0
    %1387 = vmatprep.subr.mxu0 0.0
    %1388 = vmatpush2.xpose.msra.mxu0 0.0
    %1389 = vmatprep.subr.mxu0 0.0
    %1390 = vmatpush2.xpose.msra.mxu0 0.0
    %1391 = vmatprep.subr.mxu0 0.0
    %1392 = vmatpush2.xpose.msra.mxu0 0.0
    %1393 = vmatprep.mubr.f32.mxu0 0.0
    %1394 = vmatmul.mubr.f32.gmra.mxu0 %v1325
    %v1395 = vpop.f32.mrf.mxu0
    %v1396 = vadd.f32 %v319, %v1395
    %v1397 = vpop.f32.mrf.mxu0
    %1398 = vdwg.mxu0
    %v1399 = vsel %vm321, %v1396, -inf
    %1400 = vmax.xlane.f32.xlu0 %v1399
    %v1401 = vpop.xlane.xlu0 %1400
    %v1402 = vsub.f32 %v1396, %v1401
    %v1403 = vmul.f32 %v1402, 1.442695
    %v1404 = vpow.pop %v1403
    %v1405 = vsel %vm321, %v1404, 0.0
    %1406 = vadd.xlane.f32.xlu0 %v1405
    %v1407 = vpop.xlane.xlu0 %1406
    %v1408 = vrcp.pop %v1407
    %v1409 = vmul.f32 %v1404, %v1408
    %1410 = vrot.lane.b32.xlu0 %v314, 112
    %v1411 = vpop.permute.xlu0 %1410
    %v1414 = vsel %vm321, %v1409, 0
    %1416 = vmatprep.subr.mxu0 0.0
    %1417 = vmatpush1.msra.mxu0 0.0
    %1418 = vmatprep.subr.mxu0 0.0
    %1419 = vmatpush1.msra.mxu0 0.0
    %1420 = vmatprep.subr.mxu0 0.0
    %1421 = vmatpush1.msra.mxu0 0.0
    %1422 = vmatprep.subr.mxu0 0.0
    %1423 = vmatpush1.msra.mxu0 0.0
    %1424 = vmatprep.subr.mxu0 0.0
    %1425 = vmatpush1.msra.mxu0 0.0
    %1426 = vmatprep.subr.mxu0 0.0
    %1427 = vmatpush1.msra.mxu0 0.0
    %1428 = vmatprep.subr.mxu0 0.0
    %1429 = vmatpush1.msra.mxu0 0.0
    %1430 = vmatprep.subr.mxu0 0.0
    %1431 = vmatpush1.msra.mxu0 0.0
    %1432 = vmatprep.subr.mxu0 0.0
    %1433 = vmatpush1.msra.mxu0 0.0
    %1434 = vmatprep.subr.mxu0 0.0
    %1435 = vmatpush1.msra.mxu0 0.0
    %1436 = vmatprep.subr.mxu0 0.0
    %1437 = vmatpush1.msra.mxu0 0.0
    %1438 = vmatprep.subr.mxu0 0.0
    %1439 = vmatpush1.msra.mxu0 0.0
    %1440 = vmatprep.subr.mxu0 0.0
    %1441 = vmatpush1.msra.mxu0 0.0
    %1442 = vmatprep.subr.mxu0 0.0
    %1443 = vmatpush1.msra.mxu0 0.0
    %1444 = vmatprep.subr.mxu0 0.0
    %1445 = vmatpush1.msra.mxu0 0.0
    %1446 = vmatprep.subr.mxu0 0.0
    %1447 = vmatpush1.msra.mxu0 %v1411
    %1448 = vmatprep.subr.mxu0 0.0
    %1449 = vmatpush2.msra.mxu0 0.0
    %1450 = vmatprep.subr.mxu0 0.0
    %1451 = vmatpush2.msra.mxu0 0.0
    %1452 = vmatprep.subr.mxu0 0.0
    %1453 = vmatpush2.msra.mxu0 0.0
    %1454 = vmatprep.subr.mxu0 0.0
    %1455 = vmatpush2.msra.mxu0 0.0
    %1456 = vmatprep.subr.mxu0 0.0
    %1457 = vmatpush2.msra.mxu0 0.0
    %1458 = vmatprep.subr.mxu0 0.0
    %1459 = vmatpush2.msra.mxu0 0.0
    %1460 = vmatprep.subr.mxu0 0.0
    %1461 = vmatpush2.msra.mxu0 0.0
    %1462 = vmatprep.subr.mxu0 0.0
    %1463 = vmatpush2.msra.mxu0 0.0
    %1464 = vmatprep.subr.mxu0 0.0
    %1465 = vmatpush2.msra.mxu0 0.0
    %1466 = vmatprep.subr.mxu0 0.0
    %1467 = vmatpush2.msra.mxu0 0.0
    %1468 = vmatprep.subr.mxu0 0.0
    %1469 = vmatpush2.msra.mxu0 0.0
    %1470 = vmatprep.subr.mxu0 0.0
    %1471 = vmatpush2.msra.mxu0 0.0
    %1472 = vmatprep.subr.mxu0 0.0
    %1473 = vmatpush2.msra.mxu0 0.0
    %1474 = vmatprep.subr.mxu0 0.0
    %1475 = vmatpush2.msra.mxu0 0.0
    %1476 = vmatprep.subr.mxu0 0.0
    %1477 = vmatpush2.msra.mxu0 0.0
    %1478 = vmatprep.subr.mxu0 0.0
    %1479 = vmatpush2.msra.mxu0 0.0
    %1480 = vmatprep.mubr.f32.mxu0 0.0
    %1481 = vmatmul.mubr.f32.gmra.mxu0 %v1414
    %v1482 = vpop.f32.mrf.mxu0
    %v1483 = vadd.f32 0.0, %v1482
    %v1484 = vpop.f32.mrf.mxu0
    %1485 = vdwg.mxu0
    %1486 = vrot.lane.b32.xlu0 %v238, 104
    %v1487 = vpop.permute.xlu0 %1486
    %1488 = vrot.lane.b32.xlu0 %v240, 104
    %v1489 = vpop.permute.xlu0 %1488
    %v1490 = vsel %vm321, %v1487, 0
    %v1492 = vsel %vm321, %v1489, 0
    %1494 = vmatprep.subr.mxu0 0.0
    %1495 = vmatpush1.xpose.msra.mxu0 0.0
    %1496 = vmatprep.subr.mxu0 0.0
    %1497 = vmatpush1.xpose.msra.mxu0 0.0
    %1498 = vmatprep.subr.mxu0 0.0
    %1499 = vmatpush1.xpose.msra.mxu0 0.0
    %1500 = vmatprep.subr.mxu0 0.0
    %1501 = vmatpush1.xpose.msra.mxu0 0.0
    %1502 = vmatprep.subr.mxu0 0.0
    %1503 = vmatpush1.xpose.msra.mxu0 0.0
    %1504 = vmatprep.subr.mxu0 0.0
    %1505 = vmatpush1.xpose.msra.mxu0 0.0
    %1506 = vmatprep.subr.mxu0 0.0
    %1507 = vmatpush1.xpose.msra.mxu0 0.0
    %1508 = vmatprep.subr.mxu0 0.0
    %1509 = vmatpush1.xpose.msra.mxu0 0.0
    %1510 = vmatprep.subr.mxu0 0.0
    %1511 = vmatpush1.xpose.msra.mxu0 0.0
    %1512 = vmatprep.subr.mxu0 0.0
    %1513 = vmatpush1.xpose.msra.mxu0 0.0
    %1514 = vmatprep.subr.mxu0 0.0
    %1515 = vmatpush1.xpose.msra.mxu0 0.0
    %1516 = vmatprep.subr.mxu0 0.0
    %1517 = vmatpush1.xpose.msra.mxu0 0.0
    %1518 = vmatprep.subr.mxu0 0.0
    %1519 = vmatpush1.xpose.msra.mxu0 0.0
    %1520 = vmatprep.subr.mxu0 0.0
    %1521 = vmatpush1.xpose.msra.mxu0 0.0
    %1522 = vmatprep.subr.mxu0 0.0
    %1523 = vmatpush1.xpose.msra.mxu0 0.0
    %1524 = vmatprep.subr.mxu0 0.0
    %1525 = vmatpush1.xpose.msra.mxu0 %v1492
    %1526 = vmatprep.subr.mxu0 0.0
    %1527 = vmatpush2.xpose.msra.mxu0 0.0
    %1528 = vmatprep.subr.mxu0 0.0
    %1529 = vmatpush2.xpose.msra.mxu0 0.0
    %1530 = vmatprep.subr.mxu0 0.0
    %1531 = vmatpush2.xpose.msra.mxu0 0.0
    %1532 = vmatprep.subr.mxu0 0.0
    %1533 = vmatpush2.xpose.msra.mxu0 0.0
    %1534 = vmatprep.subr.mxu0 0.0
    %1535 = vmatpush2.xpose.msra.mxu0 0.0
    %1536 = vmatprep.subr.mxu0 0.0
    %1537 = vmatpush2.xpose.msra.mxu0 0.0
    %1538 = vmatprep.subr.mxu0 0.0
    %1539 = vmatpush2.xpose.msra.mxu0 0.0
    %1540 = vmatprep.subr.mxu0 0.0
    %1541 = vmatpush2.xpose.msra.mxu0 0.0
    %1542 = vmatprep.subr.mxu0 0.0
    %1543 = vmatpush2.xpose.msra.mxu0 0.0
    %1544 = vmatprep.subr.mxu0 0.0
    %1545 = vmatpush2.xpose.msra.mxu0 0.0
    %1546 = vmatprep.subr.mxu0 0.0
    %1547 = vmatpush2.xpose.msra.mxu0 0.0
    %1548 = vmatprep.subr.mxu0 0.0
    %1549 = vmatpush2.xpose.msra.mxu0 0.0
    %1550 = vmatprep.subr.mxu0 0.0
    %1551 = vmatpush2.xpose.msra.mxu0 0.0
    %1552 = vmatprep.subr.mxu0 0.0
    %1553 = vmatpush2.xpose.msra.mxu0 0.0
    %1554 = vmatprep.subr.mxu0 0.0
    %1555 = vmatpush2.xpose.msra.mxu0 0.0
    %1556 = vmatprep.subr.mxu0 0.0
    %1557 = vmatpush2.xpose.msra.mxu0 0.0
    %1558 = vmatprep.mubr.f32.mxu0 0.0
    %1559 = vmatmul.mubr.f32.gmra.mxu0 %v1490
    %v1560 = vpop.f32.mrf.mxu0
    %v1561 = vadd.f32 %v320, %v1560
    %v1562 = vpop.f32.mrf.mxu0
    %1563 = vdwg.mxu0
    %v1564 = vsel %vm321, %v1561, -inf
    %1565 = vmax.xlane.f32.xlu0 %v1564
    %v1566 = vpop.xlane.xlu0 %1565
    %v1567 = vsub.f32 %v1561, %v1566
    %v1568 = vmul.f32 %v1567, 1.442695
    %v1569 = vpow.pop %v1568
    %v1570 = vsel %vm321, %v1569, 0.0
    %1571 = vadd.xlane.f32.xlu0 %v1570
    %v1572 = vpop.xlane.xlu0 %1571
    %v1573 = vrcp.pop %v1572
    %v1574 = vmul.f32 %v1569, %v1573
    %1575 = vrot.lane.b32.xlu0 %v314, 104
    %v1576 = vpop.permute.xlu0 %1575
    %v1579 = vsel %vm321, %v1574, 0
    %1581 = vmatprep.subr.mxu0 0.0
    %1582 = vmatpush1.msra.mxu0 0.0
    %1583 = vmatprep.subr.mxu0 0.0
    %1584 = vmatpush1.msra.mxu0 0.0
    %1585 = vmatprep.subr.mxu0 0.0
    %1586 = vmatpush1.msra.mxu0 0.0
    %1587 = vmatprep.subr.mxu0 0.0
    %1588 = vmatpush1.msra.mxu0 0.0
    %1589 = vmatprep.subr.mxu0 0.0
    %1590 = vmatpush1.msra.mxu0 0.0
    %1591 = vmatprep.subr.mxu0 0.0
    %1592 = vmatpush1.msra.mxu0 0.0
    %1593 = vmatprep.subr.mxu0 0.0
    %1594 = vmatpush1.msra.mxu0 0.0
    %1595 = vmatprep.subr.mxu0 0.0
    %1596 = vmatpush1.msra.mxu0 0.0
    %1597 = vmatprep.subr.mxu0 0.0
    %1598 = vmatpush1.msra.mxu0 0.0
    %1599 = vmatprep.subr.mxu0 0.0
    %1600 = vmatpush1.msra.mxu0 0.0
    %1601 = vmatprep.subr.mxu0 0.0
    %1602 = vmatpush1.msra.mxu0 0.0
    %1603 = vmatprep.subr.mxu0 0.0
    %1604 = vmatpush1.msra.mxu0 0.0
    %1605 = vmatprep.subr.mxu0 0.0
    %1606 = vmatpush1.msra.mxu0 0.0
    %1607 = vmatprep.subr.mxu0 0.0
    %1608 = vmatpush1.msra.mxu0 0.0
    %1609 = vmatprep.subr.mxu0 0.0
    %1610 = vmatpush1.msra.mxu0 0.0
    %1611 = vmatprep.subr.mxu0 0.0
    %1612 = vmatpush1.msra.mxu0 %v1576
    %1613 = vmatprep.subr.mxu0 0.0
    %1614 = vmatpush2.msra.mxu0 0.0
    %1615 = vmatprep.subr.mxu0 0.0
    %1616 = vmatpush2.msra.mxu0 0.0
    %1617 = vmatprep.subr.mxu0 0.0
    %1618 = vmatpush2.msra.mxu0 0.0
    %1619 = vmatprep.subr.mxu0 0.0
    %1620 = vmatpush2.msra.mxu0 0.0
    %1621 = vmatprep.subr.mxu0 0.0
    %1622 = vmatpush2.msra.mxu0 0.0
    %1623 = vmatprep.subr.mxu0 0.0
    %1624 = vmatpush2.msra.mxu0 0.0
    %1625 = vmatprep.subr.mxu0 0.0
    %1626 = vmatpush2.msra.mxu0 0.0
    %1627 = vmatprep.subr.mxu0 0.0
    %1628 = vmatpush2.msra.mxu0 0.0
    %1629 = vmatprep.subr.mxu0 0.0
    %1630 = vmatpush2.msra.mxu0 0.0
    %1631 = vmatprep.subr.mxu0 0.0
    %1632 = vmatpush2.msra.mxu0 0.0
    %1633 = vmatprep.subr.mxu0 0.0
    %1634 = vmatpush2.msra.mxu0 0.0
    %1635 = vmatprep.subr.mxu0 0.0
    %1636 = vmatpush2.msra.mxu0 0.0
    %1637 = vmatprep.subr.mxu0 0.0
    %1638 = vmatpush2.msra.mxu0 0.0
    %1639 = vmatprep.subr.mxu0 0.0
    %1640 = vmatpush2.msra.mxu0 0.0
    %1641 = vmatprep.subr.mxu0 0.0
    %1642 = vmatpush2.msra.mxu0 0.0
    %1643 = vmatprep.subr.mxu0 0.0
    %1644 = vmatpush2.msra.mxu0 0.0
    %1645 = vmatprep.mubr.f32.mxu0 0.0
    %1646 = vmatmul.mubr.f32.gmra.mxu0 %v1579
    %v1647 = vpop.f32.mrf.mxu0
    %v1648 = vadd.f32 0.0, %v1647
    %v1649 = vpop.f32.mrf.mxu0
    %1650 = vdwg.mxu0
    %1652 = vrot.lane.b32.xlu0 %v1318, 8
    %v1653 = vpop.permute.xlu0 %1652
    %1656 = vrot.lane.b32.xlu0 %v1483, 16
    %v1657 = vpop.permute.xlu0 %1656
    %1660 = vrot.lane.b32.xlu0 %v1648, 24
    %v1661 = vpop.permute.xlu0 %1660
    %v1663 = vsel %vm321, %v1152, %v1653
    %v1664 = vsel %vm991, %v1663, %v1657
    %v1665 = vsel %vm993, %v1664, %v1661
    %v1666 = vld [vmem:[#allocation4] sm:$0xff]
    %v1667 = vld [vmem:[#allocation4 + $0x8] sm:$0xff]
    %v1668 = vld [vmem:[#allocation4 + $0x10] sm:$0xff]
    %v1669 = vld [vmem:[#allocation4 + $0x18] sm:$0xff]
    %vm1670 = vcmask 261120
    %v1672 = vsel %vm1670, %v994, 0
    %v1675 = vsel %vm1670, %v1665, 0
    %1677 = vmatprep.subr.mxu0 0.0
    %1678 = vmatpush1.msra.mxu0 0.0
    %1679 = vmatprep.subr.mxu0 0.0
    %1680 = vmatpush1.msra.mxu0 0.0
    %1681 = vmatprep.subr.mxu0 0.0
    %1682 = vmatpush1.msra.mxu0 0.0
    %1683 = vmatprep.subr.mxu0 0.0
    %1684 = vmatpush1.msra.mxu0 0.0
    %1685 = vmatprep.subr.mxu0 0.0
    %1686 = vmatpush1.msra.mxu0 0.0
    %1687 = vmatprep.subr.mxu0 0.0
    %1688 = vmatpush1.msra.mxu0 0.0
    %1689 = vmatprep.subr.mxu0 0.0
    %1690 = vmatpush1.msra.mxu0 0.0
    %1691 = vmatprep.subr.mxu0 0.0
    %1692 = vmatpush1.msra.mxu0 0.0
    %1693 = vmatprep.subr.mxu0 0.0
    %1694 = vmatpush1.msra.mxu0 0.0
    %1695 = vmatprep.subr.mxu0 0.0
    %1696 = vmatpush1.msra.mxu0 0.0
    %1697 = vmatprep.subr.mxu0 0.0
    %1698 = vmatpush1.msra.mxu0 0.0
    %1699 = vmatprep.subr.mxu0 0.0
    %1700 = vmatpush1.msra.mxu0 0.0
    %1701 = vmatprep.subr.mxu0 0.0
    %1702 = vmatpush1.msra.mxu0 %v1669
    %1703 = vmatprep.subr.mxu0 0.0
    %1704 = vmatpush1.msra.mxu0 %v1668
    %1705 = vmatprep.subr.mxu0 0.0
    %1706 = vmatpush1.msra.mxu0 %v1667
    %1707 = vmatprep.subr.mxu0 0.0
    %1708 = vmatpush1.msra.mxu0 %v1666
    %1709 = vmatprep.subr.mxu0 0.0
    %1710 = vmatpush2.msra.mxu0 0.0
    %1711 = vmatprep.subr.mxu0 0.0
    %1712 = vmatpush2.msra.mxu0 0.0
    %1713 = vmatprep.subr.mxu0 0.0
    %1714 = vmatpush2.msra.mxu0 0.0
    %1715 = vmatprep.subr.mxu0 0.0
    %1716 = vmatpush2.msra.mxu0 0.0
    %1717 = vmatprep.subr.mxu0 0.0
    %1718 = vmatpush2.msra.mxu0 0.0
    %1719 = vmatprep.subr.mxu0 0.0
    %1720 = vmatpush2.msra.mxu0 0.0
    %1721 = vmatprep.subr.mxu0 0.0
    %1722 = vmatpush2.msra.mxu0 0.0
    %1723 = vmatprep.subr.mxu0 0.0
    %1724 = vmatpush2.msra.mxu0 0.0
    %1725 = vmatprep.subr.mxu0 0.0
    %1726 = vmatpush2.msra.mxu0 0.0
    %1727 = vmatprep.subr.mxu0 0.0
    %1728 = vmatpush2.msra.mxu0 0.0
    %1729 = vmatprep.subr.mxu0 0.0
    %1730 = vmatpush2.msra.mxu0 0.0
    %1731 = vmatprep.subr.mxu0 0.0
    %1732 = vmatpush2.msra.mxu0 0.0
    %1733 = vmatprep.subr.mxu0 0.0
    %1734 = vmatpush2.msra.mxu0 0.0
    %1735 = vmatprep.subr.mxu0 0.0
    %1736 = vmatpush2.msra.mxu0 0.0
    %1737 = vmatprep.subr.mxu0 0.0
    %1738 = vmatpush2.msra.mxu0 0.0
    %1739 = vmatprep.subr.mxu0 0.0
    %1740 = vmatpush2.msra.mxu0 0.0
    %1741 = vmatprep.mubr.f32.mxu0 0.0
    %1742 = vmatmul.mubr.f32.gmra.mxu0 %v1672
    %v1743 = vpop.f32.mrf.mxu0
    %v1744 = vadd.f32 0.0, %v1743
    %v1745 = vpop.f32.mrf.mxu0
    %1746 = vmatprep.mubr.f32.mxu0 0.0
    %1747 = vmatmul.mubr.f32.gmra.mxu0 %v1675
    %v1748 = vpop.f32.mrf.mxu0
    %v1749 = vadd.f32 0.0, %v1748
    %v1750 = vpop.f32.mrf.mxu0
    %1751 = vdwg.mxu0
    %v1752 = vadd.f32 %v94, %v1744
    %v1753 = vadd.f32 %v95, %v1749
    %v1754 = vmul.f32 %v1752, %v1752
    %v1755 = vmul.f32 %v1753, %v1753
    %1756 = vadd.xlane.f32.xlu0 %v1754
    %v1757 = vpop.xlane.xlu0 %1756
    %1758 = vadd.xlane.f32.xlu0 %v1755
    %v1759 = vpop.xlane.xlu0 %1758
    %v1760 = vmul.f32 %v1757, 0.03125
    %v1761 = vmul.f32 %v1759, 0.03125
    %v1762 = vadd.f32 %v1760, 1e-06
    %v1763 = vadd.f32 %v1761, 1e-06
    %v1764 = vrsqrt.pop %v1762
    %v1765 = vrsqrt.pop %v1763
    %v1766 = vmul.f32 %v1752, %v1764
    %v1767 = vmul.f32 %v1753, %v1765
    %v1768 = vlaneseq
    %v1769 = vshrl.u32 %v1768, 7
    %v1770 = vsub.s32 1, %v1769
    %v1771 = vrot.slane %v96, %v1770
    %v1772 = vmul.f32 %v1766, %v1771
    %v1773 = vmul.f32 %v1767, %v1771
    %v1774 = vld [vmem:[#allocation6] sm:$0xff]
    %v1775 = vld [vmem:[#allocation6 + $0x8] sm:$0xff]
    %v1776 = vld [vmem:[#allocation6 + $0x10] sm:$0xff]
    %v1777 = vld [vmem:[#allocation6 + $0x18] sm:$0xff]
    %v1778 = vld [vmem:[#allocation6 + $0x20] sm:$0xff]
    %v1779 = vld [vmem:[#allocation6 + $0x28] sm:$0xff]
    %v1780 = vld [vmem:[#allocation6 + $0x30] sm:$0xff]
    %v1781 = vld [vmem:[#allocation6 + $0x38] sm:$0xff]
    %v1782 = vld [vmem:[#allocation6 + $0x40] sm:$0xff]
    %v1783 = vld [vmem:[#allocation6 + $0x48] sm:$0xff]
    %v1784 = vld [vmem:[#allocation6 + $0x50] sm:$0xff]
    %v1785 = vld [vmem:[#allocation6 + $0x58] sm:$0xff]
    %v1786 = vld [vmem:[#allocation6 + $0x60] sm:$0xff]
    %v1787 = vld [vmem:[#allocation6 + $0x68] sm:$0xff]
    %v1788 = vld [vmem:[#allocation6 + $0x70] sm:$0xff]
    %v1789 = vld [vmem:[#allocation6 + $0x78] sm:$0xff]
    %1790 = vmatprep.subr.mxu0 0.0
    %1791 = vmatpush1.msra.mxu0 %v1789
    %1792 = vmatprep.subr.mxu0 0.0
    %1793 = vmatpush1.msra.mxu0 %v1788
    %1794 = vmatprep.subr.mxu0 0.0
    %1795 = vmatpush1.msra.mxu0 %v1787
    %1796 = vmatprep.subr.mxu0 0.0
    %1797 = vmatpush1.msra.mxu0 %v1786
    %1798 = vmatprep.subr.mxu0 0.0
    %1799 = vmatpush1.msra.mxu0 %v1785
    %1800 = vmatprep.subr.mxu0 0.0
    %1801 = vmatpush1.msra.mxu0 %v1784
    %1802 = vmatprep.subr.mxu0 0.0
    %1803 = vmatpush1.msra.mxu0 %v1783
    %1804 = vmatprep.subr.mxu0 0.0
    %1805 = vmatpush1.msra.mxu0 %v1782
    %1806 = vmatprep.subr.mxu0 0.0
    %1807 = vmatpush1.msra.mxu0 %v1781
    %1808 = vmatprep.subr.mxu0 0.0
    %1809 = vmatpush1.msra.mxu0 %v1780
    %1810 = vmatprep.subr.mxu0 0.0
    %1811 = vmatpush1.msra.mxu0 %v1779
    %1812 = vmatprep.subr.mxu0 0.0
    %1813 = vmatpush1.msra.mxu0 %v1778
    %1814 = vmatprep.subr.mxu0 0.0
    %1815 = vmatpush1.msra.mxu0 %v1777
    %1816 = vmatprep.subr.mxu0 0.0
    %1817 = vmatpush1.msra.mxu0 %v1776
    %1818 = vmatprep.subr.mxu0 0.0
    %1819 = vmatpush1.msra.mxu0 %v1775
    %1820 = vmatprep.subr.mxu0 0.0
    %1821 = vmatpush1.msra.mxu0 %v1774
    %1822 = vmatprep.subr.mxu0 0.0
    %1823 = vmatpush2.msra.mxu0 0.0
    %1824 = vmatprep.subr.mxu0 0.0
    %1825 = vmatpush2.msra.mxu0 0.0
    %1826 = vmatprep.subr.mxu0 0.0
    %1827 = vmatpush2.msra.mxu0 0.0
    %1828 = vmatprep.subr.mxu0 0.0
    %1829 = vmatpush2.msra.mxu0 0.0
    %1830 = vmatprep.subr.mxu0 0.0
    %1831 = vmatpush2.msra.mxu0 0.0
    %1832 = vmatprep.subr.mxu0 0.0
    %1833 = vmatpush2.msra.mxu0 0.0
    %1834 = vmatprep.subr.mxu0 0.0
    %1835 = vmatpush2.msra.mxu0 0.0
    %1836 = vmatprep.subr.mxu0 0.0
    %1837 = vmatpush2.msra.mxu0 0.0
    %1838 = vmatprep.subr.mxu0 0.0
    %1839 = vmatpush2.msra.mxu0 0.0
    %1840 = vmatprep.subr.mxu0 0.0
    %1841 = vmatpush2.msra.mxu0 0.0
    %1842 = vmatprep.subr.mxu0 0.0
    %1843 = vmatpush2.msra.mxu0 0.0
    %1844 = vmatprep.subr.mxu0 0.0
    %1845 = vmatpush2.msra.mxu0 0.0
    %1846 = vmatprep.subr.mxu0 0.0
    %1847 = vmatpush2.msra.mxu0 0.0
    %1848 = vmatprep.subr.mxu0 0.0
    %1849 = vmatpush2.msra.mxu0 0.0
    %1850 = vmatprep.subr.mxu0 0.0
    %1851 = vmatpush2.msra.mxu0 0.0
    %1852 = vmatprep.subr.mxu0 0.0
    %1853 = vmatpush2.msra.mxu0 0.0
    %1854 = vmatprep.mubr.f32.mxu0 0.0
    %1855 = vmatmul.mubr.f32.gmra.mxu0 %v1772
    %v1856 = vpop.f32.mrf.mxu0
    %v1857 = vadd.f32 0.0, %v1856
    %v1858 = vpop.f32.mrf.mxu0
    %1859 = vmatprep.mubr.f32.mxu0 0.0
    %1860 = vmatmul.mubr.f32.gmra.mxu0 %v1773
    %v1861 = vpop.f32.mrf.mxu0
    %v1862 = vadd.f32 0.0, %v1861
    %v1863 = vpop.f32.mrf.mxu0
    %1864 = vdwg.mxu0
    %v1865 = vmax.f32 %v1857, 0.0
    %v1866 = vmax.f32 %v1862, 0.0
    %v1867 = vld [vmem:[#allocation7] sm:$0xff]
    %v1868 = vld [vmem:[#allocation7 + $0x8] sm:$0xff]
    %v1869 = vld [vmem:[#allocation7 + $0x10] sm:$0xff]
    %v1870 = vld [vmem:[#allocation7 + $0x18] sm:$0xff]
    %v1871 = vld [vmem:[#allocation7 + $0x20] sm:$0xff]
    %v1872 = vld [vmem:[#allocation7 + $0x28] sm:$0xff]
    %v1873 = vld [vmem:[#allocation7 + $0x30] sm:$0xff]
    %v1874 = vld [vmem:[#allocation7 + $0x38] sm:$0xff]
    %v1875 = vld [vmem:[#allocation7 + $0x40] sm:$0xff]
    %v1876 = vld [vmem:[#allocation7 + $0x48] sm:$0xff]
    %v1877 = vld [vmem:[#allocation7 + $0x50] sm:$0xff]
    %v1878 = vld [vmem:[#allocation7 + $0x58] sm:$0xff]
    %v1879 = vld [vmem:[#allocation7 + $0x60] sm:$0xff]
    %v1880 = vld [vmem:[#allocation7 + $0x68] sm:$0xff]
    %v1881 = vld [vmem:[#allocation7 + $0x70] sm:$0xff]
    %v1882 = vld [vmem:[#allocation7 + $0x78] sm:$0xff]
    %1883 = vmatprep.subr.mxu0 0.0
    %1884 = vmatpush1.msra.mxu0 %v1882
    %1885 = vmatprep.subr.mxu0 0.0
    %1886 = vmatpush1.msra.mxu0 %v1881
    %1887 = vmatprep.subr.mxu0 0.0
    %1888 = vmatpush1.msra.mxu0 %v1880
    %1889 = vmatprep.subr.mxu0 0.0
    %1890 = vmatpush1.msra.mxu0 %v1879
    %1891 = vmatprep.subr.mxu0 0.0
    %1892 = vmatpush1.msra.mxu0 %v1878
    %1893 = vmatprep.subr.mxu0 0.0
    %1894 = vmatpush1.msra.mxu0 %v1877
    %1895 = vmatprep.subr.mxu0 0.0
    %1896 = vmatpush1.msra.mxu0 %v1876
    %1897 = vmatprep.subr.mxu0 0.0
    %1898 = vmatpush1.msra.mxu0 %v1875
    %1899 = vmatprep.subr.mxu0 0.0
    %1900 = vmatpush1.msra.mxu0 %v1874
    %1901 = vmatprep.subr.mxu0 0.0
    %1902 = vmatpush1.msra.mxu0 %v1873
    %1903 = vmatprep.subr.mxu0 0.0
    %1904 = vmatpush1.msra.mxu0 %v1872
    %1905 = vmatprep.subr.mxu0 0.0
    %1906 = vmatpush1.msra.mxu0 %v1871
    %1907 = vmatprep.subr.mxu0 0.0
    %1908 = vmatpush1.msra.mxu0 %v1870
    %1909 = vmatprep.subr.mxu0 0.0
    %1910 = vmatpush1.msra.mxu0 %v1869
    %1911 = vmatprep.subr.mxu0 0.0
    %1912 = vmatpush1.msra.mxu0 %v1868
    %1913 = vmatprep.subr.mxu0 0.0
    %1914 = vmatpush1.msra.mxu0 %v1867
    %1915 = vmatprep.subr.mxu0 0.0
    %1916 = vmatpush2.msra.mxu0 0.0
    %1917 = vmatprep.subr.mxu0 0.0
    %1918 = vmatpush2.msra.mxu0 0.0
    %1919 = vmatprep.subr.mxu0 0.0
    %1920 = vmatpush2.msra.mxu0 0.0
    %1921 = vmatprep.subr.mxu0 0.0
    %1922 = vmatpush2.msra.mxu0 0.0
    %1923 = vmatprep.subr.mxu0 0.0
    %1924 = vmatpush2.msra.mxu0 0.0
    %1925 = vmatprep.subr.mxu0 0.0
    %1926 = vmatpush2.msra.mxu0 0.0
    %1927 = vmatprep.subr.mxu0 0.0
    %1928 = vmatpush2.msra.mxu0 0.0
    %1929 = vmatprep.subr.mxu0 0.0
    %1930 = vmatpush2.msra.mxu0 0.0
    %1931 = vmatprep.subr.mxu0 0.0
    %1932 = vmatpush2.msra.mxu0 0.0
    %1933 = vmatprep.subr.mxu0 0.0
    %1934 = vmatpush2.msra.mxu0 0.0
    %1935 = vmatprep.subr.mxu0 0.0
    %1936 = vmatpush2.msra.mxu0 0.0
    %1937 = vmatprep.subr.mxu0 0.0
    %1938 = vmatpush2.msra.mxu0 0.0
    %1939 = vmatprep.subr.mxu0 0.0
    %1940 = vmatpush2.msra.mxu0 0.0
    %1941 = vmatprep.subr.mxu0 0.0
    %1942 = vmatpush2.msra.mxu0 0.0
    %1943 = vmatprep.subr.mxu0 0.0
    %1944 = vmatpush2.msra.mxu0 0.0
    %1945 = vmatprep.subr.mxu0 0.0
    %1946 = vmatpush2.msra.mxu0 0.0
    %1947 = vmatprep.mubr.f32.mxu0 0.0
    %1948 = vmatmul.mubr.f32.gmra.mxu0 %v1865
    %v1949 = vpop.f32.mrf.mxu0
    %v1950 = vadd.f32 0.0, %v1949
    %v1951 = vpop.f32.mrf.mxu0
    %1952 = vmatprep.mubr.f32.mxu0 0.0
    %1953 = vmatmul.mubr.f32.gmra.mxu0 %v1866
    %v1954 = vpop.f32.mrf.mxu0
    %v1955 = vadd.f32 0.0, %v1954
    %v1956 = vpop.f32.mrf.mxu0
    %1957 = vdwg.mxu0
    %v1958 = vadd.f32 %v1752, %v1950
    %v1959 = vadd.f32 %v1753, %v1955
    %v1960 = vmul.f32 %v1958, %v1958
    %v1961 = vmul.f32 %v1959, %v1959
    %1962 = vadd.xlane.f32.xlu0 %v1960
    %v1963 = vpop.xlane.xlu0 %1962
    %1964 = vadd.xlane.f32.xlu0 %v1961
    %v1965 = vpop.xlane.xlu0 %1964
    %v1966 = vmul.f32 %v1963, 0.03125
    %v1967 = vmul.f32 %v1965, 0.03125
    %v1968 = vadd.f32 %v1966, 1e-06
    %v1969 = vadd.f32 %v1967, 1e-06
    %v1970 = vrsqrt.pop %v1968
    %v1971 = vrsqrt.pop %v1969
    %v1972 = vmul.f32 %v1958, %v1970
    %v1973 = vmul.f32 %v1959, %v1971
    %v1974 = vlaneseq
    %v1975 = vshrl.u32 %v1974, 7
    %v1976 = vsub.s32 2, %v1975
    %v1977 = vrot.slane %v96, %v1976
    %v1978 = vmul.f32 %v1972, %v1977
    %v1979 = vmul.f32 %v1973, %v1977
    %1980 = vst [vmem:[%s7] sm:$0xff] %v1978
    %1981 = vst [vmem:[%s7 + $0x8] sm:$0xff] %v1979
    // Predicated region
    $region50: #{t5_forward.2} parent=1 // pred_check
      _
    $region51: #{t5_forward.2} parent=1 // pred_check_branch
      %1983 = sbr.rel (0) target = $region53
    $region52: #{t5_forward.2} parent=1 // pred_region
      _
    $region53: #{t5_forward.2} parent=1 // pred_fallthru
      _
    // Predicated region
    $region54: #{t5_forward.2} parent=1 // pred_check
      _
    $region55: #{t5_forward.2} parent=1 // pred_check_branch
      %1985 = sbr.rel (0) target = $region57
    $region56: #{t5_forward.2} parent=1 // pred_region
      _
    $region57: #{t5_forward.2} parent=1 // pred_fallthru
      _
    %1986 = vsyncpa [#allocation3], 1
    %1987 = vsyncpa [#allocation5], 1
    %1988 = vsyncpa [#allocation8], 1

// kernel: t5_forward.3
$region0: #{t5_forward.3}
  #allocation0 [shape = 'u32[]', space=smem, size = 0x4, offset = 0x4, fixed_abs, tag = 'smem constant byte address 0x4 - core index']
  #allocation1 [shape = 'u32[144,128]{1,0:T(1,128)}', space=vmem, size = 0x12000, scoped, tag = 'internal scratch']
  %s0 = inlined_call_operand.vmem [shape: f32[16,128], index: 0, kind: input, shape index: {}]
  %s1 = inlined_call_operand.vmem [shape: f32[16,128], index: 1, kind: input, shape index: {}]
  %s2 = inlined_call_operand.hbm [shape: f32[4,128], index: 2, kind: input, shape index: {}]
  %s3 = inlined_call_operand.vmem [shape: f32[128,384], index: 3, kind: input, shape index: {}]
  %s4 = inlined_call_operand.hbm [shape: f32[32,128], index: 4, kind: input, shape index: {}]
  %s5 = inlined_call_operand.vmem [shape: f32[128,128], index: 5, kind: input, shape index: {}]
  %s6 = inlined_call_operand.vmem [shape: f32[128,256], index: 6, kind: input, shape index: {}]
  %s7 = inlined_call_operand.hbm [shape: f32[32,128], index: 7, kind: input, shape index: {}]
  %s8 = inlined_call_operand.vmem [shape: f32[128,128], index: 8, kind: input, shape index: {}]
  %s9 = inlined_call_operand.hbm [shape: f32[128,128], index: 9, kind: input, shape index: {}]
  %s10 = inlined_call_operand.hbm [shape: f32[4,8,8], index: 10, kind: input, shape index: {}]
  %s11 = inlined_call_operand.hbm [shape: f32[128,128], index: 11, kind: input, shape index: {}]
  %s12 = inlined_call_operand.vmem [shape: f32[16,128], index: 12, kind: output, shape index: {}]
  %s13 = sld [smem:[#allocation0]]
  $region82: #{t5_forward.3} parent=0
    _
  %s15 = ssub.s32 1, %s13
  %s16 = scalar_select 0, %s15, %s13
  $region1: #{t5_forward.3} parent=0
    #allocation2 [shape = 'u8[2048]{0}', space=vmem, size = 0x800, scoped, tag = 'input window, operand 2, single buffered']
    #allocation3 [shape = 's32[1]{0}', space=sflag, size = 0x4, scoped, tag = 'scoped memory for t5_forward.3']
    #allocation4 [shape = 'u8[16384]{0}', space=vmem, size = 0x4000, scoped, tag = 'input window, operand 4, single buffered']
    #allocation5 [shape = 's32[1]{0}', space=sflag, size = 0x4, scoped, tag = 'scoped memory for t5_forward.3']
    #allocation6 [shape = 'u8[16384]{0}', space=vmem, size = 0x4000, scoped, tag = 'input window, operand 7, single buffered']
    #allocation7 [shape = 'u8[65536]{0}', space=vmem, size = 0x10000, scoped, tag = 'input window, operand 9, single buffered']
    #allocation8 [shape = 's32[1]{0}', space=sflag, size = 0x4, scoped, tag = 'scoped memory for t5_forward.3']
    #allocation9 [shape = 'u8[16384]{0}', space=vmem, size = 0x4000, scoped, tag = 'input window, operand 10, single buffered']
    #allocation10 [shape = 'u8[65536]{0}', space=vmem, size = 0x10000, scoped, tag = 'input window, operand 11, single buffered']
    #allocation11 [shape = 's32[1]{0}', space=sflag, size = 0x4, scoped, tag = 'scoped memory for t5_forward.3']
    %17 = vsyncpa [#allocation3], 0
    %18 = vsyncpa [#allocation5], 0
    %19 = vsyncpa [#allocation8], 0
    %20 = vsyncpa [#allocation11], 0
    // Predicated region
    $region2: #{t5_forward.3} parent=1 // pred_check
      _
    $region3: #{t5_forward.3} parent=1 // pred_check_branch
      %22 = sbr.rel (0) target = $region5
    $region4: #{t5_forward.3} parent=1 // pred_region
      _
    $region5: #{t5_forward.3} parent=1 // pred_fallthru
      _
    // Predicated region
    $region6: #{t5_forward.3} parent=1 // pred_check
      _
    $region7: #{t5_forward.3} parent=1 // pred_check_branch
      %24 = sbr.rel (0) target = $region9
    $region8: #{t5_forward.3} parent=1 // pred_region
      _
    $region9: #{t5_forward.3} parent=1 // pred_fallthru
      _
    // Predicated region
    $region10: #{t5_forward.3} parent=1 // pred_check
      _
    $region11: #{t5_forward.3} parent=1 // pred_check_branch
      %26 = sbr.rel (0) target = $region13
    $region12: #{t5_forward.3} parent=1 // pred_region
      %s28 = ssub.s32 64, 64
      %29 = vsyncadd [#allocation3], %s28
      %s31 = sshll.u32 [#allocation2], 4
      %s32 = int_to_ptr.vmem [resolvable:$true] %s31
      %34 = dma.hbm_to_vmem [thread:$0]  %s2, 64, %s32, [#allocation3]
    $region13: #{t5_forward.3} parent=1 // pred_fallthru
      _
    // Predicated region
    $region14: #{t5_forward.3} parent=1 // pred_check
      _
    $region15: #{t5_forward.3} parent=1 // pred_check_branch
      %36 = sbr.rel (0) target = $region17
    $region16: #{t5_forward.3} parent=1 // pred_region
      _
    $region17: #{t5_forward.3} parent=1 // pred_fallthru
      _
    // Predicated region
    $region18: #{t5_forward.3} parent=1 // pred_check
      _
    $region19: #{t5_forward.3} parent=1 // pred_check_branch
      %38 = sbr.rel (0) target = $region21
    $region20: #{t5_forward.3} parent=1 // pred_region
      %s40 = ssub.s32 512, 512
      %41 = vsyncadd [#allocation5], %s40
      %s42 = sshll.u32 [#allocation4], 4
      %s43 = int_to_ptr.vmem [resolvable:$true] %s42
      %48 = dma.hbm_to_vmem [thread:$0]  %s4, 512, %s43, [#allocation5], 128, 128, 8
    $region21: #{t5_forward.3} parent=1 // pred_fallthru
      _
    // Predicated region
    $region22: #{t5_forward.3} parent=1 // pred_check
      _
    $region23: #{t5_forward.3} parent=1 // pred_check_branch
      %50 = sbr.rel (0) target = $region25
    $region24: #{t5_forward.3} parent=1 // pred_region
      _
    $region25: #{t5_forward.3} parent=1 // pred_fallthru
      _
    // Predicated region
    $region26: #{t5_forward.3} parent=1 // pred_check
      _
    $region27: #{t5_forward.3} parent=1 // pred_check_branch
      %52 = sbr.rel (0) target = $region29
    $region28: #{t5_forward.3} parent=1 // pred_region
      _
    $region29: #{t5_forward.3} parent=1 // pred_fallthru
      _
    // Predicated region
    $region30: #{t5_forward.3} parent=1 // pred_check
      _
    $region31: #{t5_forward.3} parent=1 // pred_check_branch
      %54 = sbr.rel (0) target = $region33
    $region32: #{t5_forward.3} parent=1 // pred_region
      %s56 = ssub.s32 512, 512
      %57 = vsyncadd [#allocation5], %s56
      %s58 = sshll.u32 [#allocation6], 4
      %s59 = int_to_ptr.vmem [resolvable:$true] %s58
      %64 = dma.hbm_to_vmem [thread:$0]  %s7, 512, %s59, [#allocation5], 128, 128, 8
    $region33: #{t5_forward.3} parent=1 // pred_fallthru
      _
    // Predicated region
    $region34: #{t5_forward.3} parent=1 // pred_check
      _
    $region35: #{t5_forward.3} parent=1 // pred_check_branch
      %66 = sbr.rel (0) target = $region37
    $region36: #{t5_forward.3} parent=1 // pred_region
      _
    $region37: #{t5_forward.3} parent=1 // pred_fallthru
      _
    // Predicated region
    $region38: #{t5_forward.3} parent=1 // pred_check
      _
    $region39: #{t5_forward.3} parent=1 // pred_check_branch
      %68 = sbr.rel (0) target = $region41
    $region40: #{t5_forward.3} parent=1 // pred_region
      %s70 = ssub.s32 2048, 2048
      %71 = vsyncadd [#allocation8], %s70
      %s72 = sshll.u32 [#allocation7], 4
      %s73 = int_to_ptr.vmem [resolvable:$true] %s72
      %78 = dma.hbm_to_vmem [thread:$0]  %s9, 2048, %s73, [#allocation8], 128, 128, 8
    $region41: #{t5_forward.3} parent=1 // pred_fallthru
      _
    // Predicated region
    $region42: #{t5_forward.3} parent=1 // pred_check
      _
    $region43: #{t5_forward.3} parent=1 // pred_check_branch
      %80 = sbr.rel (0) target = $region45
    $region44: #{t5_forward.3} parent=1 // pred_region
      %s82 = ssub.s32 512, 512
      %83 = vsyncadd [#allocation8], %s82
      %s84 = sshll.u32 [#allocation9], 4
      %s85 = int_to_ptr.vmem [resolvable:$true] %s84
      %90 = dma.hbm_to_vmem [thread:$0]  %s10, 512, %s85, [#allocation8], 128, 128, 8
    $region45: #{t5_forward.3} parent=1 // pred_fallthru
      _
    // Predicated region
    $region46: #{t5_forward.3} parent=1 // pred_check
      _
    $region47: #{t5_forward.3} parent=1 // pred_check_branch
      %92 = sbr.rel (0) target = $region49
    $region48: #{t5_forward.3} parent=1 // pred_region
      %s94 = ssub.s32 2048, 2048
      %95 = vsyncadd [#allocation11], %s94
      %s96 = sshll.u32 [#allocation10], 4
      %s97 = int_to_ptr.vmem [resolvable:$true] %s96
      %102 = dma.hbm_to_vmem [thread:$0]  %s11, 2048, %s97, [#allocation11], 128, 128, 8
    $region49: #{t5_forward.3} parent=1 // pred_fallthru
      _
    // Predicated region
    $region50: #{t5_forward.3} parent=1 // pred_check
      _
    $region51: #{t5_forward.3} parent=1 // pred_check_branch
      %104 = sbr.rel (0) target = $region53
    $region52: #{t5_forward.3} parent=1 // pred_region
      %105 = dma.done [#allocation3], 64
    $region53: #{t5_forward.3} parent=1 // pred_fallthru
      _
    // Predicated region
    $region54: #{t5_forward.3} parent=1 // pred_check
      _
    $region55: #{t5_forward.3} parent=1 // pred_check_branch
      %107 = sbr.rel (0) target = $region57
    $region56: #{t5_forward.3} parent=1 // pred_region
      %108 = dma.done [#allocation5], 512
    $region57: #{t5_forward.3} parent=1 // pred_fallthru
      _
    // Predicated region
    $region58: #{t5_forward.3} parent=1 // pred_check
      _
    $region59: #{t5_forward.3} parent=1 // pred_check_branch
      %110 = sbr.rel (0) target = $region61
    $region60: #{t5_forward.3} parent=1 // pred_region
      %111 = dma.done [#allocation5], 512
    $region61: #{t5_forward.3} parent=1 // pred_fallthru
      _
    // Predicated region
    $region62: #{t5_forward.3} parent=1 // pred_check
      _
    $region63: #{t5_forward.3} parent=1 // pred_check_branch
      %113 = sbr.rel (0) target = $region65
    $region64: #{t5_forward.3} parent=1 // pred_region
      %114 = dma.done [#allocation8], 2048
    $region65: #{t5_forward.3} parent=1 // pred_fallthru
      _
    // Predicated region
    $region66: #{t5_forward.3} parent=1 // pred_check
      _
    $region67: #{t5_forward.3} parent=1 // pred_check_branch
      %116 = sbr.rel (0) target = $region69
    $region68: #{t5_forward.3} parent=1 // pred_region
      %117 = dma.done [#allocation8], 512
    $region69: #{t5_forward.3} parent=1 // pred_fallthru
      _
    // Predicated region
    $region70: #{t5_forward.3} parent=1 // pred_check
      _
    $region71: #{t5_forward.3} parent=1 // pred_check_branch
      %119 = sbr.rel (0) target = $region73
    $region72: #{t5_forward.3} parent=1 // pred_region
      %120 = dma.done [#allocation11], 2048
    $region73: #{t5_forward.3} parent=1 // pred_fallthru
      _
    %v121 = vld [vmem:[%s0] sm:$0xff]
    %v122 = vld [vmem:[%s0 + $0x8] sm:$0xff]
    %v123 = vld [vmem:[%s1] sm:$0xff]
    %v124 = vld [vmem:[%s1 + $0x8] sm:$0xff]
    %v125 = vld [vmem:[#allocation2] sm:$0xf]
    %v126 = vmul.f32 %v121, %v121
    %v127 = vmul.f32 %v122, %v122
    %128 = vadd.xlane.f32.xlu0 %v126
    %v129 = vpop.xlane.xlu0 %128
    %130 = vadd.xlane.f32.xlu0 %v127
    %v131 = vpop.xlane.xlu0 %130
    %v132 = vmul.f32 %v129, 0.03125
    %v133 = vmul.f32 %v131, 0.03125
    %v134 = vadd.f32 %v132, 1e-06
    %v135 = vadd.f32 %v133, 1e-06
    %v136 = vrsqrt.pop %v134
    %v137 = vrsqrt.pop %v135
    %v138 = vmul.f32 %v121, %v136
    %v139 = vmul.f32 %v122, %v137
    %v140 = vlaneseq
    %v141 = vshrl.u32 %v140, 7
    %v142 = vsub.s32 0, %v141
    %v143 = vrot.slane %v125, %v142
    %v144 = vmul.f32 %v138, %v143
    %v145 = vmul.f32 %v139, %v143
    %v146 = vld [vmem:[%s3] sm:$0xff]
    %v147 = vld [vmem:[%s3 + $0x8] sm:$0xff]
    %v148 = vld [vmem:[%s3 + $0x10] sm:$0xff]
    %v149 = vld [vmem:[%s3 + $0x18] sm:$0xff]
    %v150 = vld [vmem:[%s3 + $0x20] sm:$0xff]
    %v151 = vld [vmem:[%s3 + $0x28] sm:$0xff]
    %v152 = vld [vmem:[%s3 + $0x30] sm:$0xff]
    %v153 = vld [vmem:[%s3 + $0x38] sm:$0xff]
    %v154 = vld [vmem:[%s3 + $0x40] sm:$0xff]
    %v155 = vld [vmem:[%s3 + $0x48] sm:$0xff]
    %v156 = vld [vmem:[%s3 + $0x50] sm:$0xff]
    %v157 = vld [vmem:[%s3 + $0x58] sm:$0xff]
    %v158 = vld [vmem:[%s3 + $0x60] sm:$0xff]
    %v159 = vld [vmem:[%s3 + $0x68] sm:$0xff]
    %v160 = vld [vmem:[%s3 + $0x70] sm:$0xff]
    %v161 = vld [vmem:[%s3 + $0x78] sm:$0xff]
    %v162 = vld [vmem:[%s3 + $0x80] sm:$0xff]
    %v163 = vld [vmem:[%s3 + $0x88] sm:$0xff]
    %v164 = vld [vmem:[%s3 + $0x90] sm:$0xff]
    %v165 = vld [vmem:[%s3 + $0x98] sm:$0xff]
    %v166 = vld [vmem:[%s3 + $0xa0] sm:$0xff]
    %v167 = vld [vmem:[%s3 + $0xa8] sm:$0xff]
    %v168 = vld [vmem:[%s3 + $0xb0] sm:$0xff]
    %v169 = vld [vmem:[%s3 + $0xb8] sm:$0xff]
    %v170 = vld [vmem:[%s3 + $0xc0] sm:$0xff]
    %v171 = vld [vmem:[%s3 + $0xc8] sm:$0xff]
    %v172 = vld [vmem:[%s3 + $0xd0] sm:$0xff]
    %v173 = vld [vmem:[%s3 + $0xd8] sm:$0xff]
    %v174 = vld [vmem:[%s3 + $0xe0] sm:$0xff]
    %v175 = vld [vmem:[%s3 + $0xe8] sm:$0xff]
    %v176 = vld [vmem:[%s3 + $0xf0] sm:$0xff]
    %v177 = vld [vmem:[%s3 + $0xf8] sm:$0xff]
    %v178 = vld [vmem:[%s3 + $0x100] sm:$0xff]
    %v179 = vld [vmem:[%s3 + $0x108] sm:$0xff]
    %v180 = vld [vmem:[%s3 + $0x110] sm:$0xff]
    %v181 = vld [vmem:[%s3 + $0x118] sm:$0xff]
    %v182 = vld [vmem:[%s3 + $0x120] sm:$0xff]
    %v183 = vld [vmem:[%s3 + $0x128] sm:$0xff]
    %v184 = vld [vmem:[%s3 + $0x130] sm:$0xff]
    %v185 = vld [vmem:[%s3 + $0x138] sm:$0xff]
    %v186 = vld [vmem:[%s3 + $0x140] sm:$0xff]
    %v187 = vld [vmem:[%s3 + $0x148] sm:$0xff]
    %v188 = vld [vmem:[%s3 + $0x150] sm:$0xff]
    %v189 = vld [vmem:[%s3 + $0x158] sm:$0xff]
    %v190 = vld [vmem:[%s3 + $0x160] sm:$0xff]
    %v191 = vld [vmem:[%s3 + $0x168] sm:$0xff]
    %v192 = vld [vmem:[%s3 + $0x170] sm:$0xff]
    %v193 = vld [vmem:[%s3 + $0x178] sm:$0xff]
    %194 = vmatprep.subr.mxu0 %v192
    %195 = vmatpush1.msra.mxu0 %v191
    %196 = vmatprep.subr.mxu0 %v189
    %197 = vmatpush1.msra.mxu0 %v188
    %198 = vmatprep.subr.mxu0 %v186
    %199 = vmatpush1.msra.mxu0 %v185
    %200 = vmatprep.subr.mxu0 %v183
    %201 = vmatpush1.msra.mxu0 %v182
    %202 = vmatprep.subr.mxu0 %v180
    %203 = vmatpush1.msra.mxu0 %v179
    %204 = vmatprep.subr.mxu0 %v177
    %205 = vmatpush1.msra.mxu0 %v176
    %206 = vmatprep.subr.mxu0 %v174
    %207 = vmatpush1.msra.mxu0 %v173
    %208 = vmatprep.subr.mxu0 %v171
    %209 = vmatpush1.msra.mxu0 %v170
    %210 = vmatprep.subr.mxu0 %v168
    %211 = vmatpush1.msra.mxu0 %v167
    %212 = vmatprep.subr.mxu0 %v165
    %213 = vmatpush1.msra.mxu0 %v164
    %214 = vmatprep.subr.mxu0 %v162
    %215 = vmatpush1.msra.mxu0 %v161
    %216 = vmatprep.subr.mxu0 %v159
    %217 = vmatpush1.msra.mxu0 %v158
    %218 = vmatprep.subr.mxu0 %v156
    %219 = vmatpush1.msra.mxu0 %v155
    %220 = vmatprep.subr.mxu0 %v153
    %221 = vmatpush1.msra.mxu0 %v152
    %222 = vmatprep.subr.mxu0 %v150
    %223 = vmatpush1.msra.mxu0 %v149
    %224 = vmatprep.subr.mxu0 %v147
    %225 = vmatpush1.msra.mxu0 %v146
    %226 = vmatprep.subr.mxu0 0.0
    %227 = vmatpush2.msra.mxu0 0.0
    %228 = vmatprep.subr.mxu0 0.0
    %229 = vmatpush2.msra.mxu0 0.0
    %230 = vmatprep.subr.mxu0 0.0
    %231 = vmatpush2.msra.mxu0 0.0
    %232 = vmatprep.subr.mxu0 0.0
    %233 = vmatpush2.msra.mxu0 0.0
    %234 = vmatprep.subr.mxu0 0.0
    %235 = vmatpush2.msra.mxu0 0.0
    %236 = vmatprep.subr.mxu0 0.0
    %237 = vmatpush2.msra.mxu0 0.0
    %238 = vmatprep.subr.mxu0 0.0
    %239 = vmatpush2.msra.mxu0 0.0
    %240 = vmatprep.subr.mxu0 0.0
    %241 = vmatpush2.msra.mxu0 0.0
    %242 = vmatprep.subr.mxu0 0.0
    %243 = vmatpush2.msra.mxu0 0.0
    %244 = vmatprep.subr.mxu0 0.0
    %245 = vmatpush2.msra.mxu0 0.0
    %246 = vmatprep.subr.mxu0 0.0
    %247 = vmatpush2.msra.mxu0 0.0
    %248 = vmatprep.subr.mxu0 0.0
    %249 = vmatpush2.msra.mxu0 0.0
    %250 = vmatprep.subr.mxu0 0.0
    %251 = vmatpush2.msra.mxu0 0.0
    %252 = vmatprep.subr.mxu0 0.0
    %253 = vmatpush2.msra.mxu0 0.0
    %254 = vmatprep.subr.mxu0 0.0
    %255 = vmatpush2.msra.mxu0 0.0
    %256 = vmatprep.subr.mxu0 0.0
    %257 = vmatpush2.msra.mxu0 0.0
    %258 = vmatprep.mubr.f32.mxu0 0.0
    %259 = vmatmul.mubr.f32.gmra.mxu0 %v144
    %v260 = vpop.f32.mrf.mxu0
    %v261 = vadd.f32 0.0, %v260
    %v262 = vpop.f32.mrf.mxu0
    %v263 = vadd.f32 0.0, %v262
    %264 = vmatprep.mubr.f32.mxu0 0.0
    %265 = vmatmul.mubr.f32.gmra.mxu0 %v145
    %v266 = vpop.f32.mrf.mxu0
    %v267 = vadd.f32 0.0, %v266
    %v268 = vpop.f32.mrf.mxu0
    %v269 = vadd.f32 0.0, %v268
    %270 = vdwg.mxu0
    %271 = vmatprep.subr.mxu0 0.0
    %272 = vmatpush1.msra.mxu0 %v193
    %273 = vmatprep.subr.mxu0 0.0
    %274 = vmatpush1.msra.mxu0 %v190
    %275 = vmatprep.subr.mxu0 0.0
    %276 = vmatpush1.msra.mxu0 %v187
    %277 = vmatprep.subr.mxu0 0.0
    %278 = vmatpush1.msra.mxu0 %v184
    %279 = vmatprep.subr.mxu0 0.0
    %280 = vmatpush1.msra.mxu0 %v181
    %281 = vmatprep.subr.mxu0 0.0
    %282 = vmatpush1.msra.mxu0 %v178
    %283 = vmatprep.subr.mxu0 0.0
    %284 = vmatpush1.msra.mxu0 %v175
    %285 = vmatprep.subr.mxu0 0.0
    %286 = vmatpush1.msra.mxu0 %v172
    %287 = vmatprep.subr.mxu0 0.0
    %288 = vmatpush1.msra.mxu0 %v169
    %289 = vmatprep.subr.mxu0 0.0
    %290 = vmatpush1.msra.mxu0 %v166
    %291 = vmatprep.subr.mxu0 0.0
    %292 = vmatpush1.msra.mxu0 %v163
    %293 = vmatprep.subr.mxu0 0.0
    %294 = vmatpush1.msra.mxu0 %v160
    %295 = vmatprep.subr.mxu0 0.0
    %296 = vmatpush1.msra.mxu0 %v157
    %297 = vmatprep.subr.mxu0 0.0
    %298 = vmatpush1.msra.mxu0 %v154
    %299 = vmatprep.subr.mxu0 0.0
    %300 = vmatpush1.msra.mxu0 %v151
    %301 = vmatprep.subr.mxu0 0.0
    %302 = vmatpush1.msra.mxu0 %v148
    %303 = vmatprep.subr.mxu0 0.0
    %304 = vmatpush2.msra.mxu0 0.0
    %305 = vmatprep.subr.mxu0 0.0
    %306 = vmatpush2.msra.mxu0 0.0
    %307 = vmatprep.subr.mxu0 0.0
    %308 = vmatpush2.msra.mxu0 0.0
    %309 = vmatprep.subr.mxu0 0.0
    %310 = vmatpush2.msra.mxu0 0.0
    %311 = vmatprep.subr.mxu0 0.0
    %312 = vmatpush2.msra.mxu0 0.0
    %313 = vmatprep.subr.mxu0 0.0
    %314 = vmatpush2.msra.mxu0 0.0
    %315 = vmatprep.subr.mxu0 0.0
    %316 = vmatpush2.msra.mxu0 0.0
    %317 = vmatprep.subr.mxu0 0.0
    %318 = vmatpush2.msra.mxu0 0.0
    %319 = vmatprep.subr.mxu0 0.0
    %320 = vmatpush2.msra.mxu0 0.0
    %321 = vmatprep.subr.mxu0 0.0
    %322 = vmatpush2.msra.mxu0 0.0
    %323 = vmatprep.subr.mxu0 0.0
    %324 = vmatpush2.msra.mxu0 0.0
    %325 = vmatprep.subr.mxu0 0.0
    %326 = vmatpush2.msra.mxu0 0.0
    %327 = vmatprep.subr.mxu0 0.0
    %328 = vmatpush2.msra.mxu0 0.0
    %329 = vmatprep.subr.mxu0 0.0
    %330 = vmatpush2.msra.mxu0 0.0
    %331 = vmatprep.subr.mxu0 0.0
    %332 = vmatpush2.msra.mxu0 0.0
    %333 = vmatprep.subr.mxu0 0.0
    %334 = vmatpush2.msra.mxu0 0.0
    %335 = vmatprep.mubr.f32.mxu0 0.0
    %336 = vmatmul.mubr.f32.gmra.mxu0 %v144
    %v337 = vpop.f32.mrf.mxu0
    %v338 = vadd.f32 0.0, %v337
    %v339 = vpop.f32.mrf.mxu0
    %340 = vmatprep.mubr.f32.mxu0 0.0
    %341 = vmatmul.mubr.f32.gmra.mxu0 %v145
    %v342 = vpop.f32.mrf.mxu0
    %v343 = vadd.f32 0.0, %v342
    %v344 = vpop.f32.mrf.mxu0
    %345 = vdwg.mxu0
    %v346 = vld [vmem:[#allocation9] sm:$0xff]
    %v347 = vld [vmem:[#allocation9 + $0x8] sm:$0xff]
    %v348 = vld [vmem:[#allocation9 + $0x10] sm:$0xff]
    %v349 = vld [vmem:[#allocation9 + $0x18] sm:$0xff]
    %vm350 = vcmask 64512
    %v352 = vsel %vm350, %v261, 0
    %v355 = vsel %vm350, %v263, 0
    %357 = vmatprep.subr.mxu0 0.0
    %358 = vmatpush1.xpose.msra.mxu0 0.0
    %359 = vmatprep.subr.mxu0 0.0
    %360 = vmatpush1.xpose.msra.mxu0 0.0
    %361 = vmatprep.subr.mxu0 0.0
    %362 = vmatpush1.xpose.msra.mxu0 0.0
    %363 = vmatprep.subr.mxu0 0.0
    %364 = vmatpush1.xpose.msra.mxu0 0.0
    %365 = vmatprep.subr.mxu0 0.0
    %366 = vmatpush1.xpose.msra.mxu0 0.0
    %367 = vmatprep.subr.mxu0 0.0
    %368 = vmatpush1.xpose.msra.mxu0 0.0
    %369 = vmatprep.subr.mxu0 0.0
    %370 = vmatpush1.xpose.msra.mxu0 0.0
    %371 = vmatprep.subr.mxu0 0.0
    %372 = vmatpush1.xpose.msra.mxu0 0.0
    %373 = vmatprep.subr.mxu0 0.0
    %374 = vmatpush1.xpose.msra.mxu0 0.0
    %375 = vmatprep.subr.mxu0 0.0
    %376 = vmatpush1.xpose.msra.mxu0 0.0
    %377 = vmatprep.subr.mxu0 0.0
    %378 = vmatpush1.xpose.msra.mxu0 0.0
    %379 = vmatprep.subr.mxu0 0.0
    %380 = vmatpush1.xpose.msra.mxu0 0.0
    %381 = vmatprep.subr.mxu0 0.0
    %382 = vmatpush1.xpose.msra.mxu0 0.0
    %383 = vmatprep.subr.mxu0 0.0
    %384 = vmatpush1.xpose.msra.mxu0 0.0
    %385 = vmatprep.subr.mxu0 0.0
    %386 = vmatpush1.xpose.msra.mxu0 0.0
    %387 = vmatprep.subr.mxu0 0.0
    %388 = vmatpush1.xpose.msra.mxu0 %v355
    %389 = vmatprep.subr.mxu0 0.0
    %390 = vmatpush2.xpose.msra.mxu0 0.0
    %391 = vmatprep.subr.mxu0 0.0
    %392 = vmatpush2.xpose.msra.mxu0 0.0
    %393 = vmatprep.subr.mxu0 0.0
    %394 = vmatpush2.xpose.msra.mxu0 0.0
    %395 = vmatprep.subr.mxu0 0.0
    %396 = vmatpush2.xpose.msra.mxu0 0.0
    %397 = vmatprep.subr.mxu0 0.0
    %398 = vmatpush2.xpose.msra.mxu0 0.0
    %399 = vmatprep.subr.mxu0 0.0
    %400 = vmatpush2.xpose.msra.mxu0 0.0
    %401 = vmatprep.subr.mxu0 0.0
    %402 = vmatpush2.xpose.msra.mxu0 0.0
    %403 = vmatprep.subr.mxu0 0.0
    %404 = vmatpush2.xpose.msra.mxu0 0.0
    %405 = vmatprep.subr.mxu0 0.0
    %406 = vmatpush2.xpose.msra.mxu0 0.0
    %407 = vmatprep.subr.mxu0 0.0
    %408 = vmatpush2.xpose.msra.mxu0 0.0
    %409 = vmatprep.subr.mxu0 0.0
    %410 = vmatpush2.xpose.msra.mxu0 0.0
    %411 = vmatprep.subr.mxu0 0.0
    %412 = vmatpush2.xpose.msra.mxu0 0.0
    %413 = vmatprep.subr.mxu0 0.0
    %414 = vmatpush2.xpose.msra.mxu0 0.0
    %415 = vmatprep.subr.mxu0 0.0
    %416 = vmatpush2.xpose.msra.mxu0 0.0
    %417 = vmatprep.subr.mxu0 0.0
    %418 = vmatpush2.xpose.msra.mxu0 0.0
    %419 = vmatprep.subr.mxu0 0.0
    %420 = vmatpush2.xpose.msra.mxu0 0.0
    %421 = vmatprep.mubr.f32.mxu0 0.0
    %422 = vmatmul.mubr.f32.gmra.mxu0 %v352
    %v423 = vpop.f32.mrf.mxu0
    %v424 = vadd.f32 %v346, %v423
    %v425 = vpop.f32.mrf.mxu0
    %426 = vdwg.mxu0
    %v427 = vsel %vm350, %v424, -inf
    %428 = vmax.xlane.f32.xlu0 %v427
    %v429 = vpop.xlane.xlu0 %428
    %v430 = vsub.f32 %v424, %v429
    %v431 = vmul.f32 %v430, 1.442695
    %v432 = vpow.pop %v431
    %v433 = vsel %vm350, %v432, 0.0
    %434 = vadd.xlane.f32.xlu0 %v433
    %v435 = vpop.xlane.xlu0 %434
    %v436 = vrcp.pop %v435
    %v437 = vmul.f32 %v432, %v436
    %v439 = vsel %vm350, %v437, 0
    %441 = vmatprep.subr.mxu0 0.0
    %442 = vmatpush1.msra.mxu0 0.0
    %443 = vmatprep.subr.mxu0 0.0
    %444 = vmatpush1.msra.mxu0 0.0
    %445 = vmatprep.subr.mxu0 0.0
    %446 = vmatpush1.msra.mxu0 0.0
    %447 = vmatprep.subr.mxu0 0.0
    %448 = vmatpush1.msra.mxu0 0.0
    %449 = vmatprep.subr.mxu0 0.0
    %450 = vmatpush1.msra.mxu0 0.0
    %451 = vmatprep.subr.mxu0 0.0
    %452 = vmatpush1.msra.mxu0 0.0
    %453 = vmatprep.subr.mxu0 0.0
    %454 = vmatpush1.msra.mxu0 0.0
    %455 = vmatprep.subr.mxu0 0.0
    %456 = vmatpush1.msra.mxu0 0.0
    %457 = vmatprep.subr.mxu0 0.0
    %458 = vmatpush1.msra.mxu0 0.0
    %459 = vmatprep.subr.mxu0 0.0
    %460 = vmatpush1.msra.mxu0 0.0
    %461 = vmatprep.subr.mxu0 0.0
    %462 = vmatpush1.msra.mxu0 0.0
    %463 = vmatprep.subr.mxu0 0.0
    %464 = vmatpush1.msra.mxu0 0.0
    %465 = vmatprep.subr.mxu0 0.0
    %466 = vmatpush1.msra.mxu0 0.0
    %467 = vmatprep.subr.mxu0 0.0
    %468 = vmatpush1.msra.mxu0 0.0
    %469 = vmatprep.subr.mxu0 0.0
    %470 = vmatpush1.msra.mxu0 0.0
    %471 = vmatprep.subr.mxu0 0.0
    %472 = vmatpush1.msra.mxu0 %v338
    %473 = vmatprep.subr.mxu0 0.0
    %474 = vmatpush2.msra.mxu0 0.0
    %475 = vmatprep.subr.mxu0 0.0
    %476 = vmatpush2.msra.mxu0 0.0
    %477 = vmatprep.subr.mxu0 0.0
    %478 = vmatpush2.msra.mxu0 0.0
    %479 = vmatprep.subr.mxu0 0.0
    %480 = vmatpush2.msra.mxu0 0.0
    %481 = vmatprep.subr.mxu0 0.0
    %482 = vmatpush2.msra.mxu0 0.0
    %483 = vmatprep.subr.mxu0 0.0
    %484 = vmatpush2.msra.mxu0 0.0
    %485 = vmatprep.subr.mxu0 0.0
    %486 = vmatpush2.msra.mxu0 0.0
    %487 = vmatprep.subr.mxu0 0.0
    %488 = vmatpush2.msra.mxu0 0.0
    %489 = vmatprep.subr.mxu0 0.0
    %490 = vmatpush2.msra.mxu0 0.0
    %491 = vmatprep.subr.mxu0 0.0
    %492 = vmatpush2.msra.mxu0 0.0
    %493 = vmatprep.subr.mxu0 0.0
    %494 = vmatpush2.msra.mxu0 0.0
    %495 = vmatprep.subr.mxu0 0.0
    %496 = vmatpush2.msra.mxu0 0.0
    %497 = vmatprep.subr.mxu0 0.0
    %498 = vmatpush2.msra.mxu0 0.0
    %499 = vmatprep.subr.mxu0 0.0
    %500 = vmatpush2.msra.mxu0 0.0
    %501 = vmatprep.subr.mxu0 0.0
    %502 = vmatpush2.msra.mxu0 0.0
    %503 = vmatprep.subr.mxu0 0.0
    %504 = vmatpush2.msra.mxu0 0.0
    %505 = vmatprep.mubr.f32.mxu0 0.0
    %506 = vmatmul.mubr.f32.gmra.mxu0 %v439
    %v507 = vpop.f32.mrf.mxu0
    %v508 = vadd.f32 0.0, %v507
    %v509 = vpop.f32.mrf.mxu0
    %510 = vdwg.mxu0
    %511 = vrot.lane.b32.xlu0 %v261, 120
    %v512 = vpop.permute.xlu0 %511
    %513 = vrot.lane.b32.xlu0 %v263, 120
    %v514 = vpop.permute.xlu0 %513
    %v515 = vsel %vm350, %v512, 0
    %v517 = vsel %vm350, %v514, 0
    %519 = vmatprep.subr.mxu0 0.0
    %520 = vmatpush1.xpose.msra.mxu0 0.0
    %521 = vmatprep.subr.mxu0 0.0
    %522 = vmatpush1.xpose.msra.mxu0 0.0
    %523 = vmatprep.subr.mxu0 0.0
    %524 = vmatpush1.xpose.msra.mxu0 0.0
    %525 = vmatprep.subr.mxu0 0.0
    %526 = vmatpush1.xpose.msra.mxu0 0.0
    %527 = vmatprep.subr.mxu0 0.0
    %528 = vmatpush1.xpose.msra.mxu0 0.0
    %529 = vmatprep.subr.mxu0 0.0
    %530 = vmatpush1.xpose.msra.mxu0 0.0
    %531 = vmatprep.subr.mxu0 0.0
    %532 = vmatpush1.xpose.msra.mxu0 0.0
    %533 = vmatprep.subr.mxu0 0.0
    %534 = vmatpush1.xpose.msra.mxu0 0.0
    %535 = vmatprep.subr.mxu0 0.0
    %536 = vmatpush1.xpose.msra.mxu0 0.0
    %537 = vmatprep.subr.mxu0 0.0
    %538 = vmatpush1.xpose.msra.mxu0 0.0
    %539 = vmatprep.subr.mxu0 0.0
    %540 = vmatpush1.xpose.msra.mxu0 0.0
    %541 = vmatprep.subr.mxu0 0.0
    %542 = vmatpush1.xpose.msra.mxu0 0.0
    %543 = vmatprep.subr.mxu0 0.0
    %544 = vmatpush1.xpose.msra.mxu0 0.0
    %545 = vmatprep.subr.mxu0 0.0
    %546 = vmatpush1.xpose.msra.mxu0 0.0
    %547 = vmatprep.subr.mxu0 0.0
    %548 = vmatpush1.xpose.msra.mxu0 0.0
    %549 = vmatprep.subr.mxu0 0.0
    %550 = vmatpush1.xpose.msra.mxu0 %v517
    %551 = vmatprep.subr.mxu0 0.0
    %552 = vmatpush2.xpose.msra.mxu0 0.0
    %553 = vmatprep.subr.mxu0 0.0
    %554 = vmatpush2.xpose.msra.mxu0 0.0
    %555 = vmatprep.subr.mxu0 0.0
    %556 = vmatpush2.xpose.msra.mxu0 0.0
    %557 = vmatprep.subr.mxu0 0.0
    %558 = vmatpush2.xpose.msra.mxu0 0.0
    %559 = vmatprep.subr.mxu0 0.0
    %560 = vmatpush2.xpose.msra.mxu0 0.0
    %561 = vmatprep.subr.mxu0 0.0
    %562 = vmatpush2.xpose.msra.mxu0 0.0
    %563 = vmatprep.subr.mxu0 0.0
    %564 = vmatpush2.xpose.msra.mxu0 0.0
    %565 = vmatprep.subr.mxu0 0.0
    %566 = vmatpush2.xpose.msra.mxu0 0.0
    %567 = vmatprep.subr.mxu0 0.0
    %568 = vmatpush2.xpose.msra.mxu0 0.0
    %569 = vmatprep.subr.mxu0 0.0
    %570 = vmatpush2.xpose.msra.mxu0 0.0
    %571 = vmatprep.subr.mxu0 0.0
    %572 = vmatpush2.xpose.msra.mxu0 0.0
    %573 = vmatprep.subr.mxu0 0.0
    %574 = vmatpush2.xpose.msra.mxu0 0.0
    %575 = vmatprep.subr.mxu0 0.0
    %576 = vmatpush2.xpose.msra.mxu0 0.0
    %577 = vmatprep.subr.mxu0 0.0
    %578 = vmatpush2.xpose.msra.mxu0 0.0
    %579 = vmatprep.subr.mxu0 0.0
    %580 = vmatpush2.xpose.msra.mxu0 0.0
    %581 = vmatprep.subr.mxu0 0.0
    %582 = vmatpush2.xpose.msra.mxu0 0.0
    %583 = vmatprep.mubr.f32.mxu0 0.0
    %584 = vmatmul.mubr.f32.gmra.mxu0 %v515
    %v585 = vpop.f32.mrf.mxu0
    %v586 = vadd.f32 %v347, %v585
    %v587 = vpop.f32.mrf.mxu0
    %588 = vdwg.mxu0
    %v589 = vsel %vm350, %v586, -inf
    %590 = vmax.xlane.f32.xlu0 %v589
    %v591 = vpop.xlane.xlu0 %590
    %v592 = vsub.f32 %v586, %v591
    %v593 = vmul.f32 %v592, 1.442695
    %v594 = vpow.pop %v593
    %v595 = vsel %vm350, %v594, 0.0
    %596 = vadd.xlane.f32.xlu0 %v595
    %v597 = vpop.xlane.xlu0 %596
    %v598 = vrcp.pop %v597
    %v599 = vmul.f32 %v594, %v598
    %601 = vrot.lane.b32.xlu0 %v338, 120
    %v602 = vpop.permute.xlu0 %601
    %v605 = vsel %vm350, %v599, 0
    %607 = vmatprep.subr.mxu0 0.0
    %608 = vmatpush1.msra.mxu0 0.0
    %609 = vmatprep.subr.mxu0 0.0
    %610 = vmatpush1.msra.mxu0 0.0
    %611 = vmatprep.subr.mxu0 0.0
    %612 = vmatpush1.msra.mxu0 0.0
    %613 = vmatprep.subr.mxu0 0.0
    %614 = vmatpush1.msra.mxu0 0.0
    %615 = vmatprep.subr.mxu0 0.0
    %616 = vmatpush1.msra.mxu0 0.0
    %617 = vmatprep.subr.mxu0 0.0
    %618 = vmatpush1.msra.mxu0 0.0
    %619 = vmatprep.subr.mxu0 0.0
    %620 = vmatpush1.msra.mxu0 0.0
    %621 = vmatprep.subr.mxu0 0.0
    %622 = vmatpush1.msra.mxu0 0.0
    %623 = vmatprep.subr.mxu0 0.0
    %624 = vmatpush1.msra.mxu0 0.0
    %625 = vmatprep.subr.mxu0 0.0
    %626 = vmatpush1.msra.mxu0 0.0
    %627 = vmatprep.subr.mxu0 0.0
    %628 = vmatpush1.msra.mxu0 0.0
    %629 = vmatprep.subr.mxu0 0.0
    %630 = vmatpush1.msra.mxu0 0.0
    %631 = vmatprep.subr.mxu0 0.0
    %632 = vmatpush1.msra.mxu0 0.0
    %633 = vmatprep.subr.mxu0 0.0
    %634 = vmatpush1.msra.mxu0 0.0
    %635 = vmatprep.subr.mxu0 0.0
    %636 = vmatpush1.msra.mxu0 0.0
    %637 = vmatprep.subr.mxu0 0.0
    %638 = vmatpush1.msra.mxu0 %v602
    %639 = vmatprep.subr.mxu0 0.0
    %640 = vmatpush2.msra.mxu0 0.0
    %641 = vmatprep.subr.mxu0 0.0
    %642 = vmatpush2.msra.mxu0 0.0
    %643 = vmatprep.subr.mxu0 0.0
    %644 = vmatpush2.msra.mxu0 0.0
    %645 = vmatprep.subr.mxu0 0.0
    %646 = vmatpush2.msra.mxu0 0.0
    %647 = vmatprep.subr.mxu0 0.0
    %648 = vmatpush2.msra.mxu0 0.0
    %649 = vmatprep.subr.mxu0 0.0
    %650 = vmatpush2.msra.mxu0 0.0
    %651 = vmatprep.subr.mxu0 0.0
    %652 = vmatpush2.msra.mxu0 0.0
    %653 = vmatprep.subr.mxu0 0.0
    %654 = vmatpush2.msra.mxu0 0.0
    %655 = vmatprep.subr.mxu0 0.0
    %656 = vmatpush2.msra.mxu0 0.0
    %657 = vmatprep.subr.mxu0 0.0
    %658 = vmatpush2.msra.mxu0 0.0
    %659 = vmatprep.subr.mxu0 0.0
    %660 = vmatpush2.msra.mxu0 0.0
    %661 = vmatprep.subr.mxu0 0.0
    %662 = vmatpush2.msra.mxu0 0.0
    %663 = vmatprep.subr.mxu0 0.0
    %664 = vmatpush2.msra.mxu0 0.0
    %665 = vmatprep.subr.mxu0 0.0
    %666 = vmatpush2.msra.mxu0 0.0
    %667 = vmatprep.subr.mxu0 0.0
    %668 = vmatpush2.msra.mxu0 0.0
    %669 = vmatprep.subr.mxu0 0.0
    %670 = vmatpush2.msra.mxu0 0.0
    %671 = vmatprep.mubr.f32.mxu0 0.0
    %672 = vmatmul.mubr.f32.gmra.mxu0 %v605
    %v673 = vpop.f32.mrf.mxu0
    %v674 = vadd.f32 0.0, %v673
    %v675 = vpop.f32.mrf.mxu0
    %676 = vdwg.mxu0
    %677 = vrot.lane.b32.xlu0 %v261, 112
    %v678 = vpop.permute.xlu0 %677
    %679 = vrot.lane.b32.xlu0 %v263, 112
    %v680 = vpop.permute.xlu0 %679
    %v681 = vsel %vm350, %v678, 0
    %v683 = vsel %vm350, %v680, 0
    %685 = vmatprep.subr.mxu0 0.0
    %686 = vmatpush1.xpose.msra.mxu0 0.0
    %687 = vmatprep.subr.mxu0 0.0
    %688 = vmatpush1.xpose.msra.mxu0 0.0
    %689 = vmatprep.subr.mxu0 0.0
    %690 = vmatpush1.xpose.msra.mxu0 0.0
    %691 = vmatprep.subr.mxu0 0.0
    %692 = vmatpush1.xpose.msra.mxu0 0.0
    %693 = vmatprep.subr.mxu0 0.0
    %694 = vmatpush1.xpose.msra.mxu0 0.0
    %695 = vmatprep.subr.mxu0 0.0
    %696 = vmatpush1.xpose.msra.mxu0 0.0
    %697 = vmatprep.subr.mxu0 0.0
    %698 = vmatpush1.xpose.msra.mxu0 0.0
    %699 = vmatprep.subr.mxu0 0.0
    %700 = vmatpush1.xpose.msra.mxu0 0.0
    %701 = vmatprep.subr.mxu0 0.0
    %702 = vmatpush1.xpose.msra.mxu0 0.0
    %703 = vmatprep.subr.mxu0 0.0
    %704 = vmatpush1.xpose.msra.mxu0 0.0
    %705 = vmatprep.subr.mxu0 0.0
    %706 = vmatpush1.xpose.msra.mxu0 0.0
    %707 = vmatprep.subr.mxu0 0.0
    %708 = vmatpush1.xpose.msra.mxu0 0.0
    %709 = vmatprep.subr.mxu0 0.0
    %710 = vmatpush1.xpose.msra.mxu0 0.0
    %711 = vmatprep.subr.mxu0 0.0
    %712 = vmatpush1.xpose.msra.mxu0 0.0
    %713 = vmatprep.subr.mxu0 0.0
    %714 = vmatpush1.xpose.msra.mxu0 0.0
    %715 = vmatprep.subr.mxu0 0.0
    %716 = vmatpush1.xpose.msra.mxu0 %v683
    %717 = vmatprep.subr.mxu0 0.0
    %718 = vmatpush2.xpose.msra.mxu0 0.0
    %719 = vmatprep.subr.mxu0 0.0
    %720 = vmatpush2.xpose.msra.mxu0 0.0
    %721 = vmatprep.subr.mxu0 0.0
    %722 = vmatpush2.xpose.msra.mxu0 0.0
    %723 = vmatprep.subr.mxu0 0.0
    %724 = vmatpush2.xpose.msra.mxu0 0.0
    %725 = vmatprep.subr.mxu0 0.0
    %726 = vmatpush2.xpose.msra.mxu0 0.0
    %727 = vmatprep.subr.mxu0 0.0
    %728 = vmatpush2.xpose.msra.mxu0 0.0
    %729 = vmatprep.subr.mxu0 0.0
    %730 = vmatpush2.xpose.msra.mxu0 0.0
    %731 = vmatprep.subr.mxu0 0.0
    %732 = vmatpush2.xpose.msra.mxu0 0.0
    %733 = vmatprep.subr.mxu0 0.0
    %734 = vmatpush2.xpose.msra.mxu0 0.0
    %735 = vmatprep.subr.mxu0 0.0
    %736 = vmatpush2.xpose.msra.mxu0 0.0
    %737 = vmatprep.subr.mxu0 0.0
    %738 = vmatpush2.xpose.msra.mxu0 0.0
    %739 = vmatprep.subr.mxu0 0.0
    %740 = vmatpush2.xpose.msra.mxu0 0.0
    %741 = vmatprep.subr.mxu0 0.0
    %742 = vmatpush2.xpose.msra.mxu0 0.0
    %743 = vmatprep.subr.mxu0 0.0
    %744 = vmatpush2.xpose.msra.mxu0 0.0
    %745 = vmatprep.subr.mxu0 0.0
    %746 = vmatpush2.xpose.msra.mxu0 0.0
    %747 = vmatprep.subr.mxu0 0.0
    %748 = vmatpush2.xpose.msra.mxu0 0.0
    %749 = vmatprep.mubr.f32.mxu0 0.0
    %750 = vmatmul.mubr.f32.gmra.mxu0 %v681
    %v751 = vpop.f32.mrf.mxu0
    %v752 = vadd.f32 %v348, %v751
    %v753 = vpop.f32.mrf.mxu0
    %754 = vdwg.mxu0
    %v755 = vsel %vm350, %v752, -inf
    %756 = vmax.xlane.f32.xlu0 %v755
    %v757 = vpop.xlane.xlu0 %756
    %v758 = vsub.f32 %v752, %v757
    %v759 = vmul.f32 %v758, 1.442695
    %v760 = vpow.pop %v759
    %v761 = vsel %vm350, %v760, 0.0
    %762 = vadd.xlane.f32.xlu0 %v761
    %v763 = vpop.xlane.xlu0 %762
    %v764 = vrcp.pop %v763
    %v765 = vmul.f32 %v760, %v764
    %766 = vrot.lane.b32.xlu0 %v338, 112
    %v767 = vpop.permute.xlu0 %766
    %v770 = vsel %vm350, %v765, 0
    %772 = vmatprep.subr.mxu0 0.0
    %773 = vmatpush1.msra.mxu0 0.0
    %774 = vmatprep.subr.mxu0 0.0
    %775 = vmatpush1.msra.mxu0 0.0
    %776 = vmatprep.subr.mxu0 0.0
    %777 = vmatpush1.msra.mxu0 0.0
    %778 = vmatprep.subr.mxu0 0.0
    %779 = vmatpush1.msra.mxu0 0.0
    %780 = vmatprep.subr.mxu0 0.0
    %781 = vmatpush1.msra.mxu0 0.0
    %782 = vmatprep.subr.mxu0 0.0
    %783 = vmatpush1.msra.mxu0 0.0
    %784 = vmatprep.subr.mxu0 0.0
    %785 = vmatpush1.msra.mxu0 0.0
    %786 = vmatprep.subr.mxu0 0.0
    %787 = vmatpush1.msra.mxu0 0.0
    %788 = vmatprep.subr.mxu0 0.0
    %789 = vmatpush1.msra.mxu0 0.0
    %790 = vmatprep.subr.mxu0 0.0
    %791 = vmatpush1.msra.mxu0 0.0
    %792 = vmatprep.subr.mxu0 0.0
    %793 = vmatpush1.msra.mxu0 0.0
    %794 = vmatprep.subr.mxu0 0.0
    %795 = vmatpush1.msra.mxu0 0.0
    %796 = vmatprep.subr.mxu0 0.0
    %797 = vmatpush1.msra.mxu0 0.0
    %798 = vmatprep.subr.mxu0 0.0
    %799 = vmatpush1.msra.mxu0 0.0
    %800 = vmatprep.subr.mxu0 0.0
    %801 = vmatpush1.msra.mxu0 0.0
    %802 = vmatprep.subr.mxu0 0.0
    %803 = vmatpush1.msra.mxu0 %v767
    %804 = vmatprep.subr.mxu0 0.0
    %805 = vmatpush2.msra.mxu0 0.0
    %806 = vmatprep.subr.mxu0 0.0
    %807 = vmatpush2.msra.mxu0 0.0
    %808 = vmatprep.subr.mxu0 0.0
    %809 = vmatpush2.msra.mxu0 0.0
    %810 = vmatprep.subr.mxu0 0.0
    %811 = vmatpush2.msra.mxu0 0.0
    %812 = vmatprep.subr.mxu0 0.0
    %813 = vmatpush2.msra.mxu0 0.0
    %814 = vmatprep.subr.mxu0 0.0
    %815 = vmatpush2.msra.mxu0 0.0
    %816 = vmatprep.subr.mxu0 0.0
    %817 = vmatpush2.msra.mxu0 0.0
    %818 = vmatprep.subr.mxu0 0.0
    %819 = vmatpush2.msra.mxu0 0.0
    %820 = vmatprep.subr.mxu0 0.0
    %821 = vmatpush2.msra.mxu0 0.0
    %822 = vmatprep.subr.mxu0 0.0
    %823 = vmatpush2.msra.mxu0 0.0
    %824 = vmatprep.subr.mxu0 0.0
    %825 = vmatpush2.msra.mxu0 0.0
    %826 = vmatprep.subr.mxu0 0.0
    %827 = vmatpush2.msra.mxu0 0.0
    %828 = vmatprep.subr.mxu0 0.0
    %829 = vmatpush2.msra.mxu0 0.0
    %830 = vmatprep.subr.mxu0 0.0
    %831 = vmatpush2.msra.mxu0 0.0
    %832 = vmatprep.subr.mxu0 0.0
    %833 = vmatpush2.msra.mxu0 0.0
    %834 = vmatprep.subr.mxu0 0.0
    %835 = vmatpush2.msra.mxu0 0.0
    %836 = vmatprep.mubr.f32.mxu0 0.0
    %837 = vmatmul.mubr.f32.gmra.mxu0 %v770
    %v838 = vpop.f32.mrf.mxu0
    %v839 = vadd.f32 0.0, %v838
    %v840 = vpop.f32.mrf.mxu0
    %841 = vdwg.mxu0
    %842 = vrot.lane.b32.xlu0 %v261, 104
    %v843 = vpop.permute.xlu0 %842
    %844 = vrot.lane.b32.xlu0 %v263, 104
    %v845 = vpop.permute.xlu0 %844
    %v846 = vsel %vm350, %v843, 0
    %v848 = vsel %vm350, %v845, 0
    %850 = vmatprep.subr.mxu0 0.0
    %851 = vmatpush1.xpose.msra.mxu0 0.0
    %852 = vmatprep.subr.mxu0 0.0
    %853 = vmatpush1.xpose.msra.mxu0 0.0
    %854 = vmatprep.subr.mxu0 0.0
    %855 = vmatpush1.xpose.msra.mxu0 0.0
    %856 = vmatprep.subr.mxu0 0.0
    %857 = vmatpush1.xpose.msra.mxu0 0.0
    %858 = vmatprep.subr.mxu0 0.0
    %859 = vmatpush1.xpose.msra.mxu0 0.0
    %860 = vmatprep.subr.mxu0 0.0
    %861 = vmatpush1.xpose.msra.mxu0 0.0
    %862 = vmatprep.subr.mxu0 0.0
    %863 = vmatpush1.xpose.msra.mxu0 0.0
    %864 = vmatprep.subr.mxu0 0.0
    %865 = vmatpush1.xpose.msra.mxu0 0.0
    %866 = vmatprep.subr.mxu0 0.0
    %867 = vmatpush1.xpose.msra.mxu0 0.0
    %868 = vmatprep.subr.mxu0 0.0
    %869 = vmatpush1.xpose.msra.mxu0 0.0
    %870 = vmatprep.subr.mxu0 0.0
    %871 = vmatpush1.xpose.msra.mxu0 0.0
    %872 = vmatprep.subr.mxu0 0.0
    %873 = vmatpush1.xpose.msra.mxu0 0.0
    %874 = vmatprep.subr.mxu0 0.0
    %875 = vmatpush1.xpose.msra.mxu0 0.0
    %876 = vmatprep.subr.mxu0 0.0
    %877 = vmatpush1.xpose.msra.mxu0 0.0
    %878 = vmatprep.subr.mxu0 0.0
    %879 = vmatpush1.xpose.msra.mxu0 0.0
    %880 = vmatprep.subr.mxu0 0.0
    %881 = vmatpush1.xpose.msra.mxu0 %v848
    %882 = vmatprep.subr.mxu0 0.0
    %883 = vmatpush2.xpose.msra.mxu0 0.0
    %884 = vmatprep.subr.mxu0 0.0
    %885 = vmatpush2.xpose.msra.mxu0 0.0
    %886 = vmatprep.subr.mxu0 0.0
    %887 = vmatpush2.xpose.msra.mxu0 0.0
    %888 = vmatprep.subr.mxu0 0.0
    %889 = vmatpush2.xpose.msra.mxu0 0.0
    %890 = vmatprep.subr.mxu0 0.0
    %891 = vmatpush2.xpose.msra.mxu0 0.0
    %892 = vmatprep.subr.mxu0 0.0
    %893 = vmatpush2.xpose.msra.mxu0 0.0
    %894 = vmatprep.subr.mxu0 0.0
    %895 = vmatpush2.xpose.msra.mxu0 0.0
    %896 = vmatprep.subr.mxu0 0.0
    %897 = vmatpush2.xpose.msra.mxu0 0.0
    %898 = vmatprep.subr.mxu0 0.0
    %899 = vmatpush2.xpose.msra.mxu0 0.0
    %900 = vmatprep.subr.mxu0 0.0
    %901 = vmatpush2.xpose.msra.mxu0 0.0
    %902 = vmatprep.subr.mxu0 0.0
    %903 = vmatpush2.xpose.msra.mxu0 0.0
    %904 = vmatprep.subr.mxu0 0.0
    %905 = vmatpush2.xpose.msra.mxu0 0.0
    %906 = vmatprep.subr.mxu0 0.0
    %907 = vmatpush2.xpose.msra.mxu0 0.0
    %908 = vmatprep.subr.mxu0 0.0
    %909 = vmatpush2.xpose.msra.mxu0 0.0
    %910 = vmatprep.subr.mxu0 0.0
    %911 = vmatpush2.xpose.msra.mxu0 0.0
    %912 = vmatprep.subr.mxu0 0.0
    %913 = vmatpush2.xpose.msra.mxu0 0.0
    %914 = vmatprep.mubr.f32.mxu0 0.0
    %915 = vmatmul.mubr.f32.gmra.mxu0 %v846
    %v916 = vpop.f32.mrf.mxu0
    %v917 = vadd.f32 %v349, %v916
    %v918 = vpop.f32.mrf.mxu0
    %919 = vdwg.mxu0
    %v920 = vsel %vm350, %v917, -inf
    %921 = vmax.xlane.f32.xlu0 %v920
    %v922 = vpop.xlane.xlu0 %921
    %v923 = vsub.f32 %v917, %v922
    %v924 = vmul.f32 %v923, 1.442695
    %v925 = vpow.pop %v924
    %v926 = vsel %vm350, %v925, 0.0
    %927 = vadd.xlane.f32.xlu0 %v926
    %v928 = vpop.xlane.xlu0 %927
    %v929 = vrcp.pop %v928
    %v930 = vmul.f32 %v925, %v929
    %931 = vrot.lane.b32.xlu0 %v338, 104
    %v932 = vpop.permute.xlu0 %931
    %v935 = vsel %vm350, %v930, 0
    %937 = vmatprep.subr.mxu0 0.0
    %938 = vmatpush1.msra.mxu0 0.0
    %939 = vmatprep.subr.mxu0 0.0
    %940 = vmatpush1.msra.mxu0 0.0
    %941 = vmatprep.subr.mxu0 0.0
    %942 = vmatpush1.msra.mxu0 0.0
    %943 = vmatprep.subr.mxu0 0.0
    %944 = vmatpush1.msra.mxu0 0.0
    %945 = vmatprep.subr.mxu0 0.0
    %946 = vmatpush1.msra.mxu0 0.0
    %947 = vmatprep.subr.mxu0 0.0
    %948 = vmatpush1.msra.mxu0 0.0
    %949 = vmatprep.subr.mxu0 0.0
    %950 = vmatpush1.msra.mxu0 0.0
    %951 = vmatprep.subr.mxu0 0.0
    %952 = vmatpush1.msra.mxu0 0.0
    %953 = vmatprep.subr.mxu0 0.0
    %954 = vmatpush1.msra.mxu0 0.0
    %955 = vmatprep.subr.mxu0 0.0
    %956 = vmatpush1.msra.mxu0 0.0
    %957 = vmatprep.subr.mxu0 0.0
    %958 = vmatpush1.msra.mxu0 0.0
    %959 = vmatprep.subr.mxu0 0.0
    %960 = vmatpush1.msra.mxu0 0.0
    %961 = vmatprep.subr.mxu0 0.0
    %962 = vmatpush1.msra.mxu0 0.0
    %963 = vmatprep.subr.mxu0 0.0
    %964 = vmatpush1.msra.mxu0 0.0
    %965 = vmatprep.subr.mxu0 0.0
    %966 = vmatpush1.msra.mxu0 0.0
    %967 = vmatprep.subr.mxu0 0.0
    %968 = vmatpush1.msra.mxu0 %v932
    %969 = vmatprep.subr.mxu0 0.0
    %970 = vmatpush2.msra.mxu0 0.0
    %971 = vmatprep.subr.mxu0 0.0
    %972 = vmatpush2.msra.mxu0 0.0
    %973 = vmatprep.subr.mxu0 0.0
    %974 = vmatpush2.msra.mxu0 0.0
    %975 = vmatprep.subr.mxu0 0.0
    %976 = vmatpush2.msra.mxu0 0.0
    %977 = vmatprep.subr.mxu0 0.0
    %978 = vmatpush2.msra.mxu0 0.0
    %979 = vmatprep.subr.mxu0 0.0
    %980 = vmatpush2.msra.mxu0 0.0
    %981 = vmatprep.subr.mxu0 0.0
    %982 = vmatpush2.msra.mxu0 0.0
    %983 = vmatprep.subr.mxu0 0.0
    %984 = vmatpush2.msra.mxu0 0.0
    %985 = vmatprep.subr.mxu0 0.0
    %986 = vmatpush2.msra.mxu0 0.0
    %987 = vmatprep.subr.mxu0 0.0
    %988 = vmatpush2.msra.mxu0 0.0
    %989 = vmatprep.subr.mxu0 0.0
    %990 = vmatpush2.msra.mxu0 0.0
    %991 = vmatprep.subr.mxu0 0.0
    %992 = vmatpush2.msra.mxu0 0.0
    %993 = vmatprep.subr.mxu0 0.0
    %994 = vmatpush2.msra.mxu0 0.0
    %995 = vmatprep.subr.mxu0 0.0
    %996 = vmatpush2.msra.mxu0 0.0
    %997 = vmatprep.subr.mxu0 0.0
    %998 = vmatpush2.msra.mxu0 0.0
    %999 = vmatprep.subr.mxu0 0.0
    %1000 = vmatpush2.msra.mxu0 0.0
    %1001 = vmatprep.mubr.f32.mxu0 0.0
    %1002 = vmatmul.mubr.f32.gmra.mxu0 %v935
    %v1003 = vpop.f32.mrf.mxu0
    %v1004 = vadd.f32 0.0, %v1003
    %v1005 = vpop.f32.mrf.mxu0
    %1006 = vdwg.mxu0
    %1008 = vrot.lane.b32.xlu0 %v674, 8
    %v1009 = vpop.permute.xlu0 %1008
    %1012 = vrot.lane.b32.xlu0 %v839, 16
    %v1013 = vpop.permute.xlu0 %1012
    %1016 = vrot.lane.b32.xlu0 %v1004, 24
    %v1017 = vpop.permute.xlu0 %1016
    %v1019 = vsel %vm350, %v508, %v1009
    %vm1020 = vcmask 130048
    %v1021 = vsel %vm1020, %v1019, %v1013
    %vm1022 = vcmask 195584
    %v1023 = vsel %vm1022, %v1021, %v1017
    %v1025 = vsel %vm350, %v267, 0
    %v1028 = vsel %vm350, %v269, 0
    %1030 = vmatprep.subr.mxu0 0.0
    %1031 = vmatpush1.xpose.msra.mxu0 0.0
    %1032 = vmatprep.subr.mxu0 0.0
    %1033 = vmatpush1.xpose.msra.mxu0 0.0
    %1034 = vmatprep.subr.mxu0 0.0
    %1035 = vmatpush1.xpose.msra.mxu0 0.0
    %1036 = vmatprep.subr.mxu0 0.0
    %1037 = vmatpush1.xpose.msra.mxu0 0.0
    %1038 = vmatprep.subr.mxu0 0.0
    %1039 = vmatpush1.xpose.msra.mxu0 0.0
    %1040 = vmatprep.subr.mxu0 0.0
    %1041 = vmatpush1.xpose.msra.mxu0 0.0
    %1042 = vmatprep.subr.mxu0 0.0
    %1043 = vmatpush1.xpose.msra.mxu0 0.0
    %1044 = vmatprep.subr.mxu0 0.0
    %1045 = vmatpush1.xpose.msra.mxu0 0.0
    %1046 = vmatprep.subr.mxu0 0.0
    %1047 = vmatpush1.xpose.msra.mxu0 0.0
    %1048 = vmatprep.subr.mxu0 0.0
    %1049 = vmatpush1.xpose.msra.mxu0 0.0
    %1050 = vmatprep.subr.mxu0 0.0
    %1051 = vmatpush1.xpose.msra.mxu0 0.0
    %1052 = vmatprep.subr.mxu0 0.0
    %1053 = vmatpush1.xpose.msra.mxu0 0.0
    %1054 = vmatprep.subr.mxu0 0.0
    %1055 = vmatpush1.xpose.msra.mxu0 0.0
    %1056 = vmatprep.subr.mxu0 0.0
    %1057 = vmatpush1.xpose.msra.mxu0 0.0
    %1058 = vmatprep.subr.mxu0 0.0
    %1059 = vmatpush1.xpose.msra.mxu0 0.0
    %1060 = vmatprep.subr.mxu0 0.0
    %1061 = vmatpush1.xpose.msra.mxu0 %v1028
    %1062 = vmatprep.subr.mxu0 0.0
    %1063 = vmatpush2.xpose.msra.mxu0 0.0
    %1064 = vmatprep.subr.mxu0 0.0
    %1065 = vmatpush2.xpose.msra.mxu0 0.0
    %1066 = vmatprep.subr.mxu0 0.0
    %1067 = vmatpush2.xpose.msra.mxu0 0.0
    %1068 = vmatprep.subr.mxu0 0.0
    %1069 = vmatpush2.xpose.msra.mxu0 0.0
    %1070 = vmatprep.subr.mxu0 0.0
    %1071 = vmatpush2.xpose.msra.mxu0 0.0
    %1072 = vmatprep.subr.mxu0 0.0
    %1073 = vmatpush2.xpose.msra.mxu0 0.0
    %1074 = vmatprep.subr.mxu0 0.0
    %1075 = vmatpush2.xpose.msra.mxu0 0.0
    %1076 = vmatprep.subr.mxu0 0.0
    %1077 = vmatpush2.xpose.msra.mxu0 0.0
    %1078 = vmatprep.subr.mxu0 0.0
    %1079 = vmatpush2.xpose.msra.mxu0 0.0
    %1080 = vmatprep.subr.mxu0 0.0
    %1081 = vmatpush2.xpose.msra.mxu0 0.0
    %1082 = vmatprep.subr.mxu0 0.0
    %1083 = vmatpush2.xpose.msra.mxu0 0.0
    %1084 = vmatprep.subr.mxu0 0.0
    %1085 = vmatpush2.xpose.msra.mxu0 0.0
    %1086 = vmatprep.subr.mxu0 0.0
    %1087 = vmatpush2.xpose.msra.mxu0 0.0
    %1088 = vmatprep.subr.mxu0 0.0
    %1089 = vmatpush2.xpose.msra.mxu0 0.0
    %1090 = vmatprep.subr.mxu0 0.0
    %1091 = vmatpush2.xpose.msra.mxu0 0.0
    %1092 = vmatprep.subr.mxu0 0.0
    %1093 = vmatpush2.xpose.msra.mxu0 0.0
    %1094 = vmatprep.mubr.f32.mxu0 0.0
    %1095 = vmatmul.mubr.f32.gmra.mxu0 %v1025
    %v1096 = vpop.f32.mrf.mxu0
    %v1097 = vadd.f32 %v346, %v1096
    %v1098 = vpop.f32.mrf.mxu0
    %1099 = vdwg.mxu0
    %v1100 = vsel %vm350, %v1097, -inf
    %1101 = vmax.xlane.f32.xlu0 %v1100
    %v1102 = vpop.xlane.xlu0 %1101
    %v1103 = vsub.f32 %v1097, %v1102
    %v1104 = vmul.f32 %v1103, 1.442695
    %v1105 = vpow.pop %v1104
    %v1106 = vsel %vm350, %v1105, 0.0
    %1107 = vadd.xlane.f32.xlu0 %v1106
    %v1108 = vpop.xlane.xlu0 %1107
    %v1109 = vrcp.pop %v1108
    %v1110 = vmul.f32 %v1105, %v1109
    %v1112 = vsel %vm350, %v1110, 0
    %1114 = vmatprep.subr.mxu0 0.0
    %1115 = vmatpush1.msra.mxu0 0.0
    %1116 = vmatprep.subr.mxu0 0.0
    %1117 = vmatpush1.msra.mxu0 0.0
    %1118 = vmatprep.subr.mxu0 0.0
    %1119 = vmatpush1.msra.mxu0 0.0
    %1120 = vmatprep.subr.mxu0 0.0
    %1121 = vmatpush1.msra.mxu0 0.0
    %1122 = vmatprep.subr.mxu0 0.0
    %1123 = vmatpush1.msra.mxu0 0.0
    %1124 = vmatprep.subr.mxu0 0.0
    %1125 = vmatpush1.msra.mxu0 0.0
    %1126 = vmatprep.subr.mxu0 0.0
    %1127 = vmatpush1.msra.mxu0 0.0
    %1128 = vmatprep.subr.mxu0 0.0
    %1129 = vmatpush1.msra.mxu0 0.0
    %1130 = vmatprep.subr.mxu0 0.0
    %1131 = vmatpush1.msra.mxu0 0.0
    %1132 = vmatprep.subr.mxu0 0.0
    %1133 = vmatpush1.msra.mxu0 0.0
    %1134 = vmatprep.subr.mxu0 0.0
    %1135 = vmatpush1.msra.mxu0 0.0
    %1136 = vmatprep.subr.mxu0 0.0
    %1137 = vmatpush1.msra.mxu0 0.0
    %1138 = vmatprep.subr.mxu0 0.0
    %1139 = vmatpush1.msra.mxu0 0.0
    %1140 = vmatprep.subr.mxu0 0.0
    %1141 = vmatpush1.msra.mxu0 0.0
    %1142 = vmatprep.subr.mxu0 0.0
    %1143 = vmatpush1.msra.mxu0 0.0
    %1144 = vmatprep.subr.mxu0 0.0
    %1145 = vmatpush1.msra.mxu0 %v343
    %1146 = vmatprep.subr.mxu0 0.0
    %1147 = vmatpush2.msra.mxu0 0.0
    %1148 = vmatprep.subr.mxu0 0.0
    %1149 = vmatpush2.msra.mxu0 0.0
    %1150 = vmatprep.subr.mxu0 0.0
    %1151 = vmatpush2.msra.mxu0 0.0
    %1152 = vmatprep.subr.mxu0 0.0
    %1153 = vmatpush2.msra.mxu0 0.0
    %1154 = vmatprep.subr.mxu0 0.0
    %1155 = vmatpush2.msra.mxu0 0.0
    %1156 = vmatprep.subr.mxu0 0.0
    %1157 = vmatpush2.msra.mxu0 0.0
    %1158 = vmatprep.subr.mxu0 0.0
    %1159 = vmatpush2.msra.mxu0 0.0
    %1160 = vmatprep.subr.mxu0 0.0
    %1161 = vmatpush2.msra.mxu0 0.0
    %1162 = vmatprep.subr.mxu0 0.0
    %1163 = vmatpush2.msra.mxu0 0.0
    %1164 = vmatprep.subr.mxu0 0.0
    %1165 = vmatpush2.msra.mxu0 0.0
    %1166 = vmatprep.subr.mxu0 0.0
    %1167 = vmatpush2.msra.mxu0 0.0
    %1168 = vmatprep.subr.mxu0 0.0
    %1169 = vmatpush2.msra.mxu0 0.0
    %1170 = vmatprep.subr.mxu0 0.0
    %1171 = vmatpush2.msra.mxu0 0.0
    %1172 = vmatprep.subr.mxu0 0.0
    %1173 = vmatpush2.msra.mxu0 0.0
    %1174 = vmatprep.subr.mxu0 0.0
    %1175 = vmatpush2.msra.mxu0 0.0
    %1176 = vmatprep.subr.mxu0 0.0
    %1177 = vmatpush2.msra.mxu0 0.0
    %1178 = vmatprep.mubr.f32.mxu0 0.0
    %1179 = vmatmul.mubr.f32.gmra.mxu0 %v1112
    %v1180 = vpop.f32.mrf.mxu0
    %v1181 = vadd.f32 0.0, %v1180
    %v1182 = vpop.f32.mrf.mxu0
    %1183 = vdwg.mxu0
    %1184 = vrot.lane.b32.xlu0 %v267, 120
    %v1185 = vpop.permute.xlu0 %1184
    %1186 = vrot.lane.b32.xlu0 %v269, 120
    %v1187 = vpop.permute.xlu0 %1186
    %v1188 = vsel %vm350, %v1185, 0
    %v1190 = vsel %vm350, %v1187, 0
    %1192 = vmatprep.subr.mxu0 0.0
    %1193 = vmatpush1.xpose.msra.mxu0 0.0
    %1194 = vmatprep.subr.mxu0 0.0
    %1195 = vmatpush1.xpose.msra.mxu0 0.0
    %1196 = vmatprep.subr.mxu0 0.0
    %1197 = vmatpush1.xpose.msra.mxu0 0.0
    %1198 = vmatprep.subr.mxu0 0.0
    %1199 = vmatpush1.xpose.msra.mxu0 0.0
    %1200 = vmatprep.subr.mxu0 0.0
    %1201 = vmatpush1.xpose.msra.mxu0 0.0
    %1202 = vmatprep.subr.mxu0 0.0
    %1203 = vmatpush1.xpose.msra.mxu0 0.0
    %1204 = vmatprep.subr.mxu0 0.0
    %1205 = vmatpush1.xpose.msra.mxu0 0.0
    %1206 = vmatprep.subr.mxu0 0.0
    %1207 = vmatpush1.xpose.msra.mxu0 0.0
    %1208 = vmatprep.subr.mxu0 0.0
    %1209 = vmatpush1.xpose.msra.mxu0 0.0
    %1210 = vmatprep.subr.mxu0 0.0
    %1211 = vmatpush1.xpose.msra.mxu0 0.0
    %1212 = vmatprep.subr.mxu0 0.0
    %1213 = vmatpush1.xpose.msra.mxu0 0.0
    %1214 = vmatprep.subr.mxu0 0.0
    %1215 = vmatpush1.xpose.msra.mxu0 0.0
    %1216 = vmatprep.subr.mxu0 0.0
    %1217 = vmatpush1.xpose.msra.mxu0 0.0
    %1218 = vmatprep.subr.mxu0 0.0
    %1219 = vmatpush1.xpose.msra.mxu0 0.0
    %1220 = vmatprep.subr.mxu0 0.0
    %1221 = vmatpush1.xpose.msra.mxu0 0.0
    %1222 = vmatprep.subr.mxu0 0.0
    %1223 = vmatpush1.xpose.msra.mxu0 %v1190
    %1224 = vmatprep.subr.mxu0 0.0
    %1225 = vmatpush2.xpose.msra.mxu0 0.0
    %1226 = vmatprep.subr.mxu0 0.0
    %1227 = vmatpush2.xpose.msra.mxu0 0.0
    %1228 = vmatprep.subr.mxu0 0.0
    %1229 = vmatpush2.xpose.msra.mxu0 0.0
    %1230 = vmatprep.subr.mxu0 0.0
    %1231 = vmatpush2.xpose.msra.mxu0 0.0
    %1232 = vmatprep.subr.mxu0 0.0
    %1233 = vmatpush2.xpose.msra.mxu0 0.0
    %1234 = vmatprep.subr.mxu0 0.0
    %1235 = vmatpush2.xpose.msra.mxu0 0.0
    %1236 = vmatprep.subr.mxu0 0.0
    %1237 = vmatpush2.xpose.msra.mxu0 0.0
    %1238 = vmatprep.subr.mxu0 0.0
    %1239 = vmatpush2.xpose.msra.mxu0 0.0
    %1240 = vmatprep.subr.mxu0 0.0
    %1241 = vmatpush2.xpose.msra.mxu0 0.0
    %1242 = vmatprep.subr.mxu0 0.0
    %1243 = vmatpush2.xpose.msra.mxu0 0.0
    %1244 = vmatprep.subr.mxu0 0.0
    %1245 = vmatpush2.xpose.msra.mxu0 0.0
    %1246 = vmatprep.subr.mxu0 0.0
    %1247 = vmatpush2.xpose.msra.mxu0 0.0
    %1248 = vmatprep.subr.mxu0 0.0
    %1249 = vmatpush2.xpose.msra.mxu0 0.0
    %1250 = vmatprep.subr.mxu0 0.0
    %1251 = vmatpush2.xpose.msra.mxu0 0.0
    %1252 = vmatprep.subr.mxu0 0.0
    %1253 = vmatpush2.xpose.msra.mxu0 0.0
    %1254 = vmatprep.subr.mxu0 0.0
    %1255 = vmatpush2.xpose.msra.mxu0 0.0
    %1256 = vmatprep.mubr.f32.mxu0 0.0
    %1257 = vmatmul.mubr.f32.gmra.mxu0 %v1188
    %v1258 = vpop.f32.mrf.mxu0
    %v1259 = vadd.f32 %v347, %v1258
    %v1260 = vpop.f32.mrf.mxu0
    %1261 = vdwg.mxu0
    %v1262 = vsel %vm350, %v1259, -inf
    %1263 = vmax.xlane.f32.xlu0 %v1262
    %v1264 = vpop.xlane.xlu0 %1263
    %v1265 = vsub.f32 %v1259, %v1264
    %v1266 = vmul.f32 %v1265, 1.442695
    %v1267 = vpow.pop %v1266
    %v1268 = vsel %vm350, %v1267, 0.0
    %1269 = vadd.xlane.f32.xlu0 %v1268
    %v1270 = vpop.xlane.xlu0 %1269
    %v1271 = vrcp.pop %v1270
    %v1272 = vmul.f32 %v1267, %v1271
    %1274 = vrot.lane.b32.xlu0 %v343, 120
    %v1275 = vpop.permute.xlu0 %1274
    %v1278 = vsel %vm350, %v1272, 0
    %1280 = vmatprep.subr.mxu0 0.0
    %1281 = vmatpush1.msra.mxu0 0.0
    %1282 = vmatprep.subr.mxu0 0.0
    %1283 = vmatpush1.msra.mxu0 0.0
    %1284 = vmatprep.subr.mxu0 0.0
    %1285 = vmatpush1.msra.mxu0 0.0
    %1286 = vmatprep.subr.mxu0 0.0
    %1287 = vmatpush1.msra.mxu0 0.0
    %1288 = vmatprep.subr.mxu0 0.0
    %1289 = vmatpush1.msra.mxu0 0.0
    %1290 = vmatprep.subr.mxu0 0.0
    %1291 = vmatpush1.msra.mxu0 0.0
    %1292 = vmatprep.subr.mxu0 0.0
    %1293 = vmatpush1.msra.mxu0 0.0
    %1294 = vmatprep.subr.mxu0 0.0
    %1295 = vmatpush1.msra.mxu0 0.0
    %1296 = vmatprep.subr.mxu0 0.0
    %1297 = vmatpush1.msra.mxu0 0.0
    %1298 = vmatprep.subr.mxu0 0.0
    %1299 = vmatpush1.msra.mxu0 0.0
    %1300 = vmatprep.subr.mxu0 0.0
    %1301 = vmatpush1.msra.mxu0 0.0
    %1302 = vmatprep.subr.mxu0 0.0
    %1303 = vmatpush1.msra.mxu0 0.0
    %1304 = vmatprep.subr.mxu0 0.0
    %1305 = vmatpush1.msra.mxu0 0.0
    %1306 = vmatprep.subr.mxu0 0.0
    %1307 = vmatpush1.msra.mxu0 0.0
    %1308 = vmatprep.subr.mxu0 0.0
    %1309 = vmatpush1.msra.mxu0 0.0
    %1310 = vmatprep.subr.mxu0 0.0
    %1311 = vmatpush1.msra.mxu0 %v1275
    %1312 = vmatprep.subr.mxu0 0.0
    %1313 = vmatpush2.msra.mxu0 0.0
    %1314 = vmatprep.subr.mxu0 0.0
    %1315 = vmatpush2.msra.mxu0 0.0
    %1316 = vmatprep.subr.mxu0 0.0
    %1317 = vmatpush2.msra.mxu0 0.0
    %1318 = vmatprep.subr.mxu0 0.0
    %1319 = vmatpush2.msra.mxu0 0.0
    %1320 = vmatprep.subr.mxu0 0.0
    %1321 = vmatpush2.msra.mxu0 0.0
    %1322 = vmatprep.subr.mxu0 0.0
    %1323 = vmatpush2.msra.mxu0 0.0
    %1324 = vmatprep.subr.mxu0 0.0
    %1325 = vmatpush2.msra.mxu0 0.0
    %1326 = vmatprep.subr.mxu0 0.0
    %1327 = vmatpush2.msra.mxu0 0.0
    %1328 = vmatprep.subr.mxu0 0.0
    %1329 = vmatpush2.msra.mxu0 0.0
    %1330 = vmatprep.subr.mxu0 0.0
    %1331 = vmatpush2.msra.mxu0 0.0
    %1332 = vmatprep.subr.mxu0 0.0
    %1333 = vmatpush2.msra.mxu0 0.0
    %1334 = vmatprep.subr.mxu0 0.0
    %1335 = vmatpush2.msra.mxu0 0.0
    %1336 = vmatprep.subr.mxu0 0.0
    %1337 = vmatpush2.msra.mxu0 0.0
    %1338 = vmatprep.subr.mxu0 0.0
    %1339 = vmatpush2.msra.mxu0 0.0
    %1340 = vmatprep.subr.mxu0 0.0
    %1341 = vmatpush2.msra.mxu0 0.0
    %1342 = vmatprep.subr.mxu0 0.0
    %1343 = vmatpush2.msra.mxu0 0.0
    %1344 = vmatprep.mubr.f32.mxu0 0.0
    %1345 = vmatmul.mubr.f32.gmra.mxu0 %v1278
    %v1346 = vpop.f32.mrf.mxu0
    %v1347 = vadd.f32 0.0, %v1346
    %v1348 = vpop.f32.mrf.mxu0
    %1349 = vdwg.mxu0
    %1350 = vrot.lane.b32.xlu0 %v267, 112
    %v1351 = vpop.permute.xlu0 %1350
    %1352 = vrot.lane.b32.xlu0 %v269, 112
    %v1353 = vpop.permute.xlu0 %1352
    %v1354 = vsel %vm350, %v1351, 0
    %v1356 = vsel %vm350, %v1353, 0
    %1358 = vmatprep.subr.mxu0 0.0
    %1359 = vmatpush1.xpose.msra.mxu0 0.0
    %1360 = vmatprep.subr.mxu0 0.0
    %1361 = vmatpush1.xpose.msra.mxu0 0.0
    %1362 = vmatprep.subr.mxu0 0.0
    %1363 = vmatpush1.xpose.msra.mxu0 0.0
    %1364 = vmatprep.subr.mxu0 0.0
    %1365 = vmatpush1.xpose.msra.mxu0 0.0
    %1366 = vmatprep.subr.mxu0 0.0
    %1367 = vmatpush1.xpose.msra.mxu0 0.0
    %1368 = vmatprep.subr.mxu0 0.0
    %1369 = vmatpush1.xpose.msra.mxu0 0.0
    %1370 = vmatprep.subr.mxu0 0.0
    %1371 = vmatpush1.xpose.msra.mxu0 0.0
    %1372 = vmatprep.subr.mxu0 0.0
    %1373 = vmatpush1.xpose.msra.mxu0 0.0
    %1374 = vmatprep.subr.mxu0 0.0
    %1375 = vmatpush1.xpose.msra.mxu0 0.0
    %1376 = vmatprep.subr.mxu0 0.0
    %1377 = vmatpush1.xpose.msra.mxu0 0.0
    %1378 = vmatprep.subr.mxu0 0.0
    %1379 = vmatpush1.xpose.msra.mxu0 0.0
    %1380 = vmatprep.subr.mxu0 0.0
    %1381 = vmatpush1.xpose.msra.mxu0 0.0
    %1382 = vmatprep.subr.mxu0 0.0
    %1383 = vmatpush1.xpose.msra.mxu0 0.0
    %1384 = vmatprep.subr.mxu0 0.0
    %1385 = vmatpush1.xpose.msra.mxu0 0.0
    %1386 = vmatprep.subr.mxu0 0.0
    %1387 = vmatpush1.xpose.msra.mxu0 0.0
    %1388 = vmatprep.subr.mxu0 0.0
    %1389 = vmatpush1.xpose.msra.mxu0 %v1356
    %1390 = vmatprep.subr.mxu0 0.0
    %1391 = vmatpush2.xpose.msra.mxu0 0.0
    %1392 = vmatprep.subr.mxu0 0.0
    %1393 = vmatpush2.xpose.msra.mxu0 0.0
    %1394 = vmatprep.subr.mxu0 0.0
    %1395 = vmatpush2.xpose.msra.mxu0 0.0
    %1396 = vmatprep.subr.mxu0 0.0
    %1397 = vmatpush2.xpose.msra.mxu0 0.0
    %1398 = vmatprep.subr.mxu0 0.0
    %1399 = vmatpush2.xpose.msra.mxu0 0.0
    %1400 = vmatprep.subr.mxu0 0.0
    %1401 = vmatpush2.xpose.msra.mxu0 0.0
    %1402 = vmatprep.subr.mxu0 0.0
    %1403 = vmatpush2.xpose.msra.mxu0 0.0
    %1404 = vmatprep.subr.mxu0 0.0
    %1405 = vmatpush2.xpose.msra.mxu0 0.0
    %1406 = vmatprep.subr.mxu0 0.0
    %1407 = vmatpush2.xpose.msra.mxu0 0.0
    %1408 = vmatprep.subr.mxu0 0.0
    %1409 = vmatpush2.xpose.msra.mxu0 0.0
    %1410 = vmatprep.subr.mxu0 0.0
    %1411 = vmatpush2.xpose.msra.mxu0 0.0
    %1412 = vmatprep.subr.mxu0 0.0
    %1413 = vmatpush2.xpose.msra.mxu0 0.0
    %1414 = vmatprep.subr.mxu0 0.0
    %1415 = vmatpush2.xpose.msra.mxu0 0.0
    %1416 = vmatprep.subr.mxu0 0.0
    %1417 = vmatpush2.xpose.msra.mxu0 0.0
    %1418 = vmatprep.subr.mxu0 0.0
    %1419 = vmatpush2.xpose.msra.mxu0 0.0
    %1420 = vmatprep.subr.mxu0 0.0
    %1421 = vmatpush2.xpose.msra.mxu0 0.0
    %1422 = vmatprep.mubr.f32.mxu0 0.0
    %1423 = vmatmul.mubr.f32.gmra.mxu0 %v1354
    %v1424 = vpop.f32.mrf.mxu0
    %v1425 = vadd.f32 %v348, %v1424
    %v1426 = vpop.f32.mrf.mxu0
    %1427 = vdwg.mxu0
    %v1428 = vsel %vm350, %v1425, -inf
    %1429 = vmax.xlane.f32.xlu0 %v1428
    %v1430 = vpop.xlane.xlu0 %1429
    %v1431 = vsub.f32 %v1425, %v1430
    %v1432 = vmul.f32 %v1431, 1.442695
    %v1433 = vpow.pop %v1432
    %v1434 = vsel %vm350, %v1433, 0.0
    %1435 = vadd.xlane.f32.xlu0 %v1434
    %v1436 = vpop.xlane.xlu0 %1435
    %v1437 = vrcp.pop %v1436
    %v1438 = vmul.f32 %v1433, %v1437
    %1439 = vrot.lane.b32.xlu0 %v343, 112
    %v1440 = vpop.permute.xlu0 %1439
    %v1443 = vsel %vm350, %v1438, 0
    %1445 = vmatprep.subr.mxu0 0.0
    %1446 = vmatpush1.msra.mxu0 0.0
    %1447 = vmatprep.subr.mxu0 0.0
    %1448 = vmatpush1.msra.mxu0 0.0
    %1449 = vmatprep.subr.mxu0 0.0
    %1450 = vmatpush1.msra.mxu0 0.0
    %1451 = vmatprep.subr.mxu0 0.0
    %1452 = vmatpush1.msra.mxu0 0.0
    %1453 = vmatprep.subr.mxu0 0.0
    %1454 = vmatpush1.msra.mxu0 0.0
    %1455 = vmatprep.subr.mxu0 0.0
    %1456 = vmatpush1.msra.mxu0 0.0
    %1457 = vmatprep.subr.mxu0 0.0
    %1458 = vmatpush1.msra.mxu0 0.0
    %1459 = vmatprep.subr.mxu0 0.0
    %1460 = vmatpush1.msra.mxu0 0.0
    %1461 = vmatprep.subr.mxu0 0.0
    %1462 = vmatpush1.msra.mxu0 0.0
    %1463 = vmatprep.subr.mxu0 0.0
    %1464 = vmatpush1.msra.mxu0 0.0
    %1465 = vmatprep.subr.mxu0 0.0
    %1466 = vmatpush1.msra.mxu0 0.0
    %1467 = vmatprep.subr.mxu0 0.0
    %1468 = vmatpush1.msra.mxu0 0.0
    %1469 = vmatprep.subr.mxu0 0.0
    %1470 = vmatpush1.msra.mxu0 0.0
    %1471 = vmatprep.subr.mxu0 0.0
    %1472 = vmatpush1.msra.mxu0 0.0
    %1473 = vmatprep.subr.mxu0 0.0
    %1474 = vmatpush1.msra.mxu0 0.0
    %1475 = vmatprep.subr.mxu0 0.0
    %1476 = vmatpush1.msra.mxu0 %v1440
    %1477 = vmatprep.subr.mxu0 0.0
    %1478 = vmatpush2.msra.mxu0 0.0
    %1479 = vmatprep.subr.mxu0 0.0
    %1480 = vmatpush2.msra.mxu0 0.0
    %1481 = vmatprep.subr.mxu0 0.0
    %1482 = vmatpush2.msra.mxu0 0.0
    %1483 = vmatprep.subr.mxu0 0.0
    %1484 = vmatpush2.msra.mxu0 0.0
    %1485 = vmatprep.subr.mxu0 0.0
    %1486 = vmatpush2.msra.mxu0 0.0
    %1487 = vmatprep.subr.mxu0 0.0
    %1488 = vmatpush2.msra.mxu0 0.0
    %1489 = vmatprep.subr.mxu0 0.0
    %1490 = vmatpush2.msra.mxu0 0.0
    %1491 = vmatprep.subr.mxu0 0.0
    %1492 = vmatpush2.msra.mxu0 0.0
    %1493 = vmatprep.subr.mxu0 0.0
    %1494 = vmatpush2.msra.mxu0 0.0
    %1495 = vmatprep.subr.mxu0 0.0
    %1496 = vmatpush2.msra.mxu0 0.0
    %1497 = vmatprep.subr.mxu0 0.0
    %1498 = vmatpush2.msra.mxu0 0.0
    %1499 = vmatprep.subr.mxu0 0.0
    %1500 = vmatpush2.msra.mxu0 0.0
    %1501 = vmatprep.subr.mxu0 0.0
    %1502 = vmatpush2.msra.mxu0 0.0
    %1503 = vmatprep.subr.mxu0 0.0
    %1504 = vmatpush2.msra.mxu0 0.0
    %1505 = vmatprep.subr.mxu0 0.0
    %1506 = vmatpush2.msra.mxu0 0.0
    %1507 = vmatprep.subr.mxu0 0.0
    %1508 = vmatpush2.msra.mxu0 0.0
    %1509 = vmatprep.mubr.f32.mxu0 0.0
    %1510 = vmatmul.mubr.f32.gmra.mxu0 %v1443
    %v1511 = vpop.f32.mrf.mxu0
    %v1512 = vadd.f32 0.0, %v1511
    %v1513 = vpop.f32.mrf.mxu0
    %1514 = vdwg.mxu0
    %1515 = vrot.lane.b32.xlu0 %v267, 104
    %v1516 = vpop.permute.xlu0 %1515
    %1517 = vrot.lane.b32.xlu0 %v269, 104
    %v1518 = vpop.permute.xlu0 %1517
    %v1519 = vsel %vm350, %v1516, 0
    %v1521 = vsel %vm350, %v1518, 0
    %1523 = vmatprep.subr.mxu0 0.0
    %1524 = vmatpush1.xpose.msra.mxu0 0.0
    %1525 = vmatprep.subr.mxu0 0.0
    %1526 = vmatpush1.xpose.msra.mxu0 0.0
    %1527 = vmatprep.subr.mxu0 0.0
    %1528 = vmatpush1.xpose.msra.mxu0 0.0
    %1529 = vmatprep.subr.mxu0 0.0
    %1530 = vmatpush1.xpose.msra.mxu0 0.0
    %1531 = vmatprep.subr.mxu0 0.0
    %1532 = vmatpush1.xpose.msra.mxu0 0.0
    %1533 = vmatprep.subr.mxu0 0.0
    %1534 = vmatpush1.xpose.msra.mxu0 0.0
    %1535 = vmatprep.subr.mxu0 0.0
    %1536 = vmatpush1.xpose.msra.mxu0 0.0
    %1537 = vmatprep.subr.mxu0 0.0
    %1538 = vmatpush1.xpose.msra.mxu0 0.0
    %1539 = vmatprep.subr.mxu0 0.0
    %1540 = vmatpush1.xpose.msra.mxu0 0.0
    %1541 = vmatprep.subr.mxu0 0.0
    %1542 = vmatpush1.xpose.msra.mxu0 0.0
    %1543 = vmatprep.subr.mxu0 0.0
    %1544 = vmatpush1.xpose.msra.mxu0 0.0
    %1545 = vmatprep.subr.mxu0 0.0
    %1546 = vmatpush1.xpose.msra.mxu0 0.0
    %1547 = vmatprep.subr.mxu0 0.0
    %1548 = vmatpush1.xpose.msra.mxu0 0.0
    %1549 = vmatprep.subr.mxu0 0.0
    %1550 = vmatpush1.xpose.msra.mxu0 0.0
    %1551 = vmatprep.subr.mxu0 0.0
    %1552 = vmatpush1.xpose.msra.mxu0 0.0
    %1553 = vmatprep.subr.mxu0 0.0
    %1554 = vmatpush1.xpose.msra.mxu0 %v1521
    %1555 = vmatprep.subr.mxu0 0.0
    %1556 = vmatpush2.xpose.msra.mxu0 0.0
    %1557 = vmatprep.subr.mxu0 0.0
    %1558 = vmatpush2.xpose.msra.mxu0 0.0
    %1559 = vmatprep.subr.mxu0 0.0
    %1560 = vmatpush2.xpose.msra.mxu0 0.0
    %1561 = vmatprep.subr.mxu0 0.0
    %1562 = vmatpush2.xpose.msra.mxu0 0.0
    %1563 = vmatprep.subr.mxu0 0.0
    %1564 = vmatpush2.xpose.msra.mxu0 0.0
    %1565 = vmatprep.subr.mxu0 0.0
    %1566 = vmatpush2.xpose.msra.mxu0 0.0
    %1567 = vmatprep.subr.mxu0 0.0
    %1568 = vmatpush2.xpose.msra.mxu0 0.0
    %1569 = vmatprep.subr.mxu0 0.0
    %1570 = vmatpush2.xpose.msra.mxu0 0.0
    %1571 = vmatprep.subr.mxu0 0.0
    %1572 = vmatpush2.xpose.msra.mxu0 0.0
    %1573 = vmatprep.subr.mxu0 0.0
    %1574 = vmatpush2.xpose.msra.mxu0 0.0
    %1575 = vmatprep.subr.mxu0 0.0
    %1576 = vmatpush2.xpose.msra.mxu0 0.0
    %1577 = vmatprep.subr.mxu0 0.0
    %1578 = vmatpush2.xpose.msra.mxu0 0.0
    %1579 = vmatprep.subr.mxu0 0.0
    %1580 = vmatpush2.xpose.msra.mxu0 0.0
    %1581 = vmatprep.subr.mxu0 0.0
    %1582 = vmatpush2.xpose.msra.mxu0 0.0
    %1583 = vmatprep.subr.mxu0 0.0
    %1584 = vmatpush2.xpose.msra.mxu0 0.0
    %1585 = vmatprep.subr.mxu0 0.0
    %1586 = vmatpush2.xpose.msra.mxu0 0.0
    %1587 = vmatprep.mubr.f32.mxu0 0.0
    %1588 = vmatmul.mubr.f32.gmra.mxu0 %v1519
    %v1589 = vpop.f32.mrf.mxu0
    %v1590 = vadd.f32 %v349, %v1589
    %v1591 = vpop.f32.mrf.mxu0
    %1592 = vdwg.mxu0
    %v1593 = vsel %vm350, %v1590, -inf
    %1594 = vmax.xlane.f32.xlu0 %v1593
    %v1595 = vpop.xlane.xlu0 %1594
    %v1596 = vsub.f32 %v1590, %v1595
    %v1597 = vmul.f32 %v1596, 1.442695
    %v1598 = vpow.pop %v1597
    %v1599 = vsel %vm350, %v1598, 0.0
    %1600 = vadd.xlane.f32.xlu0 %v1599
    %v1601 = vpop.xlane.xlu0 %1600
    %v1602 = vrcp.pop %v1601
    %v1603 = vmul.f32 %v1598, %v1602
    %1604 = vrot.lane.b32.xlu0 %v343, 104
    %v1605 = vpop.permute.xlu0 %1604
    %v1608 = vsel %vm350, %v1603, 0
    %1610 = vmatprep.subr.mxu0 0.0
    %1611 = vmatpush1.msra.mxu0 0.0
    %1612 = vmatprep.subr.mxu0 0.0
    %1613 = vmatpush1.msra.mxu0 0.0
    %1614 = vmatprep.subr.mxu0 0.0
    %1615 = vmatpush1.msra.mxu0 0.0
    %1616 = vmatprep.subr.mxu0 0.0
    %1617 = vmatpush1.msra.mxu0 0.0
    %1618 = vmatprep.subr.mxu0 0.0
    %1619 = vmatpush1.msra.mxu0 0.0
    %1620 = vmatprep.subr.mxu0 0.0
    %1621 = vmatpush1.msra.mxu0 0.0
    %1622 = vmatprep.subr.mxu0 0.0
    %1623 = vmatpush1.msra.mxu0 0.0
    %1624 = vmatprep.subr.mxu0 0.0
    %1625 = vmatpush1.msra.mxu0 0.0
    %1626 = vmatprep.subr.mxu0 0.0
    %1627 = vmatpush1.msra.mxu0 0.0
    %1628 = vmatprep.subr.mxu0 0.0
    %1629 = vmatpush1.msra.mxu0 0.0
    %1630 = vmatprep.subr.mxu0 0.0
    %1631 = vmatpush1.msra.mxu0 0.0
    %1632 = vmatprep.subr.mxu0 0.0
    %1633 = vmatpush1.msra.mxu0 0.0
    %1634 = vmatprep.subr.mxu0 0.0
    %1635 = vmatpush1.msra.mxu0 0.0
    %1636 = vmatprep.subr.mxu0 0.0
    %1637 = vmatpush1.msra.mxu0 0.0
    %1638 = vmatprep.subr.mxu0 0.0
    %1639 = vmatpush1.msra.mxu0 0.0
    %1640 = vmatprep.subr.mxu0 0.0
    %1641 = vmatpush1.msra.mxu0 %v1605
    %1642 = vmatprep.subr.mxu0 0.0
    %1643 = vmatpush2.msra.mxu0 0.0
    %1644 = vmatprep.subr.mxu0 0.0
    %1645 = vmatpush2.msra.mxu0 0.0
    %1646 = vmatprep.subr.mxu0 0.0
    %1647 = vmatpush2.msra.mxu0 0.0
    %1648 = vmatprep.subr.mxu0 0.0
    %1649 = vmatpush2.msra.mxu0 0.0
    %1650 = vmatprep.subr.mxu0 0.0
    %1651 = vmatpush2.msra.mxu0 0.0
    %1652 = vmatprep.subr.mxu0 0.0
    %1653 = vmatpush2.msra.mxu0 0.0
    %1654 = vmatprep.subr.mxu0 0.0
    %1655 = vmatpush2.msra.mxu0 0.0
    %1656 = vmatprep.subr.mxu0 0.0
    %1657 = vmatpush2.msra.mxu0 0.0
    %1658 = vmatprep.subr.mxu0 0.0
    %1659 = vmatpush2.msra.mxu0 0.0
    %1660 = vmatprep.subr.mxu0 0.0
    %1661 = vmatpush2.msra.mxu0 0.0
    %1662 = vmatprep.subr.mxu0 0.0
    %1663 = vmatpush2.msra.mxu0 0.0
    %1664 = vmatprep.subr.mxu0 0.0
    %1665 = vmatpush2.msra.mxu0 0.0
    %1666 = vmatprep.subr.mxu0 0.0
    %1667 = vmatpush2.msra.mxu0 0.0
    %1668 = vmatprep.subr.mxu0 0.0
    %1669 = vmatpush2.msra.mxu0 0.0
    %1670 = vmatprep.subr.mxu0 0.0
    %1671 = vmatpush2.msra.mxu0 0.0
    %1672 = vmatprep.subr.mxu0 0.0
    %1673 = vmatpush2.msra.mxu0 0.0
    %1674 = vmatprep.mubr.f32.mxu0 0.0
    %1675 = vmatmul.mubr.f32.gmra.mxu0 %v1608
    %v1676 = vpop.f32.mrf.mxu0
    %v1677 = vadd.f32 0.0, %v1676
    %v1678 = vpop.f32.mrf.mxu0
    %1679 = vdwg.mxu0
    %1681 = vrot.lane.b32.xlu0 %v1347, 8
    %v1682 = vpop.permute.xlu0 %1681
    %1685 = vrot.lane.b32.xlu0 %v1512, 16
    %v1686 = vpop.permute.xlu0 %1685
    %1689 = vrot.lane.b32.xlu0 %v1677, 24
    %v1690 = vpop.permute.xlu0 %1689
    %v1692 = vsel %vm350, %v1181, %v1682
    %v1693 = vsel %vm1020, %v1692, %v1686
    %v1694 = vsel %vm1022, %v1693, %v1690
    %v1695 = vld [vmem:[#allocation4] sm:$0xff]
    %v1696 = vld [vmem:[#allocation4 + $0x8] sm:$0xff]
    %v1697 = vld [vmem:[#allocation4 + $0x10] sm:$0xff]
    %v1698 = vld [vmem:[#allocation4 + $0x18] sm:$0xff]
    %vm1699 = vcmask 261120
    %v1701 = vsel %vm1699, %v1023, 0
    %v1704 = vsel %vm1699, %v1694, 0
    %1706 = vmatprep.subr.mxu0 0.0
    %1707 = vmatpush1.msra.mxu0 0.0
    %1708 = vmatprep.subr.mxu0 0.0
    %1709 = vmatpush1.msra.mxu0 0.0
    %1710 = vmatprep.subr.mxu0 0.0
    %1711 = vmatpush1.msra.mxu0 0.0
    %1712 = vmatprep.subr.mxu0 0.0
    %1713 = vmatpush1.msra.mxu0 0.0
    %1714 = vmatprep.subr.mxu0 0.0
    %1715 = vmatpush1.msra.mxu0 0.0
    %1716 = vmatprep.subr.mxu0 0.0
    %1717 = vmatpush1.msra.mxu0 0.0
    %1718 = vmatprep.subr.mxu0 0.0
    %1719 = vmatpush1.msra.mxu0 0.0
    %1720 = vmatprep.subr.mxu0 0.0
    %1721 = vmatpush1.msra.mxu0 0.0
    %1722 = vmatprep.subr.mxu0 0.0
    %1723 = vmatpush1.msra.mxu0 0.0
    %1724 = vmatprep.subr.mxu0 0.0
    %1725 = vmatpush1.msra.mxu0 0.0
    %1726 = vmatprep.subr.mxu0 0.0
    %1727 = vmatpush1.msra.mxu0 0.0
    %1728 = vmatprep.subr.mxu0 0.0
    %1729 = vmatpush1.msra.mxu0 0.0
    %1730 = vmatprep.subr.mxu0 0.0
    %1731 = vmatpush1.msra.mxu0 %v1698
    %1732 = vmatprep.subr.mxu0 0.0
    %1733 = vmatpush1.msra.mxu0 %v1697
    %1734 = vmatprep.subr.mxu0 0.0
    %1735 = vmatpush1.msra.mxu0 %v1696
    %1736 = vmatprep.subr.mxu0 0.0
    %1737 = vmatpush1.msra.mxu0 %v1695
    %1738 = vmatprep.subr.mxu0 0.0
    %1739 = vmatpush2.msra.mxu0 0.0
    %1740 = vmatprep.subr.mxu0 0.0
    %1741 = vmatpush2.msra.mxu0 0.0
    %1742 = vmatprep.subr.mxu0 0.0
    %1743 = vmatpush2.msra.mxu0 0.0
    %1744 = vmatprep.subr.mxu0 0.0
    %1745 = vmatpush2.msra.mxu0 0.0
    %1746 = vmatprep.subr.mxu0 0.0
    %1747 = vmatpush2.msra.mxu0 0.0
    %1748 = vmatprep.subr.mxu0 0.0
    %1749 = vmatpush2.msra.mxu0 0.0
    %1750 = vmatprep.subr.mxu0 0.0
    %1751 = vmatpush2.msra.mxu0 0.0
    %1752 = vmatprep.subr.mxu0 0.0
    %1753 = vmatpush2.msra.mxu0 0.0
    %1754 = vmatprep.subr.mxu0 0.0
    %1755 = vmatpush2.msra.mxu0 0.0
    %1756 = vmatprep.subr.mxu0 0.0
    %1757 = vmatpush2.msra.mxu0 0.0
    %1758 = vmatprep.subr.mxu0 0.0
    %1759 = vmatpush2.msra.mxu0 0.0
    %1760 = vmatprep.subr.mxu0 0.0
    %1761 = vmatpush2.msra.mxu0 0.0
    %1762 = vmatprep.subr.mxu0 0.0
    %1763 = vmatpush2.msra.mxu0 0.0
    %1764 = vmatprep.subr.mxu0 0.0
    %1765 = vmatpush2.msra.mxu0 0.0
    %1766 = vmatprep.subr.mxu0 0.0
    %1767 = vmatpush2.msra.mxu0 0.0
    %1768 = vmatprep.subr.mxu0 0.0
    %1769 = vmatpush2.msra.mxu0 0.0
    %1770 = vmatprep.mubr.f32.mxu0 0.0
    %1771 = vmatmul.mubr.f32.gmra.mxu0 %v1701
    %v1772 = vpop.f32.mrf.mxu0
    %v1773 = vadd.f32 0.0, %v1772
    %v1774 = vpop.f32.mrf.mxu0
    %1775 = vmatprep.mubr.f32.mxu0 0.0
    %1776 = vmatmul.mubr.f32.gmra.mxu0 %v1704
    %v1777 = vpop.f32.mrf.mxu0
    %v1778 = vadd.f32 0.0, %v1777
    %v1779 = vpop.f32.mrf.mxu0
    %1780 = vdwg.mxu0
    %v1781 = vadd.f32 %v121, %v1773
    %v1782 = vadd.f32 %v122, %v1778
    %v1783 = vmul.f32 %v1781, %v1781
    %v1784 = vmul.f32 %v1782, %v1782
    %1785 = vadd.xlane.f32.xlu0 %v1783
    %v1786 = vpop.xlane.xlu0 %1785
    %1787 = vadd.xlane.f32.xlu0 %v1784
    %v1788 = vpop.xlane.xlu0 %1787
    %v1789 = vmul.f32 %v1786, 0.03125
    %v1790 = vmul.f32 %v1788, 0.03125
    %v1791 = vadd.f32 %v1789, 1e-06
    %v1792 = vadd.f32 %v1790, 1e-06
    %v1793 = vrsqrt.pop %v1791
    %v1794 = vrsqrt.pop %v1792
    %v1795 = vmul.f32 %v1781, %v1793
    %v1796 = vmul.f32 %v1782, %v1794
    %v1797 = vlaneseq
    %v1798 = vshrl.u32 %v1797, 7
    %v1799 = vsub.s32 1, %v1798
    %v1800 = vrot.slane %v125, %v1799
    %v1801 = vmul.f32 %v1795, %v1800
    %v1802 = vmul.f32 %v1796, %v1800
    %v1803 = vld [vmem:[%s5] sm:$0xff]
    %v1804 = vld [vmem:[%s5 + $0x8] sm:$0xff]
    %v1805 = vld [vmem:[%s5 + $0x10] sm:$0xff]
    %v1806 = vld [vmem:[%s5 + $0x18] sm:$0xff]
    %v1807 = vld [vmem:[%s5 + $0x20] sm:$0xff]
    %v1808 = vld [vmem:[%s5 + $0x28] sm:$0xff]
    %v1809 = vld [vmem:[%s5 + $0x30] sm:$0xff]
    %v1810 = vld [vmem:[%s5 + $0x38] sm:$0xff]
    %v1811 = vld [vmem:[%s5 + $0x40] sm:$0xff]
    %v1812 = vld [vmem:[%s5 + $0x48] sm:$0xff]
    %v1813 = vld [vmem:[%s5 + $0x50] sm:$0xff]
    %v1814 = vld [vmem:[%s5 + $0x58] sm:$0xff]
    %v1815 = vld [vmem:[%s5 + $0x60] sm:$0xff]
    %v1816 = vld [vmem:[%s5 + $0x68] sm:$0xff]
    %v1817 = vld [vmem:[%s5 + $0x70] sm:$0xff]
    %v1818 = vld [vmem:[%s5 + $0x78] sm:$0xff]
    %1819 = vmatprep.subr.mxu0 0.0
    %1820 = vmatpush1.msra.mxu0 %v1818
    %1821 = vmatprep.subr.mxu0 0.0
    %1822 = vmatpush1.msra.mxu0 %v1817
    %1823 = vmatprep.subr.mxu0 0.0
    %1824 = vmatpush1.msra.mxu0 %v1816
    %1825 = vmatprep.subr.mxu0 0.0
    %1826 = vmatpush1.msra.mxu0 %v1815
    %1827 = vmatprep.subr.mxu0 0.0
    %1828 = vmatpush1.msra.mxu0 %v1814
    %1829 = vmatprep.subr.mxu0 0.0
    %1830 = vmatpush1.msra.mxu0 %v1813
    %1831 = vmatprep.subr.mxu0 0.0
    %1832 = vmatpush1.msra.mxu0 %v1812
    %1833 = vmatprep.subr.mxu0 0.0
    %1834 = vmatpush1.msra.mxu0 %v1811
    %1835 = vmatprep.subr.mxu0 0.0
    %1836 = vmatpush1.msra.mxu0 %v1810
    %1837 = vmatprep.subr.mxu0 0.0
    %1838 = vmatpush1.msra.mxu0 %v1809
    %1839 = vmatprep.subr.mxu0 0.0
    %1840 = vmatpush1.msra.mxu0 %v1808
    %1841 = vmatprep.subr.mxu0 0.0
    %1842 = vmatpush1.msra.mxu0 %v1807
    %1843 = vmatprep.subr.mxu0 0.0
    %1844 = vmatpush1.msra.mxu0 %v1806
    %1845 = vmatprep.subr.mxu0 0.0
    %1846 = vmatpush1.msra.mxu0 %v1805
    %1847 = vmatprep.subr.mxu0 0.0
    %1848 = vmatpush1.msra.mxu0 %v1804
    %1849 = vmatprep.subr.mxu0 0.0
    %1850 = vmatpush1.msra.mxu0 %v1803
    %1851 = vmatprep.subr.mxu0 0.0
    %1852 = vmatpush2.msra.mxu0 0.0
    %1853 = vmatprep.subr.mxu0 0.0
    %1854 = vmatpush2.msra.mxu0 0.0
    %1855 = vmatprep.subr.mxu0 0.0
    %1856 = vmatpush2.msra.mxu0 0.0
    %1857 = vmatprep.subr.mxu0 0.0
    %1858 = vmatpush2.msra.mxu0 0.0
    %1859 = vmatprep.subr.mxu0 0.0
    %1860 = vmatpush2.msra.mxu0 0.0
    %1861 = vmatprep.subr.mxu0 0.0
    %1862 = vmatpush2.msra.mxu0 0.0
    %1863 = vmatprep.subr.mxu0 0.0
    %1864 = vmatpush2.msra.mxu0 0.0
    %1865 = vmatprep.subr.mxu0 0.0
    %1866 = vmatpush2.msra.mxu0 0.0
    %1867 = vmatprep.subr.mxu0 0.0
    %1868 = vmatpush2.msra.mxu0 0.0
    %1869 = vmatprep.subr.mxu0 0.0
    %1870 = vmatpush2.msra.mxu0 0.0
    %1871 = vmatprep.subr.mxu0 0.0
    %1872 = vmatpush2.msra.mxu0 0.0
    %1873 = vmatprep.subr.mxu0 0.0
    %1874 = vmatpush2.msra.mxu0 0.0
    %1875 = vmatprep.subr.mxu0 0.0
    %1876 = vmatpush2.msra.mxu0 0.0
    %1877 = vmatprep.subr.mxu0 0.0
    %1878 = vmatpush2.msra.mxu0 0.0
    %1879 = vmatprep.subr.mxu0 0.0
    %1880 = vmatpush2.msra.mxu0 0.0
    %1881 = vmatprep.subr.mxu0 0.0
    %1882 = vmatpush2.msra.mxu0 0.0
    %1883 = vmatprep.mubr.f32.mxu0 0.0
    %1884 = vmatmul.mubr.f32.gmra.mxu0 %v1801
    %v1885 = vpop.f32.mrf.mxu0
    %v1886 = vadd.f32 0.0, %v1885
    %v1887 = vpop.f32.mrf.mxu0
    %1888 = vmatprep.mubr.f32.mxu0 0.0
    %1889 = vmatmul.mubr.f32.gmra.mxu0 %v1802
    %v1890 = vpop.f32.mrf.mxu0
    %v1891 = vadd.f32 0.0, %v1890
    %v1892 = vpop.f32.mrf.mxu0
    %1893 = vdwg.mxu0
    %v1894 = vld [vmem:[%s6] sm:$0xff]
    %v1895 = vld [vmem:[%s6 + $0x8] sm:$0xff]
    %v1896 = vld [vmem:[%s6 + $0x10] sm:$0xff]
    %v1897 = vld [vmem:[%s6 + $0x18] sm:$0xff]
    %v1898 = vld [vmem:[%s6 + $0x20] sm:$0xff]
    %v1899 = vld [vmem:[%s6 + $0x28] sm:$0xff]
    %v1900 = vld [vmem:[%s6 + $0x30] sm:$0xff]
    %v1901 = vld [vmem:[%s6 + $0x38] sm:$0xff]
    %v1902 = vld [vmem:[%s6 + $0x40] sm:$0xff]
    %v1903 = vld [vmem:[%s6 + $0x48] sm:$0xff]
    %v1904 = vld [vmem:[%s6 + $0x50] sm:$0xff]
    %v1905 = vld [vmem:[%s6 + $0x58] sm:$0xff]
    %v1906 = vld [vmem:[%s6 + $0x60] sm:$0xff]
    %v1907 = vld [vmem:[%s6 + $0x68] sm:$0xff]
    %v1908 = vld [vmem:[%s6 + $0x70] sm:$0xff]
    %v1909 = vld [vmem:[%s6 + $0x78] sm:$0xff]
    %v1910 = vld [vmem:[%s6 + $0x80] sm:$0xff]
    %v1911 = vld [vmem:[%s6 + $0x88] sm:$0xff]
    %v1912 = vld [vmem:[%s6 + $0x90] sm:$0xff]
    %v1913 = vld [vmem:[%s6 + $0x98] sm:$0xff]
    %v1914 = vld [vmem:[%s6 + $0xa0] sm:$0xff]
    %v1915 = vld [vmem:[%s6 + $0xa8] sm:$0xff]
    %v1916 = vld [vmem:[%s6 + $0xb0] sm:$0xff]
    %v1917 = vld [vmem:[%s6 + $0xb8] sm:$0xff]
    %v1918 = vld [vmem:[%s6 + $0xc0] sm:$0xff]
    %v1919 = vld [vmem:[%s6 + $0xc8] sm:$0xff]
    %v1920 = vld [vmem:[%s6 + $0xd0] sm:$0xff]
    %v1921 = vld [vmem:[%s6 + $0xd8] sm:$0xff]
    %v1922 = vld [vmem:[%s6 + $0xe0] sm:$0xff]
    %v1923 = vld [vmem:[%s6 + $0xe8] sm:$0xff]
    %v1924 = vld [vmem:[%s6 + $0xf0] sm:$0xff]
    %v1925 = vld [vmem:[%s6 + $0xf8] sm:$0xff]
    %1926 = vmatprep.subr.mxu0 %v1925
    %1927 = vmatpush1.msra.mxu0 %v1924
    %1928 = vmatprep.subr.mxu0 %v1923
    %1929 = vmatpush1.msra.mxu0 %v1922
    %1930 = vmatprep.subr.mxu0 %v1921
    %1931 = vmatpush1.msra.mxu0 %v1920
    %1932 = vmatprep.subr.mxu0 %v1919
    %1933 = vmatpush1.msra.mxu0 %v1918
    %1934 = vmatprep.subr.mxu0 %v1917
    %1935 = vmatpush1.msra.mxu0 %v1916
    %1936 = vmatprep.subr.mxu0 %v1915
    %1937 = vmatpush1.msra.mxu0 %v1914
    %1938 = vmatprep.subr.mxu0 %v1913
    %1939 = vmatpush1.msra.mxu0 %v1912
    %1940 = vmatprep.subr.mxu0 %v1911
    %1941 = vmatpush1.msra.mxu0 %v1910
    %1942 = vmatprep.subr.mxu0 %v1909
    %1943 = vmatpush1.msra.mxu0 %v1908
    %1944 = vmatprep.subr.mxu0 %v1907
    %1945 = vmatpush1.msra.mxu0 %v1906
    %1946 = vmatprep.subr.mxu0 %v1905
    %1947 = vmatpush1.msra.mxu0 %v1904
    %1948 = vmatprep.subr.mxu0 %v1903
    %1949 = vmatpush1.msra.mxu0 %v1902
    %1950 = vmatprep.subr.mxu0 %v1901
    %1951 = vmatpush1.msra.mxu0 %v1900
    %1952 = vmatprep.subr.mxu0 %v1899
    %1953 = vmatpush1.msra.mxu0 %v1898
    %1954 = vmatprep.subr.mxu0 %v1897
    %1955 = vmatpush1.msra.mxu0 %v1896
    %1956 = vmatprep.subr.mxu0 %v1895
    %1957 = vmatpush1.msra.mxu0 %v1894
    %1958 = vmatprep.subr.mxu0 0.0
    %1959 = vmatpush2.msra.mxu0 0.0
    %1960 = vmatprep.subr.mxu0 0.0
    %1961 = vmatpush2.msra.mxu0 0.0
    %1962 = vmatprep.subr.mxu0 0.0
    %1963 = vmatpush2.msra.mxu0 0.0
    %1964 = vmatprep.subr.mxu0 0.0
    %1965 = vmatpush2.msra.mxu0 0.0
    %1966 = vmatprep.subr.mxu0 0.0
    %1967 = vmatpush2.msra.mxu0 0.0
    %1968 = vmatprep.subr.mxu0 0.0
    %1969 = vmatpush2.msra.mxu0 0.0
    %1970 = vmatprep.subr.mxu0 0.0
    %1971 = vmatpush2.msra.mxu0 0.0
    %1972 = vmatprep.subr.mxu0 0.0
    %1973 = vmatpush2.msra.mxu0 0.0
    %1974 = vmatprep.subr.mxu0 0.0
    %1975 = vmatpush2.msra.mxu0 0.0
    %1976 = vmatprep.subr.mxu0 0.0
    %1977 = vmatpush2.msra.mxu0 0.0
    %1978 = vmatprep.subr.mxu0 0.0
    %1979 = vmatpush2.msra.mxu0 0.0
    %1980 = vmatprep.subr.mxu0 0.0
    %1981 = vmatpush2.msra.mxu0 0.0
    %1982 = vmatprep.subr.mxu0 0.0
    %1983 = vmatpush2.msra.mxu0 0.0
    %1984 = vmatprep.subr.mxu0 0.0
    %1985 = vmatpush2.msra.mxu0 0.0
    %1986 = vmatprep.subr.mxu0 0.0
    %1987 = vmatpush2.msra.mxu0 0.0
    %1988 = vmatprep.subr.mxu0 0.0
    %1989 = vmatpush2.msra.mxu0 0.0
    %1990 = vmatprep.mubr.f32.mxu0 0.0
    %1991 = vmatmul.mubr.f32.gmra.mxu0 %v123
    %v1992 = vpop.f32.mrf.mxu0
    %v1993 = vadd.f32 0.0, %v1992
    %v1994 = vpop.f32.mrf.mxu0
    %v1995 = vadd.f32 0.0, %v1994
    %1996 = vmatprep.mubr.f32.mxu0 0.0
    %1997 = vmatmul.mubr.f32.gmra.mxu0 %v124
    %v1998 = vpop.f32.mrf.mxu0
    %v1999 = vadd.f32 0.0, %v1998
    %v2000 = vpop.f32.mrf.mxu0
    %v2001 = vadd.f32 0.0, %v2000
    %2002 = vdwg.mxu0
    %v2004 = vsel %vm350, %v1886, 0
    %v2007 = vsel %vm350, %v1993, 0
    %2009 = vmatprep.subr.mxu0 0.0
    %2010 = vmatpush1.xpose.msra.mxu0 0.0
    %2011 = vmatprep.subr.mxu0 0.0
    %2012 = vmatpush1.xpose.msra.mxu0 0.0
    %2013 = vmatprep.subr.mxu0 0.0
    %2014 = vmatpush1.xpose.msra.mxu0 0.0
    %2015 = vmatprep.subr.mxu0 0.0
    %2016 = vmatpush1.xpose.msra.mxu0 0.0
    %2017 = vmatprep.subr.mxu0 0.0
    %2018 = vmatpush1.xpose.msra.mxu0 0.0
    %2019 = vmatprep.subr.mxu0 0.0
    %2020 = vmatpush1.xpose.msra.mxu0 0.0
    %2021 = vmatprep.subr.mxu0 0.0
    %2022 = vmatpush1.xpose.msra.mxu0 0.0
    %2023 = vmatprep.subr.mxu0 0.0
    %2024 = vmatpush1.xpose.msra.mxu0 0.0
    %2025 = vmatprep.subr.mxu0 0.0
    %2026 = vmatpush1.xpose.msra.mxu0 0.0
    %2027 = vmatprep.subr.mxu0 0.0
    %2028 = vmatpush1.xpose.msra.mxu0 0.0
    %2029 = vmatprep.subr.mxu0 0.0
    %2030 = vmatpush1.xpose.msra.mxu0 0.0
    %2031 = vmatprep.subr.mxu0 0.0
    %2032 = vmatpush1.xpose.msra.mxu0 0.0
    %2033 = vmatprep.subr.mxu0 0.0
    %2034 = vmatpush1.xpose.msra.mxu0 0.0
    %2035 = vmatprep.subr.mxu0 0.0
    %2036 = vmatpush1.xpose.msra.mxu0 0.0
    %2037 = vmatprep.subr.mxu0 0.0
    %2038 = vmatpush1.xpose.msra.mxu0 0.0
    %2039 = vmatprep.subr.mxu0 0.0
    %2040 = vmatpush1.xpose.msra.mxu0 %v2007
    %2041 = vmatprep.subr.mxu0 0.0
    %2042 = vmatpush2.xpose.msra.mxu0 0.0
    %2043 = vmatprep.subr.mxu0 0.0
    %2044 = vmatpush2.xpose.msra.mxu0 0.0
    %2045 = vmatprep.subr.mxu0 0.0
    %2046 = vmatpush2.xpose.msra.mxu0 0.0
    %2047 = vmatprep.subr.mxu0 0.0
    %2048 = vmatpush2.xpose.msra.mxu0 0.0
    %2049 = vmatprep.subr.mxu0 0.0
    %2050 = vmatpush2.xpose.msra.mxu0 0.0
    %2051 = vmatprep.subr.mxu0 0.0
    %2052 = vmatpush2.xpose.msra.mxu0 0.0
    %2053 = vmatprep.subr.mxu0 0.0
    %2054 = vmatpush2.xpose.msra.mxu0 0.0
    %2055 = vmatprep.subr.mxu0 0.0
    %2056 = vmatpush2.xpose.msra.mxu0 0.0
    %2057 = vmatprep.subr.mxu0 0.0
    %2058 = vmatpush2.xpose.msra.mxu0 0.0
    %2059 = vmatprep.subr.mxu0 0.0
    %2060 = vmatpush2.xpose.msra.mxu0 0.0
    %2061 = vmatprep.subr.mxu0 0.0
    %2062 = vmatpush2.xpose.msra.mxu0 0.0
    %2063 = vmatprep.subr.mxu0 0.0
    %2064 = vmatpush2.xpose.msra.mxu0 0.0
    %2065 = vmatprep.subr.mxu0 0.0
    %2066 = vmatpush2.xpose.msra.mxu0 0.0
    %2067 = vmatprep.subr.mxu0 0.0
    %2068 = vmatpush2.xpose.msra.mxu0 0.0
    %2069 = vmatprep.subr.mxu0 0.0
    %2070 = vmatpush2.xpose.msra.mxu0 0.0
    %2071 = vmatprep.subr.mxu0 0.0
    %2072 = vmatpush2.xpose.msra.mxu0 0.0
    %2073 = vmatprep.mubr.f32.mxu0 0.0
    %2074 = vmatmul.mubr.f32.gmra.mxu0 %v2004
    %v2075 = vpop.f32.mrf.mxu0
    %v2076 = vadd.f32 0.0, %v2075
    %v2077 = vpop.f32.mrf.mxu0
    %2078 = vdwg.mxu0
    %v2079 = vsel %vm350, %v2076, -inf
    %2080 = vmax.xlane.f32.xlu0 %v2079
    %v2081 = vpop.xlane.xlu0 %2080
    %v2082 = vsub.f32 %v2076, %v2081
    %v2083 = vmul.f32 %v2082, 1.442695
    %v2084 = vpow.pop %v2083
    %v2085 = vsel %vm350, %v2084, 0.0
    %2086 = vadd.xlane.f32.xlu0 %v2085
    %v2087 = vpop.xlane.xlu0 %2086
    %v2088 = vrcp.pop %v2087
    %v2089 = vmul.f32 %v2084, %v2088
    %v2091 = vsel %vm350, %v2089, 0
    %2093 = vmatprep.subr.mxu0 0.0
    %2094 = vmatpush1.msra.mxu0 0.0
    %2095 = vmatprep.subr.mxu0 0.0
    %2096 = vmatpush1.msra.mxu0 0.0
    %2097 = vmatprep.subr.mxu0 0.0
    %2098 = vmatpush1.msra.mxu0 0.0
    %2099 = vmatprep.subr.mxu0 0.0
    %2100 = vmatpush1.msra.mxu0 0.0
    %2101 = vmatprep.subr.mxu0 0.0
    %2102 = vmatpush1.msra.mxu0 0.0
    %2103 = vmatprep.subr.mxu0 0.0
    %2104 = vmatpush1.msra.mxu0 0.0
    %2105 = vmatprep.subr.mxu0 0.0
    %2106 = vmatpush1.msra.mxu0 0.0
    %2107 = vmatprep.subr.mxu0 0.0
    %2108 = vmatpush1.msra.mxu0 0.0
    %2109 = vmatprep.subr.mxu0 0.0
    %2110 = vmatpush1.msra.mxu0 0.0
    %2111 = vmatprep.subr.mxu0 0.0
    %2112 = vmatpush1.msra.mxu0 0.0
    %2113 = vmatprep.subr.mxu0 0.0
    %2114 = vmatpush1.msra.mxu0 0.0
    %2115 = vmatprep.subr.mxu0 0.0
    %2116 = vmatpush1.msra.mxu0 0.0
    %2117 = vmatprep.subr.mxu0 0.0
    %2118 = vmatpush1.msra.mxu0 0.0
    %2119 = vmatprep.subr.mxu0 0.0
    %2120 = vmatpush1.msra.mxu0 0.0
    %2121 = vmatprep.subr.mxu0 0.0
    %2122 = vmatpush1.msra.mxu0 0.0
    %2123 = vmatprep.subr.mxu0 0.0
    %2124 = vmatpush1.msra.mxu0 %v1995
    %2125 = vmatprep.subr.mxu0 0.0
    %2126 = vmatpush2.msra.mxu0 0.0
    %2127 = vmatprep.subr.mxu0 0.0
    %2128 = vmatpush2.msra.mxu0 0.0
    %2129 = vmatprep.subr.mxu0 0.0
    %2130 = vmatpush2.msra.mxu0 0.0
    %2131 = vmatprep.subr.mxu0 0.0
    %2132 = vmatpush2.msra.mxu0 0.0
    %2133 = vmatprep.subr.mxu0 0.0
    %2134 = vmatpush2.msra.mxu0 0.0
    %2135 = vmatprep.subr.mxu0 0.0
    %2136 = vmatpush2.msra.mxu0 0.0
    %2137 = vmatprep.subr.mxu0 0.0
    %2138 = vmatpush2.msra.mxu0 0.0
    %2139 = vmatprep.subr.mxu0 0.0
    %2140 = vmatpush2.msra.mxu0 0.0
    %2141 = vmatprep.subr.mxu0 0.0
    %2142 = vmatpush2.msra.mxu0 0.0
    %2143 = vmatprep.subr.mxu0 0.0
    %2144 = vmatpush2.msra.mxu0 0.0
    %2145 = vmatprep.subr.mxu0 0.0
    %2146 = vmatpush2.msra.mxu0 0.0
    %2147 = vmatprep.subr.mxu0 0.0
    %2148 = vmatpush2.msra.mxu0 0.0
    %2149 = vmatprep.subr.mxu0 0.0
    %2150 = vmatpush2.msra.mxu0 0.0
    %2151 = vmatprep.subr.mxu0 0.0
    %2152 = vmatpush2.msra.mxu0 0.0
    %2153 = vmatprep.subr.mxu0 0.0
    %2154 = vmatpush2.msra.mxu0 0.0
    %2155 = vmatprep.subr.mxu0 0.0
    %2156 = vmatpush2.msra.mxu0 0.0
    %2157 = vmatprep.mubr.f32.mxu0 0.0
    %2158 = vmatmul.mubr.f32.gmra.mxu0 %v2091
    %v2159 = vpop.f32.mrf.mxu0
    %v2160 = vadd.f32 0.0, %v2159
    %v2161 = vpop.f32.mrf.mxu0
    %2162 = vdwg.mxu0
    %2163 = vrot.lane.b32.xlu0 %v1886, 120
    %v2164 = vpop.permute.xlu0 %2163
    %2165 = vrot.lane.b32.xlu0 %v1993, 120
    %v2166 = vpop.permute.xlu0 %2165
    %v2167 = vsel %vm350, %v2164, 0
    %v2169 = vsel %vm350, %v2166, 0
    %2171 = vmatprep.subr.mxu0 0.0
    %2172 = vmatpush1.xpose.msra.mxu0 0.0
    %2173 = vmatprep.subr.mxu0 0.0
    %2174 = vmatpush1.xpose.msra.mxu0 0.0
    %2175 = vmatprep.subr.mxu0 0.0
    %2176 = vmatpush1.xpose.msra.mxu0 0.0
    %2177 = vmatprep.subr.mxu0 0.0
    %2178 = vmatpush1.xpose.msra.mxu0 0.0
    %2179 = vmatprep.subr.mxu0 0.0
    %2180 = vmatpush1.xpose.msra.mxu0 0.0
    %2181 = vmatprep.subr.mxu0 0.0
    %2182 = vmatpush1.xpose.msra.mxu0 0.0
    %2183 = vmatprep.subr.mxu0 0.0
    %2184 = vmatpush1.xpose.msra.mxu0 0.0
    %2185 = vmatprep.subr.mxu0 0.0
    %2186 = vmatpush1.xpose.msra.mxu0 0.0
    %2187 = vmatprep.subr.mxu0 0.0
    %2188 = vmatpush1.xpose.msra.mxu0 0.0
    %2189 = vmatprep.subr.mxu0 0.0
    %2190 = vmatpush1.xpose.msra.mxu0 0.0
    %2191 = vmatprep.subr.mxu0 0.0
    %2192 = vmatpush1.xpose.msra.mxu0 0.0
    %2193 = vmatprep.subr.mxu0 0.0
    %2194 = vmatpush1.xpose.msra.mxu0 0.0
    %2195 = vmatprep.subr.mxu0 0.0
    %2196 = vmatpush1.xpose.msra.mxu0 0.0
    %2197 = vmatprep.subr.mxu0 0.0
    %2198 = vmatpush1.xpose.msra.mxu0 0.0
    %2199 = vmatprep.subr.mxu0 0.0
    %2200 = vmatpush1.xpose.msra.mxu0 0.0
    %2201 = vmatprep.subr.mxu0 0.0
    %2202 = vmatpush1.xpose.msra.mxu0 %v2169
    %2203 = vmatprep.subr.mxu0 0.0
    %2204 = vmatpush2.xpose.msra.mxu0 0.0
    %2205 = vmatprep.subr.mxu0 0.0
    %2206 = vmatpush2.xpose.msra.mxu0 0.0
    %2207 = vmatprep.subr.mxu0 0.0
    %2208 = vmatpush2.xpose.msra.mxu0 0.0
    %2209 = vmatprep.subr.mxu0 0.0
    %2210 = vmatpush2.xpose.msra.mxu0 0.0
    %2211 = vmatprep.subr.mxu0 0.0
    %2212 = vmatpush2.xpose.msra.mxu0 0.0
    %2213 = vmatprep.subr.mxu0 0.0
    %2214 = vmatpush2.xpose.msra.mxu0 0.0
    %2215 = vmatprep.subr.mxu0 0.0
    %2216 = vmatpush2.xpose.msra.mxu0 0.0
    %2217 = vmatprep.subr.mxu0 0.0
    %2218 = vmatpush2.xpose.msra.mxu0 0.0
    %2219 = vmatprep.subr.mxu0 0.0
    %2220 = vmatpush2.xpose.msra.mxu0 0.0
    %2221 = vmatprep.subr.mxu0 0.0
    %2222 = vmatpush2.xpose.msra.mxu0 0.0
    %2223 = vmatprep.subr.mxu0 0.0
    %2224 = vmatpush2.xpose.msra.mxu0 0.0
    %2225 = vmatprep.subr.mxu0 0.0
    %2226 = vmatpush2.xpose.msra.mxu0 0.0
    %2227 = vmatprep.subr.mxu0 0.0
    %2228 = vmatpush2.xpose.msra.mxu0 0.0
    %2229 = vmatprep.subr.mxu0 0.0
    %2230 = vmatpush2.xpose.msra.mxu0 0.0
    %2231 = vmatprep.subr.mxu0 0.0
    %2232 = vmatpush2.xpose.msra.mxu0 0.0
    %2233 = vmatprep.subr.mxu0 0.0
    %2234 = vmatpush2.xpose.msra.mxu0 0.0
    %2235 = vmatprep.mubr.f32.mxu0 0.0
    %2236 = vmatmul.mubr.f32.gmra.mxu0 %v2167
    %v2237 = vpop.f32.mrf.mxu0
    %v2238 = vadd.f32 0.0, %v2237
    %v2239 = vpop.f32.mrf.mxu0
    %2240 = vdwg.mxu0
    %v2241 = vsel %vm350, %v2238, -inf
    %2242 = vmax.xlane.f32.xlu0 %v2241
    %v2243 = vpop.xlane.xlu0 %2242
    %v2244 = vsub.f32 %v2238, %v2243
    %v2245 = vmul.f32 %v2244, 1.442695
    %v2246 = vpow.pop %v2245
    %v2247 = vsel %vm350, %v2246, 0.0
    %2248 = vadd.xlane.f32.xlu0 %v2247
    %v2249 = vpop.xlane.xlu0 %2248
    %v2250 = vrcp.pop %v2249
    %v2251 = vmul.f32 %v2246, %v2250
    %2253 = vrot.lane.b32.xlu0 %v1995, 120
    %v2254 = vpop.permute.xlu0 %2253
    %v2257 = vsel %vm350, %v2251, 0
    %2259 = vmatprep.subr.mxu0 0.0
    %2260 = vmatpush1.msra.mxu0 0.0
    %2261 = vmatprep.subr.mxu0 0.0
    %2262 = vmatpush1.msra.mxu0 0.0
    %2263 = vmatprep.subr.mxu0 0.0
    %2264 = vmatpush1.msra.mxu0 0.0
    %2265 = vmatprep.subr.mxu0 0.0
    %2266 = vmatpush1.msra.mxu0 0.0
    %2267 = vmatprep.subr.mxu0 0.0
    %2268 = vmatpush1.msra.mxu0 0.0
    %2269 = vmatprep.subr.mxu0 0.0
    %2270 = vmatpush1.msra.mxu0 0.0
    %2271 = vmatprep.subr.mxu0 0.0
    %2272 = vmatpush1.msra.mxu0 0.0
    %2273 = vmatprep.subr.mxu0 0.0
    %2274 = vmatpush1.msra.mxu0 0.0
    %2275 = vmatprep.subr.mxu0 0.0
    %2276 = vmatpush1.msra.mxu0 0.0
    %2277 = vmatprep.subr.mxu0 0.0
    %2278 = vmatpush1.msra.mxu0 0.0
    %2279 = vmatprep.subr.mxu0 0.0
    %2280 = vmatpush1.msra.mxu0 0.0
    %2281 = vmatprep.subr.mxu0 0.0
    %2282 = vmatpush1.msra.mxu0 0.0
    %2283 = vmatprep.subr.mxu0 0.0
    %2284 = vmatpush1.msra.mxu0 0.0
    %2285 = vmatprep.subr.mxu0 0.0
    %2286 = vmatpush1.msra.mxu0 0.0
    %2287 = vmatprep.subr.mxu0 0.0
    %2288 = vmatpush1.msra.mxu0 0.0
    %2289 = vmatprep.subr.mxu0 0.0
    %2290 = vmatpush1.msra.mxu0 %v2254
    %2291 = vmatprep.subr.mxu0 0.0
    %2292 = vmatpush2.msra.mxu0 0.0
    %2293 = vmatprep.subr.mxu0 0.0
    %2294 = vmatpush2.msra.mxu0 0.0
    %2295 = vmatprep.subr.mxu0 0.0
    %2296 = vmatpush2.msra.mxu0 0.0
    %2297 = vmatprep.subr.mxu0 0.0
    %2298 = vmatpush2.msra.mxu0 0.0
    %2299 = vmatprep.subr.mxu0 0.0
    %2300 = vmatpush2.msra.mxu0 0.0
    %2301 = vmatprep.subr.mxu0 0.0
    %2302 = vmatpush2.msra.mxu0 0.0
    %2303 = vmatprep.subr.mxu0 0.0
    %2304 = vmatpush2.msra.mxu0 0.0
    %2305 = vmatprep.subr.mxu0 0.0
    %2306 = vmatpush2.msra.mxu0 0.0
    %2307 = vmatprep.subr.mxu0 0.0
    %2308 = vmatpush2.msra.mxu0 0.0
    %2309 = vmatprep.subr.mxu0 0.0
    %2310 = vmatpush2.msra.mxu0 0.0
    %2311 = vmatprep.subr.mxu0 0.0
    %2312 = vmatpush2.msra.mxu0 0.0
    %2313 = vmatprep.subr.mxu0 0.0
    %2314 = vmatpush2.msra.mxu0 0.0
    %2315 = vmatprep.subr.mxu0 0.0
    %2316 = vmatpush2.msra.mxu0 0.0
    %2317 = vmatprep.subr.mxu0 0.0
    %2318 = vmatpush2.msra.mxu0 0.0
    %2319 = vmatprep.subr.mxu0 0.0
    %2320 = vmatpush2.msra.mxu0 0.0
    %2321 = vmatprep.subr.mxu0 0.0
    %2322 = vmatpush2.msra.mxu0 0.0
    %2323 = vmatprep.mubr.f32.mxu0 0.0
    %2324 = vmatmul.mubr.f32.gmra.mxu0 %v2257
    %v2325 = vpop.f32.mrf.mxu0
    %v2326 = vadd.f32 0.0, %v2325
    %v2327 = vpop.f32.mrf.mxu0
    %2328 = vdwg.mxu0
    %2329 = vrot.lane.b32.xlu0 %v1886, 112
    %v2330 = vpop.permute.xlu0 %2329
    %2331 = vrot.lane.b32.xlu0 %v1993, 112
    %v2332 = vpop.permute.xlu0 %2331
    %v2333 = vsel %vm350, %v2330, 0
    %v2335 = vsel %vm350, %v2332, 0
    %2337 = vmatprep.subr.mxu0 0.0
    %2338 = vmatpush1.xpose.msra.mxu0 0.0
    %2339 = vmatprep.subr.mxu0 0.0
    %2340 = vmatpush1.xpose.msra.mxu0 0.0
    %2341 = vmatprep.subr.mxu0 0.0
    %2342 = vmatpush1.xpose.msra.mxu0 0.0
    %2343 = vmatprep.subr.mxu0 0.0
    %2344 = vmatpush1.xpose.msra.mxu0 0.0
    %2345 = vmatprep.subr.mxu0 0.0
    %2346 = vmatpush1.xpose.msra.mxu0 0.0
    %2347 = vmatprep.subr.mxu0 0.0
    %2348 = vmatpush1.xpose.msra.mxu0 0.0
    %2349 = vmatprep.subr.mxu0 0.0
    %2350 = vmatpush1.xpose.msra.mxu0 0.0
    %2351 = vmatprep.subr.mxu0 0.0
    %2352 = vmatpush1.xpose.msra.mxu0 0.0
    %2353 = vmatprep.subr.mxu0 0.0
    %2354 = vmatpush1.xpose.msra.mxu0 0.0
    %2355 = vmatprep.subr.mxu0 0.0
    %2356 = vmatpush1.xpose.msra.mxu0 0.0
    %2357 = vmatprep.subr.mxu0 0.0
    %2358 = vmatpush1.xpose.msra.mxu0 0.0
    %2359 = vmatprep.subr.mxu0 0.0
    %2360 = vmatpush1.xpose.msra.mxu0 0.0
    %2361 = vmatprep.subr.mxu0 0.0
    %2362 = vmatpush1.xpose.msra.mxu0 0.0
    %2363 = vmatprep.subr.mxu0 0.0
    %2364 = vmatpush1.xpose.msra.mxu0 0.0
    %2365 = vmatprep.subr.mxu0 0.0
    %2366 = vmatpush1.xpose.msra.mxu0 0.0
    %2367 = vmatprep.subr.mxu0 0.0
    %2368 = vmatpush1.xpose.msra.mxu0 %v2335
    %2369 = vmatprep.subr.mxu0 0.0
    %2370 = vmatpush2.xpose.msra.mxu0 0.0
    %2371 = vmatprep.subr.mxu0 0.0
    %2372 = vmatpush2.xpose.msra.mxu0 0.0
    %2373 = vmatprep.subr.mxu0 0.0
    %2374 = vmatpush2.xpose.msra.mxu0 0.0
    %2375 = vmatprep.subr.mxu0 0.0
    %2376 = vmatpush2.xpose.msra.mxu0 0.0
    %2377 = vmatprep.subr.mxu0 0.0
    %2378 = vmatpush2.xpose.msra.mxu0 0.0
    %2379 = vmatprep.subr.mxu0 0.0
    %2380 = vmatpush2.xpose.msra.mxu0 0.0
    %2381 = vmatprep.subr.mxu0 0.0
    %2382 = vmatpush2.xpose.msra.mxu0 0.0
    %2383 = vmatprep.subr.mxu0 0.0
    %2384 = vmatpush2.xpose.msra.mxu0 0.0
    %2385 = vmatprep.subr.mxu0 0.0
    %2386 = vmatpush2.xpose.msra.mxu0 0.0
    %2387 = vmatprep.subr.mxu0 0.0
    %2388 = vmatpush2.xpose.msra.mxu0 0.0
    %2389 = vmatprep.subr.mxu0 0.0
    %2390 = vmatpush2.xpose.msra.mxu0 0.0
    %2391 = vmatprep.subr.mxu0 0.0
    %2392 = vmatpush2.xpose.msra.mxu0 0.0
    %2393 = vmatprep.subr.mxu0 0.0
    %2394 = vmatpush2.xpose.msra.mxu0 0.0
    %2395 = vmatprep.subr.mxu0 0.0
    %2396 = vmatpush2.xpose.msra.mxu0 0.0
    %2397 = vmatprep.subr.mxu0 0.0
    %2398 = vmatpush2.xpose.msra.mxu0 0.0
    %2399 = vmatprep.subr.mxu0 0.0
    %2400 = vmatpush2.xpose.msra.mxu0 0.0
    %2401 = vmatprep.mubr.f32.mxu0 0.0
    %2402 = vmatmul.mubr.f32.gmra.mxu0 %v2333
    %v2403 = vpop.f32.mrf.mxu0
    %v2404 = vadd.f32 0.0, %v2403
    %v2405 = vpop.f32.mrf.mxu0
    %2406 = vdwg.mxu0
    %v2407 = vsel %vm350, %v2404, -inf
    %2408 = vmax.xlane.f32.xlu0 %v2407
    %v2409 = vpop.xlane.xlu0 %2408
    %v2410 = vsub.f32 %v2404, %v2409
    %v2411 = vmul.f32 %v2410, 1.442695
    %v2412 = vpow.pop %v2411
    %v2413 = vsel %vm350, %v2412, 0.0
    %2414 = vadd.xlane.f32.xlu0 %v2413
    %v2415 = vpop.xlane.xlu0 %2414
    %v2416 = vrcp.pop %v2415
    %v2417 = vmul.f32 %v2412, %v2416
    %2418 = vrot.lane.b32.xlu0 %v1995, 112
    %v2419 = vpop.permute.xlu0 %2418
    %v2422 = vsel %vm350, %v2417, 0
    %2424 = vmatprep.subr.mxu0 0.0
    %2425 = vmatpush1.msra.mxu0 0.0
    %2426 = vmatprep.subr.mxu0 0.0
    %2427 = vmatpush1.msra.mxu0 0.0
    %2428 = vmatprep.subr.mxu0 0.0
    %2429 = vmatpush1.msra.mxu0 0.0
    %2430 = vmatprep.subr.mxu0 0.0
    %2431 = vmatpush1.msra.mxu0 0.0
    %2432 = vmatprep.subr.mxu0 0.0
    %2433 = vmatpush1.msra.mxu0 0.0
    %2434 = vmatprep.subr.mxu0 0.0
    %2435 = vmatpush1.msra.mxu0 0.0
    %2436 = vmatprep.subr.mxu0 0.0
    %2437 = vmatpush1.msra.mxu0 0.0
    %2438 = vmatprep.subr.mxu0 0.0
    %2439 = vmatpush1.msra.mxu0 0.0
    %2440 = vmatprep.subr.mxu0 0.0
    %2441 = vmatpush1.msra.mxu0 0.0
    %2442 = vmatprep.subr.mxu0 0.0
    %2443 = vmatpush1.msra.mxu0 0.0
    %2444 = vmatprep.subr.mxu0 0.0
    %2445 = vmatpush1.msra.mxu0 0.0
    %2446 = vmatprep.subr.mxu0 0.0
    %2447 = vmatpush1.msra.mxu0 0.0
    %2448 = vmatprep.subr.mxu0 0.0
    %2449 = vmatpush1.msra.mxu0 0.0
    %2450 = vmatprep.subr.mxu0 0.0
    %2451 = vmatpush1.msra.mxu0 0.0
    %2452 = vmatprep.subr.mxu0 0.0
    %2453 = vmatpush1.msra.mxu0 0.0
    %2454 = vmatprep.subr.mxu0 0.0
    %2455 = vmatpush1.msra.mxu0 %v2419
    %2456 = vmatprep.subr.mxu0 0.0
    %2457 = vmatpush2.msra.mxu0 0.0
    %2458 = vmatprep.subr.mxu0 0.0
    %2459 = vmatpush2.msra.mxu0 0.0
    %2460 = vmatprep.subr.mxu0 0.0
    %2461 = vmatpush2.msra.mxu0 0.0
    %2462 = vmatprep.subr.mxu0 0.0
    %2463 = vmatpush2.msra.mxu0 0.0
    %2464 = vmatprep.subr.mxu0 0.0
    %2465 = vmatpush2.msra.mxu0 0.0
    %2466 = vmatprep.subr.mxu0 0.0
    %2467 = vmatpush2.msra.mxu0 0.0
    %2468 = vmatprep.subr.mxu0 0.0
    %2469 = vmatpush2.msra.mxu0 0.0
    %2470 = vmatprep.subr.mxu0 0.0
    %2471 = vmatpush2.msra.mxu0 0.0
    %2472 = vmatprep.subr.mxu0 0.0
    %2473 = vmatpush2.msra.mxu0 0.0
    %2474 = vmatprep.subr.mxu0 0.0
    %2475 = vmatpush2.msra.mxu0 0.0
    %2476 = vmatprep.subr.mxu0 0.0
    %2477 = vmatpush2.msra.mxu0 0.0
    %2478 = vmatprep.subr.mxu0 0.0
    %2479 = vmatpush2.msra.mxu0 0.0
    %2480 = vmatprep.subr.mxu0 0.0
    %2481 = vmatpush2.msra.mxu0 0.0
    %2482 = vmatprep.subr.mxu0 0.0
    %2483 = vmatpush2.msra.mxu0 0.0
    %2484 = vmatprep.subr.mxu0 0.0
    %2485 = vmatpush2.msra.mxu0 0.0
    %2486 = vmatprep.subr.mxu0 0.0
    %2487 = vmatpush2.msra.mxu0 0.0
    %2488 = vmatprep.mubr.f32.mxu0 0.0
    %2489 = vmatmul.mubr.f32.gmra.mxu0 %v2422
    %v2490 = vpop.f32.mrf.mxu0
    %v2491 = vadd.f32 0.0, %v2490
    %v2492 = vpop.f32.mrf.mxu0
    %2493 = vdwg.mxu0
    %2494 = vrot.lane.b32.xlu0 %v1886, 104
    %v2495 = vpop.permute.xlu0 %2494
    %2496 = vrot.lane.b32.xlu0 %v1993, 104
    %v2497 = vpop.permute.xlu0 %2496
    %v2498 = vsel %vm350, %v2495, 0
    %v2500 = vsel %vm350, %v2497, 0
    %2502 = vmatprep.subr.mxu0 0.0
    %2503 = vmatpush1.xpose.msra.mxu0 0.0
    %2504 = vmatprep.subr.mxu0 0.0
    %2505 = vmatpush1.xpose.msra.mxu0 0.0
    %2506 = vmatprep.subr.mxu0 0.0
    %2507 = vmatpush1.xpose.msra.mxu0 0.0
    %2508 = vmatprep.subr.mxu0 0.0
    %2509 = vmatpush1.xpose.msra.mxu0 0.0
    %2510 = vmatprep.subr.mxu0 0.0
    %2511 = vmatpush1.xpose.msra.mxu0 0.0
    %2512 = vmatprep.subr.mxu0 0.0
    %2513 = vmatpush1.xpose.msra.mxu0 0.0
    %2514 = vmatprep.subr.mxu0 0.0
    %2515 = vmatpush1.xpose.msra.mxu0 0.0
    %2516 = vmatprep.subr.mxu0 0.0
    %2517 = vmatpush1.xpose.msra.mxu0 0.0
    %2518 = vmatprep.subr.mxu0 0.0
    %2519 = vmatpush1.xpose.msra.mxu0 0.0
    %2520 = vmatprep.subr.mxu0 0.0
    %2521 = vmatpush1.xpose.msra.mxu0 0.0
    %2522 = vmatprep.subr.mxu0 0.0
    %2523 = vmatpush1.xpose.msra.mxu0 0.0
    %2524 = vmatprep.subr.mxu0 0.0
    %2525 = vmatpush1.xpose.msra.mxu0 0.0
    %2526 = vmatprep.subr.mxu0 0.0
    %2527 = vmatpush1.xpose.msra.mxu0 0.0
    %2528 = vmatprep.subr.mxu0 0.0
    %2529 = vmatpush1.xpose.msra.mxu0 0.0
    %2530 = vmatprep.subr.mxu0 0.0
    %2531 = vmatpush1.xpose.msra.mxu0 0.0
    %2532 = vmatprep.subr.mxu0 0.0
    %2533 = vmatpush1.xpose.msra.mxu0 %v2500
    %2534 = vmatprep.subr.mxu0 0.0
    %2535 = vmatpush2.xpose.msra.mxu0 0.0
    %2536 = vmatprep.subr.mxu0 0.0
    %2537 = vmatpush2.xpose.msra.mxu0 0.0
    %2538 = vmatprep.subr.mxu0 0.0
    %2539 = vmatpush2.xpose.msra.mxu0 0.0
    %2540 = vmatprep.subr.mxu0 0.0
    %2541 = vmatpush2.xpose.msra.mxu0 0.0
    %2542 = vmatprep.subr.mxu0 0.0
    %2543 = vmatpush2.xpose.msra.mxu0 0.0
    %2544 = vmatprep.subr.mxu0 0.0
    %2545 = vmatpush2.xpose.msra.mxu0 0.0
    %2546 = vmatprep.subr.mxu0 0.0
    %2547 = vmatpush2.xpose.msra.mxu0 0.0
    %2548 = vmatprep.subr.mxu0 0.0
    %2549 = vmatpush2.xpose.msra.mxu0 0.0
    %2550 = vmatprep.subr.mxu0 0.0
    %2551 = vmatpush2.xpose.msra.mxu0 0.0
    %2552 = vmatprep.subr.mxu0 0.0
    %2553 = vmatpush2.xpose.msra.mxu0 0.0
    %2554 = vmatprep.subr.mxu0 0.0
    %2555 = vmatpush2.xpose.msra.mxu0 0.0
    %2556 = vmatprep.subr.mxu0 0.0
    %2557 = vmatpush2.xpose.msra.mxu0 0.0
    %2558 = vmatprep.subr.mxu0 0.0
    %2559 = vmatpush2.xpose.msra.mxu0 0.0
    %2560 = vmatprep.subr.mxu0 0.0
    %2561 = vmatpush2.xpose.msra.mxu0 0.0
    %2562 = vmatprep.subr.mxu0 0.0
    %2563 = vmatpush2.xpose.msra.mxu0 0.0
    %2564 = vmatprep.subr.mxu0 0.0
    %2565 = vmatpush2.xpose.msra.mxu0 0.0
    %2566 = vmatprep.mubr.f32.mxu0 0.0
    %2567 = vmatmul.mubr.f32.gmra.mxu0 %v2498
    %v2568 = vpop.f32.mrf.mxu0
    %v2569 = vadd.f32 0.0, %v2568
    %v2570 = vpop.f32.mrf.mxu0
    %2571 = vdwg.mxu0
    %v2572 = vsel %vm350, %v2569, -inf
    %2573 = vmax.xlane.f32.xlu0 %v2572
    %v2574 = vpop.xlane.xlu0 %2573
    %v2575 = vsub.f32 %v2569, %v2574
    %v2576 = vmul.f32 %v2575, 1.442695
    %v2577 = vpow.pop %v2576
    %v2578 = vsel %vm350, %v2577, 0.0
    %2579 = vadd.xlane.f32.xlu0 %v2578
    %v2580 = vpop.xlane.xlu0 %2579
    %v2581 = vrcp.pop %v2580
    %v2582 = vmul.f32 %v2577, %v2581
    %2583 = vrot.lane.b32.xlu0 %v1995, 104
    %v2584 = vpop.permute.xlu0 %2583
    %v2587 = vsel %vm350, %v2582, 0
    %2589 = vmatprep.subr.mxu0 0.0
    %2590 = vmatpush1.msra.mxu0 0.0
    %2591 = vmatprep.subr.mxu0 0.0
    %2592 = vmatpush1.msra.mxu0 0.0
    %2593 = vmatprep.subr.mxu0 0.0
    %2594 = vmatpush1.msra.mxu0 0.0
    %2595 = vmatprep.subr.mxu0 0.0
    %2596 = vmatpush1.msra.mxu0 0.0
    %2597 = vmatprep.subr.mxu0 0.0
    %2598 = vmatpush1.msra.mxu0 0.0
    %2599 = vmatprep.subr.mxu0 0.0
    %2600 = vmatpush1.msra.mxu0 0.0
    %2601 = vmatprep.subr.mxu0 0.0
    %2602 = vmatpush1.msra.mxu0 0.0
    %2603 = vmatprep.subr.mxu0 0.0
    %2604 = vmatpush1.msra.mxu0 0.0
    %2605 = vmatprep.subr.mxu0 0.0
    %2606 = vmatpush1.msra.mxu0 0.0
    %2607 = vmatprep.subr.mxu0 0.0
    %2608 = vmatpush1.msra.mxu0 0.0
    %2609 = vmatprep.subr.mxu0 0.0
    %2610 = vmatpush1.msra.mxu0 0.0
    %2611 = vmatprep.subr.mxu0 0.0
    %2612 = vmatpush1.msra.mxu0 0.0
    %2613 = vmatprep.subr.mxu0 0.0
    %2614 = vmatpush1.msra.mxu0 0.0
    %2615 = vmatprep.subr.mxu0 0.0
    %2616 = vmatpush1.msra.mxu0 0.0
    %2617 = vmatprep.subr.mxu0 0.0
    %2618 = vmatpush1.msra.mxu0 0.0
    %2619 = vmatprep.subr.mxu0 0.0
    %2620 = vmatpush1.msra.mxu0 %v2584
    %2621 = vmatprep.subr.mxu0 0.0
    %2622 = vmatpush2.msra.mxu0 0.0
    %2623 = vmatprep.subr.mxu0 0.0
    %2624 = vmatpush2.msra.mxu0 0.0
    %2625 = vmatprep.subr.mxu0 0.0
    %2626 = vmatpush2.msra.mxu0 0.0
    %2627 = vmatprep.subr.mxu0 0.0
    %2628 = vmatpush2.msra.mxu0 0.0
    %2629 = vmatprep.subr.mxu0 0.0
    %2630 = vmatpush2.msra.mxu0 0.0
    %2631 = vmatprep.subr.mxu0 0.0
    %2632 = vmatpush2.msra.mxu0 0.0
    %2633 = vmatprep.subr.mxu0 0.0
    %2634 = vmatpush2.msra.mxu0 0.0
    %2635 = vmatprep.subr.mxu0 0.0
    %2636 = vmatpush2.msra.mxu0 0.0
    %2637 = vmatprep.subr.mxu0 0.0
    %2638 = vmatpush2.msra.mxu0 0.0
    %2639 = vmatprep.subr.mxu0 0.0
    %2640 = vmatpush2.msra.mxu0 0.0
    %2641 = vmatprep.subr.mxu0 0.0
    %2642 = vmatpush2.msra.mxu0 0.0
    %2643 = vmatprep.subr.mxu0 0.0
    %2644 = vmatpush2.msra.mxu0 0.0
    %2645 = vmatprep.subr.mxu0 0.0
    %2646 = vmatpush2.msra.mxu0 0.0
    %2647 = vmatprep.subr.mxu0 0.0
    %2648 = vmatpush2.msra.mxu0 0.0
    %2649 = vmatprep.subr.mxu0 0.0
    %2650 = vmatpush2.msra.mxu0 0.0
    %2651 = vmatprep.subr.mxu0 0.0
    %2652 = vmatpush2.msra.mxu0 0.0
    %2653 = vmatprep.mubr.f32.mxu0 0.0
    %2654 = vmatmul.mubr.f32.gmra.mxu0 %v2587
    %v2655 = vpop.f32.mrf.mxu0
    %v2656 = vadd.f32 0.0, %v2655
    %v2657 = vpop.f32.mrf.mxu0
    %2658 = vdwg.mxu0
    %2660 = vrot.lane.b32.xlu0 %v2326, 8
    %v2661 = vpop.permute.xlu0 %2660
    %2664 = vrot.lane.b32.xlu0 %v2491, 16
    %v2665 = vpop.permute.xlu0 %2664
    %2668 = vrot.lane.b32.xlu0 %v2656, 24
    %v2669 = vpop.permute.xlu0 %2668
    %v2671 = vsel %vm350, %v2160, %v2661
    %v2672 = vsel %vm1020, %v2671, %v2665
    %v2673 = vsel %vm1022, %v2672, %v2669
    %v2675 = vsel %vm350, %v1891, 0
    %v2678 = vsel %vm350, %v1999, 0
    %2680 = vmatprep.subr.mxu0 0.0
    %2681 = vmatpush1.xpose.msra.mxu0 0.0
    %2682 = vmatprep.subr.mxu0 0.0
    %2683 = vmatpush1.xpose.msra.mxu0 0.0
    %2684 = vmatprep.subr.mxu0 0.0
    %2685 = vmatpush1.xpose.msra.mxu0 0.0
    %2686 = vmatprep.subr.mxu0 0.0
    %2687 = vmatpush1.xpose.msra.mxu0 0.0
    %2688 = vmatprep.subr.mxu0 0.0
    %2689 = vmatpush1.xpose.msra.mxu0 0.0
    %2690 = vmatprep.subr.mxu0 0.0
    %2691 = vmatpush1.xpose.msra.mxu0 0.0
    %2692 = vmatprep.subr.mxu0 0.0
    %2693 = vmatpush1.xpose.msra.mxu0 0.0
    %2694 = vmatprep.subr.mxu0 0.0
    %2695 = vmatpush1.xpose.msra.mxu0 0.0
    %2696 = vmatprep.subr.mxu0 0.0
    %2697 = vmatpush1.xpose.msra.mxu0 0.0
    %2698 = vmatprep.subr.mxu0 0.0
    %2699 = vmatpush1.xpose.msra.mxu0 0.0
    %2700 = vmatprep.subr.mxu0 0.0
    %2701 = vmatpush1.xpose.msra.mxu0 0.0
    %2702 = vmatprep.subr.mxu0 0.0
    %2703 = vmatpush1.xpose.msra.mxu0 0.0
    %2704 = vmatprep.subr.mxu0 0.0
    %2705 = vmatpush1.xpose.msra.mxu0 0.0
    %2706 = vmatprep.subr.mxu0 0.0
    %2707 = vmatpush1.xpose.msra.mxu0 0.0
    %2708 = vmatprep.subr.mxu0 0.0
    %2709 = vmatpush1.xpose.msra.mxu0 0.0
    %2710 = vmatprep.subr.mxu0 0.0
    %2711 = vmatpush1.xpose.msra.mxu0 %v2678
    %2712 = vmatprep.subr.mxu0 0.0
    %2713 = vmatpush2.xpose.msra.mxu0 0.0
    %2714 = vmatprep.subr.mxu0 0.0
    %2715 = vmatpush2.xpose.msra.mxu0 0.0
    %2716 = vmatprep.subr.mxu0 0.0
    %2717 = vmatpush2.xpose.msra.mxu0 0.0
    %2718 = vmatprep.subr.mxu0 0.0
    %2719 = vmatpush2.xpose.msra.mxu0 0.0
    %2720 = vmatprep.subr.mxu0 0.0
    %2721 = vmatpush2.xpose.msra.mxu0 0.0
    %2722 = vmatprep.subr.mxu0 0.0
    %2723 = vmatpush2.xpose.msra.mxu0 0.0
    %2724 = vmatprep.subr.mxu0 0.0
    %2725 = vmatpush2.xpose.msra.mxu0 0.0
    %2726 = vmatprep.subr.mxu0 0.0
    %2727 = vmatpush2.xpose.msra.mxu0 0.0
    %2728 = vmatprep.subr.mxu0 0.0
    %2729 = vmatpush2.xpose.msra.mxu0 0.0
    %2730 = vmatprep.subr.mxu0 0.0
    %2731 = vmatpush2.xpose.msra.mxu0 0.0
    %2732 = vmatprep.subr.mxu0 0.0
    %2733 = vmatpush2.xpose.msra.mxu0 0.0
    %2734 = vmatprep.subr.mxu0 0.0
    %2735 = vmatpush2.xpose.msra.mxu0 0.0
    %2736 = vmatprep.subr.mxu0 0.0
    %2737 = vmatpush2.xpose.msra.mxu0 0.0
    %2738 = vmatprep.subr.mxu0 0.0
    %2739 = vmatpush2.xpose.msra.mxu0 0.0
    %2740 = vmatprep.subr.mxu0 0.0
    %2741 = vmatpush2.xpose.msra.mxu0 0.0
    %2742 = vmatprep.subr.mxu0 0.0
    %2743 = vmatpush2.xpose.msra.mxu0 0.0
    %2744 = vmatprep.mubr.f32.mxu0 0.0
    %2745 = vmatmul.mubr.f32.gmra.mxu0 %v2675
    %v2746 = vpop.f32.mrf.mxu0
    %v2747 = vadd.f32 0.0, %v2746
    %v2748 = vpop.f32.mrf.mxu0
    %2749 = vdwg.mxu0
    %v2750 = vsel %vm350, %v2747, -inf
    %2751 = vmax.xlane.f32.xlu0 %v2750
    %v2752 = vpop.xlane.xlu0 %2751
    %v2753 = vsub.f32 %v2747, %v2752
    %v2754 = vmul.f32 %v2753, 1.442695
    %v2755 = vpow.pop %v2754
    %v2756 = vsel %vm350, %v2755, 0.0
    %2757 = vadd.xlane.f32.xlu0 %v2756
    %v2758 = vpop.xlane.xlu0 %2757
    %v2759 = vrcp.pop %v2758
    %v2760 = vmul.f32 %v2755, %v2759
    %v2762 = vsel %vm350, %v2760, 0
    %2764 = vmatprep.subr.mxu0 0.0
    %2765 = vmatpush1.msra.mxu0 0.0
    %2766 = vmatprep.subr.mxu0 0.0
    %2767 = vmatpush1.msra.mxu0 0.0
    %2768 = vmatprep.subr.mxu0 0.0
    %2769 = vmatpush1.msra.mxu0 0.0
    %2770 = vmatprep.subr.mxu0 0.0
    %2771 = vmatpush1.msra.mxu0 0.0
    %2772 = vmatprep.subr.mxu0 0.0
    %2773 = vmatpush1.msra.mxu0 0.0
    %2774 = vmatprep.subr.mxu0 0.0
    %2775 = vmatpush1.msra.mxu0 0.0
    %2776 = vmatprep.subr.mxu0 0.0
    %2777 = vmatpush1.msra.mxu0 0.0
    %2778 = vmatprep.subr.mxu0 0.0
    %2779 = vmatpush1.msra.mxu0 0.0
    %2780 = vmatprep.subr.mxu0 0.0
    %2781 = vmatpush1.msra.mxu0 0.0
    %2782 = vmatprep.subr.mxu0 0.0
    %2783 = vmatpush1.msra.mxu0 0.0
    %2784 = vmatprep.subr.mxu0 0.0
    %2785 = vmatpush1.msra.mxu0 0.0
    %2786 = vmatprep.subr.mxu0 0.0
    %2787 = vmatpush1.msra.mxu0 0.0
    %2788 = vmatprep.subr.mxu0 0.0
    %2789 = vmatpush1.msra.mxu0 0.0
    %2790 = vmatprep.subr.mxu0 0.0
    %2791 = vmatpush1.msra.mxu0 0.0
    %2792 = vmatprep.subr.mxu0 0.0
    %2793 = vmatpush1.msra.mxu0 0.0
    %2794 = vmatprep.subr.mxu0 0.0
    %2795 = vmatpush1.msra.mxu0 %v2001
    %2796 = vmatprep.subr.mxu0 0.0
    %2797 = vmatpush2.msra.mxu0 0.0
    %2798 = vmatprep.subr.mxu0 0.0
    %2799 = vmatpush2.msra.mxu0 0.0
    %2800 = vmatprep.subr.mxu0 0.0
    %2801 = vmatpush2.msra.mxu0 0.0
    %2802 = vmatprep.subr.mxu0 0.0
    %2803 = vmatpush2.msra.mxu0 0.0
    %2804 = vmatprep.subr.mxu0 0.0
    %2805 = vmatpush2.msra.mxu0 0.0
    %2806 = vmatprep.subr.mxu0 0.0
    %2807 = vmatpush2.msra.mxu0 0.0
    %2808 = vmatprep.subr.mxu0 0.0
    %2809 = vmatpush2.msra.mxu0 0.0
    %2810 = vmatprep.subr.mxu0 0.0
    %2811 = vmatpush2.msra.mxu0 0.0
    %2812 = vmatprep.subr.mxu0 0.0
    %2813 = vmatpush2.msra.mxu0 0.0
    %2814 = vmatprep.subr.mxu0 0.0
    %2815 = vmatpush2.msra.mxu0 0.0
    %2816 = vmatprep.subr.mxu0 0.0
    %2817 = vmatpush2.msra.mxu0 0.0
    %2818 = vmatprep.subr.mxu0 0.0
    %2819 = vmatpush2.msra.mxu0 0.0
    %2820 = vmatprep.subr.mxu0 0.0
    %2821 = vmatpush2.msra.mxu0 0.0
    %2822 = vmatprep.subr.mxu0 0.0
    %2823 = vmatpush2.msra.mxu0 0.0
    %2824 = vmatprep.subr.mxu0 0.0
    %2825 = vmatpush2.msra.mxu0 0.0
    %2826 = vmatprep.subr.mxu0 0.0
    %2827 = vmatpush2.msra.mxu0 0.0
    %2828 = vmatprep.mubr.f32.mxu0 0.0
    %2829 = vmatmul.mubr.f32.gmra.mxu0 %v2762
    %v2830 = vpop.f32.mrf.mxu0
    %v2831 = vadd.f32 0.0, %v2830
    %v2832 = vpop.f32.mrf.mxu0
    %2833 = vdwg.mxu0
    %2834 = vrot.lane.b32.xlu0 %v1891, 120
    %v2835 = vpop.permute.xlu0 %2834
    %2836 = vrot.lane.b32.xlu0 %v1999, 120
    %v2837 = vpop.permute.xlu0 %2836
    %v2838 = vsel %vm350, %v2835, 0
    %v2840 = vsel %vm350, %v2837, 0
    %2842 = vmatprep.subr.mxu0 0.0
    %2843 = vmatpush1.xpose.msra.mxu0 0.0
    %2844 = vmatprep.subr.mxu0 0.0
    %2845 = vmatpush1.xpose.msra.mxu0 0.0
    %2846 = vmatprep.subr.mxu0 0.0
    %2847 = vmatpush1.xpose.msra.mxu0 0.0
    %2848 = vmatprep.subr.mxu0 0.0
    %2849 = vmatpush1.xpose.msra.mxu0 0.0
    %2850 = vmatprep.subr.mxu0 0.0
    %2851 = vmatpush1.xpose.msra.mxu0 0.0
    %2852 = vmatprep.subr.mxu0 0.0
    %2853 = vmatpush1.xpose.msra.mxu0 0.0
    %2854 = vmatprep.subr.mxu0 0.0
    %2855 = vmatpush1.xpose.msra.mxu0 0.0
    %2856 = vmatprep.subr.mxu0 0.0
    %2857 = vmatpush1.xpose.msra.mxu0 0.0
    %2858 = vmatprep.subr.mxu0 0.0
    %2859 = vmatpush1.xpose.msra.mxu0 0.0
    %2860 = vmatprep.subr.mxu0 0.0
    %2861 = vmatpush1.xpose.msra.mxu0 0.0
    %2862 = vmatprep.subr.mxu0 0.0
    %2863 = vmatpush1.xpose.msra.mxu0 0.0
    %2864 = vmatprep.subr.mxu0 0.0
    %2865 = vmatpush1.xpose.msra.mxu0 0.0
    %2866 = vmatprep.subr.mxu0 0.0
    %2867 = vmatpush1.xpose.msra.mxu0 0.0
    %2868 = vmatprep.subr.mxu0 0.0
    %2869 = vmatpush1.xpose.msra.mxu0 0.0
    %2870 = vmatprep.subr.mxu0 0.0
    %2871 = vmatpush1.xpose.msra.mxu0 0.0
    %2872 = vmatprep.subr.mxu0 0.0
    %2873 = vmatpush1.xpose.msra.mxu0 %v2840
    %2874 = vmatprep.subr.mxu0 0.0
    %2875 = vmatpush2.xpose.msra.mxu0 0.0
    %2876 = vmatprep.subr.mxu0 0.0
    %2877 = vmatpush2.xpose.msra.mxu0 0.0
    %2878 = vmatprep.subr.mxu0 0.0
    %2879 = vmatpush2.xpose.msra.mxu0 0.0
    %2880 = vmatprep.subr.mxu0 0.0
    %2881 = vmatpush2.xpose.msra.mxu0 0.0
    %2882 = vmatprep.subr.mxu0 0.0
    %2883 = vmatpush2.xpose.msra.mxu0 0.0
    %2884 = vmatprep.subr.mxu0 0.0
    %2885 = vmatpush2.xpose.msra.mxu0 0.0
    %2886 = vmatprep.subr.mxu0 0.0
    %2887 = vmatpush2.xpose.msra.mxu0 0.0
    %2888 = vmatprep.subr.mxu0 0.0
    %2889 = vmatpush2.xpose.msra.mxu0 0.0
    %2890 = vmatprep.subr.mxu0 0.0
    %2891 = vmatpush2.xpose.msra.mxu0 0.0
    %2892 = vmatprep.subr.mxu0 0.0
    %2893 = vmatpush2.xpose.msra.mxu0 0.0
    %2894 = vmatprep.subr.mxu0 0.0
    %2895 = vmatpush2.xpose.msra.mxu0 0.0
    %2896 = vmatprep.subr.mxu0 0.0
    %2897 = vmatpush2.xpose.msra.mxu0 0.0
    %2898 = vmatprep.subr.mxu0 0.0
    %2899 = vmatpush2.xpose.msra.mxu0 0.0
    %2900 = vmatprep.subr.mxu0 0.0
    %2901 = vmatpush2.xpose.msra.mxu0 0.0
    %2902 = vmatprep.subr.mxu0 0.0
    %2903 = vmatpush2.xpose.msra.mxu0 0.0
    %2904 = vmatprep.subr.mxu0 0.0
    %2905 = vmatpush2.xpose.msra.mxu0 0.0
    %2906 = vmatprep.mubr.f32.mxu0 0.0
    %2907 = vmatmul.mubr.f32.gmra.mxu0 %v2838
    %v2908 = vpop.f32.mrf.mxu0
    %v2909 = vadd.f32 0.0, %v2908
    %v2910 = vpop.f32.mrf.mxu0
    %2911 = vdwg.mxu0
    %v2912 = vsel %vm350, %v2909, -inf
    %2913 = vmax.xlane.f32.xlu0 %v2912
    %v2914 = vpop.xlane.xlu0 %2913
    %v2915 = vsub.f32 %v2909, %v2914
    %v2916 = vmul.f32 %v2915, 1.442695
    %v2917 = vpow.pop %v2916
    %v2918 = vsel %vm350, %v2917, 0.0
    %2919 = vadd.xlane.f32.xlu0 %v2918
    %v2920 = vpop.xlane.xlu0 %2919
    %v2921 = vrcp.pop %v2920
    %v2922 = vmul.f32 %v2917, %v2921
    %2924 = vrot.lane.b32.xlu0 %v2001, 120
    %v2925 = vpop.permute.xlu0 %2924
    %v2928 = vsel %vm350, %v2922, 0
    %2930 = vmatprep.subr.mxu0 0.0
    %2931 = vmatpush1.msra.mxu0 0.0
    %2932 = vmatprep.subr.mxu0 0.0
    %2933 = vmatpush1.msra.mxu0 0.0
    %2934 = vmatprep.subr.mxu0 0.0
    %2935 = vmatpush1.msra.mxu0 0.0
    %2936 = vmatprep.subr.mxu0 0.0
    %2937 = vmatpush1.msra.mxu0 0.0
    %2938 = vmatprep.subr.mxu0 0.0
    %2939 = vmatpush1.msra.mxu0 0.0
    %2940 = vmatprep.subr.mxu0 0.0
    %2941 = vmatpush1.msra.mxu0 0.0
    %2942 = vmatprep.subr.mxu0 0.0
    %2943 = vmatpush1.msra.mxu0 0.0
    %2944 = vmatprep.subr.mxu0 0.0
    %2945 = vmatpush1.msra.mxu0 0.0
    %2946 = vmatprep.subr.mxu0 0.0
    %2947 = vmatpush1.msra.mxu0 0.0
    %2948 = vmatprep.subr.mxu0 0.0
    %2949 = vmatpush1.msra.mxu0 0.0
    %2950 = vmatprep.subr.mxu0 0.0
    %2951 = vmatpush1.msra.mxu0 0.0
    %2952 = vmatprep.subr.mxu0 0.0
    %2953 = vmatpush1.msra.mxu0 0.0
    %2954 = vmatprep.subr.mxu0 0.0
    %2955 = vmatpush1.msra.mxu0 0.0
    %2956 = vmatprep.subr.mxu0 0.0
    %2957 = vmatpush1.msra.mxu0 0.0
    %2958 = vmatprep.subr.mxu0 0.0
    %2959 = vmatpush1.msra.mxu0 0.0
    %2960 = vmatprep.subr.mxu0 0.0
    %2961 = vmatpush1.msra.mxu0 %v2925
    %2962 = vmatprep.subr.mxu0 0.0
    %2963 = vmatpush2.msra.mxu0 0.0
    %2964 = vmatprep.subr.mxu0 0.0
    %2965 = vmatpush2.msra.mxu0 0.0
    %2966 = vmatprep.subr.mxu0 0.0
    %2967 = vmatpush2.msra.mxu0 0.0
    %2968 = vmatprep.subr.mxu0 0.0
    %2969 = vmatpush2.msra.mxu0 0.0
    %2970 = vmatprep.subr.mxu0 0.0
    %2971 = vmatpush2.msra.mxu0 0.0
    %2972 = vmatprep.subr.mxu0 0.0
    %2973 = vmatpush2.msra.mxu0 0.0
    %2974 = vmatprep.subr.mxu0 0.0
    %2975 = vmatpush2.msra.mxu0 0.0
    %2976 = vmatprep.subr.mxu0 0.0
    %2977 = vmatpush2.msra.mxu0 0.0
    %2978 = vmatprep.subr.mxu0 0.0
    %2979 = vmatpush2.msra.mxu0 0.0
    %2980 = vmatprep.subr.mxu0 0.0
    %2981 = vmatpush2.msra.mxu0 0.0
    %2982 = vmatprep.subr.mxu0 0.0
    %2983 = vmatpush2.msra.mxu0 0.0
    %2984 = vmatprep.subr.mxu0 0.0
    %2985 = vmatpush2.msra.mxu0 0.0
    %2986 = vmatprep.subr.mxu0 0.0
    %2987 = vmatpush2.msra.mxu0 0.0
    %2988 = vmatprep.subr.mxu0 0.0
    %2989 = vmatpush2.msra.mxu0 0.0
    %2990 = vmatprep.subr.mxu0 0.0
    %2991 = vmatpush2.msra.mxu0 0.0
    %2992 = vmatprep.subr.mxu0 0.0
    %2993 = vmatpush2.msra.mxu0 0.0
    %2994 = vmatprep.mubr.f32.mxu0 0.0
    %2995 = vmatmul.mubr.f32.gmra.mxu0 %v2928
    %v2996 = vpop.f32.mrf.mxu0
    %v2997 = vadd.f32 0.0, %v2996
    %v2998 = vpop.f32.mrf.mxu0
    %2999 = vdwg.mxu0
    %3000 = vrot.lane.b32.xlu0 %v1891, 112
    %v3001 = vpop.permute.xlu0 %3000
    %3002 = vrot.lane.b32.xlu0 %v1999, 112
    %v3003 = vpop.permute.xlu0 %3002
    %v3004 = vsel %vm350, %v3001, 0
    %v3006 = vsel %vm350, %v3003, 0
    %3008 = vmatprep.subr.mxu0 0.0
    %3009 = vmatpush1.xpose.msra.mxu0 0.0
    %3010 = vmatprep.subr.mxu0 0.0
    %3011 = vmatpush1.xpose.msra.mxu0 0.0
    %3012 = vmatprep.subr.mxu0 0.0
    %3013 = vmatpush1.xpose.msra.mxu0 0.0
    %3014 = vmatprep.subr.mxu0 0.0
    %3015 = vmatpush1.xpose.msra.mxu0 0.0
    %3016 = vmatprep.subr.mxu0 0.0
    %3017 = vmatpush1.xpose.msra.mxu0 0.0
    %3018 = vmatprep.subr.mxu0 0.0
    %3019 = vmatpush1.xpose.msra.mxu0 0.0
    %3020 = vmatprep.subr.mxu0 0.0
    %3021 = vmatpush1.xpose.msra.mxu0 0.0
    %3022 = vmatprep.subr.mxu0 0.0
    %3023 = vmatpush1.xpose.msra.mxu0 0.0
    %3024 = vmatprep.subr.mxu0 0.0
    %3025 = vmatpush1.xpose.msra.mxu0 0.0
    %3026 = vmatprep.subr.mxu0 0.0
    %3027 = vmatpush1.xpose.msra.mxu0 0.0
    %3028 = vmatprep.subr.mxu0 0.0
    %3029 = vmatpush1.xpose.msra.mxu0 0.0
    %3030 = vmatprep.subr.mxu0 0.0
    %3031 = vmatpush1.xpose.msra.mxu0 0.0
    %3032 = vmatprep.subr.mxu0 0.0
    %3033 = vmatpush1.xpose.msra.mxu0 0.0
    %3034 = vmatprep.subr.mxu0 0.0
    %3035 = vmatpush1.xpose.msra.mxu0 0.0
    %3036 = vmatprep.subr.mxu0 0.0
    %3037 = vmatpush1.xpose.msra.mxu0 0.0
    %3038 = vmatprep.subr.mxu0 0.0
    %3039 = vmatpush1.xpose.msra.mxu0 %v3006
    %3040 = vmatprep.subr.mxu0 0.0
    %3041 = vmatpush2.xpose.msra.mxu0 0.0
    %3042 = vmatprep.subr.mxu0 0.0
    %3043 = vmatpush2.xpose.msra.mxu0 0.0
    %3044 = vmatprep.subr.mxu0 0.0
    %3045 = vmatpush2.xpose.msra.mxu0 0.0
    %3046 = vmatprep.subr.mxu0 0.0
    %3047 = vmatpush2.xpose.msra.mxu0 0.0
    %3048 = vmatprep.subr.mxu0 0.0
    %3049 = vmatpush2.xpose.msra.mxu0 0.0
    %3050 = vmatprep.subr.mxu0 0.0
    %3051 = vmatpush2.xpose.msra.mxu0 0.0
    %3052 = vmatprep.subr.mxu0 0.0
    %3053 = vmatpush2.xpose.msra.mxu0 0.0
    %3054 = vmatprep.subr.mxu0 0.0
    %3055 = vmatpush2.xpose.msra.mxu0 0.0
    %3056 = vmatprep.subr.mxu0 0.0
    %3057 = vmatpush2.xpose.msra.mxu0 0.0
    %3058 = vmatprep.subr.mxu0 0.0
    %3059 = vmatpush2.xpose.msra.mxu0 0.0
    %3060 = vmatprep.subr.mxu0 0.0
    %3061 = vmatpush2.xpose.msra.mxu0 0.0
    %3062 = vmatprep.subr.mxu0 0.0
    %3063 = vmatpush2.xpose.msra.mxu0 0.0
    %3064 = vmatprep.subr.mxu0 0.0
    %3065 = vmatpush2.xpose.msra.mxu0 0.0
    %3066 = vmatprep.subr.mxu0 0.0
    %3067 = vmatpush2.xpose.msra.mxu0 0.0
    %3068 = vmatprep.subr.mxu0 0.0
    %3069 = vmatpush2.xpose.msra.mxu0 0.0
    %3070 = vmatprep.subr.mxu0 0.0
    %3071 = vmatpush2.xpose.msra.mxu0 0.0
    %3072 = vmatprep.mubr.f32.mxu0 0.0
    %3073 = vmatmul.mubr.f32.gmra.mxu0 %v3004
    %v3074 = vpop.f32.mrf.mxu0
    %v3075 = vadd.f32 0.0, %v3074
    %v3076 = vpop.f32.mrf.mxu0
    %3077 = vdwg.mxu0
    %v3078 = vsel %vm350, %v3075, -inf
    %3079 = vmax.xlane.f32.xlu0 %v3078
    %v3080 = vpop.xlane.xlu0 %3079
    %v3081 = vsub.f32 %v3075, %v3080
    %v3082 = vmul.f32 %v3081, 1.442695
    %v3083 = vpow.pop %v3082
    %v3084 = vsel %vm350, %v3083, 0.0
    %3085 = vadd.xlane.f32.xlu0 %v3084
    %v3086 = vpop.xlane.xlu0 %3085
    %v3087 = vrcp.pop %v3086
    %v3088 = vmul.f32 %v3083, %v3087
    %3089 = vrot.lane.b32.xlu0 %v2001, 112
    %v3090 = vpop.permute.xlu0 %3089
    %v3093 = vsel %vm350, %v3088, 0
    %3095 = vmatprep.subr.mxu0 0.0
    %3096 = vmatpush1.msra.mxu0 0.0
    %3097 = vmatprep.subr.mxu0 0.0
    %3098 = vmatpush1.msra.mxu0 0.0
    %3099 = vmatprep.subr.mxu0 0.0
    %3100 = vmatpush1.msra.mxu0 0.0
    %3101 = vmatprep.subr.mxu0 0.0
    %3102 = vmatpush1.msra.mxu0 0.0
    %3103 = vmatprep.subr.mxu0 0.0
    %3104 = vmatpush1.msra.mxu0 0.0
    %3105 = vmatprep.subr.mxu0 0.0
    %3106 = vmatpush1.msra.mxu0 0.0
    %3107 = vmatprep.subr.mxu0 0.0
    %3108 = vmatpush1.msra.mxu0 0.0
    %3109 = vmatprep.subr.mxu0 0.0
    %3110 = vmatpush1.msra.mxu0 0.0
    %3111 = vmatprep.subr.mxu0 0.0
    %3112 = vmatpush1.msra.mxu0 0.0
    %3113 = vmatprep.subr.mxu0 0.0
    %3114 = vmatpush1.msra.mxu0 0.0
    %3115 = vmatprep.subr.mxu0 0.0
    %3116 = vmatpush1.msra.mxu0 0.0
    %3117 = vmatprep.subr.mxu0 0.0
    %3118 = vmatpush1.msra.mxu0 0.0
    %3119 = vmatprep.subr.mxu0 0.0
    %3120 = vmatpush1.msra.mxu0 0.0
    %3121 = vmatprep.subr.mxu0 0.0
    %3122 = vmatpush1.msra.mxu0 0.0
    %3123 = vmatprep.subr.mxu0 0.0
    %3124 = vmatpush1.msra.mxu0 0.0
    %3125 = vmatprep.subr.mxu0 0.0
    %3126 = vmatpush1.msra.mxu0 %v3090
    %3127 = vmatprep.subr.mxu0 0.0
    %3128 = vmatpush2.msra.mxu0 0.0
    %3129 = vmatprep.subr.mxu0 0.0
    %3130 = vmatpush2.msra.mxu0 0.0
    %3131 = vmatprep.subr.mxu0 0.0
    %3132 = vmatpush2.msra.mxu0 0.0
    %3133 = vmatprep.subr.mxu0 0.0
    %3134 = vmatpush2.msra.mxu0 0.0
    %3135 = vmatprep.subr.mxu0 0.0
    %3136 = vmatpush2.msra.mxu0 0.0
    %3137 = vmatprep.subr.mxu0 0.0
    %3138 = vmatpush2.msra.mxu0 0.0
    %3139 = vmatprep.subr.mxu0 0.0
    %3140 = vmatpush2.msra.mxu0 0.0
    %3141 = vmatprep.subr.mxu0 0.0
    %3142 = vmatpush2.msra.mxu0 0.0
    %3143 = vmatprep.subr.mxu0 0.0
    %3144 = vmatpush2.msra.mxu0 0.0
    %3145 = vmatprep.subr.mxu0 0.0
    %3146 = vmatpush2.msra.mxu0 0.0
    %3147 = vmatprep.subr.mxu0 0.0
    %3148 = vmatpush2.msra.mxu0 0.0
    %3149 = vmatprep.subr.mxu0 0.0
    %3150 = vmatpush2.msra.mxu0 0.0
    %3151 = vmatprep.subr.mxu0 0.0
    %3152 = vmatpush2.msra.mxu0 0.0
    %3153 = vmatprep.subr.mxu0 0.0
    %3154 = vmatpush2.msra.mxu0 0.0
    %3155 = vmatprep.subr.mxu0 0.0
    %3156 = vmatpush2.msra.mxu0 0.0
    %3157 = vmatprep.subr.mxu0 0.0
    %3158 = vmatpush2.msra.mxu0 0.0
    %3159 = vmatprep.mubr.f32.mxu0 0.0
    %3160 = vmatmul.mubr.f32.gmra.mxu0 %v3093
    %v3161 = vpop.f32.mrf.mxu0
    %v3162 = vadd.f32 0.0, %v3161
    %v3163 = vpop.f32.mrf.mxu0
    %3164 = vdwg.mxu0
    %3165 = vrot.lane.b32.xlu0 %v1891, 104
    %v3166 = vpop.permute.xlu0 %3165
    %3167 = vrot.lane.b32.xlu0 %v1999, 104
    %v3168 = vpop.permute.xlu0 %3167
    %v3169 = vsel %vm350, %v3166, 0
    %v3171 = vsel %vm350, %v3168, 0
    %3173 = vmatprep.subr.mxu0 0.0
    %3174 = vmatpush1.xpose.msra.mxu0 0.0
    %3175 = vmatprep.subr.mxu0 0.0
    %3176 = vmatpush1.xpose.msra.mxu0 0.0
    %3177 = vmatprep.subr.mxu0 0.0
    %3178 = vmatpush1.xpose.msra.mxu0 0.0
    %3179 = vmatprep.subr.mxu0 0.0
    %3180 = vmatpush1.xpose.msra.mxu0 0.0
    %3181 = vmatprep.subr.mxu0 0.0
    %3182 = vmatpush1.xpose.msra.mxu0 0.0
    %3183 = vmatprep.subr.mxu0 0.0
    %3184 = vmatpush1.xpose.msra.mxu0 0.0
    %3185 = vmatprep.subr.mxu0 0.0
    %3186 = vmatpush1.xpose.msra.mxu0 0.0
    %3187 = vmatprep.subr.mxu0 0.0
    %3188 = vmatpush1.xpose.msra.mxu0 0.0
    %3189 = vmatprep.subr.mxu0 0.0
    %3190 = vmatpush1.xpose.msra.mxu0 0.0
    %3191 = vmatprep.subr.mxu0 0.0
    %3192 = vmatpush1.xpose.msra.mxu0 0.0
    %3193 = vmatprep.subr.mxu0 0.0
    %3194 = vmatpush1.xpose.msra.mxu0 0.0
    %3195 = vmatprep.subr.mxu0 0.0
    %3196 = vmatpush1.xpose.msra.mxu0 0.0
    %3197 = vmatprep.subr.mxu0 0.0
    %3198 = vmatpush1.xpose.msra.mxu0 0.0
    %3199 = vmatprep.subr.mxu0 0.0
    %3200 = vmatpush1.xpose.msra.mxu0 0.0
    %3201 = vmatprep.subr.mxu0 0.0
    %3202 = vmatpush1.xpose.msra.mxu0 0.0
    %3203 = vmatprep.subr.mxu0 0.0
    %3204 = vmatpush1.xpose.msra.mxu0 %v3171
    %3205 = vmatprep.subr.mxu0 0.0
    %3206 = vmatpush2.xpose.msra.mxu0 0.0
    %3207 = vmatprep.subr.mxu0 0.0
    %3208 = vmatpush2.xpose.msra.mxu0 0.0
    %3209 = vmatprep.subr.mxu0 0.0
    %3210 = vmatpush2.xpose.msra.mxu0 0.0
    %3211 = vmatprep.subr.mxu0 0.0
    %3212 = vmatpush2.xpose.msra.mxu0 0.0
    %3213 = vmatprep.subr.mxu0 0.0
    %3214 = vmatpush2.xpose.msra.mxu0 0.0
    %3215 = vmatprep.subr.mxu0 0.0
    %3216 = vmatpush2.xpose.msra.mxu0 0.0
    %3217 = vmatprep.subr.mxu0 0.0
    %3218 = vmatpush2.xpose.msra.mxu0 0.0
    %3219 = vmatprep.subr.mxu0 0.0
    %3220 = vmatpush2.xpose.msra.mxu0 0.0
    %3221 = vmatprep.subr.mxu0 0.0
    %3222 = vmatpush2.xpose.msra.mxu0 0.0
    %3223 = vmatprep.subr.mxu0 0.0
    %3224 = vmatpush2.xpose.msra.mxu0 0.0
    %3225 = vmatprep.subr.mxu0 0.0
    %3226 = vmatpush2.xpose.msra.mxu0 0.0
    %3227 = vmatprep.subr.mxu0 0.0
    %3228 = vmatpush2.xpose.msra.mxu0 0.0
    %3229 = vmatprep.subr.mxu0 0.0
    %3230 = vmatpush2.xpose.msra.mxu0 0.0
    %3231 = vmatprep.subr.mxu0 0.0
    %3232 = vmatpush2.xpose.msra.mxu0 0.0
    %3233 = vmatprep.subr.mxu0 0.0
    %3234 = vmatpush2.xpose.msra.mxu0 0.0
    %3235 = vmatprep.subr.mxu0 0.0
    %3236 = vmatpush2.xpose.msra.mxu0 0.0
    %3237 = vmatprep.mubr.f32.mxu0 0.0
    %3238 = vmatmul.mubr.f32.gmra.mxu0 %v3169
    %v3239 = vpop.f32.mrf.mxu0
    %v3240 = vadd.f32 0.0, %v3239
    %v3241 = vpop.f32.mrf.mxu0
    %3242 = vdwg.mxu0
    %v3243 = vsel %vm350, %v3240, -inf
    %3244 = vmax.xlane.f32.xlu0 %v3243
    %v3245 = vpop.xlane.xlu0 %3244
    %v3246 = vsub.f32 %v3240, %v3245
    %v3247 = vmul.f32 %v3246, 1.442695
    %v3248 = vpow.pop %v3247
    %v3249 = vsel %vm350, %v3248, 0.0
    %3250 = vadd.xlane.f32.xlu0 %v3249
    %v3251 = vpop.xlane.xlu0 %3250
    %v3252 = vrcp.pop %v3251
    %v3253 = vmul.f32 %v3248, %v3252
    %3254 = vrot.lane.b32.xlu0 %v2001, 104
    %v3255 = vpop.permute.xlu0 %3254
    %v3258 = vsel %vm350, %v3253, 0
    %3260 = vmatprep.subr.mxu0 0.0
    %3261 = vmatpush1.msra.mxu0 0.0
    %3262 = vmatprep.subr.mxu0 0.0
    %3263 = vmatpush1.msra.mxu0 0.0
    %3264 = vmatprep.subr.mxu0 0.0
    %3265 = vmatpush1.msra.mxu0 0.0
    %3266 = vmatprep.subr.mxu0 0.0
    %3267 = vmatpush1.msra.mxu0 0.0
    %3268 = vmatprep.subr.mxu0 0.0
    %3269 = vmatpush1.msra.mxu0 0.0
    %3270 = vmatprep.subr.mxu0 0.0
    %3271 = vmatpush1.msra.mxu0 0.0
    %3272 = vmatprep.subr.mxu0 0.0
    %3273 = vmatpush1.msra.mxu0 0.0
    %3274 = vmatprep.subr.mxu0 0.0
    %3275 = vmatpush1.msra.mxu0 0.0
    %3276 = vmatprep.subr.mxu0 0.0
    %3277 = vmatpush1.msra.mxu0 0.0
    %3278 = vmatprep.subr.mxu0 0.0
    %3279 = vmatpush1.msra.mxu0 0.0
    %3280 = vmatprep.subr.mxu0 0.0
    %3281 = vmatpush1.msra.mxu0 0.0
    %3282 = vmatprep.subr.mxu0 0.0
    %3283 = vmatpush1.msra.mxu0 0.0
    %3284 = vmatprep.subr.mxu0 0.0
    %3285 = vmatpush1.msra.mxu0 0.0
    %3286 = vmatprep.subr.mxu0 0.0
    %3287 = vmatpush1.msra.mxu0 0.0
    %3288 = vmatprep.subr.mxu0 0.0
    %3289 = vmatpush1.msra.mxu0 0.0
    %3290 = vmatprep.subr.mxu0 0.0
    %3291 = vmatpush1.msra.mxu0 %v3255
    %3292 = vmatprep.subr.mxu0 0.0
    %3293 = vmatpush2.msra.mxu0 0.0
    %3294 = vmatprep.subr.mxu0 0.0
    %3295 = vmatpush2.msra.mxu0 0.0
    %3296 = vmatprep.subr.mxu0 0.0
    %3297 = vmatpush2.msra.mxu0 0.0
    %3298 = vmatprep.subr.mxu0 0.0
    %3299 = vmatpush2.msra.mxu0 0.0
    %3300 = vmatprep.subr.mxu0 0.0
    %3301 = vmatpush2.msra.mxu0 0.0
    %3302 = vmatprep.subr.mxu0 0.0
    %3303 = vmatpush2.msra.mxu0 0.0
    %3304 = vmatprep.subr.mxu0 0.0
    %3305 = vmatpush2.msra.mxu0 0.0
    %3306 = vmatprep.subr.mxu0 0.0
    %3307 = vmatpush2.msra.mxu0 0.0
    %3308 = vmatprep.subr.mxu0 0.0
    %3309 = vmatpush2.msra.mxu0 0.0
    %3310 = vmatprep.subr.mxu0 0.0
    %3311 = vmatpush2.msra.mxu0 0.0
    %3312 = vmatprep.subr.mxu0 0.0
    %3313 = vmatpush2.msra.mxu0 0.0
    %3314 = vmatprep.subr.mxu0 0.0
    %3315 = vmatpush2.msra.mxu0 0.0
    %3316 = vmatprep.subr.mxu0 0.0
    %3317 = vmatpush2.msra.mxu0 0.0
    %3318 = vmatprep.subr.mxu0 0.0
    %3319 = vmatpush2.msra.mxu0 0.0
    %3320 = vmatprep.subr.mxu0 0.0
    %3321 = vmatpush2.msra.mxu0 0.0
    %3322 = vmatprep.subr.mxu0 0.0
    %3323 = vmatpush2.msra.mxu0 0.0
    %3324 = vmatprep.mubr.f32.mxu0 0.0
    %3325 = vmatmul.mubr.f32.gmra.mxu0 %v3258
    %v3326 = vpop.f32.mrf.mxu0
    %v3327 = vadd.f32 0.0, %v3326
    %v3328 = vpop.f32.mrf.mxu0
    %3329 = vdwg.mxu0
    %3331 = vrot.lane.b32.xlu0 %v2997, 8
    %v3332 = vpop.permute.xlu0 %3331
    %3335 = vrot.lane.b32.xlu0 %v3162, 16
    %v3336 = vpop.permute.xlu0 %3335
    %3339 = vrot.lane.b32.xlu0 %v3327, 24
    %v3340 = vpop.permute.xlu0 %3339
    %v3342 = vsel %vm350, %v2831, %v3332
    %v3343 = vsel %vm1020, %v3342, %v3336
    %v3344 = vsel %vm1022, %v3343, %v3340
    %v3345 = vld [vmem:[#allocation6] sm:$0xff]
    %v3346 = vld [vmem:[#allocation6 + $0x8] sm:$0xff]
    %v3347 = vld [vmem:[#allocation6 + $0x10] sm:$0xff]
    %v3348 = vld [vmem:[#allocation6 + $0x18] sm:$0xff]
    %v3350 = vsel %vm1699, %v2673, 0
    %v3353 = vsel %vm1699, %v3344, 0
    %3355 = vmatprep.subr.mxu0 0.0
    %3356 = vmatpush1.msra.mxu0 0.0
    %3357 = vmatprep.subr.mxu0 0.0
    %3358 = vmatpush1.msra.mxu0 0.0
    %3359 = vmatprep.subr.mxu0 0.0
    %3360 = vmatpush1.msra.mxu0 0.0
    %3361 = vmatprep.subr.mxu0 0.0
    %3362 = vmatpush1.msra.mxu0 0.0
    %3363 = vmatprep.subr.mxu0 0.0
    %3364 = vmatpush1.msra.mxu0 0.0
    %3365 = vmatprep.subr.mxu0 0.0
    %3366 = vmatpush1.msra.mxu0 0.0
    %3367 = vmatprep.subr.mxu0 0.0
    %3368 = vmatpush1.msra.mxu0 0.0
    %3369 = vmatprep.subr.mxu0 0.0
    %3370 = vmatpush1.msra.mxu0 0.0
    %3371 = vmatprep.subr.mxu0 0.0
    %3372 = vmatpush1.msra.mxu0 0.0
    %3373 = vmatprep.subr.mxu0 0.0
    %3374 = vmatpush1.msra.mxu0 0.0
    %3375 = vmatprep.subr.mxu0 0.0
    %3376 = vmatpush1.msra.mxu0 0.0
    %3377 = vmatprep.subr.mxu0 0.0
    %3378 = vmatpush1.msra.mxu0 0.0
    %3379 = vmatprep.subr.mxu0 0.0
    %3380 = vmatpush1.msra.mxu0 %v3348
    %3381 = vmatprep.subr.mxu0 0.0
    %3382 = vmatpush1.msra.mxu0 %v3347
    %3383 = vmatprep.subr.mxu0 0.0
    %3384 = vmatpush1.msra.mxu0 %v3346
    %3385 = vmatprep.subr.mxu0 0.0
    %3386 = vmatpush1.msra.mxu0 %v3345
    %3387 = vmatprep.subr.mxu0 0.0
    %3388 = vmatpush2.msra.mxu0 0.0
    %3389 = vmatprep.subr.mxu0 0.0
    %3390 = vmatpush2.msra.mxu0 0.0
    %3391 = vmatprep.subr.mxu0 0.0
    %3392 = vmatpush2.msra.mxu0 0.0
    %3393 = vmatprep.subr.mxu0 0.0
    %3394 = vmatpush2.msra.mxu0 0.0
    %3395 = vmatprep.subr.mxu0 0.0
    %3396 = vmatpush2.msra.mxu0 0.0
    %3397 = vmatprep.subr.mxu0 0.0
    %3398 = vmatpush2.msra.mxu0 0.0
    %3399 = vmatprep.subr.mxu0 0.0
    %3400 = vmatpush2.msra.mxu0 0.0
    %3401 = vmatprep.subr.mxu0 0.0
    %3402 = vmatpush2.msra.mxu0 0.0
    %3403 = vmatprep.subr.mxu0 0.0
    %3404 = vmatpush2.msra.mxu0 0.0
    %3405 = vmatprep.subr.mxu0 0.0
    %3406 = vmatpush2.msra.mxu0 0.0
    %3407 = vmatprep.subr.mxu0 0.0
    %3408 = vmatpush2.msra.mxu0 0.0
    %3409 = vmatprep.subr.mxu0 0.0
    %3410 = vmatpush2.msra.mxu0 0.0
    %3411 = vmatprep.subr.mxu0 0.0
    %3412 = vmatpush2.msra.mxu0 0.0
    %3413 = vmatprep.subr.mxu0 0.0
    %3414 = vmatpush2.msra.mxu0 0.0
    %3415 = vmatprep.subr.mxu0 0.0
    %3416 = vmatpush2.msra.mxu0 0.0
    %3417 = vmatprep.subr.mxu0 0.0
    %3418 = vmatpush2.msra.mxu0 0.0
    %3419 = vmatprep.mubr.f32.mxu0 0.0
    %3420 = vmatmul.mubr.f32.gmra.mxu0 %v3350
    %v3421 = vpop.f32.mrf.mxu0
    %v3422 = vadd.f32 0.0, %v3421
    %v3423 = vpop.f32.mrf.mxu0
    %3424 = vmatprep.mubr.f32.mxu0 0.0
    %3425 = vmatmul.mubr.f32.gmra.mxu0 %v3353
    %v3426 = vpop.f32.mrf.mxu0
    %v3427 = vadd.f32 0.0, %v3426
    %v3428 = vpop.f32.mrf.mxu0
    %3429 = vdwg.mxu0
    %v3430 = vadd.f32 %v1781, %v3422
    %v3431 = vadd.f32 %v1782, %v3427
    %v3432 = vmul.f32 %v3430, %v3430
    %v3433 = vmul.f32 %v3431, %v3431
    %3434 = vadd.xlane.f32.xlu0 %v3432
    %v3435 = vpop.xlane.xlu0 %3434
    %3436 = vadd.xlane.f32.xlu0 %v3433
    %v3437 = vpop.xlane.xlu0 %3436
    %v3438 = vmul.f32 %v3435, 0.03125
    %v3439 = vmul.f32 %v3437, 0.03125
    %v3440 = vadd.f32 %v3438, 1e-06
    %v3441 = vadd.f32 %v3439, 1e-06
    %v3442 = vrsqrt.pop %v3440
    %v3443 = vrsqrt.pop %v3441
    %v3444 = vmul.f32 %v3430, %v3442
    %v3445 = vmul.f32 %v3431, %v3443
    %v3446 = vlaneseq
    %v3447 = vshrl.u32 %v3446, 7
    %v3448 = vsub.s32 2, %v3447
    %v3449 = vrot.slane %v125, %v3448
    %v3450 = vmul.f32 %v3444, %v3449
    %v3451 = vmul.f32 %v3445, %v3449
    %v3452 = vld [vmem:[%s8] sm:$0xff]
    %v3453 = vld [vmem:[%s8 + $0x8] sm:$0xff]
    %v3454 = vld [vmem:[%s8 + $0x10] sm:$0xff]
    %v3455 = vld [vmem:[%s8 + $0x18] sm:$0xff]
    %v3456 = vld [vmem:[%s8 + $0x20] sm:$0xff]
    %v3457 = vld [vmem:[%s8 + $0x28] sm:$0xff]
    %v3458 = vld [vmem:[%s8 + $0x30] sm:$0xff]
    %v3459 = vld [vmem:[%s8 + $0x38] sm:$0xff]
    %v3460 = vld [vmem:[%s8 + $0x40] sm:$0xff]
    %v3461 = vld [vmem:[%s8 + $0x48] sm:$0xff]
    %v3462 = vld [vmem:[%s8 + $0x50] sm:$0xff]
    %v3463 = vld [vmem:[%s8 + $0x58] sm:$0xff]
    %v3464 = vld [vmem:[%s8 + $0x60] sm:$0xff]
    %v3465 = vld [vmem:[%s8 + $0x68] sm:$0xff]
    %v3466 = vld [vmem:[%s8 + $0x70] sm:$0xff]
    %v3467 = vld [vmem:[%s8 + $0x78] sm:$0xff]
    %3468 = vmatprep.subr.mxu0 0.0
    %3469 = vmatpush1.msra.mxu0 %v3467
    %3470 = vmatprep.subr.mxu0 0.0
    %3471 = vmatpush1.msra.mxu0 %v3466
    %3472 = vmatprep.subr.mxu0 0.0
    %3473 = vmatpush1.msra.mxu0 %v3465
    %3474 = vmatprep.subr.mxu0 0.0
    %3475 = vmatpush1.msra.mxu0 %v3464
    %3476 = vmatprep.subr.mxu0 0.0
    %3477 = vmatpush1.msra.mxu0 %v3463
    %3478 = vmatprep.subr.mxu0 0.0
    %3479 = vmatpush1.msra.mxu0 %v3462
    %3480 = vmatprep.subr.mxu0 0.0
    %3481 = vmatpush1.msra.mxu0 %v3461
    %3482 = vmatprep.subr.mxu0 0.0
    %3483 = vmatpush1.msra.mxu0 %v3460
    %3484 = vmatprep.subr.mxu0 0.0
    %3485 = vmatpush1.msra.mxu0 %v3459
    %3486 = vmatprep.subr.mxu0 0.0
    %3487 = vmatpush1.msra.mxu0 %v3458
    %3488 = vmatprep.subr.mxu0 0.0
    %3489 = vmatpush1.msra.mxu0 %v3457
    %3490 = vmatprep.subr.mxu0 0.0
    %3491 = vmatpush1.msra.mxu0 %v3456
    %3492 = vmatprep.subr.mxu0 0.0
    %3493 = vmatpush1.msra.mxu0 %v3455
    %3494 = vmatprep.subr.mxu0 0.0
    %3495 = vmatpush1.msra.mxu0 %v3454
    %3496 = vmatprep.subr.mxu0 0.0
    %3497 = vmatpush1.msra.mxu0 %v3453
    %3498 = vmatprep.subr.mxu0 0.0
    %3499 = vmatpush1.msra.mxu0 %v3452
    %3500 = vmatprep.subr.mxu0 0.0
    %3501 = vmatpush2.msra.mxu0 0.0
    %3502 = vmatprep.subr.mxu0 0.0
    %3503 = vmatpush2.msra.mxu0 0.0
    %3504 = vmatprep.subr.mxu0 0.0
    %3505 = vmatpush2.msra.mxu0 0.0
    %3506 = vmatprep.subr.mxu0 0.0
    %3507 = vmatpush2.msra.mxu0 0.0
    %3508 = vmatprep.subr.mxu0 0.0
    %3509 = vmatpush2.msra.mxu0 0.0
    %3510 = vmatprep.subr.mxu0 0.0
    %3511 = vmatpush2.msra.mxu0 0.0
    %3512 = vmatprep.subr.mxu0 0.0
    %3513 = vmatpush2.msra.mxu0 0.0
    %3514 = vmatprep.subr.mxu0 0.0
    %3515 = vmatpush2.msra.mxu0 0.0
    %3516 = vmatprep.subr.mxu0 0.0
    %3517 = vmatpush2.msra.mxu0 0.0
    %3518 = vmatprep.subr.mxu0 0.0
    %3519 = vmatpush2.msra.mxu0 0.0
    %3520 = vmatprep.subr.mxu0 0.0
    %3521 = vmatpush2.msra.mxu0 0.0
    %3522 = vmatprep.subr.mxu0 0.0
    %3523 = vmatpush2.msra.mxu0 0.0
    %3524 = vmatprep.subr.mxu0 0.0
    %3525 = vmatpush2.msra.mxu0 0.0
    %3526 = vmatprep.subr.mxu0 0.0
    %3527 = vmatpush2.msra.mxu0 0.0
    %3528 = vmatprep.subr.mxu0 0.0
    %3529 = vmatpush2.msra.mxu0 0.0
    %3530 = vmatprep.subr.mxu0 0.0
    %3531 = vmatpush2.msra.mxu0 0.0
    %3532 = vmatprep.mubr.f32.mxu0 0.0
    %3533 = vmatmul.mubr.f32.gmra.mxu0 %v3450
    %v3534 = vpop.f32.mrf.mxu0
    %v3535 = vadd.f32 0.0, %v3534
    %v3536 = vpop.f32.mrf.mxu0
    %3537 = vmatprep.mubr.f32.mxu0 0.0
    %3538 = vmatmul.mubr.f32.gmra.mxu0 %v3451
    %v3539 = vpop.f32.mrf.mxu0
    %v3540 = vadd.f32 0.0, %v3539
    %v3541 = vpop.f32.mrf.mxu0
    %3542 = vdwg.mxu0
    %v3543 = vmax.f32 %v3535, 0.0
    %v3544 = vmax.f32 %v3540, 0.0
    %v3545 = vld [vmem:[#allocation7] sm:$0xff]
    %v3546 = vld [vmem:[#allocation7 + $0x8] sm:$0xff]
    %v3547 = vld [vmem:[#allocation7 + $0x10] sm:$0xff]
    %v3548 = vld [vmem:[#allocation7 + $0x18] sm:$0xff]
    %v3549 = vld [vmem:[#allocation7 + $0x20] sm:$0xff]
    %v3550 = vld [vmem:[#allocation7 + $0x28] sm:$0xff]
    %v3551 = vld [vmem:[#allocation7 + $0x30] sm:$0xff]
    %v3552 = vld [vmem:[#allocation7 + $0x38] sm:$0xff]
    %v3553 = vld [vmem:[#allocation7 + $0x40] sm:$0xff]
    %v3554 = vld [vmem:[#allocation7 + $0x48] sm:$0xff]
    %v3555 = vld [vmem:[#allocation7 + $0x50] sm:$0xff]
    %v3556 = vld [vmem:[#allocation7 + $0x58] sm:$0xff]
    %v3557 = vld [vmem:[#allocation7 + $0x60] sm:$0xff]
    %v3558 = vld [vmem:[#allocation7 + $0x68] sm:$0xff]
    %v3559 = vld [vmem:[#allocation7 + $0x70] sm:$0xff]
    %v3560 = vld [vmem:[#allocation7 + $0x78] sm:$0xff]
    %3561 = vmatprep.subr.mxu0 0.0
    %3562 = vmatpush1.msra.mxu0 %v3560
    %3563 = vmatprep.subr.mxu0 0.0
    %3564 = vmatpush1.msra.mxu0 %v3559
    %3565 = vmatprep.subr.mxu0 0.0
    %3566 = vmatpush1.msra.mxu0 %v3558
    %3567 = vmatprep.subr.mxu0 0.0
    %3568 = vmatpush1.msra.mxu0 %v3557
    %3569 = vmatprep.subr.mxu0 0.0
    %3570 = vmatpush1.msra.mxu0 %v3556
    %3571 = vmatprep.subr.mxu0 0.0
    %3572 = vmatpush1.msra.mxu0 %v3555
    %3573 = vmatprep.subr.mxu0 0.0
    %3574 = vmatpush1.msra.mxu0 %v3554
    %3575 = vmatprep.subr.mxu0 0.0
    %3576 = vmatpush1.msra.mxu0 %v3553
    %3577 = vmatprep.subr.mxu0 0.0
    %3578 = vmatpush1.msra.mxu0 %v3552
    %3579 = vmatprep.subr.mxu0 0.0
    %3580 = vmatpush1.msra.mxu0 %v3551
    %3581 = vmatprep.subr.mxu0 0.0
    %3582 = vmatpush1.msra.mxu0 %v3550
    %3583 = vmatprep.subr.mxu0 0.0
    %3584 = vmatpush1.msra.mxu0 %v3549
    %3585 = vmatprep.subr.mxu0 0.0
    %3586 = vmatpush1.msra.mxu0 %v3548
    %3587 = vmatprep.subr.mxu0 0.0
    %3588 = vmatpush1.msra.mxu0 %v3547
    %3589 = vmatprep.subr.mxu0 0.0
    %3590 = vmatpush1.msra.mxu0 %v3546
    %3591 = vmatprep.subr.mxu0 0.0
    %3592 = vmatpush1.msra.mxu0 %v3545
    %3593 = vmatprep.subr.mxu0 0.0
    %3594 = vmatpush2.msra.mxu0 0.0
    %3595 = vmatprep.subr.mxu0 0.0
    %3596 = vmatpush2.msra.mxu0 0.0
    %3597 = vmatprep.subr.mxu0 0.0
    %3598 = vmatpush2.msra.mxu0 0.0
    %3599 = vmatprep.subr.mxu0 0.0
    %3600 = vmatpush2.msra.mxu0 0.0
    %3601 = vmatprep.subr.mxu0 0.0
    %3602 = vmatpush2.msra.mxu0 0.0
    %3603 = vmatprep.subr.mxu0 0.0
    %3604 = vmatpush2.msra.mxu0 0.0
    %3605 = vmatprep.subr.mxu0 0.0
    %3606 = vmatpush2.msra.mxu0 0.0
    %3607 = vmatprep.subr.mxu0 0.0
    %3608 = vmatpush2.msra.mxu0 0.0
    %3609 = vmatprep.subr.mxu0 0.0
    %3610 = vmatpush2.msra.mxu0 0.0
    %3611 = vmatprep.subr.mxu0 0.0
    %3612 = vmatpush2.msra.mxu0 0.0
    %3613 = vmatprep.subr.mxu0 0.0
    %3614 = vmatpush2.msra.mxu0 0.0
    %3615 = vmatprep.subr.mxu0 0.0
    %3616 = vmatpush2.msra.mxu0 0.0
    %3617 = vmatprep.subr.mxu0 0.0
    %3618 = vmatpush2.msra.mxu0 0.0
    %3619 = vmatprep.subr.mxu0 0.0
    %3620 = vmatpush2.msra.mxu0 0.0
    %3621 = vmatprep.subr.mxu0 0.0
    %3622 = vmatpush2.msra.mxu0 0.0
    %3623 = vmatprep.subr.mxu0 0.0
    %3624 = vmatpush2.msra.mxu0 0.0
    %3625 = vmatprep.mubr.f32.mxu0 0.0
    %3626 = vmatmul.mubr.f32.gmra.mxu0 %v3543
    %v3627 = vpop.f32.mrf.mxu0
    %v3628 = vadd.f32 0.0, %v3627
    %v3629 = vpop.f32.mrf.mxu0
    %3630 = vmatprep.mubr.f32.mxu0 0.0
    %3631 = vmatmul.mubr.f32.gmra.mxu0 %v3544
    %v3632 = vpop.f32.mrf.mxu0
    %v3633 = vadd.f32 0.0, %v3632
    %v3634 = vpop.f32.mrf.mxu0
    %3635 = vdwg.mxu0
    %v3636 = vadd.f32 %v3430, %v3628
    %v3637 = vadd.f32 %v3431, %v3633
    %v3638 = vmul.f32 %v3636, %v3636
    %v3639 = vmul.f32 %v3637, %v3637
    %3640 = vadd.xlane.f32.xlu0 %v3638
    %v3641 = vpop.xlane.xlu0 %3640
    %3642 = vadd.xlane.f32.xlu0 %v3639
    %v3643 = vpop.xlane.xlu0 %3642
    %v3644 = vmul.f32 %v3641, 0.03125
    %v3645 = vmul.f32 %v3643, 0.03125
    %v3646 = vadd.f32 %v3644, 1e-06
    %v3647 = vadd.f32 %v3645, 1e-06
    %v3648 = vrsqrt.pop %v3646
    %v3649 = vrsqrt.pop %v3647
    %v3650 = vmul.f32 %v3636, %v3648
    %v3651 = vmul.f32 %v3637, %v3649
    %v3652 = vlaneseq
    %v3653 = vshrl.u32 %v3652, 7
    %v3654 = vsub.s32 3, %v3653
    %v3655 = vrot.slane %v125, %v3654
    %v3656 = vmul.f32 %v3650, %v3655
    %v3657 = vmul.f32 %v3651, %v3655
    %v3658 = vld [vmem:[#allocation10] sm:$0xff]
    %v3659 = vld [vmem:[#allocation10 + $0x8] sm:$0xff]
    %v3660 = vld [vmem:[#allocation10 + $0x10] sm:$0xff]
    %v3661 = vld [vmem:[#allocation10 + $0x18] sm:$0xff]
    %v3662 = vld [vmem:[#allocation10 + $0x20] sm:$0xff]
    %v3663 = vld [vmem:[#allocation10 + $0x28] sm:$0xff]
    %v3664 = vld [vmem:[#allocation10 + $0x30] sm:$0xff]
    %v3665 = vld [vmem:[#allocation10 + $0x38] sm:$0xff]
    %v3666 = vld [vmem:[#allocation10 + $0x40] sm:$0xff]
    %v3667 = vld [vmem:[#allocation10 + $0x48] sm:$0xff]
    %v3668 = vld [vmem:[#allocation10 + $0x50] sm:$0xff]
    %v3669 = vld [vmem:[#allocation10 + $0x58] sm:$0xff]
    %v3670 = vld [vmem:[#allocation10 + $0x60] sm:$0xff]
    %v3671 = vld [vmem:[#allocation10 + $0x68] sm:$0xff]
    %v3672 = vld [vmem:[#allocation10 + $0x70] sm:$0xff]
    %v3673 = vld [vmem:[#allocation10 + $0x78] sm:$0xff]
    %3674 = vmatprep.subr.mxu0 0.0
    %3675 = vmatpush1.msra.mxu0 %v3673
    %3676 = vmatprep.subr.mxu0 0.0
    %3677 = vmatpush1.msra.mxu0 %v3672
    %3678 = vmatprep.subr.mxu0 0.0
    %3679 = vmatpush1.msra.mxu0 %v3671
    %3680 = vmatprep.subr.mxu0 0.0
    %3681 = vmatpush1.msra.mxu0 %v3670
    %3682 = vmatprep.subr.mxu0 0.0
    %3683 = vmatpush1.msra.mxu0 %v3669
    %3684 = vmatprep.subr.mxu0 0.0
    %3685 = vmatpush1.msra.mxu0 %v3668
    %3686 = vmatprep.subr.mxu0 0.0
    %3687 = vmatpush1.msra.mxu0 %v3667
    %3688 = vmatprep.subr.mxu0 0.0
    %3689 = vmatpush1.msra.mxu0 %v3666
    %3690 = vmatprep.subr.mxu0 0.0
    %3691 = vmatpush1.msra.mxu0 %v3665
    %3692 = vmatprep.subr.mxu0 0.0
    %3693 = vmatpush1.msra.mxu0 %v3664
    %3694 = vmatprep.subr.mxu0 0.0
    %3695 = vmatpush1.msra.mxu0 %v3663
    %3696 = vmatprep.subr.mxu0 0.0
    %3697 = vmatpush1.msra.mxu0 %v3662
    %3698 = vmatprep.subr.mxu0 0.0
    %3699 = vmatpush1.msra.mxu0 %v3661
    %3700 = vmatprep.subr.mxu0 0.0
    %3701 = vmatpush1.msra.mxu0 %v3660
    %3702 = vmatprep.subr.mxu0 0.0
    %3703 = vmatpush1.msra.mxu0 %v3659
    %3704 = vmatprep.subr.mxu0 0.0
    %3705 = vmatpush1.msra.mxu0 %v3658
    %3706 = vmatprep.subr.mxu0 0.0
    %3707 = vmatpush2.msra.mxu0 0.0
    %3708 = vmatprep.subr.mxu0 0.0
    %3709 = vmatpush2.msra.mxu0 0.0
    %3710 = vmatprep.subr.mxu0 0.0
    %3711 = vmatpush2.msra.mxu0 0.0
    %3712 = vmatprep.subr.mxu0 0.0
    %3713 = vmatpush2.msra.mxu0 0.0
    %3714 = vmatprep.subr.mxu0 0.0
    %3715 = vmatpush2.msra.mxu0 0.0
    %3716 = vmatprep.subr.mxu0 0.0
    %3717 = vmatpush2.msra.mxu0 0.0
    %3718 = vmatprep.subr.mxu0 0.0
    %3719 = vmatpush2.msra.mxu0 0.0
    %3720 = vmatprep.subr.mxu0 0.0
    %3721 = vmatpush2.msra.mxu0 0.0
    %3722 = vmatprep.subr.mxu0 0.0
    %3723 = vmatpush2.msra.mxu0 0.0
    %3724 = vmatprep.subr.mxu0 0.0
    %3725 = vmatpush2.msra.mxu0 0.0
    %3726 = vmatprep.subr.mxu0 0.0
    %3727 = vmatpush2.msra.mxu0 0.0
    %3728 = vmatprep.subr.mxu0 0.0
    %3729 = vmatpush2.msra.mxu0 0.0
    %3730 = vmatprep.subr.mxu0 0.0
    %3731 = vmatpush2.msra.mxu0 0.0
    %3732 = vmatprep.subr.mxu0 0.0
    %3733 = vmatpush2.msra.mxu0 0.0
    %3734 = vmatprep.subr.mxu0 0.0
    %3735 = vmatpush2.msra.mxu0 0.0
    %3736 = vmatprep.subr.mxu0 0.0
    %3737 = vmatpush2.msra.mxu0 0.0
    %3738 = vmatprep.mubr.f32.mxu0 0.0
    %3739 = vmatmul.mubr.f32.gmra.mxu0 %v3656
    %v3740 = vpop.f32.mrf.mxu0
    %v3741 = vadd.f32 0.0, %v3740
    %v3742 = vpop.f32.mrf.mxu0
    %3743 = vmatprep.mubr.f32.mxu0 0.0
    %3744 = vmatmul.mubr.f32.gmra.mxu0 %v3657
    %v3745 = vpop.f32.mrf.mxu0
    %v3746 = vadd.f32 0.0, %v3745
    %v3747 = vpop.f32.mrf.mxu0
    %3748 = vdwg.mxu0
    %v3749 = vmul.f32 %v3741, 0.17677669
    %v3750 = vmul.f32 %v3746, 0.17677669
    %3751 = vst [vmem:[%s12] sm:$0xff] %v3749
    %3752 = vst [vmem:[%s12 + $0x8] sm:$0xff] %v3750
    // Predicated region
    $region74: #{t5_forward.3} parent=1 // pred_check
      _
    $region75: #{t5_forward.3} parent=1 // pred_check_branch
      %3754 = sbr.rel (0) target = $region77
    $region76: #{t5_forward.3} parent=1 // pred_region
      _
    $region77: #{t5_forward.3} parent=1 // pred_fallthru
      _
    // Predicated region
    $region78: #{t5_forward.3} parent=1 // pred_check
      _
    $region79: #{t5_forward.3} parent=1 // pred_check_branch
      %3756 = sbr.rel (0) target = $region81
    $region80: #{t5_forward.3} parent=1 // pred_region
      _
    $region81: #{t5_forward.3} parent=1 // pred_fallthru
      _
    %3757 = vsyncpa [#allocation3], 1
    %3758 = vsyncpa [#allocation5], 1
    %3759 = vsyncpa [#allocation8], 1
    %3760 = vsyncpa [#allocation11], 1

</llo_original>
